<compile_context>
chip_gen: v5e
topology: v5e:2x2
jax: 0.10.0
libtpu: 0.0.40
codegen_flags: <defaults>
</compile_context>

<pallas_src>
import jax
import jax.numpy as jnp
from jax.experimental import pallas as pl
from jax.experimental.pallas import tpu as pltpu

IN_FEATURES = 28 * 28   # 784
K_PAD = 896             # 784 rounded up to 7 * 128
H1 = 1024
H2 = 256
OUT_PAD = 128           # lane-dense output width (num_classes padded up)


def mlp_kernel(x_ref, w1_ref, b1_ref, w2_ref, b2_ref, w3_ref, b3_ref, o_ref):
    # x: (TB, 896) bf16, w1: (896, 1024) bf16, w2: (1024, 256) bf16,
    # w3: (256, 128) bf16, biases: (1, N) f32.
    # Matmuls accumulate in f32 on the MXU; bias add + relu stay in f32 (VPU).
    x = x_ref[...]
    h1 = jnp.maximum(
        jnp.dot(x, w1_ref[...], preferred_element_type=jnp.float32) + b1_ref[...],
        0.0,
    )
    h2 = jnp.maximum(
        jnp.dot(h1.astype(w2_ref.dtype), w2_ref[...],
                preferred_element_type=jnp.float32) + b2_ref[...],
        0.0,
    )
    out = jnp.maximum(
        jnp.dot(h2.astype(w3_ref.dtype), w3_ref[...],
                preferred_element_type=jnp.float32) + b3_ref[...],
        0.0,
    )
    o_ref[...] = out.astype(o_ref.dtype)


def model_3_1_forward(x_nchw, params, *, tile_b=128):
    """x_nchw: (B, 1, 28, 28) float32 -> (B, num_classes) float32."""
    w1, b1, w2, b2, w3, b3 = params
    B = x_nchw.shape[0]
    num_classes = w3.shape[1]

    x = x_nchw.reshape(B, -1).astype(jnp.float32)   # nn.Flatten(start_dim=1)
    assert x.shape[1] == IN_FEATURES
    assert w1.shape == (IN_FEATURES, H1)
    assert w2.shape == (H1, H2)
    assert w3.shape[0] == H2 and num_classes <= OUT_PAD

    tb = tile_b
    Bp = pl.cdiv(B, tb) * tb                         # pad batch to a tile multiple

    # --- pad + cast operands (zeros in padded regions keep the math exact) ---
    xp = jnp.zeros((Bp, K_PAD), jnp.bfloat16)
    xp = xp.at[:B, :IN_FEATURES].set(x.astype(jnp.bfloat16))

    w1p = jnp.zeros((K_PAD, H1), jnp.bfloat16)
    w1p = w1p.at[:IN_FEATURES, :].set(w1.astype(jnp.bfloat16))
    w2p = w2.astype(jnp.bfloat16)
    w3p = jnp.zeros((H2, OUT_PAD), jnp.bfloat16)
    w3p = w3p.at[:, :num_classes].set(w3.astype(jnp.bfloat16))

    b1r = b1.reshape(1, H1).astype(jnp.float32)
    b2r = b2.reshape(1, H2).astype(jnp.float32)
    b3r = jnp.zeros((1, OUT_PAD), jnp.float32)
    b3r = b3r.at[:, :num_classes].set(b3.astype(jnp.float32))

    grid = (Bp // tb,)

    flops = 2 * Bp * (K_PAD * H1 + H1 * H2 + H2 * OUT_PAD)
    bytes_accessed = (
        xp.size * 2 + w1p.size * 2 + w2p.size * 2 + w3p.size * 2
        + b1r.size * 4 + b2r.size * 4 + b3r.size * 4
        + Bp * OUT_PAD * 4
    )

    out = pl.pallas_call(
        mlp_kernel,
        out_shape=jax.ShapeDtypeStruct((Bp, OUT_PAD), jnp.float32),
        grid_spec=pltpu.PrefetchScalarGridSpec(
            num_scalar_prefetch=0,
            grid=grid,
            in_specs=[
                pl.BlockSpec((tb, K_PAD), lambda i: (i, 0)),
                pl.BlockSpec((K_PAD, H1), lambda i: (0, 0)),
                pl.BlockSpec((1, H1), lambda i: (0, 0)),
                pl.BlockSpec((H1, H2), lambda i: (0, 0)),
                pl.BlockSpec((1, H2), lambda i: (0, 0)),
                pl.BlockSpec((H2, OUT_PAD), lambda i: (0, 0)),
                pl.BlockSpec((1, OUT_PAD), lambda i: (0, 0)),
            ],
            out_specs=pl.BlockSpec((tb, OUT_PAD), lambda i: (i, 0)),
        ),
        compiler_params=pltpu.CompilerParams(
            dimension_semantics=("parallel",),
        ),
        cost_estimate=pl.CostEstimate(
            flops=flops, transcendentals=0, bytes_accessed=bytes_accessed),
    )(xp, w1p, b1r, w2p, b2r, w3p, b3r)

    # drop padded batch rows and padded class columns
    return out[:B, :num_classes]


def init_params(key, num_classes):
    """Deterministic parameter init (shapes match the nn.Module __init__)."""
    dims = [(IN_FEATURES, H1), (H1, H2), (H2, num_classes)]
    params = []
    for fan_in, fan_out in dims:
        kw, kb, key = jax.random.split(key, 3)
        bound = 1.0 / jnp.sqrt(fan_in)  # torch.nn.Linear default init range
        w = jax.random.uniform(kw, (fan_in, fan_out), jnp.float32, -bound, bound)
        b = jax.random.uniform(kb, (fan_out,), jnp.float32, -bound, bound)
        params += [w, b]
    return tuple(params)


def reference_forward(x_nchw, params):
    """Pure-JAX reference with the same bf16-operand / f32-accum math."""
    w1, b1, w2, b2, w3, b3 = params
    x = x_nchw.reshape(x_nchw.shape[0], -1)
    h = jnp.maximum(
        jnp.dot(x.astype(jnp.bfloat16), w1.astype(jnp.bfloat16),
                preferred_element_type=jnp.float32) + b1, 0.0)
    h = jnp.maximum(
        jnp.dot(h.astype(jnp.bfloat16), w2.astype(jnp.bfloat16),
                preferred_element_type=jnp.float32) + b2, 0.0)
    return jnp.maximum(
        jnp.dot(h.astype(jnp.bfloat16), w3.astype(jnp.bfloat16),
                preferred_element_type=jnp.float32) + b3, 0.0)


if __name__ == "__main__":
    key = jax.random.PRNGKey(0)
    kx, kp = jax.random.split(key)

    B, num_classes = 8, 10
    x = jax.random.normal(kx, (B, 1, 28, 28), dtype=jnp.float32)  # NCHW like torch
    params = init_params(kp, num_classes)

    out = model_3_1_forward(x, params)
    out = jax.block_until_ready(out)

    ref = reference_forward(x, params)
    assert out.shape == (B, num_classes)
    assert jnp.allclose(out, ref, atol=1e-3, rtol=1e-3), "mismatch vs reference"

    print("KERNEL_OK")
</pallas_src>

<mosaic_0001>
module attributes {stable_mosaic.version = 11 : i64} {
  func.func @mlp_kernel(%arg0: i32, %arg1: memref<128x896xbf16, #tpu.memory_space<vmem>>, %arg2: memref<896x1024xbf16, #tpu.memory_space<vmem>>, %arg3: memref<1x1024xf32, #tpu.memory_space<vmem>>, %arg4: memref<1024x256xbf16, #tpu.memory_space<vmem>>, %arg5: memref<1x256xf32, #tpu.memory_space<vmem>>, %arg6: memref<256x128xbf16, #tpu.memory_space<vmem>>, %arg7: memref<1x128xf32, #tpu.memory_space<vmem>>, %arg8: memref<128x128xf32, #tpu.memory_space<vmem>>) attributes {dimension_semantics = [#tpu.dimension_semantics<parallel>], iteration_bounds = array<i64: 1>, scalar_prefetch = 0 : i64, scratch_operands = 0 : i64, tpu.core_type = #tpu.core_type<tc>, window_params = [{transform_indices = @transform_0, window_bounds = array<i64: 128, 896>}, {pipeline_mode = #tpu.pipeline_mode<synchronous>, transform_indices = @transform_1, window_bounds = array<i64: 896, 1024>}, {pipeline_mode = #tpu.pipeline_mode<synchronous>, transform_indices = @transform_2, window_bounds = array<i64: 1, 1024>}, {pipeline_mode = #tpu.pipeline_mode<synchronous>, transform_indices = @transform_3, window_bounds = array<i64: 1024, 256>}, {pipeline_mode = #tpu.pipeline_mode<synchronous>, transform_indices = @transform_4, window_bounds = array<i64: 1, 256>}, {pipeline_mode = #tpu.pipeline_mode<synchronous>, transform_indices = @transform_5, window_bounds = array<i64: 256, 128>}, {pipeline_mode = #tpu.pipeline_mode<synchronous>, transform_indices = @transform_6, window_bounds = array<i64: 1, 128>}, {transform_indices = @transform_7, window_bounds = array<i64: 128, 128>}]} {
    %c0 = arith.constant 0 : index
    %c0_0 = arith.constant 0 : index
    %0 = vector.load %arg1[%c0, %c0_0] : memref<128x896xbf16, #tpu.memory_space<vmem>>, vector<128x896xbf16>
    %c0_1 = arith.constant 0 : index
    %c0_2 = arith.constant 0 : index
    %1 = vector.load %arg2[%c0_1, %c0_2] : memref<896x1024xbf16, #tpu.memory_space<vmem>>, vector<896x1024xbf16>
    %cst = arith.constant dense<0.000000e+00> : vector<128x1024xf32>
    %2 = tpu.matmul %0, %1, %cst {dimension_numbers = #tpu.dot_dimension_numbers<[1], [0], [0], [1], [0, 0, 1, 1], [], []>} : vector<128x896xbf16>, vector<896x1024xbf16>, vector<128x1024xf32> -> vector<128x1024xf32>
    %c0_3 = arith.constant 0 : index
    %c0_4 = arith.constant 0 : index
    %3 = vector.load %arg3[%c0_3, %c0_4] : memref<1x1024xf32, #tpu.memory_space<vmem>>, vector<1x1024xf32>
    %4 = vector.broadcast %3 : vector<1x1024xf32> to vector<128x1024xf32>
    %5 = arith.addf %2, %4 : vector<128x1024xf32>
    %cst_5 = arith.constant 0.000000e+00 : f32
    %6 = vector.broadcast %cst_5 : f32 to vector<128x1024xf32>
    %7 = arith.maximumf %5, %6 : vector<128x1024xf32>
    %8 = arith.truncf %7 : vector<128x1024xf32> to vector<128x1024xbf16>
    %c0_6 = arith.constant 0 : index
    %c0_7 = arith.constant 0 : index
    %9 = vector.load %arg4[%c0_6, %c0_7] : memref<1024x256xbf16, #tpu.memory_space<vmem>>, vector<1024x256xbf16>
    %cst_8 = arith.constant dense<0.000000e+00> : vector<128x256xf32>
    %10 = tpu.matmul %8, %9, %cst_8 {dimension_numbers = #tpu.dot_dimension_numbers<[1], [0], [0], [1], [0, 0, 1, 1], [], []>} : vector<128x1024xbf16>, vector<1024x256xbf16>, vector<128x256xf32> -> vector<128x256xf32>
    %c0_9 = arith.constant 0 : index
    %c0_10 = arith.constant 0 : index
    %11 = vector.load %arg5[%c0_9, %c0_10] : memref<1x256xf32, #tpu.memory_space<vmem>>, vector<1x256xf32>
    %12 = vector.broadcast %11 : vector<1x256xf32> to vector<128x256xf32>
    %13 = arith.addf %10, %12 : vector<128x256xf32>
    %cst_11 = arith.constant 0.000000e+00 : f32
    %14 = vector.broadcast %cst_11 : f32 to vector<128x256xf32>
    %15 = arith.maximumf %13, %14 : vector<128x256xf32>
    %16 = arith.truncf %15 : vector<128x256xf32> to vector<128x256xbf16>
    %c0_12 = arith.constant 0 : index
    %c0_13 = arith.constant 0 : index
    %17 = vector.load %arg6[%c0_12, %c0_13] : memref<256x128xbf16, #tpu.memory_space<vmem>>, vector<256x128xbf16>
    %cst_14 = arith.constant dense<0.000000e+00> : vector<128x128xf32>
    %18 = tpu.matmul %16, %17, %cst_14 {dimension_numbers = #tpu.dot_dimension_numbers<[1], [0], [0], [1], [0, 0, 1, 1], [], []>} : vector<128x256xbf16>, vector<256x128xbf16>, vector<128x128xf32> -> vector<128x128xf32>
    %c0_15 = arith.constant 0 : index
    %c0_16 = arith.constant 0 : index
    %19 = vector.load %arg7[%c0_15, %c0_16] : memref<1x128xf32, #tpu.memory_space<vmem>>, vector<1x128xf32>
    %20 = vector.broadcast %19 : vector<1x128xf32> to vector<128x128xf32>
    %21 = arith.addf %18, %20 : vector<128x128xf32>
    %cst_17 = arith.constant 0.000000e+00 : f32
    %22 = vector.broadcast %cst_17 : f32 to vector<128x128xf32>
    %23 = arith.maximumf %21, %22 : vector<128x128xf32>
    %c0_18 = arith.constant 0 : index
    %c0_19 = arith.constant 0 : index
    %24 = vector.load %arg8[%c0_18, %c0_19] : memref<128x128xf32, #tpu.memory_space<vmem>>, vector<128x128xf32>
    tpu.vector_store %arg8[%c0_18, %c0_19], %23 {strides = array<i32>} : memref<128x128xf32, #tpu.memory_space<vmem>>, vector<128x128xf32>,
    return
  }
  func.func @transform_0(%arg0: i32) -> (i32, i32) {
    %c0_i32 = arith.constant 0 : i32
    %c0_i32_0 = arith.constant 0 : i32
    return %arg0, %c0_i32 : i32, i32
  }
  func.func @transform_1(%arg0: i32) -> (i32, i32) {
    %c0_i32 = arith.constant 0 : i32
    %c0_i32_0 = arith.constant 0 : i32
    %c0_i32_1 = arith.constant 0 : i32
    return %c0_i32, %c0_i32_0 : i32, i32
  }
  func.func @transform_2(%arg0: i32) -> (i32, i32) {
    %c0_i32 = arith.constant 0 : i32
    %c0_i32_0 = arith.constant 0 : i32
    %c0_i32_1 = arith.constant 0 : i32
    return %c0_i32, %c0_i32_0 : i32, i32
  }
  func.func @transform_3(%arg0: i32) -> (i32, i32) {
    %c0_i32 = arith.constant 0 : i32
    %c0_i32_0 = arith.constant 0 : i32
    %c0_i32_1 = arith.constant 0 : i32
    return %c0_i32, %c0_i32_0 : i32, i32
  }
  func.func @transform_4(%arg0: i32) -> (i32, i32) {
    %c0_i32 = arith.constant 0 : i32
    %c0_i32_0 = arith.constant 0 : i32
    %c0_i32_1 = arith.constant 0 : i32
    return %c0_i32, %c0_i32_0 : i32, i32
  }
  func.func @transform_5(%arg0: i32) -> (i32, i32) {
    %c0_i32 = arith.constant 0 : i32
    %c0_i32_0 = arith.constant 0 : i32
    %c0_i32_1 = arith.constant 0 : i32
    return %c0_i32, %c0_i32_0 : i32, i32
  }
  func.func @transform_6(%arg0: i32) -> (i32, i32) {
    %c0_i32 = arith.constant 0 : i32
    %c0_i32_0 = arith.constant 0 : i32
    %c0_i32_1 = arith.constant 0 : i32
    return %c0_i32, %c0_i32_0 : i32, i32
  }
  func.func @transform_7(%arg0: i32) -> (i32, i32) {
    %c0_i32 = arith.constant 0 : i32
    %c0_i32_0 = arith.constant 0 : i32
    return %arg0, %c0_i32 : i32, i32
  }
}

</mosaic_0001>

<llo_original>
// kernel: tpu_custom_call.1
$region0: #{tpu_custom_call.1}
  #allocation0 [shape = 'u32[]', space=smem, size = 0x4, offset = 0x4, fixed_abs, tag = 'smem constant byte address 0x4 - core index']
  #allocation1 [shape = 'u32[72,128]{1,0:T(1,128)}', space=vmem, size = 0x9000, scoped, tag = 'internal scratch']
  %s0 = inlined_call_operand.hbm [shape: bf16[128,896], index: 0, kind: input, shape index: {}]
  %s1 = inlined_call_operand.hbm [shape: bf16[896,1024], index: 1, kind: input, shape index: {}]
  %s2 = inlined_call_operand.hbm [shape: f32[1,1024], index: 2, kind: input, shape index: {}]
  %s3 = inlined_call_operand.hbm [shape: bf16[1024,256], index: 3, kind: input, shape index: {}]
  %s4 = inlined_call_operand.hbm [shape: f32[1,256], index: 4, kind: input, shape index: {}]
  %s5 = inlined_call_operand.hbm [shape: bf16[256,128], index: 5, kind: input, shape index: {}]
  %s6 = inlined_call_operand.hbm [shape: f32[1,128], index: 6, kind: input, shape index: {}]
  %s7 = inlined_call_operand.hbm [shape: f32[128,128], index: 7, kind: output, shape index: {}]
  %s8 = sld [smem:[#allocation0]]
  $region66: #{tpu_custom_call.1} parent=0
    _
  %s10 = ssub.s32 1, %s8
  %s11 = scalar_select 0, %s10, %s8
  $region1: #{tpu_custom_call.1} parent=0
    #allocation2 [shape = 'u8[229376]{0}', space=vmem, size = 0x38000, scoped, tag = 'input window, operand 0, single buffered']
    #allocation3 [shape = 's32[1]{0}', space=sflag, size = 0x4, scoped, tag = 'scoped memory for tpu_custom_call.1']
    #allocation4 [shape = 's32[1]{0}', space=sflag, size = 0x4, scoped, tag = 'scoped memory for tpu_custom_call.1']
    #allocation5 [shape = 'u8[1835008]{0}', space=vmem, size = 0x1c0000, scoped, tag = 'input window, operand 1, single buffered']
    #allocation6 [shape = 's32[1]{0}', space=sflag, size = 0x4, scoped, tag = 'scoped memory for tpu_custom_call.1']
    #allocation7 [shape = 'u8[4096]{0}', space=vmem, size = 0x1000, scoped, tag = 'input window, operand 2, single buffered']
    #allocation8 [shape = 'u8[524288]{0}', space=vmem, size = 0x80000, scoped, tag = 'input window, operand 3, single buffered']
    #allocation9 [shape = 's32[1]{0}', space=sflag, size = 0x4, scoped, tag = 'scoped memory for tpu_custom_call.1']
    #allocation10 [shape = 'u8[1024]{0}', space=vmem, size = 0x400, scoped, tag = 'input window, operand 4, single buffered']
    #allocation11 [shape = 'u8[65536]{0}', space=vmem, size = 0x10000, scoped, tag = 'input window, operand 5, single buffered']
    #allocation12 [shape = 's32[1]{0}', space=sflag, size = 0x4, scoped, tag = 'scoped memory for tpu_custom_call.1']
    #allocation13 [shape = 'u8[512]{0}', space=vmem, size = 0x400, scoped, tag = 'input window, operand 6, single buffered']
    #allocation14 [shape = 'u8[65536]{0}', space=vmem, size = 0x10000, scoped, tag = 'output window, operand 0, single buffered']
    %12 = vsyncpa [#allocation3], 0
    %13 = vsyncpa [#allocation6], 0
    %14 = vsyncpa [#allocation9], 0
    %15 = vsyncpa [#allocation12], 0
    %16 = vsyncpa [#allocation4], 0
    // Predicated region
    $region2: #{tpu_custom_call.1} parent=1 // pred_check
      _
    $region3: #{tpu_custom_call.1} parent=1 // pred_check_branch
      %18 = sbr.rel (0) target = $region5
    $region4: #{tpu_custom_call.1} parent=1 // pred_region
      %20 = vsyncadd [#allocation3], 0
      %s21 = sshll.u32 %s0, 4
      %s22 = int_to_ptr.hbm [resolvable:$true] %s21
      %s23 = sshll.u32 [#allocation2], 4
      %s24 = int_to_ptr.vmem [resolvable:$true] %s23
      %29 = dma.hbm_to_vmem [thread:$0]  %s22, 7168, %s24, [#allocation3], 448, 448, 28
    $region5: #{tpu_custom_call.1} parent=1 // pred_fallthru
      _
    // Predicated region
    $region6: #{tpu_custom_call.1} parent=1 // pred_check
      _
    $region7: #{tpu_custom_call.1} parent=1 // pred_check_branch
      %31 = sbr.rel (0) target = $region9
    $region8: #{tpu_custom_call.1} parent=1 // pred_region
      %33 = vsyncadd [#allocation6], 0
      %s34 = sshll.u32 %s1, 4
      %s35 = int_to_ptr.hbm [resolvable:$true] %s34
      %s36 = sshll.u32 [#allocation5], 4
      %s37 = int_to_ptr.vmem [resolvable:$true] %s36
      %42 = dma.hbm_to_vmem [thread:$0]  %s35, 57344, %s37, [#allocation6], 512, 512, 32
    $region9: #{tpu_custom_call.1} parent=1 // pred_fallthru
      _
    // Predicated region
    $region10: #{tpu_custom_call.1} parent=1 // pred_check
      _
    $region11: #{tpu_custom_call.1} parent=1 // pred_check_branch
      %44 = sbr.rel (0) target = $region13
    $region12: #{tpu_custom_call.1} parent=1 // pred_region
      %46 = vsyncadd [#allocation6], 0
      %s48 = sshll.u32 %s2, 4
      %s49 = int_to_ptr.hbm [resolvable:$true] %s48
      %s50 = sshll.u32 [#allocation7], 4
      %s51 = int_to_ptr.vmem [resolvable:$true] %s50
      %53 = dma.hbm_to_vmem [thread:$0]  %s49, 128, %s51, [#allocation6]
    $region13: #{tpu_custom_call.1} parent=1 // pred_fallthru
      _
    // Predicated region
    $region14: #{tpu_custom_call.1} parent=1 // pred_check
      _
    $region15: #{tpu_custom_call.1} parent=1 // pred_check_branch
      %55 = sbr.rel (0) target = $region17
    $region16: #{tpu_custom_call.1} parent=1 // pred_region
      %57 = vsyncadd [#allocation9], 0
      %s58 = sshll.u32 %s3, 4
      %s59 = int_to_ptr.hbm [resolvable:$true] %s58
      %s60 = sshll.u32 [#allocation8], 4
      %s61 = int_to_ptr.vmem [resolvable:$true] %s60
      %66 = dma.hbm_to_vmem [thread:$0]  %s59, 16384, %s61, [#allocation9], 128, 128, 8
    $region17: #{tpu_custom_call.1} parent=1 // pred_fallthru
      _
    // Predicated region
    $region18: #{tpu_custom_call.1} parent=1 // pred_check
      _
    $region19: #{tpu_custom_call.1} parent=1 // pred_check_branch
      %68 = sbr.rel (0) target = $region21
    $region20: #{tpu_custom_call.1} parent=1 // pred_region
      %70 = vsyncadd [#allocation9], 0
      %s72 = sshll.u32 %s4, 4
      %s73 = int_to_ptr.hbm [resolvable:$true] %s72
      %s74 = sshll.u32 [#allocation10], 4
      %s75 = int_to_ptr.vmem [resolvable:$true] %s74
      %77 = dma.hbm_to_vmem [thread:$0]  %s73, 32, %s75, [#allocation9]
    $region21: #{tpu_custom_call.1} parent=1 // pred_fallthru
      _
    // Predicated region
    $region22: #{tpu_custom_call.1} parent=1 // pred_check
      _
    $region23: #{tpu_custom_call.1} parent=1 // pred_check_branch
      %79 = sbr.rel (0) target = $region25
    $region24: #{tpu_custom_call.1} parent=1 // pred_region
      %81 = vsyncadd [#allocation12], 0
      %s82 = sshll.u32 %s5, 4
      %s83 = int_to_ptr.hbm [resolvable:$true] %s82
      %s84 = sshll.u32 [#allocation11], 4
      %s85 = int_to_ptr.vmem [resolvable:$true] %s84
      %90 = dma.hbm_to_vmem [thread:$0]  %s83, 2048, %s85, [#allocation12], 64, 64, 4
    $region25: #{tpu_custom_call.1} parent=1 // pred_fallthru
      _
    // Predicated region
    $region26: #{tpu_custom_call.1} parent=1 // pred_check
      _
    $region27: #{tpu_custom_call.1} parent=1 // pred_check_branch
      %92 = sbr.rel (0) target = $region29
    $region28: #{tpu_custom_call.1} parent=1 // pred_region
      %94 = vsyncadd [#allocation12], 0
      %s96 = sshll.u32 %s6, 4
      %s97 = int_to_ptr.hbm [resolvable:$true] %s96
      %s98 = sshll.u32 [#allocation13], 4
      %s99 = int_to_ptr.vmem [resolvable:$true] %s98
      %101 = dma.hbm_to_vmem [thread:$0]  %s97, 16, %s99, [#allocation12]
    $region29: #{tpu_custom_call.1} parent=1 // pred_fallthru
      _
    // Predicated region
    $region30: #{tpu_custom_call.1} parent=1 // pred_check
      _
    $region31: #{tpu_custom_call.1} parent=1 // pred_check_branch
      %103 = sbr.rel (0) target = $region33
    $region32: #{tpu_custom_call.1} parent=1 // pred_region
      %105 = dma.done [#allocation3], 7168
    $region33: #{tpu_custom_call.1} parent=1 // pred_fallthru
      _
    // Predicated region
    $region34: #{tpu_custom_call.1} parent=1 // pred_check
      _
    $region35: #{tpu_custom_call.1} parent=1 // pred_check_branch
      %107 = sbr.rel (0) target = $region37
    $region36: #{tpu_custom_call.1} parent=1 // pred_region
      %109 = dma.done [#allocation6], 57344
    $region37: #{tpu_custom_call.1} parent=1 // pred_fallthru
      _
    // Predicated region
    $region38: #{tpu_custom_call.1} parent=1 // pred_check
      _
    $region39: #{tpu_custom_call.1} parent=1 // pred_check_branch
      %111 = sbr.rel (0) target = $region41
    $region40: #{tpu_custom_call.1} parent=1 // pred_region
      %113 = dma.done [#allocation6], 128
    $region41: #{tpu_custom_call.1} parent=1 // pred_fallthru
      _
    // Predicated region
    $region42: #{tpu_custom_call.1} parent=1 // pred_check
      _
    $region43: #{tpu_custom_call.1} parent=1 // pred_check_branch
      %115 = sbr.rel (0) target = $region45
    $region44: #{tpu_custom_call.1} parent=1 // pred_region
      %117 = dma.done [#allocation9], 16384
    $region45: #{tpu_custom_call.1} parent=1 // pred_fallthru
      _
    // Predicated region
    $region46: #{tpu_custom_call.1} parent=1 // pred_check
      _
    $region47: #{tpu_custom_call.1} parent=1 // pred_check_branch
      %119 = sbr.rel (0) target = $region49
    $region48: #{tpu_custom_call.1} parent=1 // pred_region
      %121 = dma.done [#allocation9], 32
    $region49: #{tpu_custom_call.1} parent=1 // pred_fallthru
      _
    // Predicated region
    $region50: #{tpu_custom_call.1} parent=1 // pred_check
      _
    $region51: #{tpu_custom_call.1} parent=1 // pred_check_branch
      %123 = sbr.rel (0) target = $region53
    $region52: #{tpu_custom_call.1} parent=1 // pred_region
      %125 = dma.done [#allocation12], 2048
    $region53: #{tpu_custom_call.1} parent=1 // pred_fallthru
      _
    // Predicated region
    $region54: #{tpu_custom_call.1} parent=1 // pred_check
      _
    $region55: #{tpu_custom_call.1} parent=1 // pred_check_branch
      %127 = sbr.rel (0) target = $region57
    $region56: #{tpu_custom_call.1} parent=1 // pred_region
      %129 = dma.done [#allocation12], 16
    $region57: #{tpu_custom_call.1} parent=1 // pred_fallthru
      _
    %v130 = vld [vmem:[#allocation2] sm:$0xff]
    %v131 = vld [vmem:[#allocation2 + $0x8] sm:$0xff]
    %v132 = vld [vmem:[#allocation2 + $0x10] sm:$0xff]
    %v133 = vld [vmem:[#allocation2 + $0x18] sm:$0xf]
    %v134 = vld [vmem:[#allocation2 + $0x1c] sm:$0xff]
    %v135 = vld [vmem:[#allocation2 + $0x24] sm:$0xff]
    %v136 = vld [vmem:[#allocation2 + $0x2c] sm:$0xff]
    %v137 = vld [vmem:[#allocation2 + $0x34] sm:$0xf]
    %v138 = vld [vmem:[#allocation2 + $0x38] sm:$0xff]
    %v139 = vld [vmem:[#allocation2 + $0x40] sm:$0xff]
    %v140 = vld [vmem:[#allocation2 + $0x48] sm:$0xff]
    %v141 = vld [vmem:[#allocation2 + $0x50] sm:$0xf]
    %v142 = vld [vmem:[#allocation2 + $0x54] sm:$0xff]
    %v143 = vld [vmem:[#allocation2 + $0x5c] sm:$0xff]
    %v144 = vld [vmem:[#allocation2 + $0x64] sm:$0xff]
    %v145 = vld [vmem:[#allocation2 + $0x6c] sm:$0xf]
    %v146 = vld [vmem:[#allocation2 + $0x70] sm:$0xff]
    %v147 = vld [vmem:[#allocation2 + $0x78] sm:$0xff]
    %v148 = vld [vmem:[#allocation2 + $0x80] sm:$0xff]
    %v149 = vld [vmem:[#allocation2 + $0x88] sm:$0xf]
    %v150 = vld [vmem:[#allocation2 + $0x8c] sm:$0xff]
    %v151 = vld [vmem:[#allocation2 + $0x94] sm:$0xff]
    %v152 = vld [vmem:[#allocation2 + $0x9c] sm:$0xff]
    %v153 = vld [vmem:[#allocation2 + $0xa4] sm:$0xf]
    %v154 = vld [vmem:[#allocation2 + $0xa8] sm:$0xff]
    %v155 = vld [vmem:[#allocation2 + $0xb0] sm:$0xff]
    %v156 = vld [vmem:[#allocation2 + $0xb8] sm:$0xff]
    %v157 = vld [vmem:[#allocation2 + $0xc0] sm:$0xf]
    %v158 = vld [vmem:[#allocation2 + $0xc4] sm:$0xff]
    %v159 = vld [vmem:[#allocation2 + $0xcc] sm:$0xff]
    %v160 = vld [vmem:[#allocation2 + $0xd4] sm:$0xff]
    %v161 = vld [vmem:[#allocation2 + $0xdc] sm:$0xf]
    %v162 = vld [vmem:[#allocation2 + $0xe0] sm:$0xff]
    %v163 = vld [vmem:[#allocation2 + $0xe8] sm:$0xff]
    %v164 = vld [vmem:[#allocation2 + $0xf0] sm:$0xff]
    %v165 = vld [vmem:[#allocation2 + $0xf8] sm:$0xf]
    %v166 = vld [vmem:[#allocation2 + $0xfc] sm:$0xff]
    %v167 = vld [vmem:[#allocation2 + $0x104] sm:$0xff]
    %v168 = vld [vmem:[#allocation2 + $0x10c] sm:$0xff]
    %v169 = vld [vmem:[#allocation2 + $0x114] sm:$0xf]
    %v170 = vld [vmem:[#allocation2 + $0x118] sm:$0xff]
    %v171 = vld [vmem:[#allocation2 + $0x120] sm:$0xff]
    %v172 = vld [vmem:[#allocation2 + $0x128] sm:$0xff]
    %v173 = vld [vmem:[#allocation2 + $0x130] sm:$0xf]
    %v174 = vld [vmem:[#allocation2 + $0x134] sm:$0xff]
    %v175 = vld [vmem:[#allocation2 + $0x13c] sm:$0xff]
    %v176 = vld [vmem:[#allocation2 + $0x144] sm:$0xff]
    %v177 = vld [vmem:[#allocation2 + $0x14c] sm:$0xf]
    %v178 = vld [vmem:[#allocation2 + $0x150] sm:$0xff]
    %v179 = vld [vmem:[#allocation2 + $0x158] sm:$0xff]
    %v180 = vld [vmem:[#allocation2 + $0x160] sm:$0xff]
    %v181 = vld [vmem:[#allocation2 + $0x168] sm:$0xf]
    %v182 = vld [vmem:[#allocation2 + $0x16c] sm:$0xff]
    %v183 = vld [vmem:[#allocation2 + $0x174] sm:$0xff]
    %v184 = vld [vmem:[#allocation2 + $0x17c] sm:$0xff]
    %v185 = vld [vmem:[#allocation2 + $0x184] sm:$0xf]
    %v186 = vld [vmem:[#allocation2 + $0x188] sm:$0xff]
    %v187 = vld [vmem:[#allocation2 + $0x190] sm:$0xff]
    %v188 = vld [vmem:[#allocation2 + $0x198] sm:$0xff]
    %v189 = vld [vmem:[#allocation2 + $0x1a0] sm:$0xf]
    %v190 = vld [vmem:[#allocation2 + $0x1a4] sm:$0xff]
    %v191 = vld [vmem:[#allocation2 + $0x1ac] sm:$0xff]
    %v192 = vld [vmem:[#allocation2 + $0x1b4] sm:$0xff]
    %v193 = vld [vmem:[#allocation2 + $0x1bc] sm:$0xf]
    %v194 = vld [vmem:[#allocation5] sm:$0xff]
    %v195 = vld [vmem:[#allocation5 + $0x8] sm:$0xff]
    %v196 = vld [vmem:[#allocation5 + $0x10] sm:$0xff]
    %v197 = vld [vmem:[#allocation5 + $0x18] sm:$0xff]
    %v198 = vld [vmem:[#allocation5 + $0x20] sm:$0xff]
    %v199 = vld [vmem:[#allocation5 + $0x28] sm:$0xff]
    %v200 = vld [vmem:[#allocation5 + $0x30] sm:$0xff]
    %v201 = vld [vmem:[#allocation5 + $0x38] sm:$0xff]
    %v202 = vld [vmem:[#allocation5 + $0x40] sm:$0xff]
    %v203 = vld [vmem:[#allocation5 + $0x48] sm:$0xff]
    %v204 = vld [vmem:[#allocation5 + $0x50] sm:$0xff]
    %v205 = vld [vmem:[#allocation5 + $0x58] sm:$0xff]
    %v206 = vld [vmem:[#allocation5 + $0x60] sm:$0xff]
    %v207 = vld [vmem:[#allocation5 + $0x68] sm:$0xff]
    %v208 = vld [vmem:[#allocation5 + $0x70] sm:$0xff]
    %v209 = vld [vmem:[#allocation5 + $0x78] sm:$0xff]
    %v210 = vld [vmem:[#allocation5 + $0x80] sm:$0xff]
    %v211 = vld [vmem:[#allocation5 + $0x88] sm:$0xff]
    %v212 = vld [vmem:[#allocation5 + $0x90] sm:$0xff]
    %v213 = vld [vmem:[#allocation5 + $0x98] sm:$0xff]
    %v214 = vld [vmem:[#allocation5 + $0xa0] sm:$0xff]
    %v215 = vld [vmem:[#allocation5 + $0xa8] sm:$0xff]
    %v216 = vld [vmem:[#allocation5 + $0xb0] sm:$0xff]
    %v217 = vld [vmem:[#allocation5 + $0xb8] sm:$0xff]
    %v218 = vld [vmem:[#allocation5 + $0xc0] sm:$0xff]
    %v219 = vld [vmem:[#allocation5 + $0xc8] sm:$0xff]
    %v220 = vld [vmem:[#allocation5 + $0xd0] sm:$0xff]
    %v221 = vld [vmem:[#allocation5 + $0xd8] sm:$0xff]
    %v222 = vld [vmem:[#allocation5 + $0xe0] sm:$0xff]
    %v223 = vld [vmem:[#allocation5 + $0xe8] sm:$0xff]
    %v224 = vld [vmem:[#allocation5 + $0xf0] sm:$0xff]
    %v225 = vld [vmem:[#allocation5 + $0xf8] sm:$0xff]
    %v226 = vld [vmem:[#allocation5 + $0x100] sm:$0xff]
    %v227 = vld [vmem:[#allocation5 + $0x108] sm:$0xff]
    %v228 = vld [vmem:[#allocation5 + $0x110] sm:$0xff]
    %v229 = vld [vmem:[#allocation5 + $0x118] sm:$0xff]
    %v230 = vld [vmem:[#allocation5 + $0x120] sm:$0xff]
    %v231 = vld [vmem:[#allocation5 + $0x128] sm:$0xff]
    %v232 = vld [vmem:[#allocation5 + $0x130] sm:$0xff]
    %v233 = vld [vmem:[#allocation5 + $0x138] sm:$0xff]
    %v234 = vld [vmem:[#allocation5 + $0x140] sm:$0xff]
    %v235 = vld [vmem:[#allocation5 + $0x148] sm:$0xff]
    %v236 = vld [vmem:[#allocation5 + $0x150] sm:$0xff]
    %v237 = vld [vmem:[#allocation5 + $0x158] sm:$0xff]
    %v238 = vld [vmem:[#allocation5 + $0x160] sm:$0xff]
    %v239 = vld [vmem:[#allocation5 + $0x168] sm:$0xff]
    %v240 = vld [vmem:[#allocation5 + $0x170] sm:$0xff]
    %v241 = vld [vmem:[#allocation5 + $0x178] sm:$0xff]
    %v242 = vld [vmem:[#allocation5 + $0x180] sm:$0xff]
    %v243 = vld [vmem:[#allocation5 + $0x188] sm:$0xff]
    %v244 = vld [vmem:[#allocation5 + $0x190] sm:$0xff]
    %v245 = vld [vmem:[#allocation5 + $0x198] sm:$0xff]
    %v246 = vld [vmem:[#allocation5 + $0x1a0] sm:$0xff]
    %v247 = vld [vmem:[#allocation5 + $0x1a8] sm:$0xff]
    %v248 = vld [vmem:[#allocation5 + $0x1b0] sm:$0xff]
    %v249 = vld [vmem:[#allocation5 + $0x1b8] sm:$0xff]
    %v250 = vld [vmem:[#allocation5 + $0x1c0] sm:$0xff]
    %v251 = vld [vmem:[#allocation5 + $0x1c8] sm:$0xff]
    %v252 = vld [vmem:[#allocation5 + $0x1d0] sm:$0xff]
    %v253 = vld [vmem:[#allocation5 + $0x1d8] sm:$0xff]
    %v254 = vld [vmem:[#allocation5 + $0x1e0] sm:$0xff]
    %v255 = vld [vmem:[#allocation5 + $0x1e8] sm:$0xff]
    %v256 = vld [vmem:[#allocation5 + $0x1f0] sm:$0xff]
    %v257 = vld [vmem:[#allocation5 + $0x1f8] sm:$0xff]
    %v258 = vld [vmem:[#allocation5 + $0x200] sm:$0xff]
    %v259 = vld [vmem:[#allocation5 + $0x208] sm:$0xff]
    %v260 = vld [vmem:[#allocation5 + $0x210] sm:$0xff]
    %v261 = vld [vmem:[#allocation5 + $0x218] sm:$0xff]
    %v262 = vld [vmem:[#allocation5 + $0x220] sm:$0xff]
    %v263 = vld [vmem:[#allocation5 + $0x228] sm:$0xff]
    %v264 = vld [vmem:[#allocation5 + $0x230] sm:$0xff]
    %v265 = vld [vmem:[#allocation5 + $0x238] sm:$0xff]
    %v266 = vld [vmem:[#allocation5 + $0x240] sm:$0xff]
    %v267 = vld [vmem:[#allocation5 + $0x248] sm:$0xff]
    %v268 = vld [vmem:[#allocation5 + $0x250] sm:$0xff]
    %v269 = vld [vmem:[#allocation5 + $0x258] sm:$0xff]
    %v270 = vld [vmem:[#allocation5 + $0x260] sm:$0xff]
    %v271 = vld [vmem:[#allocation5 + $0x268] sm:$0xff]
    %v272 = vld [vmem:[#allocation5 + $0x270] sm:$0xff]
    %v273 = vld [vmem:[#allocation5 + $0x278] sm:$0xff]
    %v274 = vld [vmem:[#allocation5 + $0x280] sm:$0xff]
    %v275 = vld [vmem:[#allocation5 + $0x288] sm:$0xff]
    %v276 = vld [vmem:[#allocation5 + $0x290] sm:$0xff]
    %v277 = vld [vmem:[#allocation5 + $0x298] sm:$0xff]
    %v278 = vld [vmem:[#allocation5 + $0x2a0] sm:$0xff]
    %v279 = vld [vmem:[#allocation5 + $0x2a8] sm:$0xff]
    %v280 = vld [vmem:[#allocation5 + $0x2b0] sm:$0xff]
    %v281 = vld [vmem:[#allocation5 + $0x2b8] sm:$0xff]
    %v282 = vld [vmem:[#allocation5 + $0x2c0] sm:$0xff]
    %v283 = vld [vmem:[#allocation5 + $0x2c8] sm:$0xff]
    %v284 = vld [vmem:[#allocation5 + $0x2d0] sm:$0xff]
    %v285 = vld [vmem:[#allocation5 + $0x2d8] sm:$0xff]
    %v286 = vld [vmem:[#allocation5 + $0x2e0] sm:$0xff]
    %v287 = vld [vmem:[#allocation5 + $0x2e8] sm:$0xff]
    %v288 = vld [vmem:[#allocation5 + $0x2f0] sm:$0xff]
    %v289 = vld [vmem:[#allocation5 + $0x2f8] sm:$0xff]
    %v290 = vld [vmem:[#allocation5 + $0x300] sm:$0xff]
    %v291 = vld [vmem:[#allocation5 + $0x308] sm:$0xff]
    %v292 = vld [vmem:[#allocation5 + $0x310] sm:$0xff]
    %v293 = vld [vmem:[#allocation5 + $0x318] sm:$0xff]
    %v294 = vld [vmem:[#allocation5 + $0x320] sm:$0xff]
    %v295 = vld [vmem:[#allocation5 + $0x328] sm:$0xff]
    %v296 = vld [vmem:[#allocation5 + $0x330] sm:$0xff]
    %v297 = vld [vmem:[#allocation5 + $0x338] sm:$0xff]
    %v298 = vld [vmem:[#allocation5 + $0x340] sm:$0xff]
    %v299 = vld [vmem:[#allocation5 + $0x348] sm:$0xff]
    %v300 = vld [vmem:[#allocation5 + $0x350] sm:$0xff]
    %v301 = vld [vmem:[#allocation5 + $0x358] sm:$0xff]
    %v302 = vld [vmem:[#allocation5 + $0x360] sm:$0xff]
    %v303 = vld [vmem:[#allocation5 + $0x368] sm:$0xff]
    %v304 = vld [vmem:[#allocation5 + $0x370] sm:$0xff]
    %v305 = vld [vmem:[#allocation5 + $0x378] sm:$0xff]
    %v306 = vld [vmem:[#allocation5 + $0x380] sm:$0xff]
    %v307 = vld [vmem:[#allocation5 + $0x388] sm:$0xff]
    %v308 = vld [vmem:[#allocation5 + $0x390] sm:$0xff]
    %v309 = vld [vmem:[#allocation5 + $0x398] sm:$0xff]
    %v310 = vld [vmem:[#allocation5 + $0x3a0] sm:$0xff]
    %v311 = vld [vmem:[#allocation5 + $0x3a8] sm:$0xff]
    %v312 = vld [vmem:[#allocation5 + $0x3b0] sm:$0xff]
    %v313 = vld [vmem:[#allocation5 + $0x3b8] sm:$0xff]
    %v314 = vld [vmem:[#allocation5 + $0x3c0] sm:$0xff]
    %v315 = vld [vmem:[#allocation5 + $0x3c8] sm:$0xff]
    %v316 = vld [vmem:[#allocation5 + $0x3d0] sm:$0xff]
    %v317 = vld [vmem:[#allocation5 + $0x3d8] sm:$0xff]
    %v318 = vld [vmem:[#allocation5 + $0x3e0] sm:$0xff]
    %v319 = vld [vmem:[#allocation5 + $0x3e8] sm:$0xff]
    %v320 = vld [vmem:[#allocation5 + $0x3f0] sm:$0xff]
    %v321 = vld [vmem:[#allocation5 + $0x3f8] sm:$0xff]
    %v322 = vld [vmem:[#allocation5 + $0x400] sm:$0xff]
    %v323 = vld [vmem:[#allocation5 + $0x408] sm:$0xff]
    %v324 = vld [vmem:[#allocation5 + $0x410] sm:$0xff]
    %v325 = vld [vmem:[#allocation5 + $0x418] sm:$0xff]
    %v326 = vld [vmem:[#allocation5 + $0x420] sm:$0xff]
    %v327 = vld [vmem:[#allocation5 + $0x428] sm:$0xff]
    %v328 = vld [vmem:[#allocation5 + $0x430] sm:$0xff]
    %v329 = vld [vmem:[#allocation5 + $0x438] sm:$0xff]
    %v330 = vld [vmem:[#allocation5 + $0x440] sm:$0xff]
    %v331 = vld [vmem:[#allocation5 + $0x448] sm:$0xff]
    %v332 = vld [vmem:[#allocation5 + $0x450] sm:$0xff]
    %v333 = vld [vmem:[#allocation5 + $0x458] sm:$0xff]
    %v334 = vld [vmem:[#allocation5 + $0x460] sm:$0xff]
    %v335 = vld [vmem:[#allocation5 + $0x468] sm:$0xff]
    %v336 = vld [vmem:[#allocation5 + $0x470] sm:$0xff]
    %v337 = vld [vmem:[#allocation5 + $0x478] sm:$0xff]
    %v338 = vld [vmem:[#allocation5 + $0x480] sm:$0xff]
    %v339 = vld [vmem:[#allocation5 + $0x488] sm:$0xff]
    %v340 = vld [vmem:[#allocation5 + $0x490] sm:$0xff]
    %v341 = vld [vmem:[#allocation5 + $0x498] sm:$0xff]
    %v342 = vld [vmem:[#allocation5 + $0x4a0] sm:$0xff]
    %v343 = vld [vmem:[#allocation5 + $0x4a8] sm:$0xff]
    %v344 = vld [vmem:[#allocation5 + $0x4b0] sm:$0xff]
    %v345 = vld [vmem:[#allocation5 + $0x4b8] sm:$0xff]
    %v346 = vld [vmem:[#allocation5 + $0x4c0] sm:$0xff]
    %v347 = vld [vmem:[#allocation5 + $0x4c8] sm:$0xff]
    %v348 = vld [vmem:[#allocation5 + $0x4d0] sm:$0xff]
    %v349 = vld [vmem:[#allocation5 + $0x4d8] sm:$0xff]
    %v350 = vld [vmem:[#allocation5 + $0x4e0] sm:$0xff]
    %v351 = vld [vmem:[#allocation5 + $0x4e8] sm:$0xff]
    %v352 = vld [vmem:[#allocation5 + $0x4f0] sm:$0xff]
    %v353 = vld [vmem:[#allocation5 + $0x4f8] sm:$0xff]
    %v354 = vld [vmem:[#allocation5 + $0x500] sm:$0xff]
    %v355 = vld [vmem:[#allocation5 + $0x508] sm:$0xff]
    %v356 = vld [vmem:[#allocation5 + $0x510] sm:$0xff]
    %v357 = vld [vmem:[#allocation5 + $0x518] sm:$0xff]
    %v358 = vld [vmem:[#allocation5 + $0x520] sm:$0xff]
    %v359 = vld [vmem:[#allocation5 + $0x528] sm:$0xff]
    %v360 = vld [vmem:[#allocation5 + $0x530] sm:$0xff]
    %v361 = vld [vmem:[#allocation5 + $0x538] sm:$0xff]
    %v362 = vld [vmem:[#allocation5 + $0x540] sm:$0xff]
    %v363 = vld [vmem:[#allocation5 + $0x548] sm:$0xff]
    %v364 = vld [vmem:[#allocation5 + $0x550] sm:$0xff]
    %v365 = vld [vmem:[#allocation5 + $0x558] sm:$0xff]
    %v366 = vld [vmem:[#allocation5 + $0x560] sm:$0xff]
    %v367 = vld [vmem:[#allocation5 + $0x568] sm:$0xff]
    %v368 = vld [vmem:[#allocation5 + $0x570] sm:$0xff]
    %v369 = vld [vmem:[#allocation5 + $0x578] sm:$0xff]
    %v370 = vld [vmem:[#allocation5 + $0x580] sm:$0xff]
    %v371 = vld [vmem:[#allocation5 + $0x588] sm:$0xff]
    %v372 = vld [vmem:[#allocation5 + $0x590] sm:$0xff]
    %v373 = vld [vmem:[#allocation5 + $0x598] sm:$0xff]
    %v374 = vld [vmem:[#allocation5 + $0x5a0] sm:$0xff]
    %v375 = vld [vmem:[#allocation5 + $0x5a8] sm:$0xff]
    %v376 = vld [vmem:[#allocation5 + $0x5b0] sm:$0xff]
    %v377 = vld [vmem:[#allocation5 + $0x5b8] sm:$0xff]
    %v378 = vld [vmem:[#allocation5 + $0x5c0] sm:$0xff]
    %v379 = vld [vmem:[#allocation5 + $0x5c8] sm:$0xff]
    %v380 = vld [vmem:[#allocation5 + $0x5d0] sm:$0xff]
    %v381 = vld [vmem:[#allocation5 + $0x5d8] sm:$0xff]
    %v382 = vld [vmem:[#allocation5 + $0x5e0] sm:$0xff]
    %v383 = vld [vmem:[#allocation5 + $0x5e8] sm:$0xff]
    %v384 = vld [vmem:[#allocation5 + $0x5f0] sm:$0xff]
    %v385 = vld [vmem:[#allocation5 + $0x5f8] sm:$0xff]
    %v386 = vld [vmem:[#allocation5 + $0x600] sm:$0xff]
    %v387 = vld [vmem:[#allocation5 + $0x608] sm:$0xff]
    %v388 = vld [vmem:[#allocation5 + $0x610] sm:$0xff]
    %v389 = vld [vmem:[#allocation5 + $0x618] sm:$0xff]
    %v390 = vld [vmem:[#allocation5 + $0x620] sm:$0xff]
    %v391 = vld [vmem:[#allocation5 + $0x628] sm:$0xff]
    %v392 = vld [vmem:[#allocation5 + $0x630] sm:$0xff]
    %v393 = vld [vmem:[#allocation5 + $0x638] sm:$0xff]
    %v394 = vld [vmem:[#allocation5 + $0x640] sm:$0xff]
    %v395 = vld [vmem:[#allocation5 + $0x648] sm:$0xff]
    %v396 = vld [vmem:[#allocation5 + $0x650] sm:$0xff]
    %v397 = vld [vmem:[#allocation5 + $0x658] sm:$0xff]
    %v398 = vld [vmem:[#allocation5 + $0x660] sm:$0xff]
    %v399 = vld [vmem:[#allocation5 + $0x668] sm:$0xff]
    %v400 = vld [vmem:[#allocation5 + $0x670] sm:$0xff]
    %v401 = vld [vmem:[#allocation5 + $0x678] sm:$0xff]
    %v402 = vld [vmem:[#allocation5 + $0x680] sm:$0xff]
    %v403 = vld [vmem:[#allocation5 + $0x688] sm:$0xff]
    %v404 = vld [vmem:[#allocation5 + $0x690] sm:$0xff]
    %v405 = vld [vmem:[#allocation5 + $0x698] sm:$0xff]
    %v406 = vld [vmem:[#allocation5 + $0x6a0] sm:$0xff]
    %v407 = vld [vmem:[#allocation5 + $0x6a8] sm:$0xff]
    %v408 = vld [vmem:[#allocation5 + $0x6b0] sm:$0xff]
    %v409 = vld [vmem:[#allocation5 + $0x6b8] sm:$0xff]
    %v410 = vld [vmem:[#allocation5 + $0x6c0] sm:$0xff]
    %v411 = vld [vmem:[#allocation5 + $0x6c8] sm:$0xff]
    %v412 = vld [vmem:[#allocation5 + $0x6d0] sm:$0xff]
    %v413 = vld [vmem:[#allocation5 + $0x6d8] sm:$0xff]
    %v414 = vld [vmem:[#allocation5 + $0x6e0] sm:$0xff]
    %v415 = vld [vmem:[#allocation5 + $0x6e8] sm:$0xff]
    %v416 = vld [vmem:[#allocation5 + $0x6f0] sm:$0xff]
    %v417 = vld [vmem:[#allocation5 + $0x6f8] sm:$0xff]
    %v418 = vld [vmem:[#allocation5 + $0x700] sm:$0xff]
    %v419 = vld [vmem:[#allocation5 + $0x708] sm:$0xff]
    %v420 = vld [vmem:[#allocation5 + $0x710] sm:$0xff]
    %v421 = vld [vmem:[#allocation5 + $0x718] sm:$0xff]
    %v422 = vld [vmem:[#allocation5 + $0x720] sm:$0xff]
    %v423 = vld [vmem:[#allocation5 + $0x728] sm:$0xff]
    %v424 = vld [vmem:[#allocation5 + $0x730] sm:$0xff]
    %v425 = vld [vmem:[#allocation5 + $0x738] sm:$0xff]
    %v426 = vld [vmem:[#allocation5 + $0x740] sm:$0xff]
    %v427 = vld [vmem:[#allocation5 + $0x748] sm:$0xff]
    %v428 = vld [vmem:[#allocation5 + $0x750] sm:$0xff]
    %v429 = vld [vmem:[#allocation5 + $0x758] sm:$0xff]
    %v430 = vld [vmem:[#allocation5 + $0x760] sm:$0xff]
    %v431 = vld [vmem:[#allocation5 + $0x768] sm:$0xff]
    %v432 = vld [vmem:[#allocation5 + $0x770] sm:$0xff]
    %v433 = vld [vmem:[#allocation5 + $0x778] sm:$0xff]
    %v434 = vld [vmem:[#allocation5 + $0x780] sm:$0xff]
    %v435 = vld [vmem:[#allocation5 + $0x788] sm:$0xff]
    %v436 = vld [vmem:[#allocation5 + $0x790] sm:$0xff]
    %v437 = vld [vmem:[#allocation5 + $0x798] sm:$0xff]
    %v438 = vld [vmem:[#allocation5 + $0x7a0] sm:$0xff]
    %v439 = vld [vmem:[#allocation5 + $0x7a8] sm:$0xff]
    %v440 = vld [vmem:[#allocation5 + $0x7b0] sm:$0xff]
    %v441 = vld [vmem:[#allocation5 + $0x7b8] sm:$0xff]
    %v442 = vld [vmem:[#allocation5 + $0x7c0] sm:$0xff]
    %v443 = vld [vmem:[#allocation5 + $0x7c8] sm:$0xff]
    %v444 = vld [vmem:[#allocation5 + $0x7d0] sm:$0xff]
    %v445 = vld [vmem:[#allocation5 + $0x7d8] sm:$0xff]
    %v446 = vld [vmem:[#allocation5 + $0x7e0] sm:$0xff]
    %v447 = vld [vmem:[#allocation5 + $0x7e8] sm:$0xff]
    %v448 = vld [vmem:[#allocation5 + $0x7f0] sm:$0xff]
    %v449 = vld [vmem:[#allocation5 + $0x7f8] sm:$0xff]
    %v450 = vld [vmem:[#allocation5 + $0x800] sm:$0xff]
    %v451 = vld [vmem:[#allocation5 + $0x808] sm:$0xff]
    %v452 = vld [vmem:[#allocation5 + $0x810] sm:$0xff]
    %v453 = vld [vmem:[#allocation5 + $0x818] sm:$0xff]
    %v454 = vld [vmem:[#allocation5 + $0x820] sm:$0xff]
    %v455 = vld [vmem:[#allocation5 + $0x828] sm:$0xff]
    %v456 = vld [vmem:[#allocation5 + $0x830] sm:$0xff]
    %v457 = vld [vmem:[#allocation5 + $0x838] sm:$0xff]
    %v458 = vld [vmem:[#allocation5 + $0x840] sm:$0xff]
    %v459 = vld [vmem:[#allocation5 + $0x848] sm:$0xff]
    %v460 = vld [vmem:[#allocation5 + $0x850] sm:$0xff]
    %v461 = vld [vmem:[#allocation5 + $0x858] sm:$0xff]
    %v462 = vld [vmem:[#allocation5 + $0x860] sm:$0xff]
    %v463 = vld [vmem:[#allocation5 + $0x868] sm:$0xff]
    %v464 = vld [vmem:[#allocation5 + $0x870] sm:$0xff]
    %v465 = vld [vmem:[#allocation5 + $0x878] sm:$0xff]
    %v466 = vld [vmem:[#allocation5 + $0x880] sm:$0xff]
    %v467 = vld [vmem:[#allocation5 + $0x888] sm:$0xff]
    %v468 = vld [vmem:[#allocation5 + $0x890] sm:$0xff]
    %v469 = vld [vmem:[#allocation5 + $0x898] sm:$0xff]
    %v470 = vld [vmem:[#allocation5 + $0x8a0] sm:$0xff]
    %v471 = vld [vmem:[#allocation5 + $0x8a8] sm:$0xff]
    %v472 = vld [vmem:[#allocation5 + $0x8b0] sm:$0xff]
    %v473 = vld [vmem:[#allocation5 + $0x8b8] sm:$0xff]
    %v474 = vld [vmem:[#allocation5 + $0x8c0] sm:$0xff]
    %v475 = vld [vmem:[#allocation5 + $0x8c8] sm:$0xff]
    %v476 = vld [vmem:[#allocation5 + $0x8d0] sm:$0xff]
    %v477 = vld [vmem:[#allocation5 + $0x8d8] sm:$0xff]
    %v478 = vld [vmem:[#allocation5 + $0x8e0] sm:$0xff]
    %v479 = vld [vmem:[#allocation5 + $0x8e8] sm:$0xff]
    %v480 = vld [vmem:[#allocation5 + $0x8f0] sm:$0xff]
    %v481 = vld [vmem:[#allocation5 + $0x8f8] sm:$0xff]
    %v482 = vld [vmem:[#allocation5 + $0x900] sm:$0xff]
    %v483 = vld [vmem:[#allocation5 + $0x908] sm:$0xff]
    %v484 = vld [vmem:[#allocation5 + $0x910] sm:$0xff]
    %v485 = vld [vmem:[#allocation5 + $0x918] sm:$0xff]
    %v486 = vld [vmem:[#allocation5 + $0x920] sm:$0xff]
    %v487 = vld [vmem:[#allocation5 + $0x928] sm:$0xff]
    %v488 = vld [vmem:[#allocation5 + $0x930] sm:$0xff]
    %v489 = vld [vmem:[#allocation5 + $0x938] sm:$0xff]
    %v490 = vld [vmem:[#allocation5 + $0x940] sm:$0xff]
    %v491 = vld [vmem:[#allocation5 + $0x948] sm:$0xff]
    %v492 = vld [vmem:[#allocation5 + $0x950] sm:$0xff]
    %v493 = vld [vmem:[#allocation5 + $0x958] sm:$0xff]
    %v494 = vld [vmem:[#allocation5 + $0x960] sm:$0xff]
    %v495 = vld [vmem:[#allocation5 + $0x968] sm:$0xff]
    %v496 = vld [vmem:[#allocation5 + $0x970] sm:$0xff]
    %v497 = vld [vmem:[#allocation5 + $0x978] sm:$0xff]
    %v498 = vld [vmem:[#allocation5 + $0x980] sm:$0xff]
    %v499 = vld [vmem:[#allocation5 + $0x988] sm:$0xff]
    %v500 = vld [vmem:[#allocation5 + $0x990] sm:$0xff]
    %v501 = vld [vmem:[#allocation5 + $0x998] sm:$0xff]
    %v502 = vld [vmem:[#allocation5 + $0x9a0] sm:$0xff]
    %v503 = vld [vmem:[#allocation5 + $0x9a8] sm:$0xff]
    %v504 = vld [vmem:[#allocation5 + $0x9b0] sm:$0xff]
    %v505 = vld [vmem:[#allocation5 + $0x9b8] sm:$0xff]
    %v506 = vld [vmem:[#allocation5 + $0x9c0] sm:$0xff]
    %v507 = vld [vmem:[#allocation5 + $0x9c8] sm:$0xff]
    %v508 = vld [vmem:[#allocation5 + $0x9d0] sm:$0xff]
    %v509 = vld [vmem:[#allocation5 + $0x9d8] sm:$0xff]
    %v510 = vld [vmem:[#allocation5 + $0x9e0] sm:$0xff]
    %v511 = vld [vmem:[#allocation5 + $0x9e8] sm:$0xff]
    %v512 = vld [vmem:[#allocation5 + $0x9f0] sm:$0xff]
    %v513 = vld [vmem:[#allocation5 + $0x9f8] sm:$0xff]
    %v514 = vld [vmem:[#allocation5 + $0xa00] sm:$0xff]
    %v515 = vld [vmem:[#allocation5 + $0xa08] sm:$0xff]
    %v516 = vld [vmem:[#allocation5 + $0xa10] sm:$0xff]
    %v517 = vld [vmem:[#allocation5 + $0xa18] sm:$0xff]
    %v518 = vld [vmem:[#allocation5 + $0xa20] sm:$0xff]
    %v519 = vld [vmem:[#allocation5 + $0xa28] sm:$0xff]
    %v520 = vld [vmem:[#allocation5 + $0xa30] sm:$0xff]
    %v521 = vld [vmem:[#allocation5 + $0xa38] sm:$0xff]
    %v522 = vld [vmem:[#allocation5 + $0xa40] sm:$0xff]
    %v523 = vld [vmem:[#allocation5 + $0xa48] sm:$0xff]
    %v524 = vld [vmem:[#allocation5 + $0xa50] sm:$0xff]
    %v525 = vld [vmem:[#allocation5 + $0xa58] sm:$0xff]
    %v526 = vld [vmem:[#allocation5 + $0xa60] sm:$0xff]
    %v527 = vld [vmem:[#allocation5 + $0xa68] sm:$0xff]
    %v528 = vld [vmem:[#allocation5 + $0xa70] sm:$0xff]
    %v529 = vld [vmem:[#allocation5 + $0xa78] sm:$0xff]
    %v530 = vld [vmem:[#allocation5 + $0xa80] sm:$0xff]
    %v531 = vld [vmem:[#allocation5 + $0xa88] sm:$0xff]
    %v532 = vld [vmem:[#allocation5 + $0xa90] sm:$0xff]
    %v533 = vld [vmem:[#allocation5 + $0xa98] sm:$0xff]
    %v534 = vld [vmem:[#allocation5 + $0xaa0] sm:$0xff]
    %v535 = vld [vmem:[#allocation5 + $0xaa8] sm:$0xff]
    %v536 = vld [vmem:[#allocation5 + $0xab0] sm:$0xff]
    %v537 = vld [vmem:[#allocation5 + $0xab8] sm:$0xff]
    %v538 = vld [vmem:[#allocation5 + $0xac0] sm:$0xff]
    %v539 = vld [vmem:[#allocation5 + $0xac8] sm:$0xff]
    %v540 = vld [vmem:[#allocation5 + $0xad0] sm:$0xff]
    %v541 = vld [vmem:[#allocation5 + $0xad8] sm:$0xff]
    %v542 = vld [vmem:[#allocation5 + $0xae0] sm:$0xff]
    %v543 = vld [vmem:[#allocation5 + $0xae8] sm:$0xff]
    %v544 = vld [vmem:[#allocation5 + $0xaf0] sm:$0xff]
    %v545 = vld [vmem:[#allocation5 + $0xaf8] sm:$0xff]
    %v546 = vld [vmem:[#allocation5 + $0xb00] sm:$0xff]
    %v547 = vld [vmem:[#allocation5 + $0xb08] sm:$0xff]
    %v548 = vld [vmem:[#allocation5 + $0xb10] sm:$0xff]
    %v549 = vld [vmem:[#allocation5 + $0xb18] sm:$0xff]
    %v550 = vld [vmem:[#allocation5 + $0xb20] sm:$0xff]
    %v551 = vld [vmem:[#allocation5 + $0xb28] sm:$0xff]
    %v552 = vld [vmem:[#allocation5 + $0xb30] sm:$0xff]
    %v553 = vld [vmem:[#allocation5 + $0xb38] sm:$0xff]
    %v554 = vld [vmem:[#allocation5 + $0xb40] sm:$0xff]
    %v555 = vld [vmem:[#allocation5 + $0xb48] sm:$0xff]
    %v556 = vld [vmem:[#allocation5 + $0xb50] sm:$0xff]
    %v557 = vld [vmem:[#allocation5 + $0xb58] sm:$0xff]
    %v558 = vld [vmem:[#allocation5 + $0xb60] sm:$0xff]
    %v559 = vld [vmem:[#allocation5 + $0xb68] sm:$0xff]
    %v560 = vld [vmem:[#allocation5 + $0xb70] sm:$0xff]
    %v561 = vld [vmem:[#allocation5 + $0xb78] sm:$0xff]
    %v562 = vld [vmem:[#allocation5 + $0xb80] sm:$0xff]
    %v563 = vld [vmem:[#allocation5 + $0xb88] sm:$0xff]
    %v564 = vld [vmem:[#allocation5 + $0xb90] sm:$0xff]
    %v565 = vld [vmem:[#allocation5 + $0xb98] sm:$0xff]
    %v566 = vld [vmem:[#allocation5 + $0xba0] sm:$0xff]
    %v567 = vld [vmem:[#allocation5 + $0xba8] sm:$0xff]
    %v568 = vld [vmem:[#allocation5 + $0xbb0] sm:$0xff]
    %v569 = vld [vmem:[#allocation5 + $0xbb8] sm:$0xff]
    %v570 = vld [vmem:[#allocation5 + $0xbc0] sm:$0xff]
    %v571 = vld [vmem:[#allocation5 + $0xbc8] sm:$0xff]
    %v572 = vld [vmem:[#allocation5 + $0xbd0] sm:$0xff]
    %v573 = vld [vmem:[#allocation5 + $0xbd8] sm:$0xff]
    %v574 = vld [vmem:[#allocation5 + $0xbe0] sm:$0xff]
    %v575 = vld [vmem:[#allocation5 + $0xbe8] sm:$0xff]
    %v576 = vld [vmem:[#allocation5 + $0xbf0] sm:$0xff]
    %v577 = vld [vmem:[#allocation5 + $0xbf8] sm:$0xff]
    %v578 = vld [vmem:[#allocation5 + $0xc00] sm:$0xff]
    %v579 = vld [vmem:[#allocation5 + $0xc08] sm:$0xff]
    %v580 = vld [vmem:[#allocation5 + $0xc10] sm:$0xff]
    %v581 = vld [vmem:[#allocation5 + $0xc18] sm:$0xff]
    %v582 = vld [vmem:[#allocation5 + $0xc20] sm:$0xff]
    %v583 = vld [vmem:[#allocation5 + $0xc28] sm:$0xff]
    %v584 = vld [vmem:[#allocation5 + $0xc30] sm:$0xff]
    %v585 = vld [vmem:[#allocation5 + $0xc38] sm:$0xff]
    %v586 = vld [vmem:[#allocation5 + $0xc40] sm:$0xff]
    %v587 = vld [vmem:[#allocation5 + $0xc48] sm:$0xff]
    %v588 = vld [vmem:[#allocation5 + $0xc50] sm:$0xff]
    %v589 = vld [vmem:[#allocation5 + $0xc58] sm:$0xff]
    %v590 = vld [vmem:[#allocation5 + $0xc60] sm:$0xff]
    %v591 = vld [vmem:[#allocation5 + $0xc68] sm:$0xff]
    %v592 = vld [vmem:[#allocation5 + $0xc70] sm:$0xff]
    %v593 = vld [vmem:[#allocation5 + $0xc78] sm:$0xff]
    %v594 = vld [vmem:[#allocation5 + $0xc80] sm:$0xff]
    %v595 = vld [vmem:[#allocation5 + $0xc88] sm:$0xff]
    %v596 = vld [vmem:[#allocation5 + $0xc90] sm:$0xff]
    %v597 = vld [vmem:[#allocation5 + $0xc98] sm:$0xff]
    %v598 = vld [vmem:[#allocation5 + $0xca0] sm:$0xff]
    %v599 = vld [vmem:[#allocation5 + $0xca8] sm:$0xff]
    %v600 = vld [vmem:[#allocation5 + $0xcb0] sm:$0xff]
    %v601 = vld [vmem:[#allocation5 + $0xcb8] sm:$0xff]
    %v602 = vld [vmem:[#allocation5 + $0xcc0] sm:$0xff]
    %v603 = vld [vmem:[#allocation5 + $0xcc8] sm:$0xff]
    %v604 = vld [vmem:[#allocation5 + $0xcd0] sm:$0xff]
    %v605 = vld [vmem:[#allocation5 + $0xcd8] sm:$0xff]
    %v606 = vld [vmem:[#allocation5 + $0xce0] sm:$0xff]
    %v607 = vld [vmem:[#allocation5 + $0xce8] sm:$0xff]
    %v608 = vld [vmem:[#allocation5 + $0xcf0] sm:$0xff]
    %v609 = vld [vmem:[#allocation5 + $0xcf8] sm:$0xff]
    %v610 = vld [vmem:[#allocation5 + $0xd00] sm:$0xff]
    %v611 = vld [vmem:[#allocation5 + $0xd08] sm:$0xff]
    %v612 = vld [vmem:[#allocation5 + $0xd10] sm:$0xff]
    %v613 = vld [vmem:[#allocation5 + $0xd18] sm:$0xff]
    %v614 = vld [vmem:[#allocation5 + $0xd20] sm:$0xff]
    %v615 = vld [vmem:[#allocation5 + $0xd28] sm:$0xff]
    %v616 = vld [vmem:[#allocation5 + $0xd30] sm:$0xff]
    %v617 = vld [vmem:[#allocation5 + $0xd38] sm:$0xff]
    %v618 = vld [vmem:[#allocation5 + $0xd40] sm:$0xff]
    %v619 = vld [vmem:[#allocation5 + $0xd48] sm:$0xff]
    %v620 = vld [vmem:[#allocation5 + $0xd50] sm:$0xff]
    %v621 = vld [vmem:[#allocation5 + $0xd58] sm:$0xff]
    %v622 = vld [vmem:[#allocation5 + $0xd60] sm:$0xff]
    %v623 = vld [vmem:[#allocation5 + $0xd68] sm:$0xff]
    %v624 = vld [vmem:[#allocation5 + $0xd70] sm:$0xff]
    %v625 = vld [vmem:[#allocation5 + $0xd78] sm:$0xff]
    %v626 = vld [vmem:[#allocation5 + $0xd80] sm:$0xff]
    %v627 = vld [vmem:[#allocation5 + $0xd88] sm:$0xff]
    %v628 = vld [vmem:[#allocation5 + $0xd90] sm:$0xff]
    %v629 = vld [vmem:[#allocation5 + $0xd98] sm:$0xff]
    %v630 = vld [vmem:[#allocation5 + $0xda0] sm:$0xff]
    %v631 = vld [vmem:[#allocation5 + $0xda8] sm:$0xff]
    %v632 = vld [vmem:[#allocation5 + $0xdb0] sm:$0xff]
    %v633 = vld [vmem:[#allocation5 + $0xdb8] sm:$0xff]
    %v634 = vld [vmem:[#allocation5 + $0xdc0] sm:$0xff]
    %v635 = vld [vmem:[#allocation5 + $0xdc8] sm:$0xff]
    %v636 = vld [vmem:[#allocation5 + $0xdd0] sm:$0xff]
    %v637 = vld [vmem:[#allocation5 + $0xdd8] sm:$0xff]
    %v638 = vld [vmem:[#allocation5 + $0xde0] sm:$0xff]
    %v639 = vld [vmem:[#allocation5 + $0xde8] sm:$0xff]
    %v640 = vld [vmem:[#allocation5 + $0xdf0] sm:$0xff]
    %v641 = vld [vmem:[#allocation5 + $0xdf8] sm:$0xff]
    %v642 = vld [vmem:[#allocation7] sm:$0xff]
    %v644 = vperm.slane %v642, 0
    %v645 = vperm.slane %v642, 1
    %v646 = vperm.slane %v642, 2
    %v647 = vperm.slane %v642, 3
    %v648 = vperm.slane %v642, 4
    %v649 = vperm.slane %v642, 5
    %v650 = vperm.slane %v642, 6
    %v651 = vperm.slane %v642, 7
    %v724 = vunpack.c.l.b16 %v130
    %v725 = vunpack.c.h.b16 %v130
    %v726 = vunpack.c.l.b16 %v131
    %v727 = vunpack.c.h.b16 %v131
    %v728 = vunpack.c.l.b16 %v132
    %v729 = vunpack.c.h.b16 %v132
    %v730 = vunpack.c.l.b16 %v133
    %v731 = vunpack.c.l.b16 %v134
    %v732 = vunpack.c.h.b16 %v134
    %v733 = vunpack.c.l.b16 %v135
    %v734 = vunpack.c.h.b16 %v135
    %v735 = vunpack.c.l.b16 %v136
    %v736 = vunpack.c.h.b16 %v136
    %v737 = vunpack.c.l.b16 %v137
    %v738 = vunpack.c.l.b16 %v138
    %v739 = vunpack.c.h.b16 %v138
    %v740 = vunpack.c.l.b16 %v139
    %v741 = vunpack.c.h.b16 %v139
    %v742 = vunpack.c.l.b16 %v140
    %v743 = vunpack.c.h.b16 %v140
    %v744 = vunpack.c.l.b16 %v141
    %v745 = vunpack.c.l.b16 %v142
    %v746 = vunpack.c.h.b16 %v142
    %v747 = vunpack.c.l.b16 %v143
    %v748 = vunpack.c.h.b16 %v143
    %v749 = vunpack.c.l.b16 %v144
    %v750 = vunpack.c.h.b16 %v144
    %v751 = vunpack.c.l.b16 %v145
    %v752 = vunpack.c.l.b16 %v146
    %v753 = vunpack.c.h.b16 %v146
    %v754 = vunpack.c.l.b16 %v147
    %v755 = vunpack.c.h.b16 %v147
    %v756 = vunpack.c.l.b16 %v148
    %v757 = vunpack.c.h.b16 %v148
    %v758 = vunpack.c.l.b16 %v149
    %v759 = vunpack.c.l.b16 %v150
    %v760 = vunpack.c.h.b16 %v150
    %v761 = vunpack.c.l.b16 %v151
    %v762 = vunpack.c.h.b16 %v151
    %v763 = vunpack.c.l.b16 %v152
    %v764 = vunpack.c.h.b16 %v152
    %v765 = vunpack.c.l.b16 %v153
    %v766 = vunpack.c.l.b16 %v154
    %v767 = vunpack.c.h.b16 %v154
    %v768 = vunpack.c.l.b16 %v155
    %v769 = vunpack.c.h.b16 %v155
    %v770 = vunpack.c.l.b16 %v156
    %v771 = vunpack.c.h.b16 %v156
    %v772 = vunpack.c.l.b16 %v157
    %v773 = vunpack.c.l.b16 %v158
    %v774 = vunpack.c.h.b16 %v158
    %v775 = vunpack.c.l.b16 %v159
    %v776 = vunpack.c.h.b16 %v159
    %v777 = vunpack.c.l.b16 %v160
    %v778 = vunpack.c.h.b16 %v160
    %v779 = vunpack.c.l.b16 %v161
    %v780 = vunpack.c.l.b16 %v162
    %v781 = vunpack.c.h.b16 %v162
    %v782 = vunpack.c.l.b16 %v163
    %v783 = vunpack.c.h.b16 %v163
    %v784 = vunpack.c.l.b16 %v164
    %v785 = vunpack.c.h.b16 %v164
    %v786 = vunpack.c.l.b16 %v165
    %v787 = vunpack.c.l.b16 %v166
    %v788 = vunpack.c.h.b16 %v166
    %v789 = vunpack.c.l.b16 %v167
    %v790 = vunpack.c.h.b16 %v167
    %v791 = vunpack.c.l.b16 %v168
    %v792 = vunpack.c.h.b16 %v168
    %v793 = vunpack.c.l.b16 %v169
    %v794 = vunpack.c.l.b16 %v170
    %v795 = vunpack.c.h.b16 %v170
    %v796 = vunpack.c.l.b16 %v171
    %v797 = vunpack.c.h.b16 %v171
    %v798 = vunpack.c.l.b16 %v172
    %v799 = vunpack.c.h.b16 %v172
    %v800 = vunpack.c.l.b16 %v173
    %v801 = vunpack.c.l.b16 %v174
    %v802 = vunpack.c.h.b16 %v174
    %v803 = vunpack.c.l.b16 %v175
    %v804 = vunpack.c.h.b16 %v175
    %v805 = vunpack.c.l.b16 %v176
    %v806 = vunpack.c.h.b16 %v176
    %v807 = vunpack.c.l.b16 %v177
    %v808 = vunpack.c.l.b16 %v178
    %v809 = vunpack.c.h.b16 %v178
    %v810 = vunpack.c.l.b16 %v179
    %v811 = vunpack.c.h.b16 %v179
    %v812 = vunpack.c.l.b16 %v180
    %v813 = vunpack.c.h.b16 %v180
    %v814 = vunpack.c.l.b16 %v181
    %v815 = vunpack.c.l.b16 %v182
    %v816 = vunpack.c.h.b16 %v182
    %v817 = vunpack.c.l.b16 %v183
    %v818 = vunpack.c.h.b16 %v183
    %v819 = vunpack.c.l.b16 %v184
    %v820 = vunpack.c.h.b16 %v184
    %v821 = vunpack.c.l.b16 %v185
    %v822 = vunpack.c.l.b16 %v186
    %v823 = vunpack.c.h.b16 %v186
    %v824 = vunpack.c.l.b16 %v187
    %v825 = vunpack.c.h.b16 %v187
    %v826 = vunpack.c.l.b16 %v188
    %v827 = vunpack.c.h.b16 %v188
    %v828 = vunpack.c.l.b16 %v189
    %v829 = vunpack.c.l.b16 %v190
    %v830 = vunpack.c.h.b16 %v190
    %v831 = vunpack.c.l.b16 %v191
    %v832 = vunpack.c.h.b16 %v191
    %v833 = vunpack.c.l.b16 %v192
    %v834 = vunpack.c.h.b16 %v192
    %v835 = vunpack.c.l.b16 %v193
    %v836 = vpack.c.b16 %v731, %v724
    %v837 = vpack.c.b16 %v732, %v725
    %v838 = vpack.c.b16 %v733, %v726
    %v839 = vpack.c.b16 %v734, %v727
    %v840 = vpack.c.b16 %v735, %v728
    %v841 = vpack.c.b16 %v736, %v729
    %v842 = vpack.c.b16 %v737, %v730
    %v843 = vpack.c.b16 %v745, %v738
    %v844 = vpack.c.b16 %v746, %v739
    %v845 = vpack.c.b16 %v747, %v740
    %v846 = vpack.c.b16 %v748, %v741
    %v847 = vpack.c.b16 %v749, %v742
    %v848 = vpack.c.b16 %v750, %v743
    %v849 = vpack.c.b16 %v751, %v744
    %v850 = vpack.c.b16 %v759, %v752
    %v851 = vpack.c.b16 %v760, %v753
    %v852 = vpack.c.b16 %v761, %v754
    %v853 = vpack.c.b16 %v762, %v755
    %v854 = vpack.c.b16 %v763, %v756
    %v855 = vpack.c.b16 %v764, %v757
    %v856 = vpack.c.b16 %v765, %v758
    %v857 = vpack.c.b16 %v773, %v766
    %v858 = vpack.c.b16 %v774, %v767
    %v859 = vpack.c.b16 %v775, %v768
    %v860 = vpack.c.b16 %v776, %v769
    %v861 = vpack.c.b16 %v777, %v770
    %v862 = vpack.c.b16 %v778, %v771
    %v863 = vpack.c.b16 %v779, %v772
    %v864 = vpack.c.b16 %v787, %v780
    %v865 = vpack.c.b16 %v788, %v781
    %v866 = vpack.c.b16 %v789, %v782
    %v867 = vpack.c.b16 %v790, %v783
    %v868 = vpack.c.b16 %v791, %v784
    %v869 = vpack.c.b16 %v792, %v785
    %v870 = vpack.c.b16 %v793, %v786
    %v871 = vpack.c.b16 %v801, %v794
    %v872 = vpack.c.b16 %v802, %v795
    %v873 = vpack.c.b16 %v803, %v796
    %v874 = vpack.c.b16 %v804, %v797
    %v875 = vpack.c.b16 %v805, %v798
    %v876 = vpack.c.b16 %v806, %v799
    %v877 = vpack.c.b16 %v807, %v800
    %v878 = vpack.c.b16 %v815, %v808
    %v879 = vpack.c.b16 %v816, %v809
    %v880 = vpack.c.b16 %v817, %v810
    %v881 = vpack.c.b16 %v818, %v811
    %v882 = vpack.c.b16 %v819, %v812
    %v883 = vpack.c.b16 %v820, %v813
    %v884 = vpack.c.b16 %v821, %v814
    %v885 = vpack.c.b16 %v829, %v822
    %v886 = vpack.c.b16 %v830, %v823
    %v887 = vpack.c.b16 %v831, %v824
    %v888 = vpack.c.b16 %v832, %v825
    %v889 = vpack.c.b16 %v833, %v826
    %v890 = vpack.c.b16 %v834, %v827
    %v891 = vpack.c.b16 %v835, %v828
    %v1396 = vunpack.c.l.b16 %v194
    %v1397 = vunpack.c.h.b16 %v194
    %v1398 = vunpack.c.l.b16 %v195
    %v1399 = vunpack.c.h.b16 %v195
    %v1400 = vunpack.c.l.b16 %v196
    %v1401 = vunpack.c.h.b16 %v196
    %v1402 = vunpack.c.l.b16 %v197
    %v1403 = vunpack.c.h.b16 %v197
    %v1404 = vunpack.c.l.b16 %v198
    %v1405 = vunpack.c.h.b16 %v198
    %v1406 = vunpack.c.l.b16 %v199
    %v1407 = vunpack.c.h.b16 %v199
    %v1408 = vunpack.c.l.b16 %v200
    %v1409 = vunpack.c.h.b16 %v200
    %v1410 = vunpack.c.l.b16 %v201
    %v1411 = vunpack.c.h.b16 %v201
    %v1412 = vunpack.c.l.b16 %v202
    %v1413 = vunpack.c.h.b16 %v202
    %v1414 = vunpack.c.l.b16 %v203
    %v1415 = vunpack.c.h.b16 %v203
    %v1416 = vunpack.c.l.b16 %v204
    %v1417 = vunpack.c.h.b16 %v204
    %v1418 = vunpack.c.l.b16 %v205
    %v1419 = vunpack.c.h.b16 %v205
    %v1420 = vunpack.c.l.b16 %v206
    %v1421 = vunpack.c.h.b16 %v206
    %v1422 = vunpack.c.l.b16 %v207
    %v1423 = vunpack.c.h.b16 %v207
    %v1424 = vunpack.c.l.b16 %v208
    %v1425 = vunpack.c.h.b16 %v208
    %v1426 = vunpack.c.l.b16 %v209
    %v1427 = vunpack.c.h.b16 %v209
    %v1428 = vunpack.c.l.b16 %v210
    %v1429 = vunpack.c.h.b16 %v210
    %v1430 = vunpack.c.l.b16 %v211
    %v1431 = vunpack.c.h.b16 %v211
    %v1432 = vunpack.c.l.b16 %v212
    %v1433 = vunpack.c.h.b16 %v212
    %v1434 = vunpack.c.l.b16 %v213
    %v1435 = vunpack.c.h.b16 %v213
    %v1436 = vunpack.c.l.b16 %v214
    %v1437 = vunpack.c.h.b16 %v214
    %v1438 = vunpack.c.l.b16 %v215
    %v1439 = vunpack.c.h.b16 %v215
    %v1440 = vunpack.c.l.b16 %v216
    %v1441 = vunpack.c.h.b16 %v216
    %v1442 = vunpack.c.l.b16 %v217
    %v1443 = vunpack.c.h.b16 %v217
    %v1444 = vunpack.c.l.b16 %v218
    %v1445 = vunpack.c.h.b16 %v218
    %v1446 = vunpack.c.l.b16 %v219
    %v1447 = vunpack.c.h.b16 %v219
    %v1448 = vunpack.c.l.b16 %v220
    %v1449 = vunpack.c.h.b16 %v220
    %v1450 = vunpack.c.l.b16 %v221
    %v1451 = vunpack.c.h.b16 %v221
    %v1452 = vunpack.c.l.b16 %v222
    %v1453 = vunpack.c.h.b16 %v222
    %v1454 = vunpack.c.l.b16 %v223
    %v1455 = vunpack.c.h.b16 %v223
    %v1456 = vunpack.c.l.b16 %v224
    %v1457 = vunpack.c.h.b16 %v224
    %v1458 = vunpack.c.l.b16 %v225
    %v1459 = vunpack.c.h.b16 %v225
    %v1460 = vunpack.c.l.b16 %v226
    %v1461 = vunpack.c.h.b16 %v226
    %v1462 = vunpack.c.l.b16 %v227
    %v1463 = vunpack.c.h.b16 %v227
    %v1464 = vunpack.c.l.b16 %v228
    %v1465 = vunpack.c.h.b16 %v228
    %v1466 = vunpack.c.l.b16 %v229
    %v1467 = vunpack.c.h.b16 %v229
    %v1468 = vunpack.c.l.b16 %v230
    %v1469 = vunpack.c.h.b16 %v230
    %v1470 = vunpack.c.l.b16 %v231
    %v1471 = vunpack.c.h.b16 %v231
    %v1472 = vunpack.c.l.b16 %v232
    %v1473 = vunpack.c.h.b16 %v232
    %v1474 = vunpack.c.l.b16 %v233
    %v1475 = vunpack.c.h.b16 %v233
    %v1476 = vunpack.c.l.b16 %v234
    %v1477 = vunpack.c.h.b16 %v234
    %v1478 = vunpack.c.l.b16 %v235
    %v1479 = vunpack.c.h.b16 %v235
    %v1480 = vunpack.c.l.b16 %v236
    %v1481 = vunpack.c.h.b16 %v236
    %v1482 = vunpack.c.l.b16 %v237
    %v1483 = vunpack.c.h.b16 %v237
    %v1484 = vunpack.c.l.b16 %v238
    %v1485 = vunpack.c.h.b16 %v238
    %v1486 = vunpack.c.l.b16 %v239
    %v1487 = vunpack.c.h.b16 %v239
    %v1488 = vunpack.c.l.b16 %v240
    %v1489 = vunpack.c.h.b16 %v240
    %v1490 = vunpack.c.l.b16 %v241
    %v1491 = vunpack.c.h.b16 %v241
    %v1492 = vunpack.c.l.b16 %v242
    %v1493 = vunpack.c.h.b16 %v242
    %v1494 = vunpack.c.l.b16 %v243
    %v1495 = vunpack.c.h.b16 %v243
    %v1496 = vunpack.c.l.b16 %v244
    %v1497 = vunpack.c.h.b16 %v244
    %v1498 = vunpack.c.l.b16 %v245
    %v1499 = vunpack.c.h.b16 %v245
    %v1500 = vunpack.c.l.b16 %v246
    %v1501 = vunpack.c.h.b16 %v246
    %v1502 = vunpack.c.l.b16 %v247
    %v1503 = vunpack.c.h.b16 %v247
    %v1504 = vunpack.c.l.b16 %v248
    %v1505 = vunpack.c.h.b16 %v248
    %v1506 = vunpack.c.l.b16 %v249
    %v1507 = vunpack.c.h.b16 %v249
    %v1508 = vunpack.c.l.b16 %v250
    %v1509 = vunpack.c.h.b16 %v250
    %v1510 = vunpack.c.l.b16 %v251
    %v1511 = vunpack.c.h.b16 %v251
    %v1512 = vunpack.c.l.b16 %v252
    %v1513 = vunpack.c.h.b16 %v252
    %v1514 = vunpack.c.l.b16 %v253
    %v1515 = vunpack.c.h.b16 %v253
    %v1516 = vunpack.c.l.b16 %v254
    %v1517 = vunpack.c.h.b16 %v254
    %v1518 = vunpack.c.l.b16 %v255
    %v1519 = vunpack.c.h.b16 %v255
    %v1520 = vunpack.c.l.b16 %v256
    %v1521 = vunpack.c.h.b16 %v256
    %v1522 = vunpack.c.l.b16 %v257
    %v1523 = vunpack.c.h.b16 %v257
    %v1524 = vunpack.c.l.b16 %v258
    %v1525 = vunpack.c.h.b16 %v258
    %v1526 = vunpack.c.l.b16 %v259
    %v1527 = vunpack.c.h.b16 %v259
    %v1528 = vunpack.c.l.b16 %v260
    %v1529 = vunpack.c.h.b16 %v260
    %v1530 = vunpack.c.l.b16 %v261
    %v1531 = vunpack.c.h.b16 %v261
    %v1532 = vunpack.c.l.b16 %v262
    %v1533 = vunpack.c.h.b16 %v262
    %v1534 = vunpack.c.l.b16 %v263
    %v1535 = vunpack.c.h.b16 %v263
    %v1536 = vunpack.c.l.b16 %v264
    %v1537 = vunpack.c.h.b16 %v264
    %v1538 = vunpack.c.l.b16 %v265
    %v1539 = vunpack.c.h.b16 %v265
    %v1540 = vunpack.c.l.b16 %v266
    %v1541 = vunpack.c.h.b16 %v266
    %v1542 = vunpack.c.l.b16 %v267
    %v1543 = vunpack.c.h.b16 %v267
    %v1544 = vunpack.c.l.b16 %v268
    %v1545 = vunpack.c.h.b16 %v268
    %v1546 = vunpack.c.l.b16 %v269
    %v1547 = vunpack.c.h.b16 %v269
    %v1548 = vunpack.c.l.b16 %v270
    %v1549 = vunpack.c.h.b16 %v270
    %v1550 = vunpack.c.l.b16 %v271
    %v1551 = vunpack.c.h.b16 %v271
    %v1552 = vunpack.c.l.b16 %v272
    %v1553 = vunpack.c.h.b16 %v272
    %v1554 = vunpack.c.l.b16 %v273
    %v1555 = vunpack.c.h.b16 %v273
    %v1556 = vunpack.c.l.b16 %v274
    %v1557 = vunpack.c.h.b16 %v274
    %v1558 = vunpack.c.l.b16 %v275
    %v1559 = vunpack.c.h.b16 %v275
    %v1560 = vunpack.c.l.b16 %v276
    %v1561 = vunpack.c.h.b16 %v276
    %v1562 = vunpack.c.l.b16 %v277
    %v1563 = vunpack.c.h.b16 %v277
    %v1564 = vunpack.c.l.b16 %v278
    %v1565 = vunpack.c.h.b16 %v278
    %v1566 = vunpack.c.l.b16 %v279
    %v1567 = vunpack.c.h.b16 %v279
    %v1568 = vunpack.c.l.b16 %v280
    %v1569 = vunpack.c.h.b16 %v280
    %v1570 = vunpack.c.l.b16 %v281
    %v1571 = vunpack.c.h.b16 %v281
    %v1572 = vunpack.c.l.b16 %v282
    %v1573 = vunpack.c.h.b16 %v282
    %v1574 = vunpack.c.l.b16 %v283
    %v1575 = vunpack.c.h.b16 %v283
    %v1576 = vunpack.c.l.b16 %v284
    %v1577 = vunpack.c.h.b16 %v284
    %v1578 = vunpack.c.l.b16 %v285
    %v1579 = vunpack.c.h.b16 %v285
    %v1580 = vunpack.c.l.b16 %v286
    %v1581 = vunpack.c.h.b16 %v286
    %v1582 = vunpack.c.l.b16 %v287
    %v1583 = vunpack.c.h.b16 %v287
    %v1584 = vunpack.c.l.b16 %v288
    %v1585 = vunpack.c.h.b16 %v288
    %v1586 = vunpack.c.l.b16 %v289
    %v1587 = vunpack.c.h.b16 %v289
    %v1588 = vunpack.c.l.b16 %v290
    %v1589 = vunpack.c.h.b16 %v290
    %v1590 = vunpack.c.l.b16 %v291
    %v1591 = vunpack.c.h.b16 %v291
    %v1592 = vunpack.c.l.b16 %v292
    %v1593 = vunpack.c.h.b16 %v292
    %v1594 = vunpack.c.l.b16 %v293
    %v1595 = vunpack.c.h.b16 %v293
    %v1596 = vunpack.c.l.b16 %v294
    %v1597 = vunpack.c.h.b16 %v294
    %v1598 = vunpack.c.l.b16 %v295
    %v1599 = vunpack.c.h.b16 %v295
    %v1600 = vunpack.c.l.b16 %v296
    %v1601 = vunpack.c.h.b16 %v296
    %v1602 = vunpack.c.l.b16 %v297
    %v1603 = vunpack.c.h.b16 %v297
    %v1604 = vunpack.c.l.b16 %v298
    %v1605 = vunpack.c.h.b16 %v298
    %v1606 = vunpack.c.l.b16 %v299
    %v1607 = vunpack.c.h.b16 %v299
    %v1608 = vunpack.c.l.b16 %v300
    %v1609 = vunpack.c.h.b16 %v300
    %v1610 = vunpack.c.l.b16 %v301
    %v1611 = vunpack.c.h.b16 %v301
    %v1612 = vunpack.c.l.b16 %v302
    %v1613 = vunpack.c.h.b16 %v302
    %v1614 = vunpack.c.l.b16 %v303
    %v1615 = vunpack.c.h.b16 %v303
    %v1616 = vunpack.c.l.b16 %v304
    %v1617 = vunpack.c.h.b16 %v304
    %v1618 = vunpack.c.l.b16 %v305
    %v1619 = vunpack.c.h.b16 %v305
    %v1620 = vunpack.c.l.b16 %v306
    %v1621 = vunpack.c.h.b16 %v306
    %v1622 = vunpack.c.l.b16 %v307
    %v1623 = vunpack.c.h.b16 %v307
    %v1624 = vunpack.c.l.b16 %v308
    %v1625 = vunpack.c.h.b16 %v308
    %v1626 = vunpack.c.l.b16 %v309
    %v1627 = vunpack.c.h.b16 %v309
    %v1628 = vunpack.c.l.b16 %v310
    %v1629 = vunpack.c.h.b16 %v310
    %v1630 = vunpack.c.l.b16 %v311
    %v1631 = vunpack.c.h.b16 %v311
    %v1632 = vunpack.c.l.b16 %v312
    %v1633 = vunpack.c.h.b16 %v312
    %v1634 = vunpack.c.l.b16 %v313
    %v1635 = vunpack.c.h.b16 %v313
    %v1636 = vunpack.c.l.b16 %v314
    %v1637 = vunpack.c.h.b16 %v314
    %v1638 = vunpack.c.l.b16 %v315
    %v1639 = vunpack.c.h.b16 %v315
    %v1640 = vunpack.c.l.b16 %v316
    %v1641 = vunpack.c.h.b16 %v316
    %v1642 = vunpack.c.l.b16 %v317
    %v1643 = vunpack.c.h.b16 %v317
    %v1644 = vunpack.c.l.b16 %v318
    %v1645 = vunpack.c.h.b16 %v318
    %v1646 = vunpack.c.l.b16 %v319
    %v1647 = vunpack.c.h.b16 %v319
    %v1648 = vunpack.c.l.b16 %v320
    %v1649 = vunpack.c.h.b16 %v320
    %v1650 = vunpack.c.l.b16 %v321
    %v1651 = vunpack.c.h.b16 %v321
    %v1652 = vunpack.c.l.b16 %v322
    %v1653 = vunpack.c.h.b16 %v322
    %v1654 = vunpack.c.l.b16 %v323
    %v1655 = vunpack.c.h.b16 %v323
    %v1656 = vunpack.c.l.b16 %v324
    %v1657 = vunpack.c.h.b16 %v324
    %v1658 = vunpack.c.l.b16 %v325
    %v1659 = vunpack.c.h.b16 %v325
    %v1660 = vunpack.c.l.b16 %v326
    %v1661 = vunpack.c.h.b16 %v326
    %v1662 = vunpack.c.l.b16 %v327
    %v1663 = vunpack.c.h.b16 %v327
    %v1664 = vunpack.c.l.b16 %v328
    %v1665 = vunpack.c.h.b16 %v328
    %v1666 = vunpack.c.l.b16 %v329
    %v1667 = vunpack.c.h.b16 %v329
    %v1668 = vunpack.c.l.b16 %v330
    %v1669 = vunpack.c.h.b16 %v330
    %v1670 = vunpack.c.l.b16 %v331
    %v1671 = vunpack.c.h.b16 %v331
    %v1672 = vunpack.c.l.b16 %v332
    %v1673 = vunpack.c.h.b16 %v332
    %v1674 = vunpack.c.l.b16 %v333
    %v1675 = vunpack.c.h.b16 %v333
    %v1676 = vunpack.c.l.b16 %v334
    %v1677 = vunpack.c.h.b16 %v334
    %v1678 = vunpack.c.l.b16 %v335
    %v1679 = vunpack.c.h.b16 %v335
    %v1680 = vunpack.c.l.b16 %v336
    %v1681 = vunpack.c.h.b16 %v336
    %v1682 = vunpack.c.l.b16 %v337
    %v1683 = vunpack.c.h.b16 %v337
    %v1684 = vunpack.c.l.b16 %v338
    %v1685 = vunpack.c.h.b16 %v338
    %v1686 = vunpack.c.l.b16 %v339
    %v1687 = vunpack.c.h.b16 %v339
    %v1688 = vunpack.c.l.b16 %v340
    %v1689 = vunpack.c.h.b16 %v340
    %v1690 = vunpack.c.l.b16 %v341
    %v1691 = vunpack.c.h.b16 %v341
    %v1692 = vunpack.c.l.b16 %v342
    %v1693 = vunpack.c.h.b16 %v342
    %v1694 = vunpack.c.l.b16 %v343
    %v1695 = vunpack.c.h.b16 %v343
    %v1696 = vunpack.c.l.b16 %v344
    %v1697 = vunpack.c.h.b16 %v344
    %v1698 = vunpack.c.l.b16 %v345
    %v1699 = vunpack.c.h.b16 %v345
    %v1700 = vunpack.c.l.b16 %v346
    %v1701 = vunpack.c.h.b16 %v346
    %v1702 = vunpack.c.l.b16 %v347
    %v1703 = vunpack.c.h.b16 %v347
    %v1704 = vunpack.c.l.b16 %v348
    %v1705 = vunpack.c.h.b16 %v348
    %v1706 = vunpack.c.l.b16 %v349
    %v1707 = vunpack.c.h.b16 %v349
    %v1708 = vunpack.c.l.b16 %v350
    %v1709 = vunpack.c.h.b16 %v350
    %v1710 = vunpack.c.l.b16 %v351
    %v1711 = vunpack.c.h.b16 %v351
    %v1712 = vunpack.c.l.b16 %v352
    %v1713 = vunpack.c.h.b16 %v352
    %v1714 = vunpack.c.l.b16 %v353
    %v1715 = vunpack.c.h.b16 %v353
    %v1716 = vunpack.c.l.b16 %v354
    %v1717 = vunpack.c.h.b16 %v354
    %v1718 = vunpack.c.l.b16 %v355
    %v1719 = vunpack.c.h.b16 %v355
    %v1720 = vunpack.c.l.b16 %v356
    %v1721 = vunpack.c.h.b16 %v356
    %v1722 = vunpack.c.l.b16 %v357
    %v1723 = vunpack.c.h.b16 %v357
    %v1724 = vunpack.c.l.b16 %v358
    %v1725 = vunpack.c.h.b16 %v358
    %v1726 = vunpack.c.l.b16 %v359
    %v1727 = vunpack.c.h.b16 %v359
    %v1728 = vunpack.c.l.b16 %v360
    %v1729 = vunpack.c.h.b16 %v360
    %v1730 = vunpack.c.l.b16 %v361
    %v1731 = vunpack.c.h.b16 %v361
    %v1732 = vunpack.c.l.b16 %v362
    %v1733 = vunpack.c.h.b16 %v362
    %v1734 = vunpack.c.l.b16 %v363
    %v1735 = vunpack.c.h.b16 %v363
    %v1736 = vunpack.c.l.b16 %v364
    %v1737 = vunpack.c.h.b16 %v364
    %v1738 = vunpack.c.l.b16 %v365
    %v1739 = vunpack.c.h.b16 %v365
    %v1740 = vunpack.c.l.b16 %v366
    %v1741 = vunpack.c.h.b16 %v366
    %v1742 = vunpack.c.l.b16 %v367
    %v1743 = vunpack.c.h.b16 %v367
    %v1744 = vunpack.c.l.b16 %v368
    %v1745 = vunpack.c.h.b16 %v368
    %v1746 = vunpack.c.l.b16 %v369
    %v1747 = vunpack.c.h.b16 %v369
    %v1748 = vunpack.c.l.b16 %v370
    %v1749 = vunpack.c.h.b16 %v370
    %v1750 = vunpack.c.l.b16 %v371
    %v1751 = vunpack.c.h.b16 %v371
    %v1752 = vunpack.c.l.b16 %v372
    %v1753 = vunpack.c.h.b16 %v372
    %v1754 = vunpack.c.l.b16 %v373
    %v1755 = vunpack.c.h.b16 %v373
    %v1756 = vunpack.c.l.b16 %v374
    %v1757 = vunpack.c.h.b16 %v374
    %v1758 = vunpack.c.l.b16 %v375
    %v1759 = vunpack.c.h.b16 %v375
    %v1760 = vunpack.c.l.b16 %v376
    %v1761 = vunpack.c.h.b16 %v376
    %v1762 = vunpack.c.l.b16 %v377
    %v1763 = vunpack.c.h.b16 %v377
    %v1764 = vunpack.c.l.b16 %v378
    %v1765 = vunpack.c.h.b16 %v378
    %v1766 = vunpack.c.l.b16 %v379
    %v1767 = vunpack.c.h.b16 %v379
    %v1768 = vunpack.c.l.b16 %v380
    %v1769 = vunpack.c.h.b16 %v380
    %v1770 = vunpack.c.l.b16 %v381
    %v1771 = vunpack.c.h.b16 %v381
    %v1772 = vunpack.c.l.b16 %v382
    %v1773 = vunpack.c.h.b16 %v382
    %v1774 = vunpack.c.l.b16 %v383
    %v1775 = vunpack.c.h.b16 %v383
    %v1776 = vunpack.c.l.b16 %v384
    %v1777 = vunpack.c.h.b16 %v384
    %v1778 = vunpack.c.l.b16 %v385
    %v1779 = vunpack.c.h.b16 %v385
    %v1780 = vunpack.c.l.b16 %v386
    %v1781 = vunpack.c.h.b16 %v386
    %v1782 = vunpack.c.l.b16 %v387
    %v1783 = vunpack.c.h.b16 %v387
    %v1784 = vunpack.c.l.b16 %v388
    %v1785 = vunpack.c.h.b16 %v388
    %v1786 = vunpack.c.l.b16 %v389
    %v1787 = vunpack.c.h.b16 %v389
    %v1788 = vunpack.c.l.b16 %v390
    %v1789 = vunpack.c.h.b16 %v390
    %v1790 = vunpack.c.l.b16 %v391
    %v1791 = vunpack.c.h.b16 %v391
    %v1792 = vunpack.c.l.b16 %v392
    %v1793 = vunpack.c.h.b16 %v392
    %v1794 = vunpack.c.l.b16 %v393
    %v1795 = vunpack.c.h.b16 %v393
    %v1796 = vunpack.c.l.b16 %v394
    %v1797 = vunpack.c.h.b16 %v394
    %v1798 = vunpack.c.l.b16 %v395
    %v1799 = vunpack.c.h.b16 %v395
    %v1800 = vunpack.c.l.b16 %v396
    %v1801 = vunpack.c.h.b16 %v396
    %v1802 = vunpack.c.l.b16 %v397
    %v1803 = vunpack.c.h.b16 %v397
    %v1804 = vunpack.c.l.b16 %v398
    %v1805 = vunpack.c.h.b16 %v398
    %v1806 = vunpack.c.l.b16 %v399
    %v1807 = vunpack.c.h.b16 %v399
    %v1808 = vunpack.c.l.b16 %v400
    %v1809 = vunpack.c.h.b16 %v400
    %v1810 = vunpack.c.l.b16 %v401
    %v1811 = vunpack.c.h.b16 %v401
    %v1812 = vunpack.c.l.b16 %v402
    %v1813 = vunpack.c.h.b16 %v402
    %v1814 = vunpack.c.l.b16 %v403
    %v1815 = vunpack.c.h.b16 %v403
    %v1816 = vunpack.c.l.b16 %v404
    %v1817 = vunpack.c.h.b16 %v404
    %v1818 = vunpack.c.l.b16 %v405
    %v1819 = vunpack.c.h.b16 %v405
    %v1820 = vunpack.c.l.b16 %v406
    %v1821 = vunpack.c.h.b16 %v406
    %v1822 = vunpack.c.l.b16 %v407
    %v1823 = vunpack.c.h.b16 %v407
    %v1824 = vunpack.c.l.b16 %v408
    %v1825 = vunpack.c.h.b16 %v408
    %v1826 = vunpack.c.l.b16 %v409
    %v1827 = vunpack.c.h.b16 %v409
    %v1828 = vunpack.c.l.b16 %v410
    %v1829 = vunpack.c.h.b16 %v410
    %v1830 = vunpack.c.l.b16 %v411
    %v1831 = vunpack.c.h.b16 %v411
    %v1832 = vunpack.c.l.b16 %v412
    %v1833 = vunpack.c.h.b16 %v412
    %v1834 = vunpack.c.l.b16 %v413
    %v1835 = vunpack.c.h.b16 %v413
    %v1836 = vunpack.c.l.b16 %v414
    %v1837 = vunpack.c.h.b16 %v414
    %v1838 = vunpack.c.l.b16 %v415
    %v1839 = vunpack.c.h.b16 %v415
    %v1840 = vunpack.c.l.b16 %v416
    %v1841 = vunpack.c.h.b16 %v416
    %v1842 = vunpack.c.l.b16 %v417
    %v1843 = vunpack.c.h.b16 %v417
    %v1844 = vunpack.c.l.b16 %v418
    %v1845 = vunpack.c.h.b16 %v418
    %v1846 = vunpack.c.l.b16 %v419
    %v1847 = vunpack.c.h.b16 %v419
    %v1848 = vunpack.c.l.b16 %v420
    %v1849 = vunpack.c.h.b16 %v420
    %v1850 = vunpack.c.l.b16 %v421
    %v1851 = vunpack.c.h.b16 %v421
    %v1852 = vunpack.c.l.b16 %v422
    %v1853 = vunpack.c.h.b16 %v422
    %v1854 = vunpack.c.l.b16 %v423
    %v1855 = vunpack.c.h.b16 %v423
    %v1856 = vunpack.c.l.b16 %v424
    %v1857 = vunpack.c.h.b16 %v424
    %v1858 = vunpack.c.l.b16 %v425
    %v1859 = vunpack.c.h.b16 %v425
    %v1860 = vunpack.c.l.b16 %v426
    %v1861 = vunpack.c.h.b16 %v426
    %v1862 = vunpack.c.l.b16 %v427
    %v1863 = vunpack.c.h.b16 %v427
    %v1864 = vunpack.c.l.b16 %v428
    %v1865 = vunpack.c.h.b16 %v428
    %v1866 = vunpack.c.l.b16 %v429
    %v1867 = vunpack.c.h.b16 %v429
    %v1868 = vunpack.c.l.b16 %v430
    %v1869 = vunpack.c.h.b16 %v430
    %v1870 = vunpack.c.l.b16 %v431
    %v1871 = vunpack.c.h.b16 %v431
    %v1872 = vunpack.c.l.b16 %v432
    %v1873 = vunpack.c.h.b16 %v432
    %v1874 = vunpack.c.l.b16 %v433
    %v1875 = vunpack.c.h.b16 %v433
    %v1876 = vunpack.c.l.b16 %v434
    %v1877 = vunpack.c.h.b16 %v434
    %v1878 = vunpack.c.l.b16 %v435
    %v1879 = vunpack.c.h.b16 %v435
    %v1880 = vunpack.c.l.b16 %v436
    %v1881 = vunpack.c.h.b16 %v436
    %v1882 = vunpack.c.l.b16 %v437
    %v1883 = vunpack.c.h.b16 %v437
    %v1884 = vunpack.c.l.b16 %v438
    %v1885 = vunpack.c.h.b16 %v438
    %v1886 = vunpack.c.l.b16 %v439
    %v1887 = vunpack.c.h.b16 %v439
    %v1888 = vunpack.c.l.b16 %v440
    %v1889 = vunpack.c.h.b16 %v440
    %v1890 = vunpack.c.l.b16 %v441
    %v1891 = vunpack.c.h.b16 %v441
    %v1892 = vunpack.c.l.b16 %v442
    %v1893 = vunpack.c.h.b16 %v442
    %v1894 = vunpack.c.l.b16 %v443
    %v1895 = vunpack.c.h.b16 %v443
    %v1896 = vunpack.c.l.b16 %v444
    %v1897 = vunpack.c.h.b16 %v444
    %v1898 = vunpack.c.l.b16 %v445
    %v1899 = vunpack.c.h.b16 %v445
    %v1900 = vunpack.c.l.b16 %v446
    %v1901 = vunpack.c.h.b16 %v446
    %v1902 = vunpack.c.l.b16 %v447
    %v1903 = vunpack.c.h.b16 %v447
    %v1904 = vunpack.c.l.b16 %v448
    %v1905 = vunpack.c.h.b16 %v448
    %v1906 = vunpack.c.l.b16 %v449
    %v1907 = vunpack.c.h.b16 %v449
    %v1908 = vunpack.c.l.b16 %v450
    %v1909 = vunpack.c.h.b16 %v450
    %v1910 = vunpack.c.l.b16 %v451
    %v1911 = vunpack.c.h.b16 %v451
    %v1912 = vunpack.c.l.b16 %v452
    %v1913 = vunpack.c.h.b16 %v452
    %v1914 = vunpack.c.l.b16 %v453
    %v1915 = vunpack.c.h.b16 %v453
    %v1916 = vunpack.c.l.b16 %v454
    %v1917 = vunpack.c.h.b16 %v454
    %v1918 = vunpack.c.l.b16 %v455
    %v1919 = vunpack.c.h.b16 %v455
    %v1920 = vunpack.c.l.b16 %v456
    %v1921 = vunpack.c.h.b16 %v456
    %v1922 = vunpack.c.l.b16 %v457
    %v1923 = vunpack.c.h.b16 %v457
    %v1924 = vunpack.c.l.b16 %v458
    %v1925 = vunpack.c.h.b16 %v458
    %v1926 = vunpack.c.l.b16 %v459
    %v1927 = vunpack.c.h.b16 %v459
    %v1928 = vunpack.c.l.b16 %v460
    %v1929 = vunpack.c.h.b16 %v460
    %v1930 = vunpack.c.l.b16 %v461
    %v1931 = vunpack.c.h.b16 %v461
    %v1932 = vunpack.c.l.b16 %v462
    %v1933 = vunpack.c.h.b16 %v462
    %v1934 = vunpack.c.l.b16 %v463
    %v1935 = vunpack.c.h.b16 %v463
    %v1936 = vunpack.c.l.b16 %v464
    %v1937 = vunpack.c.h.b16 %v464
    %v1938 = vunpack.c.l.b16 %v465
    %v1939 = vunpack.c.h.b16 %v465
    %v1940 = vunpack.c.l.b16 %v466
    %v1941 = vunpack.c.h.b16 %v466
    %v1942 = vunpack.c.l.b16 %v467
    %v1943 = vunpack.c.h.b16 %v467
    %v1944 = vunpack.c.l.b16 %v468
    %v1945 = vunpack.c.h.b16 %v468
    %v1946 = vunpack.c.l.b16 %v469
    %v1947 = vunpack.c.h.b16 %v469
    %v1948 = vunpack.c.l.b16 %v470
    %v1949 = vunpack.c.h.b16 %v470
    %v1950 = vunpack.c.l.b16 %v471
    %v1951 = vunpack.c.h.b16 %v471
    %v1952 = vunpack.c.l.b16 %v472
    %v1953 = vunpack.c.h.b16 %v472
    %v1954 = vunpack.c.l.b16 %v473
    %v1955 = vunpack.c.h.b16 %v473
    %v1956 = vunpack.c.l.b16 %v474
    %v1957 = vunpack.c.h.b16 %v474
    %v1958 = vunpack.c.l.b16 %v475
    %v1959 = vunpack.c.h.b16 %v475
    %v1960 = vunpack.c.l.b16 %v476
    %v1961 = vunpack.c.h.b16 %v476
    %v1962 = vunpack.c.l.b16 %v477
    %v1963 = vunpack.c.h.b16 %v477
    %v1964 = vunpack.c.l.b16 %v478
    %v1965 = vunpack.c.h.b16 %v478
    %v1966 = vunpack.c.l.b16 %v479
    %v1967 = vunpack.c.h.b16 %v479
    %v1968 = vunpack.c.l.b16 %v480
    %v1969 = vunpack.c.h.b16 %v480
    %v1970 = vunpack.c.l.b16 %v481
    %v1971 = vunpack.c.h.b16 %v481
    %v1972 = vunpack.c.l.b16 %v482
    %v1973 = vunpack.c.h.b16 %v482
    %v1974 = vunpack.c.l.b16 %v483
    %v1975 = vunpack.c.h.b16 %v483
    %v1976 = vunpack.c.l.b16 %v484
    %v1977 = vunpack.c.h.b16 %v484
    %v1978 = vunpack.c.l.b16 %v485
    %v1979 = vunpack.c.h.b16 %v485
    %v1980 = vunpack.c.l.b16 %v486
    %v1981 = vunpack.c.h.b16 %v486
    %v1982 = vunpack.c.l.b16 %v487
    %v1983 = vunpack.c.h.b16 %v487
    %v1984 = vunpack.c.l.b16 %v488
    %v1985 = vunpack.c.h.b16 %v488
    %v1986 = vunpack.c.l.b16 %v489
    %v1987 = vunpack.c.h.b16 %v489
    %v1988 = vunpack.c.l.b16 %v490
    %v1989 = vunpack.c.h.b16 %v490
    %v1990 = vunpack.c.l.b16 %v491
    %v1991 = vunpack.c.h.b16 %v491
    %v1992 = vunpack.c.l.b16 %v492
    %v1993 = vunpack.c.h.b16 %v492
    %v1994 = vunpack.c.l.b16 %v493
    %v1995 = vunpack.c.h.b16 %v493
    %v1996 = vunpack.c.l.b16 %v494
    %v1997 = vunpack.c.h.b16 %v494
    %v1998 = vunpack.c.l.b16 %v495
    %v1999 = vunpack.c.h.b16 %v495
    %v2000 = vunpack.c.l.b16 %v496
    %v2001 = vunpack.c.h.b16 %v496
    %v2002 = vunpack.c.l.b16 %v497
    %v2003 = vunpack.c.h.b16 %v497
    %v2004 = vunpack.c.l.b16 %v498
    %v2005 = vunpack.c.h.b16 %v498
    %v2006 = vunpack.c.l.b16 %v499
    %v2007 = vunpack.c.h.b16 %v499
    %v2008 = vunpack.c.l.b16 %v500
    %v2009 = vunpack.c.h.b16 %v500
    %v2010 = vunpack.c.l.b16 %v501
    %v2011 = vunpack.c.h.b16 %v501
    %v2012 = vunpack.c.l.b16 %v502
    %v2013 = vunpack.c.h.b16 %v502
    %v2014 = vunpack.c.l.b16 %v503
    %v2015 = vunpack.c.h.b16 %v503
    %v2016 = vunpack.c.l.b16 %v504
    %v2017 = vunpack.c.h.b16 %v504
    %v2018 = vunpack.c.l.b16 %v505
    %v2019 = vunpack.c.h.b16 %v505
    %v2020 = vunpack.c.l.b16 %v506
    %v2021 = vunpack.c.h.b16 %v506
    %v2022 = vunpack.c.l.b16 %v507
    %v2023 = vunpack.c.h.b16 %v507
    %v2024 = vunpack.c.l.b16 %v508
    %v2025 = vunpack.c.h.b16 %v508
    %v2026 = vunpack.c.l.b16 %v509
    %v2027 = vunpack.c.h.b16 %v509
    %v2028 = vunpack.c.l.b16 %v510
    %v2029 = vunpack.c.h.b16 %v510
    %v2030 = vunpack.c.l.b16 %v511
    %v2031 = vunpack.c.h.b16 %v511
    %v2032 = vunpack.c.l.b16 %v512
    %v2033 = vunpack.c.h.b16 %v512
    %v2034 = vunpack.c.l.b16 %v513
    %v2035 = vunpack.c.h.b16 %v513
    %v2036 = vunpack.c.l.b16 %v514
    %v2037 = vunpack.c.h.b16 %v514
    %v2038 = vunpack.c.l.b16 %v515
    %v2039 = vunpack.c.h.b16 %v515
    %v2040 = vunpack.c.l.b16 %v516
    %v2041 = vunpack.c.h.b16 %v516
    %v2042 = vunpack.c.l.b16 %v517
    %v2043 = vunpack.c.h.b16 %v517
    %v2044 = vunpack.c.l.b16 %v518
    %v2045 = vunpack.c.h.b16 %v518
    %v2046 = vunpack.c.l.b16 %v519
    %v2047 = vunpack.c.h.b16 %v519
    %v2048 = vunpack.c.l.b16 %v520
    %v2049 = vunpack.c.h.b16 %v520
    %v2050 = vunpack.c.l.b16 %v521
    %v2051 = vunpack.c.h.b16 %v521
    %v2052 = vunpack.c.l.b16 %v522
    %v2053 = vunpack.c.h.b16 %v522
    %v2054 = vunpack.c.l.b16 %v523
    %v2055 = vunpack.c.h.b16 %v523
    %v2056 = vunpack.c.l.b16 %v524
    %v2057 = vunpack.c.h.b16 %v524
    %v2058 = vunpack.c.l.b16 %v525
    %v2059 = vunpack.c.h.b16 %v525
    %v2060 = vunpack.c.l.b16 %v526
    %v2061 = vunpack.c.h.b16 %v526
    %v2062 = vunpack.c.l.b16 %v527
    %v2063 = vunpack.c.h.b16 %v527
    %v2064 = vunpack.c.l.b16 %v528
    %v2065 = vunpack.c.h.b16 %v528
    %v2066 = vunpack.c.l.b16 %v529
    %v2067 = vunpack.c.h.b16 %v529
    %v2068 = vunpack.c.l.b16 %v530
    %v2069 = vunpack.c.h.b16 %v530
    %v2070 = vunpack.c.l.b16 %v531
    %v2071 = vunpack.c.h.b16 %v531
    %v2072 = vunpack.c.l.b16 %v532
    %v2073 = vunpack.c.h.b16 %v532
    %v2074 = vunpack.c.l.b16 %v533
    %v2075 = vunpack.c.h.b16 %v533
    %v2076 = vunpack.c.l.b16 %v534
    %v2077 = vunpack.c.h.b16 %v534
    %v2078 = vunpack.c.l.b16 %v535
    %v2079 = vunpack.c.h.b16 %v535
    %v2080 = vunpack.c.l.b16 %v536
    %v2081 = vunpack.c.h.b16 %v536
    %v2082 = vunpack.c.l.b16 %v537
    %v2083 = vunpack.c.h.b16 %v537
    %v2084 = vunpack.c.l.b16 %v538
    %v2085 = vunpack.c.h.b16 %v538
    %v2086 = vunpack.c.l.b16 %v539
    %v2087 = vunpack.c.h.b16 %v539
    %v2088 = vunpack.c.l.b16 %v540
    %v2089 = vunpack.c.h.b16 %v540
    %v2090 = vunpack.c.l.b16 %v541
    %v2091 = vunpack.c.h.b16 %v541
    %v2092 = vunpack.c.l.b16 %v542
    %v2093 = vunpack.c.h.b16 %v542
    %v2094 = vunpack.c.l.b16 %v543
    %v2095 = vunpack.c.h.b16 %v543
    %v2096 = vunpack.c.l.b16 %v544
    %v2097 = vunpack.c.h.b16 %v544
    %v2098 = vunpack.c.l.b16 %v545
    %v2099 = vunpack.c.h.b16 %v545
    %v2100 = vunpack.c.l.b16 %v546
    %v2101 = vunpack.c.h.b16 %v546
    %v2102 = vunpack.c.l.b16 %v547
    %v2103 = vunpack.c.h.b16 %v547
    %v2104 = vunpack.c.l.b16 %v548
    %v2105 = vunpack.c.h.b16 %v548
    %v2106 = vunpack.c.l.b16 %v549
    %v2107 = vunpack.c.h.b16 %v549
    %v2108 = vunpack.c.l.b16 %v550
    %v2109 = vunpack.c.h.b16 %v550
    %v2110 = vunpack.c.l.b16 %v551
    %v2111 = vunpack.c.h.b16 %v551
    %v2112 = vunpack.c.l.b16 %v552
    %v2113 = vunpack.c.h.b16 %v552
    %v2114 = vunpack.c.l.b16 %v553
    %v2115 = vunpack.c.h.b16 %v553
    %v2116 = vunpack.c.l.b16 %v554
    %v2117 = vunpack.c.h.b16 %v554
    %v2118 = vunpack.c.l.b16 %v555
    %v2119 = vunpack.c.h.b16 %v555
    %v2120 = vunpack.c.l.b16 %v556
    %v2121 = vunpack.c.h.b16 %v556
    %v2122 = vunpack.c.l.b16 %v557
    %v2123 = vunpack.c.h.b16 %v557
    %v2124 = vunpack.c.l.b16 %v558
    %v2125 = vunpack.c.h.b16 %v558
    %v2126 = vunpack.c.l.b16 %v559
    %v2127 = vunpack.c.h.b16 %v559
    %v2128 = vunpack.c.l.b16 %v560
    %v2129 = vunpack.c.h.b16 %v560
    %v2130 = vunpack.c.l.b16 %v561
    %v2131 = vunpack.c.h.b16 %v561
    %v2132 = vunpack.c.l.b16 %v562
    %v2133 = vunpack.c.h.b16 %v562
    %v2134 = vunpack.c.l.b16 %v563
    %v2135 = vunpack.c.h.b16 %v563
    %v2136 = vunpack.c.l.b16 %v564
    %v2137 = vunpack.c.h.b16 %v564
    %v2138 = vunpack.c.l.b16 %v565
    %v2139 = vunpack.c.h.b16 %v565
    %v2140 = vunpack.c.l.b16 %v566
    %v2141 = vunpack.c.h.b16 %v566
    %v2142 = vunpack.c.l.b16 %v567
    %v2143 = vunpack.c.h.b16 %v567
    %v2144 = vunpack.c.l.b16 %v568
    %v2145 = vunpack.c.h.b16 %v568
    %v2146 = vunpack.c.l.b16 %v569
    %v2147 = vunpack.c.h.b16 %v569
    %v2148 = vunpack.c.l.b16 %v570
    %v2149 = vunpack.c.h.b16 %v570
    %v2150 = vunpack.c.l.b16 %v571
    %v2151 = vunpack.c.h.b16 %v571
    %v2152 = vunpack.c.l.b16 %v572
    %v2153 = vunpack.c.h.b16 %v572
    %v2154 = vunpack.c.l.b16 %v573
    %v2155 = vunpack.c.h.b16 %v573
    %v2156 = vunpack.c.l.b16 %v574
    %v2157 = vunpack.c.h.b16 %v574
    %v2158 = vunpack.c.l.b16 %v575
    %v2159 = vunpack.c.h.b16 %v575
    %v2160 = vunpack.c.l.b16 %v576
    %v2161 = vunpack.c.h.b16 %v576
    %v2162 = vunpack.c.l.b16 %v577
    %v2163 = vunpack.c.h.b16 %v577
    %v2164 = vunpack.c.l.b16 %v578
    %v2165 = vunpack.c.h.b16 %v578
    %v2166 = vunpack.c.l.b16 %v579
    %v2167 = vunpack.c.h.b16 %v579
    %v2168 = vunpack.c.l.b16 %v580
    %v2169 = vunpack.c.h.b16 %v580
    %v2170 = vunpack.c.l.b16 %v581
    %v2171 = vunpack.c.h.b16 %v581
    %v2172 = vunpack.c.l.b16 %v582
    %v2173 = vunpack.c.h.b16 %v582
    %v2174 = vunpack.c.l.b16 %v583
    %v2175 = vunpack.c.h.b16 %v583
    %v2176 = vunpack.c.l.b16 %v584
    %v2177 = vunpack.c.h.b16 %v584
    %v2178 = vunpack.c.l.b16 %v585
    %v2179 = vunpack.c.h.b16 %v585
    %v2180 = vunpack.c.l.b16 %v586
    %v2181 = vunpack.c.h.b16 %v586
    %v2182 = vunpack.c.l.b16 %v587
    %v2183 = vunpack.c.h.b16 %v587
    %v2184 = vunpack.c.l.b16 %v588
    %v2185 = vunpack.c.h.b16 %v588
    %v2186 = vunpack.c.l.b16 %v589
    %v2187 = vunpack.c.h.b16 %v589
    %v2188 = vunpack.c.l.b16 %v590
    %v2189 = vunpack.c.h.b16 %v590
    %v2190 = vunpack.c.l.b16 %v591
    %v2191 = vunpack.c.h.b16 %v591
    %v2192 = vunpack.c.l.b16 %v592
    %v2193 = vunpack.c.h.b16 %v592
    %v2194 = vunpack.c.l.b16 %v593
    %v2195 = vunpack.c.h.b16 %v593
    %v2196 = vunpack.c.l.b16 %v594
    %v2197 = vunpack.c.h.b16 %v594
    %v2198 = vunpack.c.l.b16 %v595
    %v2199 = vunpack.c.h.b16 %v595
    %v2200 = vunpack.c.l.b16 %v596
    %v2201 = vunpack.c.h.b16 %v596
    %v2202 = vunpack.c.l.b16 %v597
    %v2203 = vunpack.c.h.b16 %v597
    %v2204 = vunpack.c.l.b16 %v598
    %v2205 = vunpack.c.h.b16 %v598
    %v2206 = vunpack.c.l.b16 %v599
    %v2207 = vunpack.c.h.b16 %v599
    %v2208 = vunpack.c.l.b16 %v600
    %v2209 = vunpack.c.h.b16 %v600
    %v2210 = vunpack.c.l.b16 %v601
    %v2211 = vunpack.c.h.b16 %v601
    %v2212 = vunpack.c.l.b16 %v602
    %v2213 = vunpack.c.h.b16 %v602
    %v2214 = vunpack.c.l.b16 %v603
    %v2215 = vunpack.c.h.b16 %v603
    %v2216 = vunpack.c.l.b16 %v604
    %v2217 = vunpack.c.h.b16 %v604
    %v2218 = vunpack.c.l.b16 %v605
    %v2219 = vunpack.c.h.b16 %v605
    %v2220 = vunpack.c.l.b16 %v606
    %v2221 = vunpack.c.h.b16 %v606
    %v2222 = vunpack.c.l.b16 %v607
    %v2223 = vunpack.c.h.b16 %v607
    %v2224 = vunpack.c.l.b16 %v608
    %v2225 = vunpack.c.h.b16 %v608
    %v2226 = vunpack.c.l.b16 %v609
    %v2227 = vunpack.c.h.b16 %v609
    %v2228 = vunpack.c.l.b16 %v610
    %v2229 = vunpack.c.h.b16 %v610
    %v2230 = vunpack.c.l.b16 %v611
    %v2231 = vunpack.c.h.b16 %v611
    %v2232 = vunpack.c.l.b16 %v612
    %v2233 = vunpack.c.h.b16 %v612
    %v2234 = vunpack.c.l.b16 %v613
    %v2235 = vunpack.c.h.b16 %v613
    %v2236 = vunpack.c.l.b16 %v614
    %v2237 = vunpack.c.h.b16 %v614
    %v2238 = vunpack.c.l.b16 %v615
    %v2239 = vunpack.c.h.b16 %v615
    %v2240 = vunpack.c.l.b16 %v616
    %v2241 = vunpack.c.h.b16 %v616
    %v2242 = vunpack.c.l.b16 %v617
    %v2243 = vunpack.c.h.b16 %v617
    %v2244 = vunpack.c.l.b16 %v618
    %v2245 = vunpack.c.h.b16 %v618
    %v2246 = vunpack.c.l.b16 %v619
    %v2247 = vunpack.c.h.b16 %v619
    %v2248 = vunpack.c.l.b16 %v620
    %v2249 = vunpack.c.h.b16 %v620
    %v2250 = vunpack.c.l.b16 %v621
    %v2251 = vunpack.c.h.b16 %v621
    %v2252 = vunpack.c.l.b16 %v622
    %v2253 = vunpack.c.h.b16 %v622
    %v2254 = vunpack.c.l.b16 %v623
    %v2255 = vunpack.c.h.b16 %v623
    %v2256 = vunpack.c.l.b16 %v624
    %v2257 = vunpack.c.h.b16 %v624
    %v2258 = vunpack.c.l.b16 %v625
    %v2259 = vunpack.c.h.b16 %v625
    %v2260 = vunpack.c.l.b16 %v626
    %v2261 = vunpack.c.h.b16 %v626
    %v2262 = vunpack.c.l.b16 %v627
    %v2263 = vunpack.c.h.b16 %v627
    %v2264 = vunpack.c.l.b16 %v628
    %v2265 = vunpack.c.h.b16 %v628
    %v2266 = vunpack.c.l.b16 %v629
    %v2267 = vunpack.c.h.b16 %v629
    %v2268 = vunpack.c.l.b16 %v630
    %v2269 = vunpack.c.h.b16 %v630
    %v2270 = vunpack.c.l.b16 %v631
    %v2271 = vunpack.c.h.b16 %v631
    %v2272 = vunpack.c.l.b16 %v632
    %v2273 = vunpack.c.h.b16 %v632
    %v2274 = vunpack.c.l.b16 %v633
    %v2275 = vunpack.c.h.b16 %v633
    %v2276 = vunpack.c.l.b16 %v634
    %v2277 = vunpack.c.h.b16 %v634
    %v2278 = vunpack.c.l.b16 %v635
    %v2279 = vunpack.c.h.b16 %v635
    %v2280 = vunpack.c.l.b16 %v636
    %v2281 = vunpack.c.h.b16 %v636
    %v2282 = vunpack.c.l.b16 %v637
    %v2283 = vunpack.c.h.b16 %v637
    %v2284 = vunpack.c.l.b16 %v638
    %v2285 = vunpack.c.h.b16 %v638
    %v2286 = vunpack.c.l.b16 %v639
    %v2287 = vunpack.c.h.b16 %v639
    %v2288 = vunpack.c.l.b16 %v640
    %v2289 = vunpack.c.h.b16 %v640
    %v2290 = vunpack.c.l.b16 %v641
    %v2291 = vunpack.c.h.b16 %v641
    %v2292 = vpack.c.b16 %v1404, %v1396
    %v2293 = vpack.c.b16 %v1405, %v1397
    %v2294 = vpack.c.b16 %v1406, %v1398
    %v2295 = vpack.c.b16 %v1407, %v1399
    %v2296 = vpack.c.b16 %v1408, %v1400
    %v2297 = vpack.c.b16 %v1409, %v1401
    %v2298 = vpack.c.b16 %v1410, %v1402
    %v2299 = vpack.c.b16 %v1411, %v1403
    %v2300 = vpack.c.b16 %v1420, %v1412
    %v2301 = vpack.c.b16 %v1421, %v1413
    %v2302 = vpack.c.b16 %v1422, %v1414
    %v2303 = vpack.c.b16 %v1423, %v1415
    %v2304 = vpack.c.b16 %v1424, %v1416
    %v2305 = vpack.c.b16 %v1425, %v1417
    %v2306 = vpack.c.b16 %v1426, %v1418
    %v2307 = vpack.c.b16 %v1427, %v1419
    %v2308 = vpack.c.b16 %v1436, %v1428
    %v2309 = vpack.c.b16 %v1437, %v1429
    %v2310 = vpack.c.b16 %v1438, %v1430
    %v2311 = vpack.c.b16 %v1439, %v1431
    %v2312 = vpack.c.b16 %v1440, %v1432
    %v2313 = vpack.c.b16 %v1441, %v1433
    %v2314 = vpack.c.b16 %v1442, %v1434
    %v2315 = vpack.c.b16 %v1443, %v1435
    %v2316 = vpack.c.b16 %v1452, %v1444
    %v2317 = vpack.c.b16 %v1453, %v1445
    %v2318 = vpack.c.b16 %v1454, %v1446
    %v2319 = vpack.c.b16 %v1455, %v1447
    %v2320 = vpack.c.b16 %v1456, %v1448
    %v2321 = vpack.c.b16 %v1457, %v1449
    %v2322 = vpack.c.b16 %v1458, %v1450
    %v2323 = vpack.c.b16 %v1459, %v1451
    %v2324 = vpack.c.b16 %v1468, %v1460
    %v2325 = vpack.c.b16 %v1469, %v1461
    %v2326 = vpack.c.b16 %v1470, %v1462
    %v2327 = vpack.c.b16 %v1471, %v1463
    %v2328 = vpack.c.b16 %v1472, %v1464
    %v2329 = vpack.c.b16 %v1473, %v1465
    %v2330 = vpack.c.b16 %v1474, %v1466
    %v2331 = vpack.c.b16 %v1475, %v1467
    %v2332 = vpack.c.b16 %v1484, %v1476
    %v2333 = vpack.c.b16 %v1485, %v1477
    %v2334 = vpack.c.b16 %v1486, %v1478
    %v2335 = vpack.c.b16 %v1487, %v1479
    %v2336 = vpack.c.b16 %v1488, %v1480
    %v2337 = vpack.c.b16 %v1489, %v1481
    %v2338 = vpack.c.b16 %v1490, %v1482
    %v2339 = vpack.c.b16 %v1491, %v1483
    %v2340 = vpack.c.b16 %v1500, %v1492
    %v2341 = vpack.c.b16 %v1501, %v1493
    %v2342 = vpack.c.b16 %v1502, %v1494
    %v2343 = vpack.c.b16 %v1503, %v1495
    %v2344 = vpack.c.b16 %v1504, %v1496
    %v2345 = vpack.c.b16 %v1505, %v1497
    %v2346 = vpack.c.b16 %v1506, %v1498
    %v2347 = vpack.c.b16 %v1507, %v1499
    %v2348 = vpack.c.b16 %v1516, %v1508
    %v2349 = vpack.c.b16 %v1517, %v1509
    %v2350 = vpack.c.b16 %v1518, %v1510
    %v2351 = vpack.c.b16 %v1519, %v1511
    %v2352 = vpack.c.b16 %v1520, %v1512
    %v2353 = vpack.c.b16 %v1521, %v1513
    %v2354 = vpack.c.b16 %v1522, %v1514
    %v2355 = vpack.c.b16 %v1523, %v1515
    %v2356 = vpack.c.b16 %v1532, %v1524
    %v2357 = vpack.c.b16 %v1533, %v1525
    %v2358 = vpack.c.b16 %v1534, %v1526
    %v2359 = vpack.c.b16 %v1535, %v1527
    %v2360 = vpack.c.b16 %v1536, %v1528
    %v2361 = vpack.c.b16 %v1537, %v1529
    %v2362 = vpack.c.b16 %v1538, %v1530
    %v2363 = vpack.c.b16 %v1539, %v1531
    %v2364 = vpack.c.b16 %v1548, %v1540
    %v2365 = vpack.c.b16 %v1549, %v1541
    %v2366 = vpack.c.b16 %v1550, %v1542
    %v2367 = vpack.c.b16 %v1551, %v1543
    %v2368 = vpack.c.b16 %v1552, %v1544
    %v2369 = vpack.c.b16 %v1553, %v1545
    %v2370 = vpack.c.b16 %v1554, %v1546
    %v2371 = vpack.c.b16 %v1555, %v1547
    %v2372 = vpack.c.b16 %v1564, %v1556
    %v2373 = vpack.c.b16 %v1565, %v1557
    %v2374 = vpack.c.b16 %v1566, %v1558
    %v2375 = vpack.c.b16 %v1567, %v1559
    %v2376 = vpack.c.b16 %v1568, %v1560
    %v2377 = vpack.c.b16 %v1569, %v1561
    %v2378 = vpack.c.b16 %v1570, %v1562
    %v2379 = vpack.c.b16 %v1571, %v1563
    %v2380 = vpack.c.b16 %v1580, %v1572
    %v2381 = vpack.c.b16 %v1581, %v1573
    %v2382 = vpack.c.b16 %v1582, %v1574
    %v2383 = vpack.c.b16 %v1583, %v1575
    %v2384 = vpack.c.b16 %v1584, %v1576
    %v2385 = vpack.c.b16 %v1585, %v1577
    %v2386 = vpack.c.b16 %v1586, %v1578
    %v2387 = vpack.c.b16 %v1587, %v1579
    %v2388 = vpack.c.b16 %v1596, %v1588
    %v2389 = vpack.c.b16 %v1597, %v1589
    %v2390 = vpack.c.b16 %v1598, %v1590
    %v2391 = vpack.c.b16 %v1599, %v1591
    %v2392 = vpack.c.b16 %v1600, %v1592
    %v2393 = vpack.c.b16 %v1601, %v1593
    %v2394 = vpack.c.b16 %v1602, %v1594
    %v2395 = vpack.c.b16 %v1603, %v1595
    %v2396 = vpack.c.b16 %v1612, %v1604
    %v2397 = vpack.c.b16 %v1613, %v1605
    %v2398 = vpack.c.b16 %v1614, %v1606
    %v2399 = vpack.c.b16 %v1615, %v1607
    %v2400 = vpack.c.b16 %v1616, %v1608
    %v2401 = vpack.c.b16 %v1617, %v1609
    %v2402 = vpack.c.b16 %v1618, %v1610
    %v2403 = vpack.c.b16 %v1619, %v1611
    %v2404 = vpack.c.b16 %v1628, %v1620
    %v2405 = vpack.c.b16 %v1629, %v1621
    %v2406 = vpack.c.b16 %v1630, %v1622
    %v2407 = vpack.c.b16 %v1631, %v1623
    %v2408 = vpack.c.b16 %v1632, %v1624
    %v2409 = vpack.c.b16 %v1633, %v1625
    %v2410 = vpack.c.b16 %v1634, %v1626
    %v2411 = vpack.c.b16 %v1635, %v1627
    %v2412 = vpack.c.b16 %v1644, %v1636
    %v2413 = vpack.c.b16 %v1645, %v1637
    %v2414 = vpack.c.b16 %v1646, %v1638
    %v2415 = vpack.c.b16 %v1647, %v1639
    %v2416 = vpack.c.b16 %v1648, %v1640
    %v2417 = vpack.c.b16 %v1649, %v1641
    %v2418 = vpack.c.b16 %v1650, %v1642
    %v2419 = vpack.c.b16 %v1651, %v1643
    %v2420 = vpack.c.b16 %v1660, %v1652
    %v2421 = vpack.c.b16 %v1661, %v1653
    %v2422 = vpack.c.b16 %v1662, %v1654
    %v2423 = vpack.c.b16 %v1663, %v1655
    %v2424 = vpack.c.b16 %v1664, %v1656
    %v2425 = vpack.c.b16 %v1665, %v1657
    %v2426 = vpack.c.b16 %v1666, %v1658
    %v2427 = vpack.c.b16 %v1667, %v1659
    %v2428 = vpack.c.b16 %v1676, %v1668
    %v2429 = vpack.c.b16 %v1677, %v1669
    %v2430 = vpack.c.b16 %v1678, %v1670
    %v2431 = vpack.c.b16 %v1679, %v1671
    %v2432 = vpack.c.b16 %v1680, %v1672
    %v2433 = vpack.c.b16 %v1681, %v1673
    %v2434 = vpack.c.b16 %v1682, %v1674
    %v2435 = vpack.c.b16 %v1683, %v1675
    %v2436 = vpack.c.b16 %v1692, %v1684
    %v2437 = vpack.c.b16 %v1693, %v1685
    %v2438 = vpack.c.b16 %v1694, %v1686
    %v2439 = vpack.c.b16 %v1695, %v1687
    %v2440 = vpack.c.b16 %v1696, %v1688
    %v2441 = vpack.c.b16 %v1697, %v1689
    %v2442 = vpack.c.b16 %v1698, %v1690
    %v2443 = vpack.c.b16 %v1699, %v1691
    %v2444 = vpack.c.b16 %v1708, %v1700
    %v2445 = vpack.c.b16 %v1709, %v1701
    %v2446 = vpack.c.b16 %v1710, %v1702
    %v2447 = vpack.c.b16 %v1711, %v1703
    %v2448 = vpack.c.b16 %v1712, %v1704
    %v2449 = vpack.c.b16 %v1713, %v1705
    %v2450 = vpack.c.b16 %v1714, %v1706
    %v2451 = vpack.c.b16 %v1715, %v1707
    %v2452 = vpack.c.b16 %v1724, %v1716
    %v2453 = vpack.c.b16 %v1725, %v1717
    %v2454 = vpack.c.b16 %v1726, %v1718
    %v2455 = vpack.c.b16 %v1727, %v1719
    %v2456 = vpack.c.b16 %v1728, %v1720
    %v2457 = vpack.c.b16 %v1729, %v1721
    %v2458 = vpack.c.b16 %v1730, %v1722
    %v2459 = vpack.c.b16 %v1731, %v1723
    %v2460 = vpack.c.b16 %v1740, %v1732
    %v2461 = vpack.c.b16 %v1741, %v1733
    %v2462 = vpack.c.b16 %v1742, %v1734
    %v2463 = vpack.c.b16 %v1743, %v1735
    %v2464 = vpack.c.b16 %v1744, %v1736
    %v2465 = vpack.c.b16 %v1745, %v1737
    %v2466 = vpack.c.b16 %v1746, %v1738
    %v2467 = vpack.c.b16 %v1747, %v1739
    %v2468 = vpack.c.b16 %v1756, %v1748
    %v2469 = vpack.c.b16 %v1757, %v1749
    %v2470 = vpack.c.b16 %v1758, %v1750
    %v2471 = vpack.c.b16 %v1759, %v1751
    %v2472 = vpack.c.b16 %v1760, %v1752
    %v2473 = vpack.c.b16 %v1761, %v1753
    %v2474 = vpack.c.b16 %v1762, %v1754
    %v2475 = vpack.c.b16 %v1763, %v1755
    %v2476 = vpack.c.b16 %v1772, %v1764
    %v2477 = vpack.c.b16 %v1773, %v1765
    %v2478 = vpack.c.b16 %v1774, %v1766
    %v2479 = vpack.c.b16 %v1775, %v1767
    %v2480 = vpack.c.b16 %v1776, %v1768
    %v2481 = vpack.c.b16 %v1777, %v1769
    %v2482 = vpack.c.b16 %v1778, %v1770
    %v2483 = vpack.c.b16 %v1779, %v1771
    %v2484 = vpack.c.b16 %v1788, %v1780
    %v2485 = vpack.c.b16 %v1789, %v1781
    %v2486 = vpack.c.b16 %v1790, %v1782
    %v2487 = vpack.c.b16 %v1791, %v1783
    %v2488 = vpack.c.b16 %v1792, %v1784
    %v2489 = vpack.c.b16 %v1793, %v1785
    %v2490 = vpack.c.b16 %v1794, %v1786
    %v2491 = vpack.c.b16 %v1795, %v1787
    %v2492 = vpack.c.b16 %v1804, %v1796
    %v2493 = vpack.c.b16 %v1805, %v1797
    %v2494 = vpack.c.b16 %v1806, %v1798
    %v2495 = vpack.c.b16 %v1807, %v1799
    %v2496 = vpack.c.b16 %v1808, %v1800
    %v2497 = vpack.c.b16 %v1809, %v1801
    %v2498 = vpack.c.b16 %v1810, %v1802
    %v2499 = vpack.c.b16 %v1811, %v1803
    %v2500 = vpack.c.b16 %v1820, %v1812
    %v2501 = vpack.c.b16 %v1821, %v1813
    %v2502 = vpack.c.b16 %v1822, %v1814
    %v2503 = vpack.c.b16 %v1823, %v1815
    %v2504 = vpack.c.b16 %v1824, %v1816
    %v2505 = vpack.c.b16 %v1825, %v1817
    %v2506 = vpack.c.b16 %v1826, %v1818
    %v2507 = vpack.c.b16 %v1827, %v1819
    %v2508 = vpack.c.b16 %v1836, %v1828
    %v2509 = vpack.c.b16 %v1837, %v1829
    %v2510 = vpack.c.b16 %v1838, %v1830
    %v2511 = vpack.c.b16 %v1839, %v1831
    %v2512 = vpack.c.b16 %v1840, %v1832
    %v2513 = vpack.c.b16 %v1841, %v1833
    %v2514 = vpack.c.b16 %v1842, %v1834
    %v2515 = vpack.c.b16 %v1843, %v1835
    %v2516 = vpack.c.b16 %v1852, %v1844
    %v2517 = vpack.c.b16 %v1853, %v1845
    %v2518 = vpack.c.b16 %v1854, %v1846
    %v2519 = vpack.c.b16 %v1855, %v1847
    %v2520 = vpack.c.b16 %v1856, %v1848
    %v2521 = vpack.c.b16 %v1857, %v1849
    %v2522 = vpack.c.b16 %v1858, %v1850
    %v2523 = vpack.c.b16 %v1859, %v1851
    %v2524 = vpack.c.b16 %v1868, %v1860
    %v2525 = vpack.c.b16 %v1869, %v1861
    %v2526 = vpack.c.b16 %v1870, %v1862
    %v2527 = vpack.c.b16 %v1871, %v1863
    %v2528 = vpack.c.b16 %v1872, %v1864
    %v2529 = vpack.c.b16 %v1873, %v1865
    %v2530 = vpack.c.b16 %v1874, %v1866
    %v2531 = vpack.c.b16 %v1875, %v1867
    %v2532 = vpack.c.b16 %v1884, %v1876
    %v2533 = vpack.c.b16 %v1885, %v1877
    %v2534 = vpack.c.b16 %v1886, %v1878
    %v2535 = vpack.c.b16 %v1887, %v1879
    %v2536 = vpack.c.b16 %v1888, %v1880
    %v2537 = vpack.c.b16 %v1889, %v1881
    %v2538 = vpack.c.b16 %v1890, %v1882
    %v2539 = vpack.c.b16 %v1891, %v1883
    %v2540 = vpack.c.b16 %v1900, %v1892
    %v2541 = vpack.c.b16 %v1901, %v1893
    %v2542 = vpack.c.b16 %v1902, %v1894
    %v2543 = vpack.c.b16 %v1903, %v1895
    %v2544 = vpack.c.b16 %v1904, %v1896
    %v2545 = vpack.c.b16 %v1905, %v1897
    %v2546 = vpack.c.b16 %v1906, %v1898
    %v2547 = vpack.c.b16 %v1907, %v1899
    %v2548 = vpack.c.b16 %v1916, %v1908
    %v2549 = vpack.c.b16 %v1917, %v1909
    %v2550 = vpack.c.b16 %v1918, %v1910
    %v2551 = vpack.c.b16 %v1919, %v1911
    %v2552 = vpack.c.b16 %v1920, %v1912
    %v2553 = vpack.c.b16 %v1921, %v1913
    %v2554 = vpack.c.b16 %v1922, %v1914
    %v2555 = vpack.c.b16 %v1923, %v1915
    %v2556 = vpack.c.b16 %v1932, %v1924
    %v2557 = vpack.c.b16 %v1933, %v1925
    %v2558 = vpack.c.b16 %v1934, %v1926
    %v2559 = vpack.c.b16 %v1935, %v1927
    %v2560 = vpack.c.b16 %v1936, %v1928
    %v2561 = vpack.c.b16 %v1937, %v1929
    %v2562 = vpack.c.b16 %v1938, %v1930
    %v2563 = vpack.c.b16 %v1939, %v1931
    %v2564 = vpack.c.b16 %v1948, %v1940
    %v2565 = vpack.c.b16 %v1949, %v1941
    %v2566 = vpack.c.b16 %v1950, %v1942
    %v2567 = vpack.c.b16 %v1951, %v1943
    %v2568 = vpack.c.b16 %v1952, %v1944
    %v2569 = vpack.c.b16 %v1953, %v1945
    %v2570 = vpack.c.b16 %v1954, %v1946
    %v2571 = vpack.c.b16 %v1955, %v1947
    %v2572 = vpack.c.b16 %v1964, %v1956
    %v2573 = vpack.c.b16 %v1965, %v1957
    %v2574 = vpack.c.b16 %v1966, %v1958
    %v2575 = vpack.c.b16 %v1967, %v1959
    %v2576 = vpack.c.b16 %v1968, %v1960
    %v2577 = vpack.c.b16 %v1969, %v1961
    %v2578 = vpack.c.b16 %v1970, %v1962
    %v2579 = vpack.c.b16 %v1971, %v1963
    %v2580 = vpack.c.b16 %v1980, %v1972
    %v2581 = vpack.c.b16 %v1981, %v1973
    %v2582 = vpack.c.b16 %v1982, %v1974
    %v2583 = vpack.c.b16 %v1983, %v1975
    %v2584 = vpack.c.b16 %v1984, %v1976
    %v2585 = vpack.c.b16 %v1985, %v1977
    %v2586 = vpack.c.b16 %v1986, %v1978
    %v2587 = vpack.c.b16 %v1987, %v1979
    %v2588 = vpack.c.b16 %v1996, %v1988
    %v2589 = vpack.c.b16 %v1997, %v1989
    %v2590 = vpack.c.b16 %v1998, %v1990
    %v2591 = vpack.c.b16 %v1999, %v1991
    %v2592 = vpack.c.b16 %v2000, %v1992
    %v2593 = vpack.c.b16 %v2001, %v1993
    %v2594 = vpack.c.b16 %v2002, %v1994
    %v2595 = vpack.c.b16 %v2003, %v1995
    %v2596 = vpack.c.b16 %v2012, %v2004
    %v2597 = vpack.c.b16 %v2013, %v2005
    %v2598 = vpack.c.b16 %v2014, %v2006
    %v2599 = vpack.c.b16 %v2015, %v2007
    %v2600 = vpack.c.b16 %v2016, %v2008
    %v2601 = vpack.c.b16 %v2017, %v2009
    %v2602 = vpack.c.b16 %v2018, %v2010
    %v2603 = vpack.c.b16 %v2019, %v2011
    %v2604 = vpack.c.b16 %v2028, %v2020
    %v2605 = vpack.c.b16 %v2029, %v2021
    %v2606 = vpack.c.b16 %v2030, %v2022
    %v2607 = vpack.c.b16 %v2031, %v2023
    %v2608 = vpack.c.b16 %v2032, %v2024
    %v2609 = vpack.c.b16 %v2033, %v2025
    %v2610 = vpack.c.b16 %v2034, %v2026
    %v2611 = vpack.c.b16 %v2035, %v2027
    %v2612 = vpack.c.b16 %v2044, %v2036
    %v2613 = vpack.c.b16 %v2045, %v2037
    %v2614 = vpack.c.b16 %v2046, %v2038
    %v2615 = vpack.c.b16 %v2047, %v2039
    %v2616 = vpack.c.b16 %v2048, %v2040
    %v2617 = vpack.c.b16 %v2049, %v2041
    %v2618 = vpack.c.b16 %v2050, %v2042
    %v2619 = vpack.c.b16 %v2051, %v2043
    %v2620 = vpack.c.b16 %v2060, %v2052
    %v2621 = vpack.c.b16 %v2061, %v2053
    %v2622 = vpack.c.b16 %v2062, %v2054
    %v2623 = vpack.c.b16 %v2063, %v2055
    %v2624 = vpack.c.b16 %v2064, %v2056
    %v2625 = vpack.c.b16 %v2065, %v2057
    %v2626 = vpack.c.b16 %v2066, %v2058
    %v2627 = vpack.c.b16 %v2067, %v2059
    %v2628 = vpack.c.b16 %v2076, %v2068
    %v2629 = vpack.c.b16 %v2077, %v2069
    %v2630 = vpack.c.b16 %v2078, %v2070
    %v2631 = vpack.c.b16 %v2079, %v2071
    %v2632 = vpack.c.b16 %v2080, %v2072
    %v2633 = vpack.c.b16 %v2081, %v2073
    %v2634 = vpack.c.b16 %v2082, %v2074
    %v2635 = vpack.c.b16 %v2083, %v2075
    %v2636 = vpack.c.b16 %v2092, %v2084
    %v2637 = vpack.c.b16 %v2093, %v2085
    %v2638 = vpack.c.b16 %v2094, %v2086
    %v2639 = vpack.c.b16 %v2095, %v2087
    %v2640 = vpack.c.b16 %v2096, %v2088
    %v2641 = vpack.c.b16 %v2097, %v2089
    %v2642 = vpack.c.b16 %v2098, %v2090
    %v2643 = vpack.c.b16 %v2099, %v2091
    %v2644 = vpack.c.b16 %v2108, %v2100
    %v2645 = vpack.c.b16 %v2109, %v2101
    %v2646 = vpack.c.b16 %v2110, %v2102
    %v2647 = vpack.c.b16 %v2111, %v2103
    %v2648 = vpack.c.b16 %v2112, %v2104
    %v2649 = vpack.c.b16 %v2113, %v2105
    %v2650 = vpack.c.b16 %v2114, %v2106
    %v2651 = vpack.c.b16 %v2115, %v2107
    %v2652 = vpack.c.b16 %v2124, %v2116
    %v2653 = vpack.c.b16 %v2125, %v2117
    %v2654 = vpack.c.b16 %v2126, %v2118
    %v2655 = vpack.c.b16 %v2127, %v2119
    %v2656 = vpack.c.b16 %v2128, %v2120
    %v2657 = vpack.c.b16 %v2129, %v2121
    %v2658 = vpack.c.b16 %v2130, %v2122
    %v2659 = vpack.c.b16 %v2131, %v2123
    %v2660 = vpack.c.b16 %v2140, %v2132
    %v2661 = vpack.c.b16 %v2141, %v2133
    %v2662 = vpack.c.b16 %v2142, %v2134
    %v2663 = vpack.c.b16 %v2143, %v2135
    %v2664 = vpack.c.b16 %v2144, %v2136
    %v2665 = vpack.c.b16 %v2145, %v2137
    %v2666 = vpack.c.b16 %v2146, %v2138
    %v2667 = vpack.c.b16 %v2147, %v2139
    %v2668 = vpack.c.b16 %v2156, %v2148
    %v2669 = vpack.c.b16 %v2157, %v2149
    %v2670 = vpack.c.b16 %v2158, %v2150
    %v2671 = vpack.c.b16 %v2159, %v2151
    %v2672 = vpack.c.b16 %v2160, %v2152
    %v2673 = vpack.c.b16 %v2161, %v2153
    %v2674 = vpack.c.b16 %v2162, %v2154
    %v2675 = vpack.c.b16 %v2163, %v2155
    %v2676 = vpack.c.b16 %v2172, %v2164
    %v2677 = vpack.c.b16 %v2173, %v2165
    %v2678 = vpack.c.b16 %v2174, %v2166
    %v2679 = vpack.c.b16 %v2175, %v2167
    %v2680 = vpack.c.b16 %v2176, %v2168
    %v2681 = vpack.c.b16 %v2177, %v2169
    %v2682 = vpack.c.b16 %v2178, %v2170
    %v2683 = vpack.c.b16 %v2179, %v2171
    %v2684 = vpack.c.b16 %v2188, %v2180
    %v2685 = vpack.c.b16 %v2189, %v2181
    %v2686 = vpack.c.b16 %v2190, %v2182
    %v2687 = vpack.c.b16 %v2191, %v2183
    %v2688 = vpack.c.b16 %v2192, %v2184
    %v2689 = vpack.c.b16 %v2193, %v2185
    %v2690 = vpack.c.b16 %v2194, %v2186
    %v2691 = vpack.c.b16 %v2195, %v2187
    %v2692 = vpack.c.b16 %v2204, %v2196
    %v2693 = vpack.c.b16 %v2205, %v2197
    %v2694 = vpack.c.b16 %v2206, %v2198
    %v2695 = vpack.c.b16 %v2207, %v2199
    %v2696 = vpack.c.b16 %v2208, %v2200
    %v2697 = vpack.c.b16 %v2209, %v2201
    %v2698 = vpack.c.b16 %v2210, %v2202
    %v2699 = vpack.c.b16 %v2211, %v2203
    %v2700 = vpack.c.b16 %v2220, %v2212
    %v2701 = vpack.c.b16 %v2221, %v2213
    %v2702 = vpack.c.b16 %v2222, %v2214
    %v2703 = vpack.c.b16 %v2223, %v2215
    %v2704 = vpack.c.b16 %v2224, %v2216
    %v2705 = vpack.c.b16 %v2225, %v2217
    %v2706 = vpack.c.b16 %v2226, %v2218
    %v2707 = vpack.c.b16 %v2227, %v2219
    %v2708 = vpack.c.b16 %v2236, %v2228
    %v2709 = vpack.c.b16 %v2237, %v2229
    %v2710 = vpack.c.b16 %v2238, %v2230
    %v2711 = vpack.c.b16 %v2239, %v2231
    %v2712 = vpack.c.b16 %v2240, %v2232
    %v2713 = vpack.c.b16 %v2241, %v2233
    %v2714 = vpack.c.b16 %v2242, %v2234
    %v2715 = vpack.c.b16 %v2243, %v2235
    %v2716 = vpack.c.b16 %v2252, %v2244
    %v2717 = vpack.c.b16 %v2253, %v2245
    %v2718 = vpack.c.b16 %v2254, %v2246
    %v2719 = vpack.c.b16 %v2255, %v2247
    %v2720 = vpack.c.b16 %v2256, %v2248
    %v2721 = vpack.c.b16 %v2257, %v2249
    %v2722 = vpack.c.b16 %v2258, %v2250
    %v2723 = vpack.c.b16 %v2259, %v2251
    %v2724 = vpack.c.b16 %v2268, %v2260
    %v2725 = vpack.c.b16 %v2269, %v2261
    %v2726 = vpack.c.b16 %v2270, %v2262
    %v2727 = vpack.c.b16 %v2271, %v2263
    %v2728 = vpack.c.b16 %v2272, %v2264
    %v2729 = vpack.c.b16 %v2273, %v2265
    %v2730 = vpack.c.b16 %v2274, %v2266
    %v2731 = vpack.c.b16 %v2275, %v2267
    %v2732 = vpack.c.b16 %v2284, %v2276
    %v2733 = vpack.c.b16 %v2285, %v2277
    %v2734 = vpack.c.b16 %v2286, %v2278
    %v2735 = vpack.c.b16 %v2287, %v2279
    %v2736 = vpack.c.b16 %v2288, %v2280
    %v2737 = vpack.c.b16 %v2289, %v2281
    %v2738 = vpack.c.b16 %v2290, %v2282
    %v2739 = vpack.c.b16 %v2291, %v2283
    %3188 = vmatpush.bf16.msra.mxu0 %v2348
    %3189 = vmatpush.bf16.msra.mxu0 %v2340
    %3190 = vmatpush.bf16.msra.mxu0 %v2332
    %3191 = vmatpush.bf16.msra.mxu0 %v2324
    %3192 = vmatpush.bf16.msra.mxu0 %v2316
    %3193 = vmatpush.bf16.msra.mxu0 %v2308
    %3194 = vmatpush.bf16.msra.mxu0 %v2300
    %3195 = vmatpush.bf16.msra.mxu0 %v2292
    %3196 = vmatmul.bf16.gmra.mxu0 %v836
    %v3197 = vpop.f32.mrf.mxu0
    %v3198 = vadd.f32 %v644, %v3197
    %v3199 = vpop.f32.mrf.mxu0
    %v3200 = vadd.f32 %v644, %v3199
    %3201 = vmatmul.bf16.gmra.mxu0 %v843
    %v3202 = vpop.f32.mrf.mxu0
    %v3203 = vadd.f32 %v644, %v3202
    %v3204 = vpop.f32.mrf.mxu0
    %v3205 = vadd.f32 %v644, %v3204
    %3206 = vmatmul.bf16.gmra.mxu0 %v850
    %v3207 = vpop.f32.mrf.mxu0
    %v3208 = vadd.f32 %v644, %v3207
    %v3209 = vpop.f32.mrf.mxu0
    %v3210 = vadd.f32 %v644, %v3209
    %3211 = vmatmul.bf16.gmra.mxu0 %v857
    %v3212 = vpop.f32.mrf.mxu0
    %v3213 = vadd.f32 %v644, %v3212
    %v3214 = vpop.f32.mrf.mxu0
    %v3215 = vadd.f32 %v644, %v3214
    %3216 = vmatmul.bf16.gmra.mxu0 %v864
    %v3217 = vpop.f32.mrf.mxu0
    %v3218 = vadd.f32 %v644, %v3217
    %v3219 = vpop.f32.mrf.mxu0
    %v3220 = vadd.f32 %v644, %v3219
    %3221 = vmatmul.bf16.gmra.mxu0 %v871
    %v3222 = vpop.f32.mrf.mxu0
    %v3223 = vadd.f32 %v644, %v3222
    %v3224 = vpop.f32.mrf.mxu0
    %v3225 = vadd.f32 %v644, %v3224
    %3226 = vmatmul.bf16.gmra.mxu0 %v878
    %v3227 = vpop.f32.mrf.mxu0
    %v3228 = vadd.f32 %v644, %v3227
    %v3229 = vpop.f32.mrf.mxu0
    %v3230 = vadd.f32 %v644, %v3229
    %3231 = vmatmul.bf16.gmra.mxu0 %v885
    %v3232 = vpop.f32.mrf.mxu0
    %v3233 = vadd.f32 %v644, %v3232
    %v3234 = vpop.f32.mrf.mxu0
    %v3235 = vadd.f32 %v644, %v3234
    %3236 = vdwg.mxu0
    %3237 = vmatpush.bf16.msra.mxu0 %v2412
    %3238 = vmatpush.bf16.msra.mxu0 %v2404
    %3239 = vmatpush.bf16.msra.mxu0 %v2396
    %3240 = vmatpush.bf16.msra.mxu0 %v2388
    %3241 = vmatpush.bf16.msra.mxu0 %v2380
    %3242 = vmatpush.bf16.msra.mxu0 %v2372
    %3243 = vmatpush.bf16.msra.mxu0 %v2364
    %3244 = vmatpush.bf16.msra.mxu0 %v2356
    %3245 = vmatmul.bf16.gmra.mxu0 %v837
    %v3246 = vpop.f32.mrf.mxu0
    %v3247 = vadd.f32 %v3198, %v3246
    %v3248 = vpop.f32.mrf.mxu0
    %v3249 = vadd.f32 %v3200, %v3248
    %3250 = vmatmul.bf16.gmra.mxu0 %v844
    %v3251 = vpop.f32.mrf.mxu0
    %v3252 = vadd.f32 %v3203, %v3251
    %v3253 = vpop.f32.mrf.mxu0
    %v3254 = vadd.f32 %v3205, %v3253
    %3255 = vmatmul.bf16.gmra.mxu0 %v851
    %v3256 = vpop.f32.mrf.mxu0
    %v3257 = vadd.f32 %v3208, %v3256
    %v3258 = vpop.f32.mrf.mxu0
    %v3259 = vadd.f32 %v3210, %v3258
    %3260 = vmatmul.bf16.gmra.mxu0 %v858
    %v3261 = vpop.f32.mrf.mxu0
    %v3262 = vadd.f32 %v3213, %v3261
    %v3263 = vpop.f32.mrf.mxu0
    %v3264 = vadd.f32 %v3215, %v3263
    %3265 = vmatmul.bf16.gmra.mxu0 %v865
    %v3266 = vpop.f32.mrf.mxu0
    %v3267 = vadd.f32 %v3218, %v3266
    %v3268 = vpop.f32.mrf.mxu0
    %v3269 = vadd.f32 %v3220, %v3268
    %3270 = vmatmul.bf16.gmra.mxu0 %v872
    %v3271 = vpop.f32.mrf.mxu0
    %v3272 = vadd.f32 %v3223, %v3271
    %v3273 = vpop.f32.mrf.mxu0
    %v3274 = vadd.f32 %v3225, %v3273
    %3275 = vmatmul.bf16.gmra.mxu0 %v879
    %v3276 = vpop.f32.mrf.mxu0
    %v3277 = vadd.f32 %v3228, %v3276
    %v3278 = vpop.f32.mrf.mxu0
    %v3279 = vadd.f32 %v3230, %v3278
    %3280 = vmatmul.bf16.gmra.mxu0 %v886
    %v3281 = vpop.f32.mrf.mxu0
    %v3282 = vadd.f32 %v3233, %v3281
    %v3283 = vpop.f32.mrf.mxu0
    %v3284 = vadd.f32 %v3235, %v3283
    %3285 = vdwg.mxu0
    %3286 = vmatpush.bf16.msra.mxu0 %v2476
    %3287 = vmatpush.bf16.msra.mxu0 %v2468
    %3288 = vmatpush.bf16.msra.mxu0 %v2460
    %3289 = vmatpush.bf16.msra.mxu0 %v2452
    %3290 = vmatpush.bf16.msra.mxu0 %v2444
    %3291 = vmatpush.bf16.msra.mxu0 %v2436
    %3292 = vmatpush.bf16.msra.mxu0 %v2428
    %3293 = vmatpush.bf16.msra.mxu0 %v2420
    %3294 = vmatmul.bf16.gmra.mxu0 %v838
    %v3295 = vpop.f32.mrf.mxu0
    %v3296 = vadd.f32 %v3247, %v3295
    %v3297 = vpop.f32.mrf.mxu0
    %v3298 = vadd.f32 %v3249, %v3297
    %3299 = vmatmul.bf16.gmra.mxu0 %v845
    %v3300 = vpop.f32.mrf.mxu0
    %v3301 = vadd.f32 %v3252, %v3300
    %v3302 = vpop.f32.mrf.mxu0
    %v3303 = vadd.f32 %v3254, %v3302
    %3304 = vmatmul.bf16.gmra.mxu0 %v852
    %v3305 = vpop.f32.mrf.mxu0
    %v3306 = vadd.f32 %v3257, %v3305
    %v3307 = vpop.f32.mrf.mxu0
    %v3308 = vadd.f32 %v3259, %v3307
    %3309 = vmatmul.bf16.gmra.mxu0 %v859
    %v3310 = vpop.f32.mrf.mxu0
    %v3311 = vadd.f32 %v3262, %v3310
    %v3312 = vpop.f32.mrf.mxu0
    %v3313 = vadd.f32 %v3264, %v3312
    %3314 = vmatmul.bf16.gmra.mxu0 %v866
    %v3315 = vpop.f32.mrf.mxu0
    %v3316 = vadd.f32 %v3267, %v3315
    %v3317 = vpop.f32.mrf.mxu0
    %v3318 = vadd.f32 %v3269, %v3317
    %3319 = vmatmul.bf16.gmra.mxu0 %v873
    %v3320 = vpop.f32.mrf.mxu0
    %v3321 = vadd.f32 %v3272, %v3320
    %v3322 = vpop.f32.mrf.mxu0
    %v3323 = vadd.f32 %v3274, %v3322
    %3324 = vmatmul.bf16.gmra.mxu0 %v880
    %v3325 = vpop.f32.mrf.mxu0
    %v3326 = vadd.f32 %v3277, %v3325
    %v3327 = vpop.f32.mrf.mxu0
    %v3328 = vadd.f32 %v3279, %v3327
    %3329 = vmatmul.bf16.gmra.mxu0 %v887
    %v3330 = vpop.f32.mrf.mxu0
    %v3331 = vadd.f32 %v3282, %v3330
    %v3332 = vpop.f32.mrf.mxu0
    %v3333 = vadd.f32 %v3284, %v3332
    %3334 = vdwg.mxu0
    %3335 = vmatpush.bf16.msra.mxu0 %v2540
    %3336 = vmatpush.bf16.msra.mxu0 %v2532
    %3337 = vmatpush.bf16.msra.mxu0 %v2524
    %3338 = vmatpush.bf16.msra.mxu0 %v2516
    %3339 = vmatpush.bf16.msra.mxu0 %v2508
    %3340 = vmatpush.bf16.msra.mxu0 %v2500
    %3341 = vmatpush.bf16.msra.mxu0 %v2492
    %3342 = vmatpush.bf16.msra.mxu0 %v2484
    %3343 = vmatmul.bf16.gmra.mxu0 %v839
    %v3344 = vpop.f32.mrf.mxu0
    %v3345 = vadd.f32 %v3296, %v3344
    %v3346 = vpop.f32.mrf.mxu0
    %v3347 = vadd.f32 %v3298, %v3346
    %3348 = vmatmul.bf16.gmra.mxu0 %v846
    %v3349 = vpop.f32.mrf.mxu0
    %v3350 = vadd.f32 %v3301, %v3349
    %v3351 = vpop.f32.mrf.mxu0
    %v3352 = vadd.f32 %v3303, %v3351
    %3353 = vmatmul.bf16.gmra.mxu0 %v853
    %v3354 = vpop.f32.mrf.mxu0
    %v3355 = vadd.f32 %v3306, %v3354
    %v3356 = vpop.f32.mrf.mxu0
    %v3357 = vadd.f32 %v3308, %v3356
    %3358 = vmatmul.bf16.gmra.mxu0 %v860
    %v3359 = vpop.f32.mrf.mxu0
    %v3360 = vadd.f32 %v3311, %v3359
    %v3361 = vpop.f32.mrf.mxu0
    %v3362 = vadd.f32 %v3313, %v3361
    %3363 = vmatmul.bf16.gmra.mxu0 %v867
    %v3364 = vpop.f32.mrf.mxu0
    %v3365 = vadd.f32 %v3316, %v3364
    %v3366 = vpop.f32.mrf.mxu0
    %v3367 = vadd.f32 %v3318, %v3366
    %3368 = vmatmul.bf16.gmra.mxu0 %v874
    %v3369 = vpop.f32.mrf.mxu0
    %v3370 = vadd.f32 %v3321, %v3369
    %v3371 = vpop.f32.mrf.mxu0
    %v3372 = vadd.f32 %v3323, %v3371
    %3373 = vmatmul.bf16.gmra.mxu0 %v881
    %v3374 = vpop.f32.mrf.mxu0
    %v3375 = vadd.f32 %v3326, %v3374
    %v3376 = vpop.f32.mrf.mxu0
    %v3377 = vadd.f32 %v3328, %v3376
    %3378 = vmatmul.bf16.gmra.mxu0 %v888
    %v3379 = vpop.f32.mrf.mxu0
    %v3380 = vadd.f32 %v3331, %v3379
    %v3381 = vpop.f32.mrf.mxu0
    %v3382 = vadd.f32 %v3333, %v3381
    %3383 = vdwg.mxu0
    %3384 = vmatpush.bf16.msra.mxu0 %v2604
    %3385 = vmatpush.bf16.msra.mxu0 %v2596
    %3386 = vmatpush.bf16.msra.mxu0 %v2588
    %3387 = vmatpush.bf16.msra.mxu0 %v2580
    %3388 = vmatpush.bf16.msra.mxu0 %v2572
    %3389 = vmatpush.bf16.msra.mxu0 %v2564
    %3390 = vmatpush.bf16.msra.mxu0 %v2556
    %3391 = vmatpush.bf16.msra.mxu0 %v2548
    %3392 = vmatmul.bf16.gmra.mxu0 %v840
    %v3393 = vpop.f32.mrf.mxu0
    %v3394 = vadd.f32 %v3345, %v3393
    %v3395 = vpop.f32.mrf.mxu0
    %v3396 = vadd.f32 %v3347, %v3395
    %3397 = vmatmul.bf16.gmra.mxu0 %v847
    %v3398 = vpop.f32.mrf.mxu0
    %v3399 = vadd.f32 %v3350, %v3398
    %v3400 = vpop.f32.mrf.mxu0
    %v3401 = vadd.f32 %v3352, %v3400
    %3402 = vmatmul.bf16.gmra.mxu0 %v854
    %v3403 = vpop.f32.mrf.mxu0
    %v3404 = vadd.f32 %v3355, %v3403
    %v3405 = vpop.f32.mrf.mxu0
    %v3406 = vadd.f32 %v3357, %v3405
    %3407 = vmatmul.bf16.gmra.mxu0 %v861
    %v3408 = vpop.f32.mrf.mxu0
    %v3409 = vadd.f32 %v3360, %v3408
    %v3410 = vpop.f32.mrf.mxu0
    %v3411 = vadd.f32 %v3362, %v3410
    %3412 = vmatmul.bf16.gmra.mxu0 %v868
    %v3413 = vpop.f32.mrf.mxu0
    %v3414 = vadd.f32 %v3365, %v3413
    %v3415 = vpop.f32.mrf.mxu0
    %v3416 = vadd.f32 %v3367, %v3415
    %3417 = vmatmul.bf16.gmra.mxu0 %v875
    %v3418 = vpop.f32.mrf.mxu0
    %v3419 = vadd.f32 %v3370, %v3418
    %v3420 = vpop.f32.mrf.mxu0
    %v3421 = vadd.f32 %v3372, %v3420
    %3422 = vmatmul.bf16.gmra.mxu0 %v882
    %v3423 = vpop.f32.mrf.mxu0
    %v3424 = vadd.f32 %v3375, %v3423
    %v3425 = vpop.f32.mrf.mxu0
    %v3426 = vadd.f32 %v3377, %v3425
    %3427 = vmatmul.bf16.gmra.mxu0 %v889
    %v3428 = vpop.f32.mrf.mxu0
    %v3429 = vadd.f32 %v3380, %v3428
    %v3430 = vpop.f32.mrf.mxu0
    %v3431 = vadd.f32 %v3382, %v3430
    %3432 = vdwg.mxu0
    %3433 = vmatpush.bf16.msra.mxu0 %v2668
    %3434 = vmatpush.bf16.msra.mxu0 %v2660
    %3435 = vmatpush.bf16.msra.mxu0 %v2652
    %3436 = vmatpush.bf16.msra.mxu0 %v2644
    %3437 = vmatpush.bf16.msra.mxu0 %v2636
    %3438 = vmatpush.bf16.msra.mxu0 %v2628
    %3439 = vmatpush.bf16.msra.mxu0 %v2620
    %3440 = vmatpush.bf16.msra.mxu0 %v2612
    %3441 = vmatmul.bf16.gmra.mxu0 %v841
    %v3442 = vpop.f32.mrf.mxu0
    %v3443 = vadd.f32 %v3394, %v3442
    %v3444 = vpop.f32.mrf.mxu0
    %v3445 = vadd.f32 %v3396, %v3444
    %3446 = vmatmul.bf16.gmra.mxu0 %v848
    %v3447 = vpop.f32.mrf.mxu0
    %v3448 = vadd.f32 %v3399, %v3447
    %v3449 = vpop.f32.mrf.mxu0
    %v3450 = vadd.f32 %v3401, %v3449
    %3451 = vmatmul.bf16.gmra.mxu0 %v855
    %v3452 = vpop.f32.mrf.mxu0
    %v3453 = vadd.f32 %v3404, %v3452
    %v3454 = vpop.f32.mrf.mxu0
    %v3455 = vadd.f32 %v3406, %v3454
    %3456 = vmatmul.bf16.gmra.mxu0 %v862
    %v3457 = vpop.f32.mrf.mxu0
    %v3458 = vadd.f32 %v3409, %v3457
    %v3459 = vpop.f32.mrf.mxu0
    %v3460 = vadd.f32 %v3411, %v3459
    %3461 = vmatmul.bf16.gmra.mxu0 %v869
    %v3462 = vpop.f32.mrf.mxu0
    %v3463 = vadd.f32 %v3414, %v3462
    %v3464 = vpop.f32.mrf.mxu0
    %v3465 = vadd.f32 %v3416, %v3464
    %3466 = vmatmul.bf16.gmra.mxu0 %v876
    %v3467 = vpop.f32.mrf.mxu0
    %v3468 = vadd.f32 %v3419, %v3467
    %v3469 = vpop.f32.mrf.mxu0
    %v3470 = vadd.f32 %v3421, %v3469
    %3471 = vmatmul.bf16.gmra.mxu0 %v883
    %v3472 = vpop.f32.mrf.mxu0
    %v3473 = vadd.f32 %v3424, %v3472
    %v3474 = vpop.f32.mrf.mxu0
    %v3475 = vadd.f32 %v3426, %v3474
    %3476 = vmatmul.bf16.gmra.mxu0 %v890
    %v3477 = vpop.f32.mrf.mxu0
    %v3478 = vadd.f32 %v3429, %v3477
    %v3479 = vpop.f32.mrf.mxu0
    %v3480 = vadd.f32 %v3431, %v3479
    %3481 = vdwg.mxu0
    %3482 = vmatpush.bf16.msra.mxu0 %v2732
    %3483 = vmatpush.bf16.msra.mxu0 %v2724
    %3484 = vmatpush.bf16.msra.mxu0 %v2716
    %3485 = vmatpush.bf16.msra.mxu0 %v2708
    %3486 = vmatpush.bf16.msra.mxu0 %v2700
    %3487 = vmatpush.bf16.msra.mxu0 %v2692
    %3488 = vmatpush.bf16.msra.mxu0 %v2684
    %3489 = vmatpush.bf16.msra.mxu0 %v2676
    %3490 = vmatmul.bf16.gmra.mxu0 %v842
    %v3491 = vpop.f32.mrf.mxu0
    %v3492 = vadd.f32 %v3443, %v3491
    %v3493 = vpop.f32.mrf.mxu0
    %v3494 = vadd.f32 %v3445, %v3493
    %3495 = vmatmul.bf16.gmra.mxu0 %v849
    %v3496 = vpop.f32.mrf.mxu0
    %v3497 = vadd.f32 %v3448, %v3496
    %v3498 = vpop.f32.mrf.mxu0
    %v3499 = vadd.f32 %v3450, %v3498
    %3500 = vmatmul.bf16.gmra.mxu0 %v856
    %v3501 = vpop.f32.mrf.mxu0
    %v3502 = vadd.f32 %v3453, %v3501
    %v3503 = vpop.f32.mrf.mxu0
    %v3504 = vadd.f32 %v3455, %v3503
    %3505 = vmatmul.bf16.gmra.mxu0 %v863
    %v3506 = vpop.f32.mrf.mxu0
    %v3507 = vadd.f32 %v3458, %v3506
    %v3508 = vpop.f32.mrf.mxu0
    %v3509 = vadd.f32 %v3460, %v3508
    %3510 = vmatmul.bf16.gmra.mxu0 %v870
    %v3511 = vpop.f32.mrf.mxu0
    %v3512 = vadd.f32 %v3463, %v3511
    %v3513 = vpop.f32.mrf.mxu0
    %v3514 = vadd.f32 %v3465, %v3513
    %3515 = vmatmul.bf16.gmra.mxu0 %v877
    %v3516 = vpop.f32.mrf.mxu0
    %v3517 = vadd.f32 %v3468, %v3516
    %v3518 = vpop.f32.mrf.mxu0
    %v3519 = vadd.f32 %v3470, %v3518
    %3520 = vmatmul.bf16.gmra.mxu0 %v884
    %v3521 = vpop.f32.mrf.mxu0
    %v3522 = vadd.f32 %v3473, %v3521
    %v3523 = vpop.f32.mrf.mxu0
    %v3524 = vadd.f32 %v3475, %v3523
    %3525 = vmatmul.bf16.gmra.mxu0 %v891
    %v3526 = vpop.f32.mrf.mxu0
    %v3527 = vadd.f32 %v3478, %v3526
    %v3528 = vpop.f32.mrf.mxu0
    %v3529 = vadd.f32 %v3480, %v3528
    %3530 = vdwg.mxu0
    %3531 = vmatpush.bf16.msra.mxu0 %v2349
    %3532 = vmatpush.bf16.msra.mxu0 %v2341
    %3533 = vmatpush.bf16.msra.mxu0 %v2333
    %3534 = vmatpush.bf16.msra.mxu0 %v2325
    %3535 = vmatpush.bf16.msra.mxu0 %v2317
    %3536 = vmatpush.bf16.msra.mxu0 %v2309
    %3537 = vmatpush.bf16.msra.mxu0 %v2301
    %3538 = vmatpush.bf16.msra.mxu0 %v2293
    %3539 = vmatmul.bf16.gmra.mxu0 %v836
    %v3540 = vpop.f32.mrf.mxu0
    %v3541 = vadd.f32 %v645, %v3540
    %v3542 = vpop.f32.mrf.mxu0
    %v3543 = vadd.f32 %v645, %v3542
    %3544 = vmatmul.bf16.gmra.mxu0 %v843
    %v3545 = vpop.f32.mrf.mxu0
    %v3546 = vadd.f32 %v645, %v3545
    %v3547 = vpop.f32.mrf.mxu0
    %v3548 = vadd.f32 %v645, %v3547
    %3549 = vmatmul.bf16.gmra.mxu0 %v850
    %v3550 = vpop.f32.mrf.mxu0
    %v3551 = vadd.f32 %v645, %v3550
    %v3552 = vpop.f32.mrf.mxu0
    %v3553 = vadd.f32 %v645, %v3552
    %3554 = vmatmul.bf16.gmra.mxu0 %v857
    %v3555 = vpop.f32.mrf.mxu0
    %v3556 = vadd.f32 %v645, %v3555
    %v3557 = vpop.f32.mrf.mxu0
    %v3558 = vadd.f32 %v645, %v3557
    %3559 = vmatmul.bf16.gmra.mxu0 %v864
    %v3560 = vpop.f32.mrf.mxu0
    %v3561 = vadd.f32 %v645, %v3560
    %v3562 = vpop.f32.mrf.mxu0
    %v3563 = vadd.f32 %v645, %v3562
    %3564 = vmatmul.bf16.gmra.mxu0 %v871
    %v3565 = vpop.f32.mrf.mxu0
    %v3566 = vadd.f32 %v645, %v3565
    %v3567 = vpop.f32.mrf.mxu0
    %v3568 = vadd.f32 %v645, %v3567
    %3569 = vmatmul.bf16.gmra.mxu0 %v878
    %v3570 = vpop.f32.mrf.mxu0
    %v3571 = vadd.f32 %v645, %v3570
    %v3572 = vpop.f32.mrf.mxu0
    %v3573 = vadd.f32 %v645, %v3572
    %3574 = vmatmul.bf16.gmra.mxu0 %v885
    %v3575 = vpop.f32.mrf.mxu0
    %v3576 = vadd.f32 %v645, %v3575
    %v3577 = vpop.f32.mrf.mxu0
    %v3578 = vadd.f32 %v645, %v3577
    %3579 = vdwg.mxu0
    %3580 = vmatpush.bf16.msra.mxu0 %v2413
    %3581 = vmatpush.bf16.msra.mxu0 %v2405
    %3582 = vmatpush.bf16.msra.mxu0 %v2397
    %3583 = vmatpush.bf16.msra.mxu0 %v2389
    %3584 = vmatpush.bf16.msra.mxu0 %v2381
    %3585 = vmatpush.bf16.msra.mxu0 %v2373
    %3586 = vmatpush.bf16.msra.mxu0 %v2365
    %3587 = vmatpush.bf16.msra.mxu0 %v2357
    %3588 = vmatmul.bf16.gmra.mxu0 %v837
    %v3589 = vpop.f32.mrf.mxu0
    %v3590 = vadd.f32 %v3541, %v3589
    %v3591 = vpop.f32.mrf.mxu0
    %v3592 = vadd.f32 %v3543, %v3591
    %3593 = vmatmul.bf16.gmra.mxu0 %v844
    %v3594 = vpop.f32.mrf.mxu0
    %v3595 = vadd.f32 %v3546, %v3594
    %v3596 = vpop.f32.mrf.mxu0
    %v3597 = vadd.f32 %v3548, %v3596
    %3598 = vmatmul.bf16.gmra.mxu0 %v851
    %v3599 = vpop.f32.mrf.mxu0
    %v3600 = vadd.f32 %v3551, %v3599
    %v3601 = vpop.f32.mrf.mxu0
    %v3602 = vadd.f32 %v3553, %v3601
    %3603 = vmatmul.bf16.gmra.mxu0 %v858
    %v3604 = vpop.f32.mrf.mxu0
    %v3605 = vadd.f32 %v3556, %v3604
    %v3606 = vpop.f32.mrf.mxu0
    %v3607 = vadd.f32 %v3558, %v3606
    %3608 = vmatmul.bf16.gmra.mxu0 %v865
    %v3609 = vpop.f32.mrf.mxu0
    %v3610 = vadd.f32 %v3561, %v3609
    %v3611 = vpop.f32.mrf.mxu0
    %v3612 = vadd.f32 %v3563, %v3611
    %3613 = vmatmul.bf16.gmra.mxu0 %v872
    %v3614 = vpop.f32.mrf.mxu0
    %v3615 = vadd.f32 %v3566, %v3614
    %v3616 = vpop.f32.mrf.mxu0
    %v3617 = vadd.f32 %v3568, %v3616
    %3618 = vmatmul.bf16.gmra.mxu0 %v879
    %v3619 = vpop.f32.mrf.mxu0
    %v3620 = vadd.f32 %v3571, %v3619
    %v3621 = vpop.f32.mrf.mxu0
    %v3622 = vadd.f32 %v3573, %v3621
    %3623 = vmatmul.bf16.gmra.mxu0 %v886
    %v3624 = vpop.f32.mrf.mxu0
    %v3625 = vadd.f32 %v3576, %v3624
    %v3626 = vpop.f32.mrf.mxu0
    %v3627 = vadd.f32 %v3578, %v3626
    %3628 = vdwg.mxu0
    %3629 = vmatpush.bf16.msra.mxu0 %v2477
    %3630 = vmatpush.bf16.msra.mxu0 %v2469
    %3631 = vmatpush.bf16.msra.mxu0 %v2461
    %3632 = vmatpush.bf16.msra.mxu0 %v2453
    %3633 = vmatpush.bf16.msra.mxu0 %v2445
    %3634 = vmatpush.bf16.msra.mxu0 %v2437
    %3635 = vmatpush.bf16.msra.mxu0 %v2429
    %3636 = vmatpush.bf16.msra.mxu0 %v2421
    %3637 = vmatmul.bf16.gmra.mxu0 %v838
    %v3638 = vpop.f32.mrf.mxu0
    %v3639 = vadd.f32 %v3590, %v3638
    %v3640 = vpop.f32.mrf.mxu0
    %v3641 = vadd.f32 %v3592, %v3640
    %3642 = vmatmul.bf16.gmra.mxu0 %v845
    %v3643 = vpop.f32.mrf.mxu0
    %v3644 = vadd.f32 %v3595, %v3643
    %v3645 = vpop.f32.mrf.mxu0
    %v3646 = vadd.f32 %v3597, %v3645
    %3647 = vmatmul.bf16.gmra.mxu0 %v852
    %v3648 = vpop.f32.mrf.mxu0
    %v3649 = vadd.f32 %v3600, %v3648
    %v3650 = vpop.f32.mrf.mxu0
    %v3651 = vadd.f32 %v3602, %v3650
    %3652 = vmatmul.bf16.gmra.mxu0 %v859
    %v3653 = vpop.f32.mrf.mxu0
    %v3654 = vadd.f32 %v3605, %v3653
    %v3655 = vpop.f32.mrf.mxu0
    %v3656 = vadd.f32 %v3607, %v3655
    %3657 = vmatmul.bf16.gmra.mxu0 %v866
    %v3658 = vpop.f32.mrf.mxu0
    %v3659 = vadd.f32 %v3610, %v3658
    %v3660 = vpop.f32.mrf.mxu0
    %v3661 = vadd.f32 %v3612, %v3660
    %3662 = vmatmul.bf16.gmra.mxu0 %v873
    %v3663 = vpop.f32.mrf.mxu0
    %v3664 = vadd.f32 %v3615, %v3663
    %v3665 = vpop.f32.mrf.mxu0
    %v3666 = vadd.f32 %v3617, %v3665
    %3667 = vmatmul.bf16.gmra.mxu0 %v880
    %v3668 = vpop.f32.mrf.mxu0
    %v3669 = vadd.f32 %v3620, %v3668
    %v3670 = vpop.f32.mrf.mxu0
    %v3671 = vadd.f32 %v3622, %v3670
    %3672 = vmatmul.bf16.gmra.mxu0 %v887
    %v3673 = vpop.f32.mrf.mxu0
    %v3674 = vadd.f32 %v3625, %v3673
    %v3675 = vpop.f32.mrf.mxu0
    %v3676 = vadd.f32 %v3627, %v3675
    %3677 = vdwg.mxu0
    %3678 = vmatpush.bf16.msra.mxu0 %v2541
    %3679 = vmatpush.bf16.msra.mxu0 %v2533
    %3680 = vmatpush.bf16.msra.mxu0 %v2525
    %3681 = vmatpush.bf16.msra.mxu0 %v2517
    %3682 = vmatpush.bf16.msra.mxu0 %v2509
    %3683 = vmatpush.bf16.msra.mxu0 %v2501
    %3684 = vmatpush.bf16.msra.mxu0 %v2493
    %3685 = vmatpush.bf16.msra.mxu0 %v2485
    %3686 = vmatmul.bf16.gmra.mxu0 %v839
    %v3687 = vpop.f32.mrf.mxu0
    %v3688 = vadd.f32 %v3639, %v3687
    %v3689 = vpop.f32.mrf.mxu0
    %v3690 = vadd.f32 %v3641, %v3689
    %3691 = vmatmul.bf16.gmra.mxu0 %v846
    %v3692 = vpop.f32.mrf.mxu0
    %v3693 = vadd.f32 %v3644, %v3692
    %v3694 = vpop.f32.mrf.mxu0
    %v3695 = vadd.f32 %v3646, %v3694
    %3696 = vmatmul.bf16.gmra.mxu0 %v853
    %v3697 = vpop.f32.mrf.mxu0
    %v3698 = vadd.f32 %v3649, %v3697
    %v3699 = vpop.f32.mrf.mxu0
    %v3700 = vadd.f32 %v3651, %v3699
    %3701 = vmatmul.bf16.gmra.mxu0 %v860
    %v3702 = vpop.f32.mrf.mxu0
    %v3703 = vadd.f32 %v3654, %v3702
    %v3704 = vpop.f32.mrf.mxu0
    %v3705 = vadd.f32 %v3656, %v3704
    %3706 = vmatmul.bf16.gmra.mxu0 %v867
    %v3707 = vpop.f32.mrf.mxu0
    %v3708 = vadd.f32 %v3659, %v3707
    %v3709 = vpop.f32.mrf.mxu0
    %v3710 = vadd.f32 %v3661, %v3709
    %3711 = vmatmul.bf16.gmra.mxu0 %v874
    %v3712 = vpop.f32.mrf.mxu0
    %v3713 = vadd.f32 %v3664, %v3712
    %v3714 = vpop.f32.mrf.mxu0
    %v3715 = vadd.f32 %v3666, %v3714
    %3716 = vmatmul.bf16.gmra.mxu0 %v881
    %v3717 = vpop.f32.mrf.mxu0
    %v3718 = vadd.f32 %v3669, %v3717
    %v3719 = vpop.f32.mrf.mxu0
    %v3720 = vadd.f32 %v3671, %v3719
    %3721 = vmatmul.bf16.gmra.mxu0 %v888
    %v3722 = vpop.f32.mrf.mxu0
    %v3723 = vadd.f32 %v3674, %v3722
    %v3724 = vpop.f32.mrf.mxu0
    %v3725 = vadd.f32 %v3676, %v3724
    %3726 = vdwg.mxu0
    %3727 = vmatpush.bf16.msra.mxu0 %v2605
    %3728 = vmatpush.bf16.msra.mxu0 %v2597
    %3729 = vmatpush.bf16.msra.mxu0 %v2589
    %3730 = vmatpush.bf16.msra.mxu0 %v2581
    %3731 = vmatpush.bf16.msra.mxu0 %v2573
    %3732 = vmatpush.bf16.msra.mxu0 %v2565
    %3733 = vmatpush.bf16.msra.mxu0 %v2557
    %3734 = vmatpush.bf16.msra.mxu0 %v2549
    %3735 = vmatmul.bf16.gmra.mxu0 %v840
    %v3736 = vpop.f32.mrf.mxu0
    %v3737 = vadd.f32 %v3688, %v3736
    %v3738 = vpop.f32.mrf.mxu0
    %v3739 = vadd.f32 %v3690, %v3738
    %3740 = vmatmul.bf16.gmra.mxu0 %v847
    %v3741 = vpop.f32.mrf.mxu0
    %v3742 = vadd.f32 %v3693, %v3741
    %v3743 = vpop.f32.mrf.mxu0
    %v3744 = vadd.f32 %v3695, %v3743
    %3745 = vmatmul.bf16.gmra.mxu0 %v854
    %v3746 = vpop.f32.mrf.mxu0
    %v3747 = vadd.f32 %v3698, %v3746
    %v3748 = vpop.f32.mrf.mxu0
    %v3749 = vadd.f32 %v3700, %v3748
    %3750 = vmatmul.bf16.gmra.mxu0 %v861
    %v3751 = vpop.f32.mrf.mxu0
    %v3752 = vadd.f32 %v3703, %v3751
    %v3753 = vpop.f32.mrf.mxu0
    %v3754 = vadd.f32 %v3705, %v3753
    %3755 = vmatmul.bf16.gmra.mxu0 %v868
    %v3756 = vpop.f32.mrf.mxu0
    %v3757 = vadd.f32 %v3708, %v3756
    %v3758 = vpop.f32.mrf.mxu0
    %v3759 = vadd.f32 %v3710, %v3758
    %3760 = vmatmul.bf16.gmra.mxu0 %v875
    %v3761 = vpop.f32.mrf.mxu0
    %v3762 = vadd.f32 %v3713, %v3761
    %v3763 = vpop.f32.mrf.mxu0
    %v3764 = vadd.f32 %v3715, %v3763
    %3765 = vmatmul.bf16.gmra.mxu0 %v882
    %v3766 = vpop.f32.mrf.mxu0
    %v3767 = vadd.f32 %v3718, %v3766
    %v3768 = vpop.f32.mrf.mxu0
    %v3769 = vadd.f32 %v3720, %v3768
    %3770 = vmatmul.bf16.gmra.mxu0 %v889
    %v3771 = vpop.f32.mrf.mxu0
    %v3772 = vadd.f32 %v3723, %v3771
    %v3773 = vpop.f32.mrf.mxu0
    %v3774 = vadd.f32 %v3725, %v3773
    %3775 = vdwg.mxu0
    %3776 = vmatpush.bf16.msra.mxu0 %v2669
    %3777 = vmatpush.bf16.msra.mxu0 %v2661
    %3778 = vmatpush.bf16.msra.mxu0 %v2653
    %3779 = vmatpush.bf16.msra.mxu0 %v2645
    %3780 = vmatpush.bf16.msra.mxu0 %v2637
    %3781 = vmatpush.bf16.msra.mxu0 %v2629
    %3782 = vmatpush.bf16.msra.mxu0 %v2621
    %3783 = vmatpush.bf16.msra.mxu0 %v2613
    %3784 = vmatmul.bf16.gmra.mxu0 %v841
    %v3785 = vpop.f32.mrf.mxu0
    %v3786 = vadd.f32 %v3737, %v3785
    %v3787 = vpop.f32.mrf.mxu0
    %v3788 = vadd.f32 %v3739, %v3787
    %3789 = vmatmul.bf16.gmra.mxu0 %v848
    %v3790 = vpop.f32.mrf.mxu0
    %v3791 = vadd.f32 %v3742, %v3790
    %v3792 = vpop.f32.mrf.mxu0
    %v3793 = vadd.f32 %v3744, %v3792
    %3794 = vmatmul.bf16.gmra.mxu0 %v855
    %v3795 = vpop.f32.mrf.mxu0
    %v3796 = vadd.f32 %v3747, %v3795
    %v3797 = vpop.f32.mrf.mxu0
    %v3798 = vadd.f32 %v3749, %v3797
    %3799 = vmatmul.bf16.gmra.mxu0 %v862
    %v3800 = vpop.f32.mrf.mxu0
    %v3801 = vadd.f32 %v3752, %v3800
    %v3802 = vpop.f32.mrf.mxu0
    %v3803 = vadd.f32 %v3754, %v3802
    %3804 = vmatmul.bf16.gmra.mxu0 %v869
    %v3805 = vpop.f32.mrf.mxu0
    %v3806 = vadd.f32 %v3757, %v3805
    %v3807 = vpop.f32.mrf.mxu0
    %v3808 = vadd.f32 %v3759, %v3807
    %3809 = vmatmul.bf16.gmra.mxu0 %v876
    %v3810 = vpop.f32.mrf.mxu0
    %v3811 = vadd.f32 %v3762, %v3810
    %v3812 = vpop.f32.mrf.mxu0
    %v3813 = vadd.f32 %v3764, %v3812
    %3814 = vmatmul.bf16.gmra.mxu0 %v883
    %v3815 = vpop.f32.mrf.mxu0
    %v3816 = vadd.f32 %v3767, %v3815
    %v3817 = vpop.f32.mrf.mxu0
    %v3818 = vadd.f32 %v3769, %v3817
    %3819 = vmatmul.bf16.gmra.mxu0 %v890
    %v3820 = vpop.f32.mrf.mxu0
    %v3821 = vadd.f32 %v3772, %v3820
    %v3822 = vpop.f32.mrf.mxu0
    %v3823 = vadd.f32 %v3774, %v3822
    %3824 = vdwg.mxu0
    %3825 = vmatpush.bf16.msra.mxu0 %v2733
    %3826 = vmatpush.bf16.msra.mxu0 %v2725
    %3827 = vmatpush.bf16.msra.mxu0 %v2717
    %3828 = vmatpush.bf16.msra.mxu0 %v2709
    %3829 = vmatpush.bf16.msra.mxu0 %v2701
    %3830 = vmatpush.bf16.msra.mxu0 %v2693
    %3831 = vmatpush.bf16.msra.mxu0 %v2685
    %3832 = vmatpush.bf16.msra.mxu0 %v2677
    %3833 = vmatmul.bf16.gmra.mxu0 %v842
    %v3834 = vpop.f32.mrf.mxu0
    %v3835 = vadd.f32 %v3786, %v3834
    %v3836 = vpop.f32.mrf.mxu0
    %v3837 = vadd.f32 %v3788, %v3836
    %3838 = vmatmul.bf16.gmra.mxu0 %v849
    %v3839 = vpop.f32.mrf.mxu0
    %v3840 = vadd.f32 %v3791, %v3839
    %v3841 = vpop.f32.mrf.mxu0
    %v3842 = vadd.f32 %v3793, %v3841
    %3843 = vmatmul.bf16.gmra.mxu0 %v856
    %v3844 = vpop.f32.mrf.mxu0
    %v3845 = vadd.f32 %v3796, %v3844
    %v3846 = vpop.f32.mrf.mxu0
    %v3847 = vadd.f32 %v3798, %v3846
    %3848 = vmatmul.bf16.gmra.mxu0 %v863
    %v3849 = vpop.f32.mrf.mxu0
    %v3850 = vadd.f32 %v3801, %v3849
    %v3851 = vpop.f32.mrf.mxu0
    %v3852 = vadd.f32 %v3803, %v3851
    %3853 = vmatmul.bf16.gmra.mxu0 %v870
    %v3854 = vpop.f32.mrf.mxu0
    %v3855 = vadd.f32 %v3806, %v3854
    %v3856 = vpop.f32.mrf.mxu0
    %v3857 = vadd.f32 %v3808, %v3856
    %3858 = vmatmul.bf16.gmra.mxu0 %v877
    %v3859 = vpop.f32.mrf.mxu0
    %v3860 = vadd.f32 %v3811, %v3859
    %v3861 = vpop.f32.mrf.mxu0
    %v3862 = vadd.f32 %v3813, %v3861
    %3863 = vmatmul.bf16.gmra.mxu0 %v884
    %v3864 = vpop.f32.mrf.mxu0
    %v3865 = vadd.f32 %v3816, %v3864
    %v3866 = vpop.f32.mrf.mxu0
    %v3867 = vadd.f32 %v3818, %v3866
    %3868 = vmatmul.bf16.gmra.mxu0 %v891
    %v3869 = vpop.f32.mrf.mxu0
    %v3870 = vadd.f32 %v3821, %v3869
    %v3871 = vpop.f32.mrf.mxu0
    %v3872 = vadd.f32 %v3823, %v3871
    %3873 = vdwg.mxu0
    %3874 = vmatpush.bf16.msra.mxu0 %v2350
    %3875 = vmatpush.bf16.msra.mxu0 %v2342
    %3876 = vmatpush.bf16.msra.mxu0 %v2334
    %3877 = vmatpush.bf16.msra.mxu0 %v2326
    %3878 = vmatpush.bf16.msra.mxu0 %v2318
    %3879 = vmatpush.bf16.msra.mxu0 %v2310
    %3880 = vmatpush.bf16.msra.mxu0 %v2302
    %3881 = vmatpush.bf16.msra.mxu0 %v2294
    %3882 = vmatmul.bf16.gmra.mxu0 %v836
    %v3883 = vpop.f32.mrf.mxu0
    %v3884 = vadd.f32 %v646, %v3883
    %v3885 = vpop.f32.mrf.mxu0
    %v3886 = vadd.f32 %v646, %v3885
    %3887 = vmatmul.bf16.gmra.mxu0 %v843
    %v3888 = vpop.f32.mrf.mxu0
    %v3889 = vadd.f32 %v646, %v3888
    %v3890 = vpop.f32.mrf.mxu0
    %v3891 = vadd.f32 %v646, %v3890
    %3892 = vmatmul.bf16.gmra.mxu0 %v850
    %v3893 = vpop.f32.mrf.mxu0
    %v3894 = vadd.f32 %v646, %v3893
    %v3895 = vpop.f32.mrf.mxu0
    %v3896 = vadd.f32 %v646, %v3895
    %3897 = vmatmul.bf16.gmra.mxu0 %v857
    %v3898 = vpop.f32.mrf.mxu0
    %v3899 = vadd.f32 %v646, %v3898
    %v3900 = vpop.f32.mrf.mxu0
    %v3901 = vadd.f32 %v646, %v3900
    %3902 = vmatmul.bf16.gmra.mxu0 %v864
    %v3903 = vpop.f32.mrf.mxu0
    %v3904 = vadd.f32 %v646, %v3903
    %v3905 = vpop.f32.mrf.mxu0
    %v3906 = vadd.f32 %v646, %v3905
    %3907 = vmatmul.bf16.gmra.mxu0 %v871
    %v3908 = vpop.f32.mrf.mxu0
    %v3909 = vadd.f32 %v646, %v3908
    %v3910 = vpop.f32.mrf.mxu0
    %v3911 = vadd.f32 %v646, %v3910
    %3912 = vmatmul.bf16.gmra.mxu0 %v878
    %v3913 = vpop.f32.mrf.mxu0
    %v3914 = vadd.f32 %v646, %v3913
    %v3915 = vpop.f32.mrf.mxu0
    %v3916 = vadd.f32 %v646, %v3915
    %3917 = vmatmul.bf16.gmra.mxu0 %v885
    %v3918 = vpop.f32.mrf.mxu0
    %v3919 = vadd.f32 %v646, %v3918
    %v3920 = vpop.f32.mrf.mxu0
    %v3921 = vadd.f32 %v646, %v3920
    %3922 = vdwg.mxu0
    %3923 = vmatpush.bf16.msra.mxu0 %v2414
    %3924 = vmatpush.bf16.msra.mxu0 %v2406
    %3925 = vmatpush.bf16.msra.mxu0 %v2398
    %3926 = vmatpush.bf16.msra.mxu0 %v2390
    %3927 = vmatpush.bf16.msra.mxu0 %v2382
    %3928 = vmatpush.bf16.msra.mxu0 %v2374
    %3929 = vmatpush.bf16.msra.mxu0 %v2366
    %3930 = vmatpush.bf16.msra.mxu0 %v2358
    %3931 = vmatmul.bf16.gmra.mxu0 %v837
    %v3932 = vpop.f32.mrf.mxu0
    %v3933 = vadd.f32 %v3884, %v3932
    %v3934 = vpop.f32.mrf.mxu0
    %v3935 = vadd.f32 %v3886, %v3934
    %3936 = vmatmul.bf16.gmra.mxu0 %v844
    %v3937 = vpop.f32.mrf.mxu0
    %v3938 = vadd.f32 %v3889, %v3937
    %v3939 = vpop.f32.mrf.mxu0
    %v3940 = vadd.f32 %v3891, %v3939
    %3941 = vmatmul.bf16.gmra.mxu0 %v851
    %v3942 = vpop.f32.mrf.mxu0
    %v3943 = vadd.f32 %v3894, %v3942
    %v3944 = vpop.f32.mrf.mxu0
    %v3945 = vadd.f32 %v3896, %v3944
    %3946 = vmatmul.bf16.gmra.mxu0 %v858
    %v3947 = vpop.f32.mrf.mxu0
    %v3948 = vadd.f32 %v3899, %v3947
    %v3949 = vpop.f32.mrf.mxu0
    %v3950 = vadd.f32 %v3901, %v3949
    %3951 = vmatmul.bf16.gmra.mxu0 %v865
    %v3952 = vpop.f32.mrf.mxu0
    %v3953 = vadd.f32 %v3904, %v3952
    %v3954 = vpop.f32.mrf.mxu0
    %v3955 = vadd.f32 %v3906, %v3954
    %3956 = vmatmul.bf16.gmra.mxu0 %v872
    %v3957 = vpop.f32.mrf.mxu0
    %v3958 = vadd.f32 %v3909, %v3957
    %v3959 = vpop.f32.mrf.mxu0
    %v3960 = vadd.f32 %v3911, %v3959
    %3961 = vmatmul.bf16.gmra.mxu0 %v879
    %v3962 = vpop.f32.mrf.mxu0
    %v3963 = vadd.f32 %v3914, %v3962
    %v3964 = vpop.f32.mrf.mxu0
    %v3965 = vadd.f32 %v3916, %v3964
    %3966 = vmatmul.bf16.gmra.mxu0 %v886
    %v3967 = vpop.f32.mrf.mxu0
    %v3968 = vadd.f32 %v3919, %v3967
    %v3969 = vpop.f32.mrf.mxu0
    %v3970 = vadd.f32 %v3921, %v3969
    %3971 = vdwg.mxu0
    %3972 = vmatpush.bf16.msra.mxu0 %v2478
    %3973 = vmatpush.bf16.msra.mxu0 %v2470
    %3974 = vmatpush.bf16.msra.mxu0 %v2462
    %3975 = vmatpush.bf16.msra.mxu0 %v2454
    %3976 = vmatpush.bf16.msra.mxu0 %v2446
    %3977 = vmatpush.bf16.msra.mxu0 %v2438
    %3978 = vmatpush.bf16.msra.mxu0 %v2430
    %3979 = vmatpush.bf16.msra.mxu0 %v2422
    %3980 = vmatmul.bf16.gmra.mxu0 %v838
    %v3981 = vpop.f32.mrf.mxu0
    %v3982 = vadd.f32 %v3933, %v3981
    %v3983 = vpop.f32.mrf.mxu0
    %v3984 = vadd.f32 %v3935, %v3983
    %3985 = vmatmul.bf16.gmra.mxu0 %v845
    %v3986 = vpop.f32.mrf.mxu0
    %v3987 = vadd.f32 %v3938, %v3986
    %v3988 = vpop.f32.mrf.mxu0
    %v3989 = vadd.f32 %v3940, %v3988
    %3990 = vmatmul.bf16.gmra.mxu0 %v852
    %v3991 = vpop.f32.mrf.mxu0
    %v3992 = vadd.f32 %v3943, %v3991
    %v3993 = vpop.f32.mrf.mxu0
    %v3994 = vadd.f32 %v3945, %v3993
    %3995 = vmatmul.bf16.gmra.mxu0 %v859
    %v3996 = vpop.f32.mrf.mxu0
    %v3997 = vadd.f32 %v3948, %v3996
    %v3998 = vpop.f32.mrf.mxu0
    %v3999 = vadd.f32 %v3950, %v3998
    %4000 = vmatmul.bf16.gmra.mxu0 %v866
    %v4001 = vpop.f32.mrf.mxu0
    %v4002 = vadd.f32 %v3953, %v4001
    %v4003 = vpop.f32.mrf.mxu0
    %v4004 = vadd.f32 %v3955, %v4003
    %4005 = vmatmul.bf16.gmra.mxu0 %v873
    %v4006 = vpop.f32.mrf.mxu0
    %v4007 = vadd.f32 %v3958, %v4006
    %v4008 = vpop.f32.mrf.mxu0
    %v4009 = vadd.f32 %v3960, %v4008
    %4010 = vmatmul.bf16.gmra.mxu0 %v880
    %v4011 = vpop.f32.mrf.mxu0
    %v4012 = vadd.f32 %v3963, %v4011
    %v4013 = vpop.f32.mrf.mxu0
    %v4014 = vadd.f32 %v3965, %v4013
    %4015 = vmatmul.bf16.gmra.mxu0 %v887
    %v4016 = vpop.f32.mrf.mxu0
    %v4017 = vadd.f32 %v3968, %v4016
    %v4018 = vpop.f32.mrf.mxu0
    %v4019 = vadd.f32 %v3970, %v4018
    %4020 = vdwg.mxu0
    %4021 = vmatpush.bf16.msra.mxu0 %v2542
    %4022 = vmatpush.bf16.msra.mxu0 %v2534
    %4023 = vmatpush.bf16.msra.mxu0 %v2526
    %4024 = vmatpush.bf16.msra.mxu0 %v2518
    %4025 = vmatpush.bf16.msra.mxu0 %v2510
    %4026 = vmatpush.bf16.msra.mxu0 %v2502
    %4027 = vmatpush.bf16.msra.mxu0 %v2494
    %4028 = vmatpush.bf16.msra.mxu0 %v2486
    %4029 = vmatmul.bf16.gmra.mxu0 %v839
    %v4030 = vpop.f32.mrf.mxu0
    %v4031 = vadd.f32 %v3982, %v4030
    %v4032 = vpop.f32.mrf.mxu0
    %v4033 = vadd.f32 %v3984, %v4032
    %4034 = vmatmul.bf16.gmra.mxu0 %v846
    %v4035 = vpop.f32.mrf.mxu0
    %v4036 = vadd.f32 %v3987, %v4035
    %v4037 = vpop.f32.mrf.mxu0
    %v4038 = vadd.f32 %v3989, %v4037
    %4039 = vmatmul.bf16.gmra.mxu0 %v853
    %v4040 = vpop.f32.mrf.mxu0
    %v4041 = vadd.f32 %v3992, %v4040
    %v4042 = vpop.f32.mrf.mxu0
    %v4043 = vadd.f32 %v3994, %v4042
    %4044 = vmatmul.bf16.gmra.mxu0 %v860
    %v4045 = vpop.f32.mrf.mxu0
    %v4046 = vadd.f32 %v3997, %v4045
    %v4047 = vpop.f32.mrf.mxu0
    %v4048 = vadd.f32 %v3999, %v4047
    %4049 = vmatmul.bf16.gmra.mxu0 %v867
    %v4050 = vpop.f32.mrf.mxu0
    %v4051 = vadd.f32 %v4002, %v4050
    %v4052 = vpop.f32.mrf.mxu0
    %v4053 = vadd.f32 %v4004, %v4052
    %4054 = vmatmul.bf16.gmra.mxu0 %v874
    %v4055 = vpop.f32.mrf.mxu0
    %v4056 = vadd.f32 %v4007, %v4055
    %v4057 = vpop.f32.mrf.mxu0
    %v4058 = vadd.f32 %v4009, %v4057
    %4059 = vmatmul.bf16.gmra.mxu0 %v881
    %v4060 = vpop.f32.mrf.mxu0
    %v4061 = vadd.f32 %v4012, %v4060
    %v4062 = vpop.f32.mrf.mxu0
    %v4063 = vadd.f32 %v4014, %v4062
    %4064 = vmatmul.bf16.gmra.mxu0 %v888
    %v4065 = vpop.f32.mrf.mxu0
    %v4066 = vadd.f32 %v4017, %v4065
    %v4067 = vpop.f32.mrf.mxu0
    %v4068 = vadd.f32 %v4019, %v4067
    %4069 = vdwg.mxu0
    %4070 = vmatpush.bf16.msra.mxu0 %v2606
    %4071 = vmatpush.bf16.msra.mxu0 %v2598
    %4072 = vmatpush.bf16.msra.mxu0 %v2590
    %4073 = vmatpush.bf16.msra.mxu0 %v2582
    %4074 = vmatpush.bf16.msra.mxu0 %v2574
    %4075 = vmatpush.bf16.msra.mxu0 %v2566
    %4076 = vmatpush.bf16.msra.mxu0 %v2558
    %4077 = vmatpush.bf16.msra.mxu0 %v2550
    %4078 = vmatmul.bf16.gmra.mxu0 %v840
    %v4079 = vpop.f32.mrf.mxu0
    %v4080 = vadd.f32 %v4031, %v4079
    %v4081 = vpop.f32.mrf.mxu0
    %v4082 = vadd.f32 %v4033, %v4081
    %4083 = vmatmul.bf16.gmra.mxu0 %v847
    %v4084 = vpop.f32.mrf.mxu0
    %v4085 = vadd.f32 %v4036, %v4084
    %v4086 = vpop.f32.mrf.mxu0
    %v4087 = vadd.f32 %v4038, %v4086
    %4088 = vmatmul.bf16.gmra.mxu0 %v854
    %v4089 = vpop.f32.mrf.mxu0
    %v4090 = vadd.f32 %v4041, %v4089
    %v4091 = vpop.f32.mrf.mxu0
    %v4092 = vadd.f32 %v4043, %v4091
    %4093 = vmatmul.bf16.gmra.mxu0 %v861
    %v4094 = vpop.f32.mrf.mxu0
    %v4095 = vadd.f32 %v4046, %v4094
    %v4096 = vpop.f32.mrf.mxu0
    %v4097 = vadd.f32 %v4048, %v4096
    %4098 = vmatmul.bf16.gmra.mxu0 %v868
    %v4099 = vpop.f32.mrf.mxu0
    %v4100 = vadd.f32 %v4051, %v4099
    %v4101 = vpop.f32.mrf.mxu0
    %v4102 = vadd.f32 %v4053, %v4101
    %4103 = vmatmul.bf16.gmra.mxu0 %v875
    %v4104 = vpop.f32.mrf.mxu0
    %v4105 = vadd.f32 %v4056, %v4104
    %v4106 = vpop.f32.mrf.mxu0
    %v4107 = vadd.f32 %v4058, %v4106
    %4108 = vmatmul.bf16.gmra.mxu0 %v882
    %v4109 = vpop.f32.mrf.mxu0
    %v4110 = vadd.f32 %v4061, %v4109
    %v4111 = vpop.f32.mrf.mxu0
    %v4112 = vadd.f32 %v4063, %v4111
    %4113 = vmatmul.bf16.gmra.mxu0 %v889
    %v4114 = vpop.f32.mrf.mxu0
    %v4115 = vadd.f32 %v4066, %v4114
    %v4116 = vpop.f32.mrf.mxu0
    %v4117 = vadd.f32 %v4068, %v4116
    %4118 = vdwg.mxu0
    %4119 = vmatpush.bf16.msra.mxu0 %v2670
    %4120 = vmatpush.bf16.msra.mxu0 %v2662
    %4121 = vmatpush.bf16.msra.mxu0 %v2654
    %4122 = vmatpush.bf16.msra.mxu0 %v2646
    %4123 = vmatpush.bf16.msra.mxu0 %v2638
    %4124 = vmatpush.bf16.msra.mxu0 %v2630
    %4125 = vmatpush.bf16.msra.mxu0 %v2622
    %4126 = vmatpush.bf16.msra.mxu0 %v2614
    %4127 = vmatmul.bf16.gmra.mxu0 %v841
    %v4128 = vpop.f32.mrf.mxu0
    %v4129 = vadd.f32 %v4080, %v4128
    %v4130 = vpop.f32.mrf.mxu0
    %v4131 = vadd.f32 %v4082, %v4130
    %4132 = vmatmul.bf16.gmra.mxu0 %v848
    %v4133 = vpop.f32.mrf.mxu0
    %v4134 = vadd.f32 %v4085, %v4133
    %v4135 = vpop.f32.mrf.mxu0
    %v4136 = vadd.f32 %v4087, %v4135
    %4137 = vmatmul.bf16.gmra.mxu0 %v855
    %v4138 = vpop.f32.mrf.mxu0
    %v4139 = vadd.f32 %v4090, %v4138
    %v4140 = vpop.f32.mrf.mxu0
    %v4141 = vadd.f32 %v4092, %v4140
    %4142 = vmatmul.bf16.gmra.mxu0 %v862
    %v4143 = vpop.f32.mrf.mxu0
    %v4144 = vadd.f32 %v4095, %v4143
    %v4145 = vpop.f32.mrf.mxu0
    %v4146 = vadd.f32 %v4097, %v4145
    %4147 = vmatmul.bf16.gmra.mxu0 %v869
    %v4148 = vpop.f32.mrf.mxu0
    %v4149 = vadd.f32 %v4100, %v4148
    %v4150 = vpop.f32.mrf.mxu0
    %v4151 = vadd.f32 %v4102, %v4150
    %4152 = vmatmul.bf16.gmra.mxu0 %v876
    %v4153 = vpop.f32.mrf.mxu0
    %v4154 = vadd.f32 %v4105, %v4153
    %v4155 = vpop.f32.mrf.mxu0
    %v4156 = vadd.f32 %v4107, %v4155
    %4157 = vmatmul.bf16.gmra.mxu0 %v883
    %v4158 = vpop.f32.mrf.mxu0
    %v4159 = vadd.f32 %v4110, %v4158
    %v4160 = vpop.f32.mrf.mxu0
    %v4161 = vadd.f32 %v4112, %v4160
    %4162 = vmatmul.bf16.gmra.mxu0 %v890
    %v4163 = vpop.f32.mrf.mxu0
    %v4164 = vadd.f32 %v4115, %v4163
    %v4165 = vpop.f32.mrf.mxu0
    %v4166 = vadd.f32 %v4117, %v4165
    %4167 = vdwg.mxu0
    %4168 = vmatpush.bf16.msra.mxu0 %v2734
    %4169 = vmatpush.bf16.msra.mxu0 %v2726
    %4170 = vmatpush.bf16.msra.mxu0 %v2718
    %4171 = vmatpush.bf16.msra.mxu0 %v2710
    %4172 = vmatpush.bf16.msra.mxu0 %v2702
    %4173 = vmatpush.bf16.msra.mxu0 %v2694
    %4174 = vmatpush.bf16.msra.mxu0 %v2686
    %4175 = vmatpush.bf16.msra.mxu0 %v2678
    %4176 = vmatmul.bf16.gmra.mxu0 %v842
    %v4177 = vpop.f32.mrf.mxu0
    %v4178 = vadd.f32 %v4129, %v4177
    %v4179 = vpop.f32.mrf.mxu0
    %v4180 = vadd.f32 %v4131, %v4179
    %4181 = vmatmul.bf16.gmra.mxu0 %v849
    %v4182 = vpop.f32.mrf.mxu0
    %v4183 = vadd.f32 %v4134, %v4182
    %v4184 = vpop.f32.mrf.mxu0
    %v4185 = vadd.f32 %v4136, %v4184
    %4186 = vmatmul.bf16.gmra.mxu0 %v856
    %v4187 = vpop.f32.mrf.mxu0
    %v4188 = vadd.f32 %v4139, %v4187
    %v4189 = vpop.f32.mrf.mxu0
    %v4190 = vadd.f32 %v4141, %v4189
    %4191 = vmatmul.bf16.gmra.mxu0 %v863
    %v4192 = vpop.f32.mrf.mxu0
    %v4193 = vadd.f32 %v4144, %v4192
    %v4194 = vpop.f32.mrf.mxu0
    %v4195 = vadd.f32 %v4146, %v4194
    %4196 = vmatmul.bf16.gmra.mxu0 %v870
    %v4197 = vpop.f32.mrf.mxu0
    %v4198 = vadd.f32 %v4149, %v4197
    %v4199 = vpop.f32.mrf.mxu0
    %v4200 = vadd.f32 %v4151, %v4199
    %4201 = vmatmul.bf16.gmra.mxu0 %v877
    %v4202 = vpop.f32.mrf.mxu0
    %v4203 = vadd.f32 %v4154, %v4202
    %v4204 = vpop.f32.mrf.mxu0
    %v4205 = vadd.f32 %v4156, %v4204
    %4206 = vmatmul.bf16.gmra.mxu0 %v884
    %v4207 = vpop.f32.mrf.mxu0
    %v4208 = vadd.f32 %v4159, %v4207
    %v4209 = vpop.f32.mrf.mxu0
    %v4210 = vadd.f32 %v4161, %v4209
    %4211 = vmatmul.bf16.gmra.mxu0 %v891
    %v4212 = vpop.f32.mrf.mxu0
    %v4213 = vadd.f32 %v4164, %v4212
    %v4214 = vpop.f32.mrf.mxu0
    %v4215 = vadd.f32 %v4166, %v4214
    %4216 = vdwg.mxu0
    %4217 = vmatpush.bf16.msra.mxu0 %v2351
    %4218 = vmatpush.bf16.msra.mxu0 %v2343
    %4219 = vmatpush.bf16.msra.mxu0 %v2335
    %4220 = vmatpush.bf16.msra.mxu0 %v2327
    %4221 = vmatpush.bf16.msra.mxu0 %v2319
    %4222 = vmatpush.bf16.msra.mxu0 %v2311
    %4223 = vmatpush.bf16.msra.mxu0 %v2303
    %4224 = vmatpush.bf16.msra.mxu0 %v2295
    %4225 = vmatmul.bf16.gmra.mxu0 %v836
    %v4226 = vpop.f32.mrf.mxu0
    %v4227 = vadd.f32 %v647, %v4226
    %v4228 = vpop.f32.mrf.mxu0
    %v4229 = vadd.f32 %v647, %v4228
    %4230 = vmatmul.bf16.gmra.mxu0 %v843
    %v4231 = vpop.f32.mrf.mxu0
    %v4232 = vadd.f32 %v647, %v4231
    %v4233 = vpop.f32.mrf.mxu0
    %v4234 = vadd.f32 %v647, %v4233
    %4235 = vmatmul.bf16.gmra.mxu0 %v850
    %v4236 = vpop.f32.mrf.mxu0
    %v4237 = vadd.f32 %v647, %v4236
    %v4238 = vpop.f32.mrf.mxu0
    %v4239 = vadd.f32 %v647, %v4238
    %4240 = vmatmul.bf16.gmra.mxu0 %v857
    %v4241 = vpop.f32.mrf.mxu0
    %v4242 = vadd.f32 %v647, %v4241
    %v4243 = vpop.f32.mrf.mxu0
    %v4244 = vadd.f32 %v647, %v4243
    %4245 = vmatmul.bf16.gmra.mxu0 %v864
    %v4246 = vpop.f32.mrf.mxu0
    %v4247 = vadd.f32 %v647, %v4246
    %v4248 = vpop.f32.mrf.mxu0
    %v4249 = vadd.f32 %v647, %v4248
    %4250 = vmatmul.bf16.gmra.mxu0 %v871
    %v4251 = vpop.f32.mrf.mxu0
    %v4252 = vadd.f32 %v647, %v4251
    %v4253 = vpop.f32.mrf.mxu0
    %v4254 = vadd.f32 %v647, %v4253
    %4255 = vmatmul.bf16.gmra.mxu0 %v878
    %v4256 = vpop.f32.mrf.mxu0
    %v4257 = vadd.f32 %v647, %v4256
    %v4258 = vpop.f32.mrf.mxu0
    %v4259 = vadd.f32 %v647, %v4258
    %4260 = vmatmul.bf16.gmra.mxu0 %v885
    %v4261 = vpop.f32.mrf.mxu0
    %v4262 = vadd.f32 %v647, %v4261
    %v4263 = vpop.f32.mrf.mxu0
    %v4264 = vadd.f32 %v647, %v4263
    %4265 = vdwg.mxu0
    %4266 = vmatpush.bf16.msra.mxu0 %v2415
    %4267 = vmatpush.bf16.msra.mxu0 %v2407
    %4268 = vmatpush.bf16.msra.mxu0 %v2399
    %4269 = vmatpush.bf16.msra.mxu0 %v2391
    %4270 = vmatpush.bf16.msra.mxu0 %v2383
    %4271 = vmatpush.bf16.msra.mxu0 %v2375
    %4272 = vmatpush.bf16.msra.mxu0 %v2367
    %4273 = vmatpush.bf16.msra.mxu0 %v2359
    %4274 = vmatmul.bf16.gmra.mxu0 %v837
    %v4275 = vpop.f32.mrf.mxu0
    %v4276 = vadd.f32 %v4227, %v4275
    %v4277 = vpop.f32.mrf.mxu0
    %v4278 = vadd.f32 %v4229, %v4277
    %4279 = vmatmul.bf16.gmra.mxu0 %v844
    %v4280 = vpop.f32.mrf.mxu0
    %v4281 = vadd.f32 %v4232, %v4280
    %v4282 = vpop.f32.mrf.mxu0
    %v4283 = vadd.f32 %v4234, %v4282
    %4284 = vmatmul.bf16.gmra.mxu0 %v851
    %v4285 = vpop.f32.mrf.mxu0
    %v4286 = vadd.f32 %v4237, %v4285
    %v4287 = vpop.f32.mrf.mxu0
    %v4288 = vadd.f32 %v4239, %v4287
    %4289 = vmatmul.bf16.gmra.mxu0 %v858
    %v4290 = vpop.f32.mrf.mxu0
    %v4291 = vadd.f32 %v4242, %v4290
    %v4292 = vpop.f32.mrf.mxu0
    %v4293 = vadd.f32 %v4244, %v4292
    %4294 = vmatmul.bf16.gmra.mxu0 %v865
    %v4295 = vpop.f32.mrf.mxu0
    %v4296 = vadd.f32 %v4247, %v4295
    %v4297 = vpop.f32.mrf.mxu0
    %v4298 = vadd.f32 %v4249, %v4297
    %4299 = vmatmul.bf16.gmra.mxu0 %v872
    %v4300 = vpop.f32.mrf.mxu0
    %v4301 = vadd.f32 %v4252, %v4300
    %v4302 = vpop.f32.mrf.mxu0
    %v4303 = vadd.f32 %v4254, %v4302
    %4304 = vmatmul.bf16.gmra.mxu0 %v879
    %v4305 = vpop.f32.mrf.mxu0
    %v4306 = vadd.f32 %v4257, %v4305
    %v4307 = vpop.f32.mrf.mxu0
    %v4308 = vadd.f32 %v4259, %v4307
    %4309 = vmatmul.bf16.gmra.mxu0 %v886
    %v4310 = vpop.f32.mrf.mxu0
    %v4311 = vadd.f32 %v4262, %v4310
    %v4312 = vpop.f32.mrf.mxu0
    %v4313 = vadd.f32 %v4264, %v4312
    %4314 = vdwg.mxu0
    %4315 = vmatpush.bf16.msra.mxu0 %v2479
    %4316 = vmatpush.bf16.msra.mxu0 %v2471
    %4317 = vmatpush.bf16.msra.mxu0 %v2463
    %4318 = vmatpush.bf16.msra.mxu0 %v2455
    %4319 = vmatpush.bf16.msra.mxu0 %v2447
    %4320 = vmatpush.bf16.msra.mxu0 %v2439
    %4321 = vmatpush.bf16.msra.mxu0 %v2431
    %4322 = vmatpush.bf16.msra.mxu0 %v2423
    %4323 = vmatmul.bf16.gmra.mxu0 %v838
    %v4324 = vpop.f32.mrf.mxu0
    %v4325 = vadd.f32 %v4276, %v4324
    %v4326 = vpop.f32.mrf.mxu0
    %v4327 = vadd.f32 %v4278, %v4326
    %4328 = vmatmul.bf16.gmra.mxu0 %v845
    %v4329 = vpop.f32.mrf.mxu0
    %v4330 = vadd.f32 %v4281, %v4329
    %v4331 = vpop.f32.mrf.mxu0
    %v4332 = vadd.f32 %v4283, %v4331
    %4333 = vmatmul.bf16.gmra.mxu0 %v852
    %v4334 = vpop.f32.mrf.mxu0
    %v4335 = vadd.f32 %v4286, %v4334
    %v4336 = vpop.f32.mrf.mxu0
    %v4337 = vadd.f32 %v4288, %v4336
    %4338 = vmatmul.bf16.gmra.mxu0 %v859
    %v4339 = vpop.f32.mrf.mxu0
    %v4340 = vadd.f32 %v4291, %v4339
    %v4341 = vpop.f32.mrf.mxu0
    %v4342 = vadd.f32 %v4293, %v4341
    %4343 = vmatmul.bf16.gmra.mxu0 %v866
    %v4344 = vpop.f32.mrf.mxu0
    %v4345 = vadd.f32 %v4296, %v4344
    %v4346 = vpop.f32.mrf.mxu0
    %v4347 = vadd.f32 %v4298, %v4346
    %4348 = vmatmul.bf16.gmra.mxu0 %v873
    %v4349 = vpop.f32.mrf.mxu0
    %v4350 = vadd.f32 %v4301, %v4349
    %v4351 = vpop.f32.mrf.mxu0
    %v4352 = vadd.f32 %v4303, %v4351
    %4353 = vmatmul.bf16.gmra.mxu0 %v880
    %v4354 = vpop.f32.mrf.mxu0
    %v4355 = vadd.f32 %v4306, %v4354
    %v4356 = vpop.f32.mrf.mxu0
    %v4357 = vadd.f32 %v4308, %v4356
    %4358 = vmatmul.bf16.gmra.mxu0 %v887
    %v4359 = vpop.f32.mrf.mxu0
    %v4360 = vadd.f32 %v4311, %v4359
    %v4361 = vpop.f32.mrf.mxu0
    %v4362 = vadd.f32 %v4313, %v4361
    %4363 = vdwg.mxu0
    %4364 = vmatpush.bf16.msra.mxu0 %v2543
    %4365 = vmatpush.bf16.msra.mxu0 %v2535
    %4366 = vmatpush.bf16.msra.mxu0 %v2527
    %4367 = vmatpush.bf16.msra.mxu0 %v2519
    %4368 = vmatpush.bf16.msra.mxu0 %v2511
    %4369 = vmatpush.bf16.msra.mxu0 %v2503
    %4370 = vmatpush.bf16.msra.mxu0 %v2495
    %4371 = vmatpush.bf16.msra.mxu0 %v2487
    %4372 = vmatmul.bf16.gmra.mxu0 %v839
    %v4373 = vpop.f32.mrf.mxu0
    %v4374 = vadd.f32 %v4325, %v4373
    %v4375 = vpop.f32.mrf.mxu0
    %v4376 = vadd.f32 %v4327, %v4375
    %4377 = vmatmul.bf16.gmra.mxu0 %v846
    %v4378 = vpop.f32.mrf.mxu0
    %v4379 = vadd.f32 %v4330, %v4378
    %v4380 = vpop.f32.mrf.mxu0
    %v4381 = vadd.f32 %v4332, %v4380
    %4382 = vmatmul.bf16.gmra.mxu0 %v853
    %v4383 = vpop.f32.mrf.mxu0
    %v4384 = vadd.f32 %v4335, %v4383
    %v4385 = vpop.f32.mrf.mxu0
    %v4386 = vadd.f32 %v4337, %v4385
    %4387 = vmatmul.bf16.gmra.mxu0 %v860
    %v4388 = vpop.f32.mrf.mxu0
    %v4389 = vadd.f32 %v4340, %v4388
    %v4390 = vpop.f32.mrf.mxu0
    %v4391 = vadd.f32 %v4342, %v4390
    %4392 = vmatmul.bf16.gmra.mxu0 %v867
    %v4393 = vpop.f32.mrf.mxu0
    %v4394 = vadd.f32 %v4345, %v4393
    %v4395 = vpop.f32.mrf.mxu0
    %v4396 = vadd.f32 %v4347, %v4395
    %4397 = vmatmul.bf16.gmra.mxu0 %v874
    %v4398 = vpop.f32.mrf.mxu0
    %v4399 = vadd.f32 %v4350, %v4398
    %v4400 = vpop.f32.mrf.mxu0
    %v4401 = vadd.f32 %v4352, %v4400
    %4402 = vmatmul.bf16.gmra.mxu0 %v881
    %v4403 = vpop.f32.mrf.mxu0
    %v4404 = vadd.f32 %v4355, %v4403
    %v4405 = vpop.f32.mrf.mxu0
    %v4406 = vadd.f32 %v4357, %v4405
    %4407 = vmatmul.bf16.gmra.mxu0 %v888
    %v4408 = vpop.f32.mrf.mxu0
    %v4409 = vadd.f32 %v4360, %v4408
    %v4410 = vpop.f32.mrf.mxu0
    %v4411 = vadd.f32 %v4362, %v4410
    %4412 = vdwg.mxu0
    %4413 = vmatpush.bf16.msra.mxu0 %v2607
    %4414 = vmatpush.bf16.msra.mxu0 %v2599
    %4415 = vmatpush.bf16.msra.mxu0 %v2591
    %4416 = vmatpush.bf16.msra.mxu0 %v2583
    %4417 = vmatpush.bf16.msra.mxu0 %v2575
    %4418 = vmatpush.bf16.msra.mxu0 %v2567
    %4419 = vmatpush.bf16.msra.mxu0 %v2559
    %4420 = vmatpush.bf16.msra.mxu0 %v2551
    %4421 = vmatmul.bf16.gmra.mxu0 %v840
    %v4422 = vpop.f32.mrf.mxu0
    %v4423 = vadd.f32 %v4374, %v4422
    %v4424 = vpop.f32.mrf.mxu0
    %v4425 = vadd.f32 %v4376, %v4424
    %4426 = vmatmul.bf16.gmra.mxu0 %v847
    %v4427 = vpop.f32.mrf.mxu0
    %v4428 = vadd.f32 %v4379, %v4427
    %v4429 = vpop.f32.mrf.mxu0
    %v4430 = vadd.f32 %v4381, %v4429
    %4431 = vmatmul.bf16.gmra.mxu0 %v854
    %v4432 = vpop.f32.mrf.mxu0
    %v4433 = vadd.f32 %v4384, %v4432
    %v4434 = vpop.f32.mrf.mxu0
    %v4435 = vadd.f32 %v4386, %v4434
    %4436 = vmatmul.bf16.gmra.mxu0 %v861
    %v4437 = vpop.f32.mrf.mxu0
    %v4438 = vadd.f32 %v4389, %v4437
    %v4439 = vpop.f32.mrf.mxu0
    %v4440 = vadd.f32 %v4391, %v4439
    %4441 = vmatmul.bf16.gmra.mxu0 %v868
    %v4442 = vpop.f32.mrf.mxu0
    %v4443 = vadd.f32 %v4394, %v4442
    %v4444 = vpop.f32.mrf.mxu0
    %v4445 = vadd.f32 %v4396, %v4444
    %4446 = vmatmul.bf16.gmra.mxu0 %v875
    %v4447 = vpop.f32.mrf.mxu0
    %v4448 = vadd.f32 %v4399, %v4447
    %v4449 = vpop.f32.mrf.mxu0
    %v4450 = vadd.f32 %v4401, %v4449
    %4451 = vmatmul.bf16.gmra.mxu0 %v882
    %v4452 = vpop.f32.mrf.mxu0
    %v4453 = vadd.f32 %v4404, %v4452
    %v4454 = vpop.f32.mrf.mxu0
    %v4455 = vadd.f32 %v4406, %v4454
    %4456 = vmatmul.bf16.gmra.mxu0 %v889
    %v4457 = vpop.f32.mrf.mxu0
    %v4458 = vadd.f32 %v4409, %v4457
    %v4459 = vpop.f32.mrf.mxu0
    %v4460 = vadd.f32 %v4411, %v4459
    %4461 = vdwg.mxu0
    %4462 = vmatpush.bf16.msra.mxu0 %v2671
    %4463 = vmatpush.bf16.msra.mxu0 %v2663
    %4464 = vmatpush.bf16.msra.mxu0 %v2655
    %4465 = vmatpush.bf16.msra.mxu0 %v2647
    %4466 = vmatpush.bf16.msra.mxu0 %v2639
    %4467 = vmatpush.bf16.msra.mxu0 %v2631
    %4468 = vmatpush.bf16.msra.mxu0 %v2623
    %4469 = vmatpush.bf16.msra.mxu0 %v2615
    %4470 = vmatmul.bf16.gmra.mxu0 %v841
    %v4471 = vpop.f32.mrf.mxu0
    %v4472 = vadd.f32 %v4423, %v4471
    %v4473 = vpop.f32.mrf.mxu0
    %v4474 = vadd.f32 %v4425, %v4473
    %4475 = vmatmul.bf16.gmra.mxu0 %v848
    %v4476 = vpop.f32.mrf.mxu0
    %v4477 = vadd.f32 %v4428, %v4476
    %v4478 = vpop.f32.mrf.mxu0
    %v4479 = vadd.f32 %v4430, %v4478
    %4480 = vmatmul.bf16.gmra.mxu0 %v855
    %v4481 = vpop.f32.mrf.mxu0
    %v4482 = vadd.f32 %v4433, %v4481
    %v4483 = vpop.f32.mrf.mxu0
    %v4484 = vadd.f32 %v4435, %v4483
    %4485 = vmatmul.bf16.gmra.mxu0 %v862
    %v4486 = vpop.f32.mrf.mxu0
    %v4487 = vadd.f32 %v4438, %v4486
    %v4488 = vpop.f32.mrf.mxu0
    %v4489 = vadd.f32 %v4440, %v4488
    %4490 = vmatmul.bf16.gmra.mxu0 %v869
    %v4491 = vpop.f32.mrf.mxu0
    %v4492 = vadd.f32 %v4443, %v4491
    %v4493 = vpop.f32.mrf.mxu0
    %v4494 = vadd.f32 %v4445, %v4493
    %4495 = vmatmul.bf16.gmra.mxu0 %v876
    %v4496 = vpop.f32.mrf.mxu0
    %v4497 = vadd.f32 %v4448, %v4496
    %v4498 = vpop.f32.mrf.mxu0
    %v4499 = vadd.f32 %v4450, %v4498
    %4500 = vmatmul.bf16.gmra.mxu0 %v883
    %v4501 = vpop.f32.mrf.mxu0
    %v4502 = vadd.f32 %v4453, %v4501
    %v4503 = vpop.f32.mrf.mxu0
    %v4504 = vadd.f32 %v4455, %v4503
    %4505 = vmatmul.bf16.gmra.mxu0 %v890
    %v4506 = vpop.f32.mrf.mxu0
    %v4507 = vadd.f32 %v4458, %v4506
    %v4508 = vpop.f32.mrf.mxu0
    %v4509 = vadd.f32 %v4460, %v4508
    %4510 = vdwg.mxu0
    %4511 = vmatpush.bf16.msra.mxu0 %v2735
    %4512 = vmatpush.bf16.msra.mxu0 %v2727
    %4513 = vmatpush.bf16.msra.mxu0 %v2719
    %4514 = vmatpush.bf16.msra.mxu0 %v2711
    %4515 = vmatpush.bf16.msra.mxu0 %v2703
    %4516 = vmatpush.bf16.msra.mxu0 %v2695
    %4517 = vmatpush.bf16.msra.mxu0 %v2687
    %4518 = vmatpush.bf16.msra.mxu0 %v2679
    %4519 = vmatmul.bf16.gmra.mxu0 %v842
    %v4520 = vpop.f32.mrf.mxu0
    %v4521 = vadd.f32 %v4472, %v4520
    %v4522 = vpop.f32.mrf.mxu0
    %v4523 = vadd.f32 %v4474, %v4522
    %4524 = vmatmul.bf16.gmra.mxu0 %v849
    %v4525 = vpop.f32.mrf.mxu0
    %v4526 = vadd.f32 %v4477, %v4525
    %v4527 = vpop.f32.mrf.mxu0
    %v4528 = vadd.f32 %v4479, %v4527
    %4529 = vmatmul.bf16.gmra.mxu0 %v856
    %v4530 = vpop.f32.mrf.mxu0
    %v4531 = vadd.f32 %v4482, %v4530
    %v4532 = vpop.f32.mrf.mxu0
    %v4533 = vadd.f32 %v4484, %v4532
    %4534 = vmatmul.bf16.gmra.mxu0 %v863
    %v4535 = vpop.f32.mrf.mxu0
    %v4536 = vadd.f32 %v4487, %v4535
    %v4537 = vpop.f32.mrf.mxu0
    %v4538 = vadd.f32 %v4489, %v4537
    %4539 = vmatmul.bf16.gmra.mxu0 %v870
    %v4540 = vpop.f32.mrf.mxu0
    %v4541 = vadd.f32 %v4492, %v4540
    %v4542 = vpop.f32.mrf.mxu0
    %v4543 = vadd.f32 %v4494, %v4542
    %4544 = vmatmul.bf16.gmra.mxu0 %v877
    %v4545 = vpop.f32.mrf.mxu0
    %v4546 = vadd.f32 %v4497, %v4545
    %v4547 = vpop.f32.mrf.mxu0
    %v4548 = vadd.f32 %v4499, %v4547
    %4549 = vmatmul.bf16.gmra.mxu0 %v884
    %v4550 = vpop.f32.mrf.mxu0
    %v4551 = vadd.f32 %v4502, %v4550
    %v4552 = vpop.f32.mrf.mxu0
    %v4553 = vadd.f32 %v4504, %v4552
    %4554 = vmatmul.bf16.gmra.mxu0 %v891
    %v4555 = vpop.f32.mrf.mxu0
    %v4556 = vadd.f32 %v4507, %v4555
    %v4557 = vpop.f32.mrf.mxu0
    %v4558 = vadd.f32 %v4509, %v4557
    %4559 = vdwg.mxu0
    %4560 = vmatpush.bf16.msra.mxu0 %v2352
    %4561 = vmatpush.bf16.msra.mxu0 %v2344
    %4562 = vmatpush.bf16.msra.mxu0 %v2336
    %4563 = vmatpush.bf16.msra.mxu0 %v2328
    %4564 = vmatpush.bf16.msra.mxu0 %v2320
    %4565 = vmatpush.bf16.msra.mxu0 %v2312
    %4566 = vmatpush.bf16.msra.mxu0 %v2304
    %4567 = vmatpush.bf16.msra.mxu0 %v2296
    %4568 = vmatmul.bf16.gmra.mxu0 %v836
    %v4569 = vpop.f32.mrf.mxu0
    %v4570 = vadd.f32 %v648, %v4569
    %v4571 = vpop.f32.mrf.mxu0
    %v4572 = vadd.f32 %v648, %v4571
    %4573 = vmatmul.bf16.gmra.mxu0 %v843
    %v4574 = vpop.f32.mrf.mxu0
    %v4575 = vadd.f32 %v648, %v4574
    %v4576 = vpop.f32.mrf.mxu0
    %v4577 = vadd.f32 %v648, %v4576
    %4578 = vmatmul.bf16.gmra.mxu0 %v850
    %v4579 = vpop.f32.mrf.mxu0
    %v4580 = vadd.f32 %v648, %v4579
    %v4581 = vpop.f32.mrf.mxu0
    %v4582 = vadd.f32 %v648, %v4581
    %4583 = vmatmul.bf16.gmra.mxu0 %v857
    %v4584 = vpop.f32.mrf.mxu0
    %v4585 = vadd.f32 %v648, %v4584
    %v4586 = vpop.f32.mrf.mxu0
    %v4587 = vadd.f32 %v648, %v4586
    %4588 = vmatmul.bf16.gmra.mxu0 %v864
    %v4589 = vpop.f32.mrf.mxu0
    %v4590 = vadd.f32 %v648, %v4589
    %v4591 = vpop.f32.mrf.mxu0
    %v4592 = vadd.f32 %v648, %v4591
    %4593 = vmatmul.bf16.gmra.mxu0 %v871
    %v4594 = vpop.f32.mrf.mxu0
    %v4595 = vadd.f32 %v648, %v4594
    %v4596 = vpop.f32.mrf.mxu0
    %v4597 = vadd.f32 %v648, %v4596
    %4598 = vmatmul.bf16.gmra.mxu0 %v878
    %v4599 = vpop.f32.mrf.mxu0
    %v4600 = vadd.f32 %v648, %v4599
    %v4601 = vpop.f32.mrf.mxu0
    %v4602 = vadd.f32 %v648, %v4601
    %4603 = vmatmul.bf16.gmra.mxu0 %v885
    %v4604 = vpop.f32.mrf.mxu0
    %v4605 = vadd.f32 %v648, %v4604
    %v4606 = vpop.f32.mrf.mxu0
    %v4607 = vadd.f32 %v648, %v4606
    %4608 = vdwg.mxu0
    %4609 = vmatpush.bf16.msra.mxu0 %v2416
    %4610 = vmatpush.bf16.msra.mxu0 %v2408
    %4611 = vmatpush.bf16.msra.mxu0 %v2400
    %4612 = vmatpush.bf16.msra.mxu0 %v2392
    %4613 = vmatpush.bf16.msra.mxu0 %v2384
    %4614 = vmatpush.bf16.msra.mxu0 %v2376
    %4615 = vmatpush.bf16.msra.mxu0 %v2368
    %4616 = vmatpush.bf16.msra.mxu0 %v2360
    %4617 = vmatmul.bf16.gmra.mxu0 %v837
    %v4618 = vpop.f32.mrf.mxu0
    %v4619 = vadd.f32 %v4570, %v4618
    %v4620 = vpop.f32.mrf.mxu0
    %v4621 = vadd.f32 %v4572, %v4620
    %4622 = vmatmul.bf16.gmra.mxu0 %v844
    %v4623 = vpop.f32.mrf.mxu0
    %v4624 = vadd.f32 %v4575, %v4623
    %v4625 = vpop.f32.mrf.mxu0
    %v4626 = vadd.f32 %v4577, %v4625
    %4627 = vmatmul.bf16.gmra.mxu0 %v851
    %v4628 = vpop.f32.mrf.mxu0
    %v4629 = vadd.f32 %v4580, %v4628
    %v4630 = vpop.f32.mrf.mxu0
    %v4631 = vadd.f32 %v4582, %v4630
    %4632 = vmatmul.bf16.gmra.mxu0 %v858
    %v4633 = vpop.f32.mrf.mxu0
    %v4634 = vadd.f32 %v4585, %v4633
    %v4635 = vpop.f32.mrf.mxu0
    %v4636 = vadd.f32 %v4587, %v4635
    %4637 = vmatmul.bf16.gmra.mxu0 %v865
    %v4638 = vpop.f32.mrf.mxu0
    %v4639 = vadd.f32 %v4590, %v4638
    %v4640 = vpop.f32.mrf.mxu0
    %v4641 = vadd.f32 %v4592, %v4640
    %4642 = vmatmul.bf16.gmra.mxu0 %v872
    %v4643 = vpop.f32.mrf.mxu0
    %v4644 = vadd.f32 %v4595, %v4643
    %v4645 = vpop.f32.mrf.mxu0
    %v4646 = vadd.f32 %v4597, %v4645
    %4647 = vmatmul.bf16.gmra.mxu0 %v879
    %v4648 = vpop.f32.mrf.mxu0
    %v4649 = vadd.f32 %v4600, %v4648
    %v4650 = vpop.f32.mrf.mxu0
    %v4651 = vadd.f32 %v4602, %v4650
    %4652 = vmatmul.bf16.gmra.mxu0 %v886
    %v4653 = vpop.f32.mrf.mxu0
    %v4654 = vadd.f32 %v4605, %v4653
    %v4655 = vpop.f32.mrf.mxu0
    %v4656 = vadd.f32 %v4607, %v4655
    %4657 = vdwg.mxu0
    %4658 = vmatpush.bf16.msra.mxu0 %v2480
    %4659 = vmatpush.bf16.msra.mxu0 %v2472
    %4660 = vmatpush.bf16.msra.mxu0 %v2464
    %4661 = vmatpush.bf16.msra.mxu0 %v2456
    %4662 = vmatpush.bf16.msra.mxu0 %v2448
    %4663 = vmatpush.bf16.msra.mxu0 %v2440
    %4664 = vmatpush.bf16.msra.mxu0 %v2432
    %4665 = vmatpush.bf16.msra.mxu0 %v2424
    %4666 = vmatmul.bf16.gmra.mxu0 %v838
    %v4667 = vpop.f32.mrf.mxu0
    %v4668 = vadd.f32 %v4619, %v4667
    %v4669 = vpop.f32.mrf.mxu0
    %v4670 = vadd.f32 %v4621, %v4669
    %4671 = vmatmul.bf16.gmra.mxu0 %v845
    %v4672 = vpop.f32.mrf.mxu0
    %v4673 = vadd.f32 %v4624, %v4672
    %v4674 = vpop.f32.mrf.mxu0
    %v4675 = vadd.f32 %v4626, %v4674
    %4676 = vmatmul.bf16.gmra.mxu0 %v852
    %v4677 = vpop.f32.mrf.mxu0
    %v4678 = vadd.f32 %v4629, %v4677
    %v4679 = vpop.f32.mrf.mxu0
    %v4680 = vadd.f32 %v4631, %v4679
    %4681 = vmatmul.bf16.gmra.mxu0 %v859
    %v4682 = vpop.f32.mrf.mxu0
    %v4683 = vadd.f32 %v4634, %v4682
    %v4684 = vpop.f32.mrf.mxu0
    %v4685 = vadd.f32 %v4636, %v4684
    %4686 = vmatmul.bf16.gmra.mxu0 %v866
    %v4687 = vpop.f32.mrf.mxu0
    %v4688 = vadd.f32 %v4639, %v4687
    %v4689 = vpop.f32.mrf.mxu0
    %v4690 = vadd.f32 %v4641, %v4689
    %4691 = vmatmul.bf16.gmra.mxu0 %v873
    %v4692 = vpop.f32.mrf.mxu0
    %v4693 = vadd.f32 %v4644, %v4692
    %v4694 = vpop.f32.mrf.mxu0
    %v4695 = vadd.f32 %v4646, %v4694
    %4696 = vmatmul.bf16.gmra.mxu0 %v880
    %v4697 = vpop.f32.mrf.mxu0
    %v4698 = vadd.f32 %v4649, %v4697
    %v4699 = vpop.f32.mrf.mxu0
    %v4700 = vadd.f32 %v4651, %v4699
    %4701 = vmatmul.bf16.gmra.mxu0 %v887
    %v4702 = vpop.f32.mrf.mxu0
    %v4703 = vadd.f32 %v4654, %v4702
    %v4704 = vpop.f32.mrf.mxu0
    %v4705 = vadd.f32 %v4656, %v4704
    %4706 = vdwg.mxu0
    %4707 = vmatpush.bf16.msra.mxu0 %v2544
    %4708 = vmatpush.bf16.msra.mxu0 %v2536
    %4709 = vmatpush.bf16.msra.mxu0 %v2528
    %4710 = vmatpush.bf16.msra.mxu0 %v2520
    %4711 = vmatpush.bf16.msra.mxu0 %v2512
    %4712 = vmatpush.bf16.msra.mxu0 %v2504
    %4713 = vmatpush.bf16.msra.mxu0 %v2496
    %4714 = vmatpush.bf16.msra.mxu0 %v2488
    %4715 = vmatmul.bf16.gmra.mxu0 %v839
    %v4716 = vpop.f32.mrf.mxu0
    %v4717 = vadd.f32 %v4668, %v4716
    %v4718 = vpop.f32.mrf.mxu0
    %v4719 = vadd.f32 %v4670, %v4718
    %4720 = vmatmul.bf16.gmra.mxu0 %v846
    %v4721 = vpop.f32.mrf.mxu0
    %v4722 = vadd.f32 %v4673, %v4721
    %v4723 = vpop.f32.mrf.mxu0
    %v4724 = vadd.f32 %v4675, %v4723
    %4725 = vmatmul.bf16.gmra.mxu0 %v853
    %v4726 = vpop.f32.mrf.mxu0
    %v4727 = vadd.f32 %v4678, %v4726
    %v4728 = vpop.f32.mrf.mxu0
    %v4729 = vadd.f32 %v4680, %v4728
    %4730 = vmatmul.bf16.gmra.mxu0 %v860
    %v4731 = vpop.f32.mrf.mxu0
    %v4732 = vadd.f32 %v4683, %v4731
    %v4733 = vpop.f32.mrf.mxu0
    %v4734 = vadd.f32 %v4685, %v4733
    %4735 = vmatmul.bf16.gmra.mxu0 %v867
    %v4736 = vpop.f32.mrf.mxu0
    %v4737 = vadd.f32 %v4688, %v4736
    %v4738 = vpop.f32.mrf.mxu0
    %v4739 = vadd.f32 %v4690, %v4738
    %4740 = vmatmul.bf16.gmra.mxu0 %v874
    %v4741 = vpop.f32.mrf.mxu0
    %v4742 = vadd.f32 %v4693, %v4741
    %v4743 = vpop.f32.mrf.mxu0
    %v4744 = vadd.f32 %v4695, %v4743
    %4745 = vmatmul.bf16.gmra.mxu0 %v881
    %v4746 = vpop.f32.mrf.mxu0
    %v4747 = vadd.f32 %v4698, %v4746
    %v4748 = vpop.f32.mrf.mxu0
    %v4749 = vadd.f32 %v4700, %v4748
    %4750 = vmatmul.bf16.gmra.mxu0 %v888
    %v4751 = vpop.f32.mrf.mxu0
    %v4752 = vadd.f32 %v4703, %v4751
    %v4753 = vpop.f32.mrf.mxu0
    %v4754 = vadd.f32 %v4705, %v4753
    %4755 = vdwg.mxu0
    %4756 = vmatpush.bf16.msra.mxu0 %v2608
    %4757 = vmatpush.bf16.msra.mxu0 %v2600
    %4758 = vmatpush.bf16.msra.mxu0 %v2592
    %4759 = vmatpush.bf16.msra.mxu0 %v2584
    %4760 = vmatpush.bf16.msra.mxu0 %v2576
    %4761 = vmatpush.bf16.msra.mxu0 %v2568
    %4762 = vmatpush.bf16.msra.mxu0 %v2560
    %4763 = vmatpush.bf16.msra.mxu0 %v2552
    %4764 = vmatmul.bf16.gmra.mxu0 %v840
    %v4765 = vpop.f32.mrf.mxu0
    %v4766 = vadd.f32 %v4717, %v4765
    %v4767 = vpop.f32.mrf.mxu0
    %v4768 = vadd.f32 %v4719, %v4767
    %4769 = vmatmul.bf16.gmra.mxu0 %v847
    %v4770 = vpop.f32.mrf.mxu0
    %v4771 = vadd.f32 %v4722, %v4770
    %v4772 = vpop.f32.mrf.mxu0
    %v4773 = vadd.f32 %v4724, %v4772
    %4774 = vmatmul.bf16.gmra.mxu0 %v854
    %v4775 = vpop.f32.mrf.mxu0
    %v4776 = vadd.f32 %v4727, %v4775
    %v4777 = vpop.f32.mrf.mxu0
    %v4778 = vadd.f32 %v4729, %v4777
    %4779 = vmatmul.bf16.gmra.mxu0 %v861
    %v4780 = vpop.f32.mrf.mxu0
    %v4781 = vadd.f32 %v4732, %v4780
    %v4782 = vpop.f32.mrf.mxu0
    %v4783 = vadd.f32 %v4734, %v4782
    %4784 = vmatmul.bf16.gmra.mxu0 %v868
    %v4785 = vpop.f32.mrf.mxu0
    %v4786 = vadd.f32 %v4737, %v4785
    %v4787 = vpop.f32.mrf.mxu0
    %v4788 = vadd.f32 %v4739, %v4787
    %4789 = vmatmul.bf16.gmra.mxu0 %v875
    %v4790 = vpop.f32.mrf.mxu0
    %v4791 = vadd.f32 %v4742, %v4790
    %v4792 = vpop.f32.mrf.mxu0
    %v4793 = vadd.f32 %v4744, %v4792
    %4794 = vmatmul.bf16.gmra.mxu0 %v882
    %v4795 = vpop.f32.mrf.mxu0
    %v4796 = vadd.f32 %v4747, %v4795
    %v4797 = vpop.f32.mrf.mxu0
    %v4798 = vadd.f32 %v4749, %v4797
    %4799 = vmatmul.bf16.gmra.mxu0 %v889
    %v4800 = vpop.f32.mrf.mxu0
    %v4801 = vadd.f32 %v4752, %v4800
    %v4802 = vpop.f32.mrf.mxu0
    %v4803 = vadd.f32 %v4754, %v4802
    %4804 = vdwg.mxu0
    %4805 = vmatpush.bf16.msra.mxu0 %v2672
    %4806 = vmatpush.bf16.msra.mxu0 %v2664
    %4807 = vmatpush.bf16.msra.mxu0 %v2656
    %4808 = vmatpush.bf16.msra.mxu0 %v2648
    %4809 = vmatpush.bf16.msra.mxu0 %v2640
    %4810 = vmatpush.bf16.msra.mxu0 %v2632
    %4811 = vmatpush.bf16.msra.mxu0 %v2624
    %4812 = vmatpush.bf16.msra.mxu0 %v2616
    %4813 = vmatmul.bf16.gmra.mxu0 %v841
    %v4814 = vpop.f32.mrf.mxu0
    %v4815 = vadd.f32 %v4766, %v4814
    %v4816 = vpop.f32.mrf.mxu0
    %v4817 = vadd.f32 %v4768, %v4816
    %4818 = vmatmul.bf16.gmra.mxu0 %v848
    %v4819 = vpop.f32.mrf.mxu0
    %v4820 = vadd.f32 %v4771, %v4819
    %v4821 = vpop.f32.mrf.mxu0
    %v4822 = vadd.f32 %v4773, %v4821
    %4823 = vmatmul.bf16.gmra.mxu0 %v855
    %v4824 = vpop.f32.mrf.mxu0
    %v4825 = vadd.f32 %v4776, %v4824
    %v4826 = vpop.f32.mrf.mxu0
    %v4827 = vadd.f32 %v4778, %v4826
    %4828 = vmatmul.bf16.gmra.mxu0 %v862
    %v4829 = vpop.f32.mrf.mxu0
    %v4830 = vadd.f32 %v4781, %v4829
    %v4831 = vpop.f32.mrf.mxu0
    %v4832 = vadd.f32 %v4783, %v4831
    %4833 = vmatmul.bf16.gmra.mxu0 %v869
    %v4834 = vpop.f32.mrf.mxu0
    %v4835 = vadd.f32 %v4786, %v4834
    %v4836 = vpop.f32.mrf.mxu0
    %v4837 = vadd.f32 %v4788, %v4836
    %4838 = vmatmul.bf16.gmra.mxu0 %v876
    %v4839 = vpop.f32.mrf.mxu0
    %v4840 = vadd.f32 %v4791, %v4839
    %v4841 = vpop.f32.mrf.mxu0
    %v4842 = vadd.f32 %v4793, %v4841
    %4843 = vmatmul.bf16.gmra.mxu0 %v883
    %v4844 = vpop.f32.mrf.mxu0
    %v4845 = vadd.f32 %v4796, %v4844
    %v4846 = vpop.f32.mrf.mxu0
    %v4847 = vadd.f32 %v4798, %v4846
    %4848 = vmatmul.bf16.gmra.mxu0 %v890
    %v4849 = vpop.f32.mrf.mxu0
    %v4850 = vadd.f32 %v4801, %v4849
    %v4851 = vpop.f32.mrf.mxu0
    %v4852 = vadd.f32 %v4803, %v4851
    %4853 = vdwg.mxu0
    %4854 = vmatpush.bf16.msra.mxu0 %v2736
    %4855 = vmatpush.bf16.msra.mxu0 %v2728
    %4856 = vmatpush.bf16.msra.mxu0 %v2720
    %4857 = vmatpush.bf16.msra.mxu0 %v2712
    %4858 = vmatpush.bf16.msra.mxu0 %v2704
    %4859 = vmatpush.bf16.msra.mxu0 %v2696
    %4860 = vmatpush.bf16.msra.mxu0 %v2688
    %4861 = vmatpush.bf16.msra.mxu0 %v2680
    %4862 = vmatmul.bf16.gmra.mxu0 %v842
    %v4863 = vpop.f32.mrf.mxu0
    %v4864 = vadd.f32 %v4815, %v4863
    %v4865 = vpop.f32.mrf.mxu0
    %v4866 = vadd.f32 %v4817, %v4865
    %4867 = vmatmul.bf16.gmra.mxu0 %v849
    %v4868 = vpop.f32.mrf.mxu0
    %v4869 = vadd.f32 %v4820, %v4868
    %v4870 = vpop.f32.mrf.mxu0
    %v4871 = vadd.f32 %v4822, %v4870
    %4872 = vmatmul.bf16.gmra.mxu0 %v856
    %v4873 = vpop.f32.mrf.mxu0
    %v4874 = vadd.f32 %v4825, %v4873
    %v4875 = vpop.f32.mrf.mxu0
    %v4876 = vadd.f32 %v4827, %v4875
    %4877 = vmatmul.bf16.gmra.mxu0 %v863
    %v4878 = vpop.f32.mrf.mxu0
    %v4879 = vadd.f32 %v4830, %v4878
    %v4880 = vpop.f32.mrf.mxu0
    %v4881 = vadd.f32 %v4832, %v4880
    %4882 = vmatmul.bf16.gmra.mxu0 %v870
    %v4883 = vpop.f32.mrf.mxu0
    %v4884 = vadd.f32 %v4835, %v4883
    %v4885 = vpop.f32.mrf.mxu0
    %v4886 = vadd.f32 %v4837, %v4885
    %4887 = vmatmul.bf16.gmra.mxu0 %v877
    %v4888 = vpop.f32.mrf.mxu0
    %v4889 = vadd.f32 %v4840, %v4888
    %v4890 = vpop.f32.mrf.mxu0
    %v4891 = vadd.f32 %v4842, %v4890
    %4892 = vmatmul.bf16.gmra.mxu0 %v884
    %v4893 = vpop.f32.mrf.mxu0
    %v4894 = vadd.f32 %v4845, %v4893
    %v4895 = vpop.f32.mrf.mxu0
    %v4896 = vadd.f32 %v4847, %v4895
    %4897 = vmatmul.bf16.gmra.mxu0 %v891
    %v4898 = vpop.f32.mrf.mxu0
    %v4899 = vadd.f32 %v4850, %v4898
    %v4900 = vpop.f32.mrf.mxu0
    %v4901 = vadd.f32 %v4852, %v4900
    %4902 = vdwg.mxu0
    %4903 = vmatpush.bf16.msra.mxu0 %v2353
    %4904 = vmatpush.bf16.msra.mxu0 %v2345
    %4905 = vmatpush.bf16.msra.mxu0 %v2337
    %4906 = vmatpush.bf16.msra.mxu0 %v2329
    %4907 = vmatpush.bf16.msra.mxu0 %v2321
    %4908 = vmatpush.bf16.msra.mxu0 %v2313
    %4909 = vmatpush.bf16.msra.mxu0 %v2305
    %4910 = vmatpush.bf16.msra.mxu0 %v2297
    %4911 = vmatmul.bf16.gmra.mxu0 %v836
    %v4912 = vpop.f32.mrf.mxu0
    %v4913 = vadd.f32 %v649, %v4912
    %v4914 = vpop.f32.mrf.mxu0
    %v4915 = vadd.f32 %v649, %v4914
    %4916 = vmatmul.bf16.gmra.mxu0 %v843
    %v4917 = vpop.f32.mrf.mxu0
    %v4918 = vadd.f32 %v649, %v4917
    %v4919 = vpop.f32.mrf.mxu0
    %v4920 = vadd.f32 %v649, %v4919
    %4921 = vmatmul.bf16.gmra.mxu0 %v850
    %v4922 = vpop.f32.mrf.mxu0
    %v4923 = vadd.f32 %v649, %v4922
    %v4924 = vpop.f32.mrf.mxu0
    %v4925 = vadd.f32 %v649, %v4924
    %4926 = vmatmul.bf16.gmra.mxu0 %v857
    %v4927 = vpop.f32.mrf.mxu0
    %v4928 = vadd.f32 %v649, %v4927
    %v4929 = vpop.f32.mrf.mxu0
    %v4930 = vadd.f32 %v649, %v4929
    %4931 = vmatmul.bf16.gmra.mxu0 %v864
    %v4932 = vpop.f32.mrf.mxu0
    %v4933 = vadd.f32 %v649, %v4932
    %v4934 = vpop.f32.mrf.mxu0
    %v4935 = vadd.f32 %v649, %v4934
    %4936 = vmatmul.bf16.gmra.mxu0 %v871
    %v4937 = vpop.f32.mrf.mxu0
    %v4938 = vadd.f32 %v649, %v4937
    %v4939 = vpop.f32.mrf.mxu0
    %v4940 = vadd.f32 %v649, %v4939
    %4941 = vmatmul.bf16.gmra.mxu0 %v878
    %v4942 = vpop.f32.mrf.mxu0
    %v4943 = vadd.f32 %v649, %v4942
    %v4944 = vpop.f32.mrf.mxu0
    %v4945 = vadd.f32 %v649, %v4944
    %4946 = vmatmul.bf16.gmra.mxu0 %v885
    %v4947 = vpop.f32.mrf.mxu0
    %v4948 = vadd.f32 %v649, %v4947
    %v4949 = vpop.f32.mrf.mxu0
    %v4950 = vadd.f32 %v649, %v4949
    %4951 = vdwg.mxu0
    %4952 = vmatpush.bf16.msra.mxu0 %v2417
    %4953 = vmatpush.bf16.msra.mxu0 %v2409
    %4954 = vmatpush.bf16.msra.mxu0 %v2401
    %4955 = vmatpush.bf16.msra.mxu0 %v2393
    %4956 = vmatpush.bf16.msra.mxu0 %v2385
    %4957 = vmatpush.bf16.msra.mxu0 %v2377
    %4958 = vmatpush.bf16.msra.mxu0 %v2369
    %4959 = vmatpush.bf16.msra.mxu0 %v2361
    %4960 = vmatmul.bf16.gmra.mxu0 %v837
    %v4961 = vpop.f32.mrf.mxu0
    %v4962 = vadd.f32 %v4913, %v4961
    %v4963 = vpop.f32.mrf.mxu0
    %v4964 = vadd.f32 %v4915, %v4963
    %4965 = vmatmul.bf16.gmra.mxu0 %v844
    %v4966 = vpop.f32.mrf.mxu0
    %v4967 = vadd.f32 %v4918, %v4966
    %v4968 = vpop.f32.mrf.mxu0
    %v4969 = vadd.f32 %v4920, %v4968
    %4970 = vmatmul.bf16.gmra.mxu0 %v851
    %v4971 = vpop.f32.mrf.mxu0
    %v4972 = vadd.f32 %v4923, %v4971
    %v4973 = vpop.f32.mrf.mxu0
    %v4974 = vadd.f32 %v4925, %v4973
    %4975 = vmatmul.bf16.gmra.mxu0 %v858
    %v4976 = vpop.f32.mrf.mxu0
    %v4977 = vadd.f32 %v4928, %v4976
    %v4978 = vpop.f32.mrf.mxu0
    %v4979 = vadd.f32 %v4930, %v4978
    %4980 = vmatmul.bf16.gmra.mxu0 %v865
    %v4981 = vpop.f32.mrf.mxu0
    %v4982 = vadd.f32 %v4933, %v4981
    %v4983 = vpop.f32.mrf.mxu0
    %v4984 = vadd.f32 %v4935, %v4983
    %4985 = vmatmul.bf16.gmra.mxu0 %v872
    %v4986 = vpop.f32.mrf.mxu0
    %v4987 = vadd.f32 %v4938, %v4986
    %v4988 = vpop.f32.mrf.mxu0
    %v4989 = vadd.f32 %v4940, %v4988
    %4990 = vmatmul.bf16.gmra.mxu0 %v879
    %v4991 = vpop.f32.mrf.mxu0
    %v4992 = vadd.f32 %v4943, %v4991
    %v4993 = vpop.f32.mrf.mxu0
    %v4994 = vadd.f32 %v4945, %v4993
    %4995 = vmatmul.bf16.gmra.mxu0 %v886
    %v4996 = vpop.f32.mrf.mxu0
    %v4997 = vadd.f32 %v4948, %v4996
    %v4998 = vpop.f32.mrf.mxu0
    %v4999 = vadd.f32 %v4950, %v4998
    %5000 = vdwg.mxu0
    %5001 = vmatpush.bf16.msra.mxu0 %v2481
    %5002 = vmatpush.bf16.msra.mxu0 %v2473
    %5003 = vmatpush.bf16.msra.mxu0 %v2465
    %5004 = vmatpush.bf16.msra.mxu0 %v2457
    %5005 = vmatpush.bf16.msra.mxu0 %v2449
    %5006 = vmatpush.bf16.msra.mxu0 %v2441
    %5007 = vmatpush.bf16.msra.mxu0 %v2433
    %5008 = vmatpush.bf16.msra.mxu0 %v2425
    %5009 = vmatmul.bf16.gmra.mxu0 %v838
    %v5010 = vpop.f32.mrf.mxu0
    %v5011 = vadd.f32 %v4962, %v5010
    %v5012 = vpop.f32.mrf.mxu0
    %v5013 = vadd.f32 %v4964, %v5012
    %5014 = vmatmul.bf16.gmra.mxu0 %v845
    %v5015 = vpop.f32.mrf.mxu0
    %v5016 = vadd.f32 %v4967, %v5015
    %v5017 = vpop.f32.mrf.mxu0
    %v5018 = vadd.f32 %v4969, %v5017
    %5019 = vmatmul.bf16.gmra.mxu0 %v852
    %v5020 = vpop.f32.mrf.mxu0
    %v5021 = vadd.f32 %v4972, %v5020
    %v5022 = vpop.f32.mrf.mxu0
    %v5023 = vadd.f32 %v4974, %v5022
    %5024 = vmatmul.bf16.gmra.mxu0 %v859
    %v5025 = vpop.f32.mrf.mxu0
    %v5026 = vadd.f32 %v4977, %v5025
    %v5027 = vpop.f32.mrf.mxu0
    %v5028 = vadd.f32 %v4979, %v5027
    %5029 = vmatmul.bf16.gmra.mxu0 %v866
    %v5030 = vpop.f32.mrf.mxu0
    %v5031 = vadd.f32 %v4982, %v5030
    %v5032 = vpop.f32.mrf.mxu0
    %v5033 = vadd.f32 %v4984, %v5032
    %5034 = vmatmul.bf16.gmra.mxu0 %v873
    %v5035 = vpop.f32.mrf.mxu0
    %v5036 = vadd.f32 %v4987, %v5035
    %v5037 = vpop.f32.mrf.mxu0
    %v5038 = vadd.f32 %v4989, %v5037
    %5039 = vmatmul.bf16.gmra.mxu0 %v880
    %v5040 = vpop.f32.mrf.mxu0
    %v5041 = vadd.f32 %v4992, %v5040
    %v5042 = vpop.f32.mrf.mxu0
    %v5043 = vadd.f32 %v4994, %v5042
    %5044 = vmatmul.bf16.gmra.mxu0 %v887
    %v5045 = vpop.f32.mrf.mxu0
    %v5046 = vadd.f32 %v4997, %v5045
    %v5047 = vpop.f32.mrf.mxu0
    %v5048 = vadd.f32 %v4999, %v5047
    %5049 = vdwg.mxu0
    %5050 = vmatpush.bf16.msra.mxu0 %v2545
    %5051 = vmatpush.bf16.msra.mxu0 %v2537
    %5052 = vmatpush.bf16.msra.mxu0 %v2529
    %5053 = vmatpush.bf16.msra.mxu0 %v2521
    %5054 = vmatpush.bf16.msra.mxu0 %v2513
    %5055 = vmatpush.bf16.msra.mxu0 %v2505
    %5056 = vmatpush.bf16.msra.mxu0 %v2497
    %5057 = vmatpush.bf16.msra.mxu0 %v2489
    %5058 = vmatmul.bf16.gmra.mxu0 %v839
    %v5059 = vpop.f32.mrf.mxu0
    %v5060 = vadd.f32 %v5011, %v5059
    %v5061 = vpop.f32.mrf.mxu0
    %v5062 = vadd.f32 %v5013, %v5061
    %5063 = vmatmul.bf16.gmra.mxu0 %v846
    %v5064 = vpop.f32.mrf.mxu0
    %v5065 = vadd.f32 %v5016, %v5064
    %v5066 = vpop.f32.mrf.mxu0
    %v5067 = vadd.f32 %v5018, %v5066
    %5068 = vmatmul.bf16.gmra.mxu0 %v853
    %v5069 = vpop.f32.mrf.mxu0
    %v5070 = vadd.f32 %v5021, %v5069
    %v5071 = vpop.f32.mrf.mxu0
    %v5072 = vadd.f32 %v5023, %v5071
    %5073 = vmatmul.bf16.gmra.mxu0 %v860
    %v5074 = vpop.f32.mrf.mxu0
    %v5075 = vadd.f32 %v5026, %v5074
    %v5076 = vpop.f32.mrf.mxu0
    %v5077 = vadd.f32 %v5028, %v5076
    %5078 = vmatmul.bf16.gmra.mxu0 %v867
    %v5079 = vpop.f32.mrf.mxu0
    %v5080 = vadd.f32 %v5031, %v5079
    %v5081 = vpop.f32.mrf.mxu0
    %v5082 = vadd.f32 %v5033, %v5081
    %5083 = vmatmul.bf16.gmra.mxu0 %v874
    %v5084 = vpop.f32.mrf.mxu0
    %v5085 = vadd.f32 %v5036, %v5084
    %v5086 = vpop.f32.mrf.mxu0
    %v5087 = vadd.f32 %v5038, %v5086
    %5088 = vmatmul.bf16.gmra.mxu0 %v881
    %v5089 = vpop.f32.mrf.mxu0
    %v5090 = vadd.f32 %v5041, %v5089
    %v5091 = vpop.f32.mrf.mxu0
    %v5092 = vadd.f32 %v5043, %v5091
    %5093 = vmatmul.bf16.gmra.mxu0 %v888
    %v5094 = vpop.f32.mrf.mxu0
    %v5095 = vadd.f32 %v5046, %v5094
    %v5096 = vpop.f32.mrf.mxu0
    %v5097 = vadd.f32 %v5048, %v5096
    %5098 = vdwg.mxu0
    %5099 = vmatpush.bf16.msra.mxu0 %v2609
    %5100 = vmatpush.bf16.msra.mxu0 %v2601
    %5101 = vmatpush.bf16.msra.mxu0 %v2593
    %5102 = vmatpush.bf16.msra.mxu0 %v2585
    %5103 = vmatpush.bf16.msra.mxu0 %v2577
    %5104 = vmatpush.bf16.msra.mxu0 %v2569
    %5105 = vmatpush.bf16.msra.mxu0 %v2561
    %5106 = vmatpush.bf16.msra.mxu0 %v2553
    %5107 = vmatmul.bf16.gmra.mxu0 %v840
    %v5108 = vpop.f32.mrf.mxu0
    %v5109 = vadd.f32 %v5060, %v5108
    %v5110 = vpop.f32.mrf.mxu0
    %v5111 = vadd.f32 %v5062, %v5110
    %5112 = vmatmul.bf16.gmra.mxu0 %v847
    %v5113 = vpop.f32.mrf.mxu0
    %v5114 = vadd.f32 %v5065, %v5113
    %v5115 = vpop.f32.mrf.mxu0
    %v5116 = vadd.f32 %v5067, %v5115
    %5117 = vmatmul.bf16.gmra.mxu0 %v854
    %v5118 = vpop.f32.mrf.mxu0
    %v5119 = vadd.f32 %v5070, %v5118
    %v5120 = vpop.f32.mrf.mxu0
    %v5121 = vadd.f32 %v5072, %v5120
    %5122 = vmatmul.bf16.gmra.mxu0 %v861
    %v5123 = vpop.f32.mrf.mxu0
    %v5124 = vadd.f32 %v5075, %v5123
    %v5125 = vpop.f32.mrf.mxu0
    %v5126 = vadd.f32 %v5077, %v5125
    %5127 = vmatmul.bf16.gmra.mxu0 %v868
    %v5128 = vpop.f32.mrf.mxu0
    %v5129 = vadd.f32 %v5080, %v5128
    %v5130 = vpop.f32.mrf.mxu0
    %v5131 = vadd.f32 %v5082, %v5130
    %5132 = vmatmul.bf16.gmra.mxu0 %v875
    %v5133 = vpop.f32.mrf.mxu0
    %v5134 = vadd.f32 %v5085, %v5133
    %v5135 = vpop.f32.mrf.mxu0
    %v5136 = vadd.f32 %v5087, %v5135
    %5137 = vmatmul.bf16.gmra.mxu0 %v882
    %v5138 = vpop.f32.mrf.mxu0
    %v5139 = vadd.f32 %v5090, %v5138
    %v5140 = vpop.f32.mrf.mxu0
    %v5141 = vadd.f32 %v5092, %v5140
    %5142 = vmatmul.bf16.gmra.mxu0 %v889
    %v5143 = vpop.f32.mrf.mxu0
    %v5144 = vadd.f32 %v5095, %v5143
    %v5145 = vpop.f32.mrf.mxu0
    %v5146 = vadd.f32 %v5097, %v5145
    %5147 = vdwg.mxu0
    %5148 = vmatpush.bf16.msra.mxu0 %v2673
    %5149 = vmatpush.bf16.msra.mxu0 %v2665
    %5150 = vmatpush.bf16.msra.mxu0 %v2657
    %5151 = vmatpush.bf16.msra.mxu0 %v2649
    %5152 = vmatpush.bf16.msra.mxu0 %v2641
    %5153 = vmatpush.bf16.msra.mxu0 %v2633
    %5154 = vmatpush.bf16.msra.mxu0 %v2625
    %5155 = vmatpush.bf16.msra.mxu0 %v2617
    %5156 = vmatmul.bf16.gmra.mxu0 %v841
    %v5157 = vpop.f32.mrf.mxu0
    %v5158 = vadd.f32 %v5109, %v5157
    %v5159 = vpop.f32.mrf.mxu0
    %v5160 = vadd.f32 %v5111, %v5159
    %5161 = vmatmul.bf16.gmra.mxu0 %v848
    %v5162 = vpop.f32.mrf.mxu0
    %v5163 = vadd.f32 %v5114, %v5162
    %v5164 = vpop.f32.mrf.mxu0
    %v5165 = vadd.f32 %v5116, %v5164
    %5166 = vmatmul.bf16.gmra.mxu0 %v855
    %v5167 = vpop.f32.mrf.mxu0
    %v5168 = vadd.f32 %v5119, %v5167
    %v5169 = vpop.f32.mrf.mxu0
    %v5170 = vadd.f32 %v5121, %v5169
    %5171 = vmatmul.bf16.gmra.mxu0 %v862
    %v5172 = vpop.f32.mrf.mxu0
    %v5173 = vadd.f32 %v5124, %v5172
    %v5174 = vpop.f32.mrf.mxu0
    %v5175 = vadd.f32 %v5126, %v5174
    %5176 = vmatmul.bf16.gmra.mxu0 %v869
    %v5177 = vpop.f32.mrf.mxu0
    %v5178 = vadd.f32 %v5129, %v5177
    %v5179 = vpop.f32.mrf.mxu0
    %v5180 = vadd.f32 %v5131, %v5179
    %5181 = vmatmul.bf16.gmra.mxu0 %v876
    %v5182 = vpop.f32.mrf.mxu0
    %v5183 = vadd.f32 %v5134, %v5182
    %v5184 = vpop.f32.mrf.mxu0
    %v5185 = vadd.f32 %v5136, %v5184
    %5186 = vmatmul.bf16.gmra.mxu0 %v883
    %v5187 = vpop.f32.mrf.mxu0
    %v5188 = vadd.f32 %v5139, %v5187
    %v5189 = vpop.f32.mrf.mxu0
    %v5190 = vadd.f32 %v5141, %v5189
    %5191 = vmatmul.bf16.gmra.mxu0 %v890
    %v5192 = vpop.f32.mrf.mxu0
    %v5193 = vadd.f32 %v5144, %v5192
    %v5194 = vpop.f32.mrf.mxu0
    %v5195 = vadd.f32 %v5146, %v5194
    %5196 = vdwg.mxu0
    %5197 = vmatpush.bf16.msra.mxu0 %v2737
    %5198 = vmatpush.bf16.msra.mxu0 %v2729
    %5199 = vmatpush.bf16.msra.mxu0 %v2721
    %5200 = vmatpush.bf16.msra.mxu0 %v2713
    %5201 = vmatpush.bf16.msra.mxu0 %v2705
    %5202 = vmatpush.bf16.msra.mxu0 %v2697
    %5203 = vmatpush.bf16.msra.mxu0 %v2689
    %5204 = vmatpush.bf16.msra.mxu0 %v2681
    %5205 = vmatmul.bf16.gmra.mxu0 %v842
    %v5206 = vpop.f32.mrf.mxu0
    %v5207 = vadd.f32 %v5158, %v5206
    %v5208 = vpop.f32.mrf.mxu0
    %v5209 = vadd.f32 %v5160, %v5208
    %5210 = vmatmul.bf16.gmra.mxu0 %v849
    %v5211 = vpop.f32.mrf.mxu0
    %v5212 = vadd.f32 %v5163, %v5211
    %v5213 = vpop.f32.mrf.mxu0
    %v5214 = vadd.f32 %v5165, %v5213
    %5215 = vmatmul.bf16.gmra.mxu0 %v856
    %v5216 = vpop.f32.mrf.mxu0
    %v5217 = vadd.f32 %v5168, %v5216
    %v5218 = vpop.f32.mrf.mxu0
    %v5219 = vadd.f32 %v5170, %v5218
    %5220 = vmatmul.bf16.gmra.mxu0 %v863
    %v5221 = vpop.f32.mrf.mxu0
    %v5222 = vadd.f32 %v5173, %v5221
    %v5223 = vpop.f32.mrf.mxu0
    %v5224 = vadd.f32 %v5175, %v5223
    %5225 = vmatmul.bf16.gmra.mxu0 %v870
    %v5226 = vpop.f32.mrf.mxu0
    %v5227 = vadd.f32 %v5178, %v5226
    %v5228 = vpop.f32.mrf.mxu0
    %v5229 = vadd.f32 %v5180, %v5228
    %5230 = vmatmul.bf16.gmra.mxu0 %v877
    %v5231 = vpop.f32.mrf.mxu0
    %v5232 = vadd.f32 %v5183, %v5231
    %v5233 = vpop.f32.mrf.mxu0
    %v5234 = vadd.f32 %v5185, %v5233
    %5235 = vmatmul.bf16.gmra.mxu0 %v884
    %v5236 = vpop.f32.mrf.mxu0
    %v5237 = vadd.f32 %v5188, %v5236
    %v5238 = vpop.f32.mrf.mxu0
    %v5239 = vadd.f32 %v5190, %v5238
    %5240 = vmatmul.bf16.gmra.mxu0 %v891
    %v5241 = vpop.f32.mrf.mxu0
    %v5242 = vadd.f32 %v5193, %v5241
    %v5243 = vpop.f32.mrf.mxu0
    %v5244 = vadd.f32 %v5195, %v5243
    %5245 = vdwg.mxu0
    %5246 = vmatpush.bf16.msra.mxu0 %v2354
    %5247 = vmatpush.bf16.msra.mxu0 %v2346
    %5248 = vmatpush.bf16.msra.mxu0 %v2338
    %5249 = vmatpush.bf16.msra.mxu0 %v2330
    %5250 = vmatpush.bf16.msra.mxu0 %v2322
    %5251 = vmatpush.bf16.msra.mxu0 %v2314
    %5252 = vmatpush.bf16.msra.mxu0 %v2306
    %5253 = vmatpush.bf16.msra.mxu0 %v2298
    %5254 = vmatmul.bf16.gmra.mxu0 %v836
    %v5255 = vpop.f32.mrf.mxu0
    %v5256 = vadd.f32 %v650, %v5255
    %v5257 = vpop.f32.mrf.mxu0
    %v5258 = vadd.f32 %v650, %v5257
    %5259 = vmatmul.bf16.gmra.mxu0 %v843
    %v5260 = vpop.f32.mrf.mxu0
    %v5261 = vadd.f32 %v650, %v5260
    %v5262 = vpop.f32.mrf.mxu0
    %v5263 = vadd.f32 %v650, %v5262
    %5264 = vmatmul.bf16.gmra.mxu0 %v850
    %v5265 = vpop.f32.mrf.mxu0
    %v5266 = vadd.f32 %v650, %v5265
    %v5267 = vpop.f32.mrf.mxu0
    %v5268 = vadd.f32 %v650, %v5267
    %5269 = vmatmul.bf16.gmra.mxu0 %v857
    %v5270 = vpop.f32.mrf.mxu0
    %v5271 = vadd.f32 %v650, %v5270
    %v5272 = vpop.f32.mrf.mxu0
    %v5273 = vadd.f32 %v650, %v5272
    %5274 = vmatmul.bf16.gmra.mxu0 %v864
    %v5275 = vpop.f32.mrf.mxu0
    %v5276 = vadd.f32 %v650, %v5275
    %v5277 = vpop.f32.mrf.mxu0
    %v5278 = vadd.f32 %v650, %v5277
    %5279 = vmatmul.bf16.gmra.mxu0 %v871
    %v5280 = vpop.f32.mrf.mxu0
    %v5281 = vadd.f32 %v650, %v5280
    %v5282 = vpop.f32.mrf.mxu0
    %v5283 = vadd.f32 %v650, %v5282
    %5284 = vmatmul.bf16.gmra.mxu0 %v878
    %v5285 = vpop.f32.mrf.mxu0
    %v5286 = vadd.f32 %v650, %v5285
    %v5287 = vpop.f32.mrf.mxu0
    %v5288 = vadd.f32 %v650, %v5287
    %5289 = vmatmul.bf16.gmra.mxu0 %v885
    %v5290 = vpop.f32.mrf.mxu0
    %v5291 = vadd.f32 %v650, %v5290
    %v5292 = vpop.f32.mrf.mxu0
    %v5293 = vadd.f32 %v650, %v5292
    %5294 = vdwg.mxu0
    %5295 = vmatpush.bf16.msra.mxu0 %v2418
    %5296 = vmatpush.bf16.msra.mxu0 %v2410
    %5297 = vmatpush.bf16.msra.mxu0 %v2402
    %5298 = vmatpush.bf16.msra.mxu0 %v2394
    %5299 = vmatpush.bf16.msra.mxu0 %v2386
    %5300 = vmatpush.bf16.msra.mxu0 %v2378
    %5301 = vmatpush.bf16.msra.mxu0 %v2370
    %5302 = vmatpush.bf16.msra.mxu0 %v2362
    %5303 = vmatmul.bf16.gmra.mxu0 %v837
    %v5304 = vpop.f32.mrf.mxu0
    %v5305 = vadd.f32 %v5256, %v5304
    %v5306 = vpop.f32.mrf.mxu0
    %v5307 = vadd.f32 %v5258, %v5306
    %5308 = vmatmul.bf16.gmra.mxu0 %v844
    %v5309 = vpop.f32.mrf.mxu0
    %v5310 = vadd.f32 %v5261, %v5309
    %v5311 = vpop.f32.mrf.mxu0
    %v5312 = vadd.f32 %v5263, %v5311
    %5313 = vmatmul.bf16.gmra.mxu0 %v851
    %v5314 = vpop.f32.mrf.mxu0
    %v5315 = vadd.f32 %v5266, %v5314
    %v5316 = vpop.f32.mrf.mxu0
    %v5317 = vadd.f32 %v5268, %v5316
    %5318 = vmatmul.bf16.gmra.mxu0 %v858
    %v5319 = vpop.f32.mrf.mxu0
    %v5320 = vadd.f32 %v5271, %v5319
    %v5321 = vpop.f32.mrf.mxu0
    %v5322 = vadd.f32 %v5273, %v5321
    %5323 = vmatmul.bf16.gmra.mxu0 %v865
    %v5324 = vpop.f32.mrf.mxu0
    %v5325 = vadd.f32 %v5276, %v5324
    %v5326 = vpop.f32.mrf.mxu0
    %v5327 = vadd.f32 %v5278, %v5326
    %5328 = vmatmul.bf16.gmra.mxu0 %v872
    %v5329 = vpop.f32.mrf.mxu0
    %v5330 = vadd.f32 %v5281, %v5329
    %v5331 = vpop.f32.mrf.mxu0
    %v5332 = vadd.f32 %v5283, %v5331
    %5333 = vmatmul.bf16.gmra.mxu0 %v879
    %v5334 = vpop.f32.mrf.mxu0
    %v5335 = vadd.f32 %v5286, %v5334
    %v5336 = vpop.f32.mrf.mxu0
    %v5337 = vadd.f32 %v5288, %v5336
    %5338 = vmatmul.bf16.gmra.mxu0 %v886
    %v5339 = vpop.f32.mrf.mxu0
    %v5340 = vadd.f32 %v5291, %v5339
    %v5341 = vpop.f32.mrf.mxu0
    %v5342 = vadd.f32 %v5293, %v5341
    %5343 = vdwg.mxu0
    %5344 = vmatpush.bf16.msra.mxu0 %v2482
    %5345 = vmatpush.bf16.msra.mxu0 %v2474
    %5346 = vmatpush.bf16.msra.mxu0 %v2466
    %5347 = vmatpush.bf16.msra.mxu0 %v2458
    %5348 = vmatpush.bf16.msra.mxu0 %v2450
    %5349 = vmatpush.bf16.msra.mxu0 %v2442
    %5350 = vmatpush.bf16.msra.mxu0 %v2434
    %5351 = vmatpush.bf16.msra.mxu0 %v2426
    %5352 = vmatmul.bf16.gmra.mxu0 %v838
    %v5353 = vpop.f32.mrf.mxu0
    %v5354 = vadd.f32 %v5305, %v5353
    %v5355 = vpop.f32.mrf.mxu0
    %v5356 = vadd.f32 %v5307, %v5355
    %5357 = vmatmul.bf16.gmra.mxu0 %v845
    %v5358 = vpop.f32.mrf.mxu0
    %v5359 = vadd.f32 %v5310, %v5358
    %v5360 = vpop.f32.mrf.mxu0
    %v5361 = vadd.f32 %v5312, %v5360
    %5362 = vmatmul.bf16.gmra.mxu0 %v852
    %v5363 = vpop.f32.mrf.mxu0
    %v5364 = vadd.f32 %v5315, %v5363
    %v5365 = vpop.f32.mrf.mxu0
    %v5366 = vadd.f32 %v5317, %v5365
    %5367 = vmatmul.bf16.gmra.mxu0 %v859
    %v5368 = vpop.f32.mrf.mxu0
    %v5369 = vadd.f32 %v5320, %v5368
    %v5370 = vpop.f32.mrf.mxu0
    %v5371 = vadd.f32 %v5322, %v5370
    %5372 = vmatmul.bf16.gmra.mxu0 %v866
    %v5373 = vpop.f32.mrf.mxu0
    %v5374 = vadd.f32 %v5325, %v5373
    %v5375 = vpop.f32.mrf.mxu0
    %v5376 = vadd.f32 %v5327, %v5375
    %5377 = vmatmul.bf16.gmra.mxu0 %v873
    %v5378 = vpop.f32.mrf.mxu0
    %v5379 = vadd.f32 %v5330, %v5378
    %v5380 = vpop.f32.mrf.mxu0
    %v5381 = vadd.f32 %v5332, %v5380
    %5382 = vmatmul.bf16.gmra.mxu0 %v880
    %v5383 = vpop.f32.mrf.mxu0
    %v5384 = vadd.f32 %v5335, %v5383
    %v5385 = vpop.f32.mrf.mxu0
    %v5386 = vadd.f32 %v5337, %v5385
    %5387 = vmatmul.bf16.gmra.mxu0 %v887
    %v5388 = vpop.f32.mrf.mxu0
    %v5389 = vadd.f32 %v5340, %v5388
    %v5390 = vpop.f32.mrf.mxu0
    %v5391 = vadd.f32 %v5342, %v5390
    %5392 = vdwg.mxu0
    %5393 = vmatpush.bf16.msra.mxu0 %v2546
    %5394 = vmatpush.bf16.msra.mxu0 %v2538
    %5395 = vmatpush.bf16.msra.mxu0 %v2530
    %5396 = vmatpush.bf16.msra.mxu0 %v2522
    %5397 = vmatpush.bf16.msra.mxu0 %v2514
    %5398 = vmatpush.bf16.msra.mxu0 %v2506
    %5399 = vmatpush.bf16.msra.mxu0 %v2498
    %5400 = vmatpush.bf16.msra.mxu0 %v2490
    %5401 = vmatmul.bf16.gmra.mxu0 %v839
    %v5402 = vpop.f32.mrf.mxu0
    %v5403 = vadd.f32 %v5354, %v5402
    %v5404 = vpop.f32.mrf.mxu0
    %v5405 = vadd.f32 %v5356, %v5404
    %5406 = vmatmul.bf16.gmra.mxu0 %v846
    %v5407 = vpop.f32.mrf.mxu0
    %v5408 = vadd.f32 %v5359, %v5407
    %v5409 = vpop.f32.mrf.mxu0
    %v5410 = vadd.f32 %v5361, %v5409
    %5411 = vmatmul.bf16.gmra.mxu0 %v853
    %v5412 = vpop.f32.mrf.mxu0
    %v5413 = vadd.f32 %v5364, %v5412
    %v5414 = vpop.f32.mrf.mxu0
    %v5415 = vadd.f32 %v5366, %v5414
    %5416 = vmatmul.bf16.gmra.mxu0 %v860
    %v5417 = vpop.f32.mrf.mxu0
    %v5418 = vadd.f32 %v5369, %v5417
    %v5419 = vpop.f32.mrf.mxu0
    %v5420 = vadd.f32 %v5371, %v5419
    %5421 = vmatmul.bf16.gmra.mxu0 %v867
    %v5422 = vpop.f32.mrf.mxu0
    %v5423 = vadd.f32 %v5374, %v5422
    %v5424 = vpop.f32.mrf.mxu0
    %v5425 = vadd.f32 %v5376, %v5424
    %5426 = vmatmul.bf16.gmra.mxu0 %v874
    %v5427 = vpop.f32.mrf.mxu0
    %v5428 = vadd.f32 %v5379, %v5427
    %v5429 = vpop.f32.mrf.mxu0
    %v5430 = vadd.f32 %v5381, %v5429
    %5431 = vmatmul.bf16.gmra.mxu0 %v881
    %v5432 = vpop.f32.mrf.mxu0
    %v5433 = vadd.f32 %v5384, %v5432
    %v5434 = vpop.f32.mrf.mxu0
    %v5435 = vadd.f32 %v5386, %v5434
    %5436 = vmatmul.bf16.gmra.mxu0 %v888
    %v5437 = vpop.f32.mrf.mxu0
    %v5438 = vadd.f32 %v5389, %v5437
    %v5439 = vpop.f32.mrf.mxu0
    %v5440 = vadd.f32 %v5391, %v5439
    %5441 = vdwg.mxu0
    %5442 = vmatpush.bf16.msra.mxu0 %v2610
    %5443 = vmatpush.bf16.msra.mxu0 %v2602
    %5444 = vmatpush.bf16.msra.mxu0 %v2594
    %5445 = vmatpush.bf16.msra.mxu0 %v2586
    %5446 = vmatpush.bf16.msra.mxu0 %v2578
    %5447 = vmatpush.bf16.msra.mxu0 %v2570
    %5448 = vmatpush.bf16.msra.mxu0 %v2562
    %5449 = vmatpush.bf16.msra.mxu0 %v2554
    %5450 = vmatmul.bf16.gmra.mxu0 %v840
    %v5451 = vpop.f32.mrf.mxu0
    %v5452 = vadd.f32 %v5403, %v5451
    %v5453 = vpop.f32.mrf.mxu0
    %v5454 = vadd.f32 %v5405, %v5453
    %5455 = vmatmul.bf16.gmra.mxu0 %v847
    %v5456 = vpop.f32.mrf.mxu0
    %v5457 = vadd.f32 %v5408, %v5456
    %v5458 = vpop.f32.mrf.mxu0
    %v5459 = vadd.f32 %v5410, %v5458
    %5460 = vmatmul.bf16.gmra.mxu0 %v854
    %v5461 = vpop.f32.mrf.mxu0
    %v5462 = vadd.f32 %v5413, %v5461
    %v5463 = vpop.f32.mrf.mxu0
    %v5464 = vadd.f32 %v5415, %v5463
    %5465 = vmatmul.bf16.gmra.mxu0 %v861
    %v5466 = vpop.f32.mrf.mxu0
    %v5467 = vadd.f32 %v5418, %v5466
    %v5468 = vpop.f32.mrf.mxu0
    %v5469 = vadd.f32 %v5420, %v5468
    %5470 = vmatmul.bf16.gmra.mxu0 %v868
    %v5471 = vpop.f32.mrf.mxu0
    %v5472 = vadd.f32 %v5423, %v5471
    %v5473 = vpop.f32.mrf.mxu0
    %v5474 = vadd.f32 %v5425, %v5473
    %5475 = vmatmul.bf16.gmra.mxu0 %v875
    %v5476 = vpop.f32.mrf.mxu0
    %v5477 = vadd.f32 %v5428, %v5476
    %v5478 = vpop.f32.mrf.mxu0
    %v5479 = vadd.f32 %v5430, %v5478
    %5480 = vmatmul.bf16.gmra.mxu0 %v882
    %v5481 = vpop.f32.mrf.mxu0
    %v5482 = vadd.f32 %v5433, %v5481
    %v5483 = vpop.f32.mrf.mxu0
    %v5484 = vadd.f32 %v5435, %v5483
    %5485 = vmatmul.bf16.gmra.mxu0 %v889
    %v5486 = vpop.f32.mrf.mxu0
    %v5487 = vadd.f32 %v5438, %v5486
    %v5488 = vpop.f32.mrf.mxu0
    %v5489 = vadd.f32 %v5440, %v5488
    %5490 = vdwg.mxu0
    %5491 = vmatpush.bf16.msra.mxu0 %v2674
    %5492 = vmatpush.bf16.msra.mxu0 %v2666
    %5493 = vmatpush.bf16.msra.mxu0 %v2658
    %5494 = vmatpush.bf16.msra.mxu0 %v2650
    %5495 = vmatpush.bf16.msra.mxu0 %v2642
    %5496 = vmatpush.bf16.msra.mxu0 %v2634
    %5497 = vmatpush.bf16.msra.mxu0 %v2626
    %5498 = vmatpush.bf16.msra.mxu0 %v2618
    %5499 = vmatmul.bf16.gmra.mxu0 %v841
    %v5500 = vpop.f32.mrf.mxu0
    %v5501 = vadd.f32 %v5452, %v5500
    %v5502 = vpop.f32.mrf.mxu0
    %v5503 = vadd.f32 %v5454, %v5502
    %5504 = vmatmul.bf16.gmra.mxu0 %v848
    %v5505 = vpop.f32.mrf.mxu0
    %v5506 = vadd.f32 %v5457, %v5505
    %v5507 = vpop.f32.mrf.mxu0
    %v5508 = vadd.f32 %v5459, %v5507
    %5509 = vmatmul.bf16.gmra.mxu0 %v855
    %v5510 = vpop.f32.mrf.mxu0
    %v5511 = vadd.f32 %v5462, %v5510
    %v5512 = vpop.f32.mrf.mxu0
    %v5513 = vadd.f32 %v5464, %v5512
    %5514 = vmatmul.bf16.gmra.mxu0 %v862
    %v5515 = vpop.f32.mrf.mxu0
    %v5516 = vadd.f32 %v5467, %v5515
    %v5517 = vpop.f32.mrf.mxu0
    %v5518 = vadd.f32 %v5469, %v5517
    %5519 = vmatmul.bf16.gmra.mxu0 %v869
    %v5520 = vpop.f32.mrf.mxu0
    %v5521 = vadd.f32 %v5472, %v5520
    %v5522 = vpop.f32.mrf.mxu0
    %v5523 = vadd.f32 %v5474, %v5522
    %5524 = vmatmul.bf16.gmra.mxu0 %v876
    %v5525 = vpop.f32.mrf.mxu0
    %v5526 = vadd.f32 %v5477, %v5525
    %v5527 = vpop.f32.mrf.mxu0
    %v5528 = vadd.f32 %v5479, %v5527
    %5529 = vmatmul.bf16.gmra.mxu0 %v883
    %v5530 = vpop.f32.mrf.mxu0
    %v5531 = vadd.f32 %v5482, %v5530
    %v5532 = vpop.f32.mrf.mxu0
    %v5533 = vadd.f32 %v5484, %v5532
    %5534 = vmatmul.bf16.gmra.mxu0 %v890
    %v5535 = vpop.f32.mrf.mxu0
    %v5536 = vadd.f32 %v5487, %v5535
    %v5537 = vpop.f32.mrf.mxu0
    %v5538 = vadd.f32 %v5489, %v5537
    %5539 = vdwg.mxu0
    %5540 = vmatpush.bf16.msra.mxu0 %v2738
    %5541 = vmatpush.bf16.msra.mxu0 %v2730
    %5542 = vmatpush.bf16.msra.mxu0 %v2722
    %5543 = vmatpush.bf16.msra.mxu0 %v2714
    %5544 = vmatpush.bf16.msra.mxu0 %v2706
    %5545 = vmatpush.bf16.msra.mxu0 %v2698
    %5546 = vmatpush.bf16.msra.mxu0 %v2690
    %5547 = vmatpush.bf16.msra.mxu0 %v2682
    %5548 = vmatmul.bf16.gmra.mxu0 %v842
    %v5549 = vpop.f32.mrf.mxu0
    %v5550 = vadd.f32 %v5501, %v5549
    %v5551 = vpop.f32.mrf.mxu0
    %v5552 = vadd.f32 %v5503, %v5551
    %5553 = vmatmul.bf16.gmra.mxu0 %v849
    %v5554 = vpop.f32.mrf.mxu0
    %v5555 = vadd.f32 %v5506, %v5554
    %v5556 = vpop.f32.mrf.mxu0
    %v5557 = vadd.f32 %v5508, %v5556
    %5558 = vmatmul.bf16.gmra.mxu0 %v856
    %v5559 = vpop.f32.mrf.mxu0
    %v5560 = vadd.f32 %v5511, %v5559
    %v5561 = vpop.f32.mrf.mxu0
    %v5562 = vadd.f32 %v5513, %v5561
    %5563 = vmatmul.bf16.gmra.mxu0 %v863
    %v5564 = vpop.f32.mrf.mxu0
    %v5565 = vadd.f32 %v5516, %v5564
    %v5566 = vpop.f32.mrf.mxu0
    %v5567 = vadd.f32 %v5518, %v5566
    %5568 = vmatmul.bf16.gmra.mxu0 %v870
    %v5569 = vpop.f32.mrf.mxu0
    %v5570 = vadd.f32 %v5521, %v5569
    %v5571 = vpop.f32.mrf.mxu0
    %v5572 = vadd.f32 %v5523, %v5571
    %5573 = vmatmul.bf16.gmra.mxu0 %v877
    %v5574 = vpop.f32.mrf.mxu0
    %v5575 = vadd.f32 %v5526, %v5574
    %v5576 = vpop.f32.mrf.mxu0
    %v5577 = vadd.f32 %v5528, %v5576
    %5578 = vmatmul.bf16.gmra.mxu0 %v884
    %v5579 = vpop.f32.mrf.mxu0
    %v5580 = vadd.f32 %v5531, %v5579
    %v5581 = vpop.f32.mrf.mxu0
    %v5582 = vadd.f32 %v5533, %v5581
    %5583 = vmatmul.bf16.gmra.mxu0 %v891
    %v5584 = vpop.f32.mrf.mxu0
    %v5585 = vadd.f32 %v5536, %v5584
    %v5586 = vpop.f32.mrf.mxu0
    %v5587 = vadd.f32 %v5538, %v5586
    %5588 = vdwg.mxu0
    %5589 = vmatpush.bf16.msra.mxu0 %v2355
    %5590 = vmatpush.bf16.msra.mxu0 %v2347
    %5591 = vmatpush.bf16.msra.mxu0 %v2339
    %5592 = vmatpush.bf16.msra.mxu0 %v2331
    %5593 = vmatpush.bf16.msra.mxu0 %v2323
    %5594 = vmatpush.bf16.msra.mxu0 %v2315
    %5595 = vmatpush.bf16.msra.mxu0 %v2307
    %5596 = vmatpush.bf16.msra.mxu0 %v2299
    %5597 = vmatmul.bf16.gmra.mxu0 %v836
    %v5598 = vpop.f32.mrf.mxu0
    %v5599 = vadd.f32 %v651, %v5598
    %v5600 = vpop.f32.mrf.mxu0
    %v5601 = vadd.f32 %v651, %v5600
    %5602 = vmatmul.bf16.gmra.mxu0 %v843
    %v5603 = vpop.f32.mrf.mxu0
    %v5604 = vadd.f32 %v651, %v5603
    %v5605 = vpop.f32.mrf.mxu0
    %v5606 = vadd.f32 %v651, %v5605
    %5607 = vmatmul.bf16.gmra.mxu0 %v850
    %v5608 = vpop.f32.mrf.mxu0
    %v5609 = vadd.f32 %v651, %v5608
    %v5610 = vpop.f32.mrf.mxu0
    %v5611 = vadd.f32 %v651, %v5610
    %5612 = vmatmul.bf16.gmra.mxu0 %v857
    %v5613 = vpop.f32.mrf.mxu0
    %v5614 = vadd.f32 %v651, %v5613
    %v5615 = vpop.f32.mrf.mxu0
    %v5616 = vadd.f32 %v651, %v5615
    %5617 = vmatmul.bf16.gmra.mxu0 %v864
    %v5618 = vpop.f32.mrf.mxu0
    %v5619 = vadd.f32 %v651, %v5618
    %v5620 = vpop.f32.mrf.mxu0
    %v5621 = vadd.f32 %v651, %v5620
    %5622 = vmatmul.bf16.gmra.mxu0 %v871
    %v5623 = vpop.f32.mrf.mxu0
    %v5624 = vadd.f32 %v651, %v5623
    %v5625 = vpop.f32.mrf.mxu0
    %v5626 = vadd.f32 %v651, %v5625
    %5627 = vmatmul.bf16.gmra.mxu0 %v878
    %v5628 = vpop.f32.mrf.mxu0
    %v5629 = vadd.f32 %v651, %v5628
    %v5630 = vpop.f32.mrf.mxu0
    %v5631 = vadd.f32 %v651, %v5630
    %5632 = vmatmul.bf16.gmra.mxu0 %v885
    %v5633 = vpop.f32.mrf.mxu0
    %v5634 = vadd.f32 %v651, %v5633
    %v5635 = vpop.f32.mrf.mxu0
    %v5636 = vadd.f32 %v651, %v5635
    %5637 = vdwg.mxu0
    %5638 = vmatpush.bf16.msra.mxu0 %v2419
    %5639 = vmatpush.bf16.msra.mxu0 %v2411
    %5640 = vmatpush.bf16.msra.mxu0 %v2403
    %5641 = vmatpush.bf16.msra.mxu0 %v2395
    %5642 = vmatpush.bf16.msra.mxu0 %v2387
    %5643 = vmatpush.bf16.msra.mxu0 %v2379
    %5644 = vmatpush.bf16.msra.mxu0 %v2371
    %5645 = vmatpush.bf16.msra.mxu0 %v2363
    %5646 = vmatmul.bf16.gmra.mxu0 %v837
    %v5647 = vpop.f32.mrf.mxu0
    %v5648 = vadd.f32 %v5599, %v5647
    %v5649 = vpop.f32.mrf.mxu0
    %v5650 = vadd.f32 %v5601, %v5649
    %5651 = vmatmul.bf16.gmra.mxu0 %v844
    %v5652 = vpop.f32.mrf.mxu0
    %v5653 = vadd.f32 %v5604, %v5652
    %v5654 = vpop.f32.mrf.mxu0
    %v5655 = vadd.f32 %v5606, %v5654
    %5656 = vmatmul.bf16.gmra.mxu0 %v851
    %v5657 = vpop.f32.mrf.mxu0
    %v5658 = vadd.f32 %v5609, %v5657
    %v5659 = vpop.f32.mrf.mxu0
    %v5660 = vadd.f32 %v5611, %v5659
    %5661 = vmatmul.bf16.gmra.mxu0 %v858
    %v5662 = vpop.f32.mrf.mxu0
    %v5663 = vadd.f32 %v5614, %v5662
    %v5664 = vpop.f32.mrf.mxu0
    %v5665 = vadd.f32 %v5616, %v5664
    %5666 = vmatmul.bf16.gmra.mxu0 %v865
    %v5667 = vpop.f32.mrf.mxu0
    %v5668 = vadd.f32 %v5619, %v5667
    %v5669 = vpop.f32.mrf.mxu0
    %v5670 = vadd.f32 %v5621, %v5669
    %5671 = vmatmul.bf16.gmra.mxu0 %v872
    %v5672 = vpop.f32.mrf.mxu0
    %v5673 = vadd.f32 %v5624, %v5672
    %v5674 = vpop.f32.mrf.mxu0
    %v5675 = vadd.f32 %v5626, %v5674
    %5676 = vmatmul.bf16.gmra.mxu0 %v879
    %v5677 = vpop.f32.mrf.mxu0
    %v5678 = vadd.f32 %v5629, %v5677
    %v5679 = vpop.f32.mrf.mxu0
    %v5680 = vadd.f32 %v5631, %v5679
    %5681 = vmatmul.bf16.gmra.mxu0 %v886
    %v5682 = vpop.f32.mrf.mxu0
    %v5683 = vadd.f32 %v5634, %v5682
    %v5684 = vpop.f32.mrf.mxu0
    %v5685 = vadd.f32 %v5636, %v5684
    %5686 = vdwg.mxu0
    %5687 = vmatpush.bf16.msra.mxu0 %v2483
    %5688 = vmatpush.bf16.msra.mxu0 %v2475
    %5689 = vmatpush.bf16.msra.mxu0 %v2467
    %5690 = vmatpush.bf16.msra.mxu0 %v2459
    %5691 = vmatpush.bf16.msra.mxu0 %v2451
    %5692 = vmatpush.bf16.msra.mxu0 %v2443
    %5693 = vmatpush.bf16.msra.mxu0 %v2435
    %5694 = vmatpush.bf16.msra.mxu0 %v2427
    %5695 = vmatmul.bf16.gmra.mxu0 %v838
    %v5696 = vpop.f32.mrf.mxu0
    %v5697 = vadd.f32 %v5648, %v5696
    %v5698 = vpop.f32.mrf.mxu0
    %v5699 = vadd.f32 %v5650, %v5698
    %5700 = vmatmul.bf16.gmra.mxu0 %v845
    %v5701 = vpop.f32.mrf.mxu0
    %v5702 = vadd.f32 %v5653, %v5701
    %v5703 = vpop.f32.mrf.mxu0
    %v5704 = vadd.f32 %v5655, %v5703
    %5705 = vmatmul.bf16.gmra.mxu0 %v852
    %v5706 = vpop.f32.mrf.mxu0
    %v5707 = vadd.f32 %v5658, %v5706
    %v5708 = vpop.f32.mrf.mxu0
    %v5709 = vadd.f32 %v5660, %v5708
    %5710 = vmatmul.bf16.gmra.mxu0 %v859
    %v5711 = vpop.f32.mrf.mxu0
    %v5712 = vadd.f32 %v5663, %v5711
    %v5713 = vpop.f32.mrf.mxu0
    %v5714 = vadd.f32 %v5665, %v5713
    %5715 = vmatmul.bf16.gmra.mxu0 %v866
    %v5716 = vpop.f32.mrf.mxu0
    %v5717 = vadd.f32 %v5668, %v5716
    %v5718 = vpop.f32.mrf.mxu0
    %v5719 = vadd.f32 %v5670, %v5718
    %5720 = vmatmul.bf16.gmra.mxu0 %v873
    %v5721 = vpop.f32.mrf.mxu0
    %v5722 = vadd.f32 %v5673, %v5721
    %v5723 = vpop.f32.mrf.mxu0
    %v5724 = vadd.f32 %v5675, %v5723
    %5725 = vmatmul.bf16.gmra.mxu0 %v880
    %v5726 = vpop.f32.mrf.mxu0
    %v5727 = vadd.f32 %v5678, %v5726
    %v5728 = vpop.f32.mrf.mxu0
    %v5729 = vadd.f32 %v5680, %v5728
    %5730 = vmatmul.bf16.gmra.mxu0 %v887
    %v5731 = vpop.f32.mrf.mxu0
    %v5732 = vadd.f32 %v5683, %v5731
    %v5733 = vpop.f32.mrf.mxu0
    %v5734 = vadd.f32 %v5685, %v5733
    %5735 = vdwg.mxu0
    %5736 = vmatpush.bf16.msra.mxu0 %v2547
    %5737 = vmatpush.bf16.msra.mxu0 %v2539
    %5738 = vmatpush.bf16.msra.mxu0 %v2531
    %5739 = vmatpush.bf16.msra.mxu0 %v2523
    %5740 = vmatpush.bf16.msra.mxu0 %v2515
    %5741 = vmatpush.bf16.msra.mxu0 %v2507
    %5742 = vmatpush.bf16.msra.mxu0 %v2499
    %5743 = vmatpush.bf16.msra.mxu0 %v2491
    %5744 = vmatmul.bf16.gmra.mxu0 %v839
    %v5745 = vpop.f32.mrf.mxu0
    %v5746 = vadd.f32 %v5697, %v5745
    %v5747 = vpop.f32.mrf.mxu0
    %v5748 = vadd.f32 %v5699, %v5747
    %5749 = vmatmul.bf16.gmra.mxu0 %v846
    %v5750 = vpop.f32.mrf.mxu0
    %v5751 = vadd.f32 %v5702, %v5750
    %v5752 = vpop.f32.mrf.mxu0
    %v5753 = vadd.f32 %v5704, %v5752
    %5754 = vmatmul.bf16.gmra.mxu0 %v853
    %v5755 = vpop.f32.mrf.mxu0
    %v5756 = vadd.f32 %v5707, %v5755
    %v5757 = vpop.f32.mrf.mxu0
    %v5758 = vadd.f32 %v5709, %v5757
    %5759 = vmatmul.bf16.gmra.mxu0 %v860
    %v5760 = vpop.f32.mrf.mxu0
    %v5761 = vadd.f32 %v5712, %v5760
    %v5762 = vpop.f32.mrf.mxu0
    %v5763 = vadd.f32 %v5714, %v5762
    %5764 = vmatmul.bf16.gmra.mxu0 %v867
    %v5765 = vpop.f32.mrf.mxu0
    %v5766 = vadd.f32 %v5717, %v5765
    %v5767 = vpop.f32.mrf.mxu0
    %v5768 = vadd.f32 %v5719, %v5767
    %5769 = vmatmul.bf16.gmra.mxu0 %v874
    %v5770 = vpop.f32.mrf.mxu0
    %v5771 = vadd.f32 %v5722, %v5770
    %v5772 = vpop.f32.mrf.mxu0
    %v5773 = vadd.f32 %v5724, %v5772
    %5774 = vmatmul.bf16.gmra.mxu0 %v881
    %v5775 = vpop.f32.mrf.mxu0
    %v5776 = vadd.f32 %v5727, %v5775
    %v5777 = vpop.f32.mrf.mxu0
    %v5778 = vadd.f32 %v5729, %v5777
    %5779 = vmatmul.bf16.gmra.mxu0 %v888
    %v5780 = vpop.f32.mrf.mxu0
    %v5781 = vadd.f32 %v5732, %v5780
    %v5782 = vpop.f32.mrf.mxu0
    %v5783 = vadd.f32 %v5734, %v5782
    %5784 = vdwg.mxu0
    %5785 = vmatpush.bf16.msra.mxu0 %v2611
    %5786 = vmatpush.bf16.msra.mxu0 %v2603
    %5787 = vmatpush.bf16.msra.mxu0 %v2595
    %5788 = vmatpush.bf16.msra.mxu0 %v2587
    %5789 = vmatpush.bf16.msra.mxu0 %v2579
    %5790 = vmatpush.bf16.msra.mxu0 %v2571
    %5791 = vmatpush.bf16.msra.mxu0 %v2563
    %5792 = vmatpush.bf16.msra.mxu0 %v2555
    %5793 = vmatmul.bf16.gmra.mxu0 %v840
    %v5794 = vpop.f32.mrf.mxu0
    %v5795 = vadd.f32 %v5746, %v5794
    %v5796 = vpop.f32.mrf.mxu0
    %v5797 = vadd.f32 %v5748, %v5796
    %5798 = vmatmul.bf16.gmra.mxu0 %v847
    %v5799 = vpop.f32.mrf.mxu0
    %v5800 = vadd.f32 %v5751, %v5799
    %v5801 = vpop.f32.mrf.mxu0
    %v5802 = vadd.f32 %v5753, %v5801
    %5803 = vmatmul.bf16.gmra.mxu0 %v854
    %v5804 = vpop.f32.mrf.mxu0
    %v5805 = vadd.f32 %v5756, %v5804
    %v5806 = vpop.f32.mrf.mxu0
    %v5807 = vadd.f32 %v5758, %v5806
    %5808 = vmatmul.bf16.gmra.mxu0 %v861
    %v5809 = vpop.f32.mrf.mxu0
    %v5810 = vadd.f32 %v5761, %v5809
    %v5811 = vpop.f32.mrf.mxu0
    %v5812 = vadd.f32 %v5763, %v5811
    %5813 = vmatmul.bf16.gmra.mxu0 %v868
    %v5814 = vpop.f32.mrf.mxu0
    %v5815 = vadd.f32 %v5766, %v5814
    %v5816 = vpop.f32.mrf.mxu0
    %v5817 = vadd.f32 %v5768, %v5816
    %5818 = vmatmul.bf16.gmra.mxu0 %v875
    %v5819 = vpop.f32.mrf.mxu0
    %v5820 = vadd.f32 %v5771, %v5819
    %v5821 = vpop.f32.mrf.mxu0
    %v5822 = vadd.f32 %v5773, %v5821
    %5823 = vmatmul.bf16.gmra.mxu0 %v882
    %v5824 = vpop.f32.mrf.mxu0
    %v5825 = vadd.f32 %v5776, %v5824
    %v5826 = vpop.f32.mrf.mxu0
    %v5827 = vadd.f32 %v5778, %v5826
    %5828 = vmatmul.bf16.gmra.mxu0 %v889
    %v5829 = vpop.f32.mrf.mxu0
    %v5830 = vadd.f32 %v5781, %v5829
    %v5831 = vpop.f32.mrf.mxu0
    %v5832 = vadd.f32 %v5783, %v5831
    %5833 = vdwg.mxu0
    %5834 = vmatpush.bf16.msra.mxu0 %v2675
    %5835 = vmatpush.bf16.msra.mxu0 %v2667
    %5836 = vmatpush.bf16.msra.mxu0 %v2659
    %5837 = vmatpush.bf16.msra.mxu0 %v2651
    %5838 = vmatpush.bf16.msra.mxu0 %v2643
    %5839 = vmatpush.bf16.msra.mxu0 %v2635
    %5840 = vmatpush.bf16.msra.mxu0 %v2627
    %5841 = vmatpush.bf16.msra.mxu0 %v2619
    %5842 = vmatmul.bf16.gmra.mxu0 %v841
    %v5843 = vpop.f32.mrf.mxu0
    %v5844 = vadd.f32 %v5795, %v5843
    %v5845 = vpop.f32.mrf.mxu0
    %v5846 = vadd.f32 %v5797, %v5845
    %5847 = vmatmul.bf16.gmra.mxu0 %v848
    %v5848 = vpop.f32.mrf.mxu0
    %v5849 = vadd.f32 %v5800, %v5848
    %v5850 = vpop.f32.mrf.mxu0
    %v5851 = vadd.f32 %v5802, %v5850
    %5852 = vmatmul.bf16.gmra.mxu0 %v855
    %v5853 = vpop.f32.mrf.mxu0
    %v5854 = vadd.f32 %v5805, %v5853
    %v5855 = vpop.f32.mrf.mxu0
    %v5856 = vadd.f32 %v5807, %v5855
    %5857 = vmatmul.bf16.gmra.mxu0 %v862
    %v5858 = vpop.f32.mrf.mxu0
    %v5859 = vadd.f32 %v5810, %v5858
    %v5860 = vpop.f32.mrf.mxu0
    %v5861 = vadd.f32 %v5812, %v5860
    %5862 = vmatmul.bf16.gmra.mxu0 %v869
    %v5863 = vpop.f32.mrf.mxu0
    %v5864 = vadd.f32 %v5815, %v5863
    %v5865 = vpop.f32.mrf.mxu0
    %v5866 = vadd.f32 %v5817, %v5865
    %5867 = vmatmul.bf16.gmra.mxu0 %v876
    %v5868 = vpop.f32.mrf.mxu0
    %v5869 = vadd.f32 %v5820, %v5868
    %v5870 = vpop.f32.mrf.mxu0
    %v5871 = vadd.f32 %v5822, %v5870
    %5872 = vmatmul.bf16.gmra.mxu0 %v883
    %v5873 = vpop.f32.mrf.mxu0
    %v5874 = vadd.f32 %v5825, %v5873
    %v5875 = vpop.f32.mrf.mxu0
    %v5876 = vadd.f32 %v5827, %v5875
    %5877 = vmatmul.bf16.gmra.mxu0 %v890
    %v5878 = vpop.f32.mrf.mxu0
    %v5879 = vadd.f32 %v5830, %v5878
    %v5880 = vpop.f32.mrf.mxu0
    %v5881 = vadd.f32 %v5832, %v5880
    %5882 = vdwg.mxu0
    %5883 = vmatpush.bf16.msra.mxu0 %v2739
    %5884 = vmatpush.bf16.msra.mxu0 %v2731
    %5885 = vmatpush.bf16.msra.mxu0 %v2723
    %5886 = vmatpush.bf16.msra.mxu0 %v2715
    %5887 = vmatpush.bf16.msra.mxu0 %v2707
    %5888 = vmatpush.bf16.msra.mxu0 %v2699
    %5889 = vmatpush.bf16.msra.mxu0 %v2691
    %5890 = vmatpush.bf16.msra.mxu0 %v2683
    %5891 = vmatmul.bf16.gmra.mxu0 %v842
    %v5892 = vpop.f32.mrf.mxu0
    %v5893 = vadd.f32 %v5844, %v5892
    %v5894 = vpop.f32.mrf.mxu0
    %v5895 = vadd.f32 %v5846, %v5894
    %5896 = vmatmul.bf16.gmra.mxu0 %v849
    %v5897 = vpop.f32.mrf.mxu0
    %v5898 = vadd.f32 %v5849, %v5897
    %v5899 = vpop.f32.mrf.mxu0
    %v5900 = vadd.f32 %v5851, %v5899
    %5901 = vmatmul.bf16.gmra.mxu0 %v856
    %v5902 = vpop.f32.mrf.mxu0
    %v5903 = vadd.f32 %v5854, %v5902
    %v5904 = vpop.f32.mrf.mxu0
    %v5905 = vadd.f32 %v5856, %v5904
    %5906 = vmatmul.bf16.gmra.mxu0 %v863
    %v5907 = vpop.f32.mrf.mxu0
    %v5908 = vadd.f32 %v5859, %v5907
    %v5909 = vpop.f32.mrf.mxu0
    %v5910 = vadd.f32 %v5861, %v5909
    %5911 = vmatmul.bf16.gmra.mxu0 %v870
    %v5912 = vpop.f32.mrf.mxu0
    %v5913 = vadd.f32 %v5864, %v5912
    %v5914 = vpop.f32.mrf.mxu0
    %v5915 = vadd.f32 %v5866, %v5914
    %5916 = vmatmul.bf16.gmra.mxu0 %v877
    %v5917 = vpop.f32.mrf.mxu0
    %v5918 = vadd.f32 %v5869, %v5917
    %v5919 = vpop.f32.mrf.mxu0
    %v5920 = vadd.f32 %v5871, %v5919
    %5921 = vmatmul.bf16.gmra.mxu0 %v884
    %v5922 = vpop.f32.mrf.mxu0
    %v5923 = vadd.f32 %v5874, %v5922
    %v5924 = vpop.f32.mrf.mxu0
    %v5925 = vadd.f32 %v5876, %v5924
    %5926 = vmatmul.bf16.gmra.mxu0 %v891
    %v5927 = vpop.f32.mrf.mxu0
    %v5928 = vadd.f32 %v5879, %v5927
    %v5929 = vpop.f32.mrf.mxu0
    %v5930 = vadd.f32 %v5881, %v5929
    %5931 = vdwg.mxu0
    %v5932 = vmax.f32 %v3492, 0.0
    %v5933 = vmax.f32 %v3835, 0.0
    %v5934 = vmax.f32 %v4178, 0.0
    %v5935 = vmax.f32 %v4521, 0.0
    %v5936 = vmax.f32 %v4864, 0.0
    %v5937 = vmax.f32 %v5207, 0.0
    %v5938 = vmax.f32 %v5550, 0.0
    %v5939 = vmax.f32 %v5893, 0.0
    %v5940 = vmax.f32 %v3494, 0.0
    %v5941 = vmax.f32 %v3837, 0.0
    %v5942 = vmax.f32 %v4180, 0.0
    %v5943 = vmax.f32 %v4523, 0.0
    %v5944 = vmax.f32 %v4866, 0.0
    %v5945 = vmax.f32 %v5209, 0.0
    %v5946 = vmax.f32 %v5552, 0.0
    %v5947 = vmax.f32 %v5895, 0.0
    %v5948 = vmax.f32 %v3497, 0.0
    %v5949 = vmax.f32 %v3840, 0.0
    %v5950 = vmax.f32 %v4183, 0.0
    %v5951 = vmax.f32 %v4526, 0.0
    %v5952 = vmax.f32 %v4869, 0.0
    %v5953 = vmax.f32 %v5212, 0.0
    %v5954 = vmax.f32 %v5555, 0.0
    %v5955 = vmax.f32 %v5898, 0.0
    %v5956 = vmax.f32 %v3499, 0.0
    %v5957 = vmax.f32 %v3842, 0.0
    %v5958 = vmax.f32 %v4185, 0.0
    %v5959 = vmax.f32 %v4528, 0.0
    %v5960 = vmax.f32 %v4871, 0.0
    %v5961 = vmax.f32 %v5214, 0.0
    %v5962 = vmax.f32 %v5557, 0.0
    %v5963 = vmax.f32 %v5900, 0.0
    %v5964 = vmax.f32 %v3502, 0.0
    %v5965 = vmax.f32 %v3845, 0.0
    %v5966 = vmax.f32 %v4188, 0.0
    %v5967 = vmax.f32 %v4531, 0.0
    %v5968 = vmax.f32 %v4874, 0.0
    %v5969 = vmax.f32 %v5217, 0.0
    %v5970 = vmax.f32 %v5560, 0.0
    %v5971 = vmax.f32 %v5903, 0.0
    %v5972 = vmax.f32 %v3504, 0.0
    %v5973 = vmax.f32 %v3847, 0.0
    %v5974 = vmax.f32 %v4190, 0.0
    %v5975 = vmax.f32 %v4533, 0.0
    %v5976 = vmax.f32 %v4876, 0.0
    %v5977 = vmax.f32 %v5219, 0.0
    %v5978 = vmax.f32 %v5562, 0.0
    %v5979 = vmax.f32 %v5905, 0.0
    %v5980 = vmax.f32 %v3507, 0.0
    %v5981 = vmax.f32 %v3850, 0.0
    %v5982 = vmax.f32 %v4193, 0.0
    %v5983 = vmax.f32 %v4536, 0.0
    %v5984 = vmax.f32 %v4879, 0.0
    %v5985 = vmax.f32 %v5222, 0.0
    %v5986 = vmax.f32 %v5565, 0.0
    %v5987 = vmax.f32 %v5908, 0.0
    %v5988 = vmax.f32 %v3509, 0.0
    %v5989 = vmax.f32 %v3852, 0.0
    %v5990 = vmax.f32 %v4195, 0.0
    %v5991 = vmax.f32 %v4538, 0.0
    %v5992 = vmax.f32 %v4881, 0.0
    %v5993 = vmax.f32 %v5224, 0.0
    %v5994 = vmax.f32 %v5567, 0.0
    %v5995 = vmax.f32 %v5910, 0.0
    %v5996 = vmax.f32 %v3512, 0.0
    %v5997 = vmax.f32 %v3855, 0.0
    %v5998 = vmax.f32 %v4198, 0.0
    %v5999 = vmax.f32 %v4541, 0.0
    %v6000 = vmax.f32 %v4884, 0.0
    %v6001 = vmax.f32 %v5227, 0.0
    %v6002 = vmax.f32 %v5570, 0.0
    %v6003 = vmax.f32 %v5913, 0.0
    %v6004 = vmax.f32 %v3514, 0.0
    %v6005 = vmax.f32 %v3857, 0.0
    %v6006 = vmax.f32 %v4200, 0.0
    %v6007 = vmax.f32 %v4543, 0.0
    %v6008 = vmax.f32 %v4886, 0.0
    %v6009 = vmax.f32 %v5229, 0.0
    %v6010 = vmax.f32 %v5572, 0.0
    %v6011 = vmax.f32 %v5915, 0.0
    %v6012 = vmax.f32 %v3517, 0.0
    %v6013 = vmax.f32 %v3860, 0.0
    %v6014 = vmax.f32 %v4203, 0.0
    %v6015 = vmax.f32 %v4546, 0.0
    %v6016 = vmax.f32 %v4889, 0.0
    %v6017 = vmax.f32 %v5232, 0.0
    %v6018 = vmax.f32 %v5575, 0.0
    %v6019 = vmax.f32 %v5918, 0.0
    %v6020 = vmax.f32 %v3519, 0.0
    %v6021 = vmax.f32 %v3862, 0.0
    %v6022 = vmax.f32 %v4205, 0.0
    %v6023 = vmax.f32 %v4548, 0.0
    %v6024 = vmax.f32 %v4891, 0.0
    %v6025 = vmax.f32 %v5234, 0.0
    %v6026 = vmax.f32 %v5577, 0.0
    %v6027 = vmax.f32 %v5920, 0.0
    %v6028 = vmax.f32 %v3522, 0.0
    %v6029 = vmax.f32 %v3865, 0.0
    %v6030 = vmax.f32 %v4208, 0.0
    %v6031 = vmax.f32 %v4551, 0.0
    %v6032 = vmax.f32 %v4894, 0.0
    %v6033 = vmax.f32 %v5237, 0.0
    %v6034 = vmax.f32 %v5580, 0.0
    %v6035 = vmax.f32 %v5923, 0.0
    %v6036 = vmax.f32 %v3524, 0.0
    %v6037 = vmax.f32 %v3867, 0.0
    %v6038 = vmax.f32 %v4210, 0.0
    %v6039 = vmax.f32 %v4553, 0.0
    %v6040 = vmax.f32 %v4896, 0.0
    %v6041 = vmax.f32 %v5239, 0.0
    %v6042 = vmax.f32 %v5582, 0.0
    %v6043 = vmax.f32 %v5925, 0.0
    %v6044 = vmax.f32 %v3527, 0.0
    %v6045 = vmax.f32 %v3870, 0.0
    %v6046 = vmax.f32 %v4213, 0.0
    %v6047 = vmax.f32 %v4556, 0.0
    %v6048 = vmax.f32 %v4899, 0.0
    %v6049 = vmax.f32 %v5242, 0.0
    %v6050 = vmax.f32 %v5585, 0.0
    %v6051 = vmax.f32 %v5928, 0.0
    %v6052 = vmax.f32 %v3529, 0.0
    %v6053 = vmax.f32 %v3872, 0.0
    %v6054 = vmax.f32 %v4215, 0.0
    %v6055 = vmax.f32 %v4558, 0.0
    %v6056 = vmax.f32 %v4901, 0.0
    %v6057 = vmax.f32 %v5244, 0.0
    %v6058 = vmax.f32 %v5587, 0.0
    %v6059 = vmax.f32 %v5930, 0.0
    %v6060 = vpack.c.bf16 %v5940, %v5932
    %v6061 = vpack.c.bf16 %v5941, %v5933
    %v6062 = vpack.c.bf16 %v5942, %v5934
    %v6063 = vpack.c.bf16 %v5943, %v5935
    %v6064 = vpack.c.bf16 %v5944, %v5936
    %v6065 = vpack.c.bf16 %v5945, %v5937
    %v6066 = vpack.c.bf16 %v5946, %v5938
    %v6067 = vpack.c.bf16 %v5947, %v5939
    %v6068 = vpack.c.bf16 %v5956, %v5948
    %v6069 = vpack.c.bf16 %v5957, %v5949
    %v6070 = vpack.c.bf16 %v5958, %v5950
    %v6071 = vpack.c.bf16 %v5959, %v5951
    %v6072 = vpack.c.bf16 %v5960, %v5952
    %v6073 = vpack.c.bf16 %v5961, %v5953
    %v6074 = vpack.c.bf16 %v5962, %v5954
    %v6075 = vpack.c.bf16 %v5963, %v5955
    %v6076 = vpack.c.bf16 %v5972, %v5964
    %v6077 = vpack.c.bf16 %v5973, %v5965
    %v6078 = vpack.c.bf16 %v5974, %v5966
    %v6079 = vpack.c.bf16 %v5975, %v5967
    %v6080 = vpack.c.bf16 %v5976, %v5968
    %v6081 = vpack.c.bf16 %v5977, %v5969
    %v6082 = vpack.c.bf16 %v5978, %v5970
    %v6083 = vpack.c.bf16 %v5979, %v5971
    %v6084 = vpack.c.bf16 %v5988, %v5980
    %v6085 = vpack.c.bf16 %v5989, %v5981
    %v6086 = vpack.c.bf16 %v5990, %v5982
    %v6087 = vpack.c.bf16 %v5991, %v5983
    %v6088 = vpack.c.bf16 %v5992, %v5984
    %v6089 = vpack.c.bf16 %v5993, %v5985
    %v6090 = vpack.c.bf16 %v5994, %v5986
    %v6091 = vpack.c.bf16 %v5995, %v5987
    %v6092 = vpack.c.bf16 %v6004, %v5996
    %v6093 = vpack.c.bf16 %v6005, %v5997
    %v6094 = vpack.c.bf16 %v6006, %v5998
    %v6095 = vpack.c.bf16 %v6007, %v5999
    %v6096 = vpack.c.bf16 %v6008, %v6000
    %v6097 = vpack.c.bf16 %v6009, %v6001
    %v6098 = vpack.c.bf16 %v6010, %v6002
    %v6099 = vpack.c.bf16 %v6011, %v6003
    %v6100 = vpack.c.bf16 %v6020, %v6012
    %v6101 = vpack.c.bf16 %v6021, %v6013
    %v6102 = vpack.c.bf16 %v6022, %v6014
    %v6103 = vpack.c.bf16 %v6023, %v6015
    %v6104 = vpack.c.bf16 %v6024, %v6016
    %v6105 = vpack.c.bf16 %v6025, %v6017
    %v6106 = vpack.c.bf16 %v6026, %v6018
    %v6107 = vpack.c.bf16 %v6027, %v6019
    %v6108 = vpack.c.bf16 %v6036, %v6028
    %v6109 = vpack.c.bf16 %v6037, %v6029
    %v6110 = vpack.c.bf16 %v6038, %v6030
    %v6111 = vpack.c.bf16 %v6039, %v6031
    %v6112 = vpack.c.bf16 %v6040, %v6032
    %v6113 = vpack.c.bf16 %v6041, %v6033
    %v6114 = vpack.c.bf16 %v6042, %v6034
    %v6115 = vpack.c.bf16 %v6043, %v6035
    %v6116 = vpack.c.bf16 %v6052, %v6044
    %v6117 = vpack.c.bf16 %v6053, %v6045
    %v6118 = vpack.c.bf16 %v6054, %v6046
    %v6119 = vpack.c.bf16 %v6055, %v6047
    %v6120 = vpack.c.bf16 %v6056, %v6048
    %v6121 = vpack.c.bf16 %v6057, %v6049
    %v6122 = vpack.c.bf16 %v6058, %v6050
    %v6123 = vpack.c.bf16 %v6059, %v6051
    %v6124 = vld [vmem:[#allocation8] sm:$0xff]
    %v6125 = vld [vmem:[#allocation8 + $0x8] sm:$0xff]
    %v6126 = vld [vmem:[#allocation8 + $0x10] sm:$0xff]
    %v6127 = vld [vmem:[#allocation8 + $0x18] sm:$0xff]
    %v6128 = vld [vmem:[#allocation8 + $0x20] sm:$0xff]
    %v6129 = vld [vmem:[#allocation8 + $0x28] sm:$0xff]
    %v6130 = vld [vmem:[#allocation8 + $0x30] sm:$0xff]
    %v6131 = vld [vmem:[#allocation8 + $0x38] sm:$0xff]
    %v6132 = vld [vmem:[#allocation8 + $0x40] sm:$0xff]
    %v6133 = vld [vmem:[#allocation8 + $0x48] sm:$0xff]
    %v6134 = vld [vmem:[#allocation8 + $0x50] sm:$0xff]
    %v6135 = vld [vmem:[#allocation8 + $0x58] sm:$0xff]
    %v6136 = vld [vmem:[#allocation8 + $0x60] sm:$0xff]
    %v6137 = vld [vmem:[#allocation8 + $0x68] sm:$0xff]
    %v6138 = vld [vmem:[#allocation8 + $0x70] sm:$0xff]
    %v6139 = vld [vmem:[#allocation8 + $0x78] sm:$0xff]
    %v6140 = vld [vmem:[#allocation8 + $0x80] sm:$0xff]
    %v6141 = vld [vmem:[#allocation8 + $0x88] sm:$0xff]
    %v6142 = vld [vmem:[#allocation8 + $0x90] sm:$0xff]
    %v6143 = vld [vmem:[#allocation8 + $0x98] sm:$0xff]
    %v6144 = vld [vmem:[#allocation8 + $0xa0] sm:$0xff]
    %v6145 = vld [vmem:[#allocation8 + $0xa8] sm:$0xff]
    %v6146 = vld [vmem:[#allocation8 + $0xb0] sm:$0xff]
    %v6147 = vld [vmem:[#allocation8 + $0xb8] sm:$0xff]
    %v6148 = vld [vmem:[#allocation8 + $0xc0] sm:$0xff]
    %v6149 = vld [vmem:[#allocation8 + $0xc8] sm:$0xff]
    %v6150 = vld [vmem:[#allocation8 + $0xd0] sm:$0xff]
    %v6151 = vld [vmem:[#allocation8 + $0xd8] sm:$0xff]
    %v6152 = vld [vmem:[#allocation8 + $0xe0] sm:$0xff]
    %v6153 = vld [vmem:[#allocation8 + $0xe8] sm:$0xff]
    %v6154 = vld [vmem:[#allocation8 + $0xf0] sm:$0xff]
    %v6155 = vld [vmem:[#allocation8 + $0xf8] sm:$0xff]
    %v6156 = vld [vmem:[#allocation8 + $0x100] sm:$0xff]
    %v6157 = vld [vmem:[#allocation8 + $0x108] sm:$0xff]
    %v6158 = vld [vmem:[#allocation8 + $0x110] sm:$0xff]
    %v6159 = vld [vmem:[#allocation8 + $0x118] sm:$0xff]
    %v6160 = vld [vmem:[#allocation8 + $0x120] sm:$0xff]
    %v6161 = vld [vmem:[#allocation8 + $0x128] sm:$0xff]
    %v6162 = vld [vmem:[#allocation8 + $0x130] sm:$0xff]
    %v6163 = vld [vmem:[#allocation8 + $0x138] sm:$0xff]
    %v6164 = vld [vmem:[#allocation8 + $0x140] sm:$0xff]
    %v6165 = vld [vmem:[#allocation8 + $0x148] sm:$0xff]
    %v6166 = vld [vmem:[#allocation8 + $0x150] sm:$0xff]
    %v6167 = vld [vmem:[#allocation8 + $0x158] sm:$0xff]
    %v6168 = vld [vmem:[#allocation8 + $0x160] sm:$0xff]
    %v6169 = vld [vmem:[#allocation8 + $0x168] sm:$0xff]
    %v6170 = vld [vmem:[#allocation8 + $0x170] sm:$0xff]
    %v6171 = vld [vmem:[#allocation8 + $0x178] sm:$0xff]
    %v6172 = vld [vmem:[#allocation8 + $0x180] sm:$0xff]
    %v6173 = vld [vmem:[#allocation8 + $0x188] sm:$0xff]
    %v6174 = vld [vmem:[#allocation8 + $0x190] sm:$0xff]
    %v6175 = vld [vmem:[#allocation8 + $0x198] sm:$0xff]
    %v6176 = vld [vmem:[#allocation8 + $0x1a0] sm:$0xff]
    %v6177 = vld [vmem:[#allocation8 + $0x1a8] sm:$0xff]
    %v6178 = vld [vmem:[#allocation8 + $0x1b0] sm:$0xff]
    %v6179 = vld [vmem:[#allocation8 + $0x1b8] sm:$0xff]
    %v6180 = vld [vmem:[#allocation8 + $0x1c0] sm:$0xff]
    %v6181 = vld [vmem:[#allocation8 + $0x1c8] sm:$0xff]
    %v6182 = vld [vmem:[#allocation8 + $0x1d0] sm:$0xff]
    %v6183 = vld [vmem:[#allocation8 + $0x1d8] sm:$0xff]
    %v6184 = vld [vmem:[#allocation8 + $0x1e0] sm:$0xff]
    %v6185 = vld [vmem:[#allocation8 + $0x1e8] sm:$0xff]
    %v6186 = vld [vmem:[#allocation8 + $0x1f0] sm:$0xff]
    %v6187 = vld [vmem:[#allocation8 + $0x1f8] sm:$0xff]
    %v6188 = vld [vmem:[#allocation8 + $0x200] sm:$0xff]
    %v6189 = vld [vmem:[#allocation8 + $0x208] sm:$0xff]
    %v6190 = vld [vmem:[#allocation8 + $0x210] sm:$0xff]
    %v6191 = vld [vmem:[#allocation8 + $0x218] sm:$0xff]
    %v6192 = vld [vmem:[#allocation8 + $0x220] sm:$0xff]
    %v6193 = vld [vmem:[#allocation8 + $0x228] sm:$0xff]
    %v6194 = vld [vmem:[#allocation8 + $0x230] sm:$0xff]
    %v6195 = vld [vmem:[#allocation8 + $0x238] sm:$0xff]
    %v6196 = vld [vmem:[#allocation8 + $0x240] sm:$0xff]
    %v6197 = vld [vmem:[#allocation8 + $0x248] sm:$0xff]
    %v6198 = vld [vmem:[#allocation8 + $0x250] sm:$0xff]
    %v6199 = vld [vmem:[#allocation8 + $0x258] sm:$0xff]
    %v6200 = vld [vmem:[#allocation8 + $0x260] sm:$0xff]
    %v6201 = vld [vmem:[#allocation8 + $0x268] sm:$0xff]
    %v6202 = vld [vmem:[#allocation8 + $0x270] sm:$0xff]
    %v6203 = vld [vmem:[#allocation8 + $0x278] sm:$0xff]
    %v6204 = vld [vmem:[#allocation8 + $0x280] sm:$0xff]
    %v6205 = vld [vmem:[#allocation8 + $0x288] sm:$0xff]
    %v6206 = vld [vmem:[#allocation8 + $0x290] sm:$0xff]
    %v6207 = vld [vmem:[#allocation8 + $0x298] sm:$0xff]
    %v6208 = vld [vmem:[#allocation8 + $0x2a0] sm:$0xff]
    %v6209 = vld [vmem:[#allocation8 + $0x2a8] sm:$0xff]
    %v6210 = vld [vmem:[#allocation8 + $0x2b0] sm:$0xff]
    %v6211 = vld [vmem:[#allocation8 + $0x2b8] sm:$0xff]
    %v6212 = vld [vmem:[#allocation8 + $0x2c0] sm:$0xff]
    %v6213 = vld [vmem:[#allocation8 + $0x2c8] sm:$0xff]
    %v6214 = vld [vmem:[#allocation8 + $0x2d0] sm:$0xff]
    %v6215 = vld [vmem:[#allocation8 + $0x2d8] sm:$0xff]
    %v6216 = vld [vmem:[#allocation8 + $0x2e0] sm:$0xff]
    %v6217 = vld [vmem:[#allocation8 + $0x2e8] sm:$0xff]
    %v6218 = vld [vmem:[#allocation8 + $0x2f0] sm:$0xff]
    %v6219 = vld [vmem:[#allocation8 + $0x2f8] sm:$0xff]
    %v6220 = vld [vmem:[#allocation8 + $0x300] sm:$0xff]
    %v6221 = vld [vmem:[#allocation8 + $0x308] sm:$0xff]
    %v6222 = vld [vmem:[#allocation8 + $0x310] sm:$0xff]
    %v6223 = vld [vmem:[#allocation8 + $0x318] sm:$0xff]
    %v6224 = vld [vmem:[#allocation8 + $0x320] sm:$0xff]
    %v6225 = vld [vmem:[#allocation8 + $0x328] sm:$0xff]
    %v6226 = vld [vmem:[#allocation8 + $0x330] sm:$0xff]
    %v6227 = vld [vmem:[#allocation8 + $0x338] sm:$0xff]
    %v6228 = vld [vmem:[#allocation8 + $0x340] sm:$0xff]
    %v6229 = vld [vmem:[#allocation8 + $0x348] sm:$0xff]
    %v6230 = vld [vmem:[#allocation8 + $0x350] sm:$0xff]
    %v6231 = vld [vmem:[#allocation8 + $0x358] sm:$0xff]
    %v6232 = vld [vmem:[#allocation8 + $0x360] sm:$0xff]
    %v6233 = vld [vmem:[#allocation8 + $0x368] sm:$0xff]
    %v6234 = vld [vmem:[#allocation8 + $0x370] sm:$0xff]
    %v6235 = vld [vmem:[#allocation8 + $0x378] sm:$0xff]
    %v6236 = vld [vmem:[#allocation8 + $0x380] sm:$0xff]
    %v6237 = vld [vmem:[#allocation8 + $0x388] sm:$0xff]
    %v6238 = vld [vmem:[#allocation8 + $0x390] sm:$0xff]
    %v6239 = vld [vmem:[#allocation8 + $0x398] sm:$0xff]
    %v6240 = vld [vmem:[#allocation8 + $0x3a0] sm:$0xff]
    %v6241 = vld [vmem:[#allocation8 + $0x3a8] sm:$0xff]
    %v6242 = vld [vmem:[#allocation8 + $0x3b0] sm:$0xff]
    %v6243 = vld [vmem:[#allocation8 + $0x3b8] sm:$0xff]
    %v6244 = vld [vmem:[#allocation8 + $0x3c0] sm:$0xff]
    %v6245 = vld [vmem:[#allocation8 + $0x3c8] sm:$0xff]
    %v6246 = vld [vmem:[#allocation8 + $0x3d0] sm:$0xff]
    %v6247 = vld [vmem:[#allocation8 + $0x3d8] sm:$0xff]
    %v6248 = vld [vmem:[#allocation8 + $0x3e0] sm:$0xff]
    %v6249 = vld [vmem:[#allocation8 + $0x3e8] sm:$0xff]
    %v6250 = vld [vmem:[#allocation8 + $0x3f0] sm:$0xff]
    %v6251 = vld [vmem:[#allocation8 + $0x3f8] sm:$0xff]
    %v6252 = vld [vmem:[#allocation10] sm:$0x3]
    %v6254 = vperm.slane %v6252, 0
    %v6255 = vperm.slane %v6252, 1
    %v6386 = vunpack.c.l.b16 %v6124
    %v6387 = vunpack.c.h.b16 %v6124
    %v6388 = vunpack.c.l.b16 %v6125
    %v6389 = vunpack.c.h.b16 %v6125
    %v6390 = vunpack.c.l.b16 %v6126
    %v6391 = vunpack.c.h.b16 %v6126
    %v6392 = vunpack.c.l.b16 %v6127
    %v6393 = vunpack.c.h.b16 %v6127
    %v6394 = vunpack.c.l.b16 %v6128
    %v6395 = vunpack.c.h.b16 %v6128
    %v6396 = vunpack.c.l.b16 %v6129
    %v6397 = vunpack.c.h.b16 %v6129
    %v6398 = vunpack.c.l.b16 %v6130
    %v6399 = vunpack.c.h.b16 %v6130
    %v6400 = vunpack.c.l.b16 %v6131
    %v6401 = vunpack.c.h.b16 %v6131
    %v6402 = vunpack.c.l.b16 %v6132
    %v6403 = vunpack.c.h.b16 %v6132
    %v6404 = vunpack.c.l.b16 %v6133
    %v6405 = vunpack.c.h.b16 %v6133
    %v6406 = vunpack.c.l.b16 %v6134
    %v6407 = vunpack.c.h.b16 %v6134
    %v6408 = vunpack.c.l.b16 %v6135
    %v6409 = vunpack.c.h.b16 %v6135
    %v6410 = vunpack.c.l.b16 %v6136
    %v6411 = vunpack.c.h.b16 %v6136
    %v6412 = vunpack.c.l.b16 %v6137
    %v6413 = vunpack.c.h.b16 %v6137
    %v6414 = vunpack.c.l.b16 %v6138
    %v6415 = vunpack.c.h.b16 %v6138
    %v6416 = vunpack.c.l.b16 %v6139
    %v6417 = vunpack.c.h.b16 %v6139
    %v6418 = vunpack.c.l.b16 %v6140
    %v6419 = vunpack.c.h.b16 %v6140
    %v6420 = vunpack.c.l.b16 %v6141
    %v6421 = vunpack.c.h.b16 %v6141
    %v6422 = vunpack.c.l.b16 %v6142
    %v6423 = vunpack.c.h.b16 %v6142
    %v6424 = vunpack.c.l.b16 %v6143
    %v6425 = vunpack.c.h.b16 %v6143
    %v6426 = vunpack.c.l.b16 %v6144
    %v6427 = vunpack.c.h.b16 %v6144
    %v6428 = vunpack.c.l.b16 %v6145
    %v6429 = vunpack.c.h.b16 %v6145
    %v6430 = vunpack.c.l.b16 %v6146
    %v6431 = vunpack.c.h.b16 %v6146
    %v6432 = vunpack.c.l.b16 %v6147
    %v6433 = vunpack.c.h.b16 %v6147
    %v6434 = vunpack.c.l.b16 %v6148
    %v6435 = vunpack.c.h.b16 %v6148
    %v6436 = vunpack.c.l.b16 %v6149
    %v6437 = vunpack.c.h.b16 %v6149
    %v6438 = vunpack.c.l.b16 %v6150
    %v6439 = vunpack.c.h.b16 %v6150
    %v6440 = vunpack.c.l.b16 %v6151
    %v6441 = vunpack.c.h.b16 %v6151
    %v6442 = vunpack.c.l.b16 %v6152
    %v6443 = vunpack.c.h.b16 %v6152
    %v6444 = vunpack.c.l.b16 %v6153
    %v6445 = vunpack.c.h.b16 %v6153
    %v6446 = vunpack.c.l.b16 %v6154
    %v6447 = vunpack.c.h.b16 %v6154
    %v6448 = vunpack.c.l.b16 %v6155
    %v6449 = vunpack.c.h.b16 %v6155
    %v6450 = vunpack.c.l.b16 %v6156
    %v6451 = vunpack.c.h.b16 %v6156
    %v6452 = vunpack.c.l.b16 %v6157
    %v6453 = vunpack.c.h.b16 %v6157
    %v6454 = vunpack.c.l.b16 %v6158
    %v6455 = vunpack.c.h.b16 %v6158
    %v6456 = vunpack.c.l.b16 %v6159
    %v6457 = vunpack.c.h.b16 %v6159
    %v6458 = vunpack.c.l.b16 %v6160
    %v6459 = vunpack.c.h.b16 %v6160
    %v6460 = vunpack.c.l.b16 %v6161
    %v6461 = vunpack.c.h.b16 %v6161
    %v6462 = vunpack.c.l.b16 %v6162
    %v6463 = vunpack.c.h.b16 %v6162
    %v6464 = vunpack.c.l.b16 %v6163
    %v6465 = vunpack.c.h.b16 %v6163
    %v6466 = vunpack.c.l.b16 %v6164
    %v6467 = vunpack.c.h.b16 %v6164
    %v6468 = vunpack.c.l.b16 %v6165
    %v6469 = vunpack.c.h.b16 %v6165
    %v6470 = vunpack.c.l.b16 %v6166
    %v6471 = vunpack.c.h.b16 %v6166
    %v6472 = vunpack.c.l.b16 %v6167
    %v6473 = vunpack.c.h.b16 %v6167
    %v6474 = vunpack.c.l.b16 %v6168
    %v6475 = vunpack.c.h.b16 %v6168
    %v6476 = vunpack.c.l.b16 %v6169
    %v6477 = vunpack.c.h.b16 %v6169
    %v6478 = vunpack.c.l.b16 %v6170
    %v6479 = vunpack.c.h.b16 %v6170
    %v6480 = vunpack.c.l.b16 %v6171
    %v6481 = vunpack.c.h.b16 %v6171
    %v6482 = vunpack.c.l.b16 %v6172
    %v6483 = vunpack.c.h.b16 %v6172
    %v6484 = vunpack.c.l.b16 %v6173
    %v6485 = vunpack.c.h.b16 %v6173
    %v6486 = vunpack.c.l.b16 %v6174
    %v6487 = vunpack.c.h.b16 %v6174
    %v6488 = vunpack.c.l.b16 %v6175
    %v6489 = vunpack.c.h.b16 %v6175
    %v6490 = vunpack.c.l.b16 %v6176
    %v6491 = vunpack.c.h.b16 %v6176
    %v6492 = vunpack.c.l.b16 %v6177
    %v6493 = vunpack.c.h.b16 %v6177
    %v6494 = vunpack.c.l.b16 %v6178
    %v6495 = vunpack.c.h.b16 %v6178
    %v6496 = vunpack.c.l.b16 %v6179
    %v6497 = vunpack.c.h.b16 %v6179
    %v6498 = vunpack.c.l.b16 %v6180
    %v6499 = vunpack.c.h.b16 %v6180
    %v6500 = vunpack.c.l.b16 %v6181
    %v6501 = vunpack.c.h.b16 %v6181
    %v6502 = vunpack.c.l.b16 %v6182
    %v6503 = vunpack.c.h.b16 %v6182
    %v6504 = vunpack.c.l.b16 %v6183
    %v6505 = vunpack.c.h.b16 %v6183
    %v6506 = vunpack.c.l.b16 %v6184
    %v6507 = vunpack.c.h.b16 %v6184
    %v6508 = vunpack.c.l.b16 %v6185
    %v6509 = vunpack.c.h.b16 %v6185
    %v6510 = vunpack.c.l.b16 %v6186
    %v6511 = vunpack.c.h.b16 %v6186
    %v6512 = vunpack.c.l.b16 %v6187
    %v6513 = vunpack.c.h.b16 %v6187
    %v6514 = vunpack.c.l.b16 %v6188
    %v6515 = vunpack.c.h.b16 %v6188
    %v6516 = vunpack.c.l.b16 %v6189
    %v6517 = vunpack.c.h.b16 %v6189
    %v6518 = vunpack.c.l.b16 %v6190
    %v6519 = vunpack.c.h.b16 %v6190
    %v6520 = vunpack.c.l.b16 %v6191
    %v6521 = vunpack.c.h.b16 %v6191
    %v6522 = vunpack.c.l.b16 %v6192
    %v6523 = vunpack.c.h.b16 %v6192
    %v6524 = vunpack.c.l.b16 %v6193
    %v6525 = vunpack.c.h.b16 %v6193
    %v6526 = vunpack.c.l.b16 %v6194
    %v6527 = vunpack.c.h.b16 %v6194
    %v6528 = vunpack.c.l.b16 %v6195
    %v6529 = vunpack.c.h.b16 %v6195
    %v6530 = vunpack.c.l.b16 %v6196
    %v6531 = vunpack.c.h.b16 %v6196
    %v6532 = vunpack.c.l.b16 %v6197
    %v6533 = vunpack.c.h.b16 %v6197
    %v6534 = vunpack.c.l.b16 %v6198
    %v6535 = vunpack.c.h.b16 %v6198
    %v6536 = vunpack.c.l.b16 %v6199
    %v6537 = vunpack.c.h.b16 %v6199
    %v6538 = vunpack.c.l.b16 %v6200
    %v6539 = vunpack.c.h.b16 %v6200
    %v6540 = vunpack.c.l.b16 %v6201
    %v6541 = vunpack.c.h.b16 %v6201
    %v6542 = vunpack.c.l.b16 %v6202
    %v6543 = vunpack.c.h.b16 %v6202
    %v6544 = vunpack.c.l.b16 %v6203
    %v6545 = vunpack.c.h.b16 %v6203
    %v6546 = vunpack.c.l.b16 %v6204
    %v6547 = vunpack.c.h.b16 %v6204
    %v6548 = vunpack.c.l.b16 %v6205
    %v6549 = vunpack.c.h.b16 %v6205
    %v6550 = vunpack.c.l.b16 %v6206
    %v6551 = vunpack.c.h.b16 %v6206
    %v6552 = vunpack.c.l.b16 %v6207
    %v6553 = vunpack.c.h.b16 %v6207
    %v6554 = vunpack.c.l.b16 %v6208
    %v6555 = vunpack.c.h.b16 %v6208
    %v6556 = vunpack.c.l.b16 %v6209
    %v6557 = vunpack.c.h.b16 %v6209
    %v6558 = vunpack.c.l.b16 %v6210
    %v6559 = vunpack.c.h.b16 %v6210
    %v6560 = vunpack.c.l.b16 %v6211
    %v6561 = vunpack.c.h.b16 %v6211
    %v6562 = vunpack.c.l.b16 %v6212
    %v6563 = vunpack.c.h.b16 %v6212
    %v6564 = vunpack.c.l.b16 %v6213
    %v6565 = vunpack.c.h.b16 %v6213
    %v6566 = vunpack.c.l.b16 %v6214
    %v6567 = vunpack.c.h.b16 %v6214
    %v6568 = vunpack.c.l.b16 %v6215
    %v6569 = vunpack.c.h.b16 %v6215
    %v6570 = vunpack.c.l.b16 %v6216
    %v6571 = vunpack.c.h.b16 %v6216
    %v6572 = vunpack.c.l.b16 %v6217
    %v6573 = vunpack.c.h.b16 %v6217
    %v6574 = vunpack.c.l.b16 %v6218
    %v6575 = vunpack.c.h.b16 %v6218
    %v6576 = vunpack.c.l.b16 %v6219
    %v6577 = vunpack.c.h.b16 %v6219
    %v6578 = vunpack.c.l.b16 %v6220
    %v6579 = vunpack.c.h.b16 %v6220
    %v6580 = vunpack.c.l.b16 %v6221
    %v6581 = vunpack.c.h.b16 %v6221
    %v6582 = vunpack.c.l.b16 %v6222
    %v6583 = vunpack.c.h.b16 %v6222
    %v6584 = vunpack.c.l.b16 %v6223
    %v6585 = vunpack.c.h.b16 %v6223
    %v6586 = vunpack.c.l.b16 %v6224
    %v6587 = vunpack.c.h.b16 %v6224
    %v6588 = vunpack.c.l.b16 %v6225
    %v6589 = vunpack.c.h.b16 %v6225
    %v6590 = vunpack.c.l.b16 %v6226
    %v6591 = vunpack.c.h.b16 %v6226
    %v6592 = vunpack.c.l.b16 %v6227
    %v6593 = vunpack.c.h.b16 %v6227
    %v6594 = vunpack.c.l.b16 %v6228
    %v6595 = vunpack.c.h.b16 %v6228
    %v6596 = vunpack.c.l.b16 %v6229
    %v6597 = vunpack.c.h.b16 %v6229
    %v6598 = vunpack.c.l.b16 %v6230
    %v6599 = vunpack.c.h.b16 %v6230
    %v6600 = vunpack.c.l.b16 %v6231
    %v6601 = vunpack.c.h.b16 %v6231
    %v6602 = vunpack.c.l.b16 %v6232
    %v6603 = vunpack.c.h.b16 %v6232
    %v6604 = vunpack.c.l.b16 %v6233
    %v6605 = vunpack.c.h.b16 %v6233
    %v6606 = vunpack.c.l.b16 %v6234
    %v6607 = vunpack.c.h.b16 %v6234
    %v6608 = vunpack.c.l.b16 %v6235
    %v6609 = vunpack.c.h.b16 %v6235
    %v6610 = vunpack.c.l.b16 %v6236
    %v6611 = vunpack.c.h.b16 %v6236
    %v6612 = vunpack.c.l.b16 %v6237
    %v6613 = vunpack.c.h.b16 %v6237
    %v6614 = vunpack.c.l.b16 %v6238
    %v6615 = vunpack.c.h.b16 %v6238
    %v6616 = vunpack.c.l.b16 %v6239
    %v6617 = vunpack.c.h.b16 %v6239
    %v6618 = vunpack.c.l.b16 %v6240
    %v6619 = vunpack.c.h.b16 %v6240
    %v6620 = vunpack.c.l.b16 %v6241
    %v6621 = vunpack.c.h.b16 %v6241
    %v6622 = vunpack.c.l.b16 %v6242
    %v6623 = vunpack.c.h.b16 %v6242
    %v6624 = vunpack.c.l.b16 %v6243
    %v6625 = vunpack.c.h.b16 %v6243
    %v6626 = vunpack.c.l.b16 %v6244
    %v6627 = vunpack.c.h.b16 %v6244
    %v6628 = vunpack.c.l.b16 %v6245
    %v6629 = vunpack.c.h.b16 %v6245
    %v6630 = vunpack.c.l.b16 %v6246
    %v6631 = vunpack.c.h.b16 %v6246
    %v6632 = vunpack.c.l.b16 %v6247
    %v6633 = vunpack.c.h.b16 %v6247
    %v6634 = vunpack.c.l.b16 %v6248
    %v6635 = vunpack.c.h.b16 %v6248
    %v6636 = vunpack.c.l.b16 %v6249
    %v6637 = vunpack.c.h.b16 %v6249
    %v6638 = vunpack.c.l.b16 %v6250
    %v6639 = vunpack.c.h.b16 %v6250
    %v6640 = vunpack.c.l.b16 %v6251
    %v6641 = vunpack.c.h.b16 %v6251
    %v6642 = vpack.c.b16 %v6388, %v6386
    %v6643 = vpack.c.b16 %v6389, %v6387
    %v6644 = vpack.c.b16 %v6392, %v6390
    %v6645 = vpack.c.b16 %v6393, %v6391
    %v6646 = vpack.c.b16 %v6396, %v6394
    %v6647 = vpack.c.b16 %v6397, %v6395
    %v6648 = vpack.c.b16 %v6400, %v6398
    %v6649 = vpack.c.b16 %v6401, %v6399
    %v6650 = vpack.c.b16 %v6404, %v6402
    %v6651 = vpack.c.b16 %v6405, %v6403
    %v6652 = vpack.c.b16 %v6408, %v6406
    %v6653 = vpack.c.b16 %v6409, %v6407
    %v6654 = vpack.c.b16 %v6412, %v6410
    %v6655 = vpack.c.b16 %v6413, %v6411
    %v6656 = vpack.c.b16 %v6416, %v6414
    %v6657 = vpack.c.b16 %v6417, %v6415
    %v6658 = vpack.c.b16 %v6420, %v6418
    %v6659 = vpack.c.b16 %v6421, %v6419
    %v6660 = vpack.c.b16 %v6424, %v6422
    %v6661 = vpack.c.b16 %v6425, %v6423
    %v6662 = vpack.c.b16 %v6428, %v6426
    %v6663 = vpack.c.b16 %v6429, %v6427
    %v6664 = vpack.c.b16 %v6432, %v6430
    %v6665 = vpack.c.b16 %v6433, %v6431
    %v6666 = vpack.c.b16 %v6436, %v6434
    %v6667 = vpack.c.b16 %v6437, %v6435
    %v6668 = vpack.c.b16 %v6440, %v6438
    %v6669 = vpack.c.b16 %v6441, %v6439
    %v6670 = vpack.c.b16 %v6444, %v6442
    %v6671 = vpack.c.b16 %v6445, %v6443
    %v6672 = vpack.c.b16 %v6448, %v6446
    %v6673 = vpack.c.b16 %v6449, %v6447
    %v6674 = vpack.c.b16 %v6452, %v6450
    %v6675 = vpack.c.b16 %v6453, %v6451
    %v6676 = vpack.c.b16 %v6456, %v6454
    %v6677 = vpack.c.b16 %v6457, %v6455
    %v6678 = vpack.c.b16 %v6460, %v6458
    %v6679 = vpack.c.b16 %v6461, %v6459
    %v6680 = vpack.c.b16 %v6464, %v6462
    %v6681 = vpack.c.b16 %v6465, %v6463
    %v6682 = vpack.c.b16 %v6468, %v6466
    %v6683 = vpack.c.b16 %v6469, %v6467
    %v6684 = vpack.c.b16 %v6472, %v6470
    %v6685 = vpack.c.b16 %v6473, %v6471
    %v6686 = vpack.c.b16 %v6476, %v6474
    %v6687 = vpack.c.b16 %v6477, %v6475
    %v6688 = vpack.c.b16 %v6480, %v6478
    %v6689 = vpack.c.b16 %v6481, %v6479
    %v6690 = vpack.c.b16 %v6484, %v6482
    %v6691 = vpack.c.b16 %v6485, %v6483
    %v6692 = vpack.c.b16 %v6488, %v6486
    %v6693 = vpack.c.b16 %v6489, %v6487
    %v6694 = vpack.c.b16 %v6492, %v6490
    %v6695 = vpack.c.b16 %v6493, %v6491
    %v6696 = vpack.c.b16 %v6496, %v6494
    %v6697 = vpack.c.b16 %v6497, %v6495
    %v6698 = vpack.c.b16 %v6500, %v6498
    %v6699 = vpack.c.b16 %v6501, %v6499
    %v6700 = vpack.c.b16 %v6504, %v6502
    %v6701 = vpack.c.b16 %v6505, %v6503
    %v6702 = vpack.c.b16 %v6508, %v6506
    %v6703 = vpack.c.b16 %v6509, %v6507
    %v6704 = vpack.c.b16 %v6512, %v6510
    %v6705 = vpack.c.b16 %v6513, %v6511
    %v6706 = vpack.c.b16 %v6516, %v6514
    %v6707 = vpack.c.b16 %v6517, %v6515
    %v6708 = vpack.c.b16 %v6520, %v6518
    %v6709 = vpack.c.b16 %v6521, %v6519
    %v6710 = vpack.c.b16 %v6524, %v6522
    %v6711 = vpack.c.b16 %v6525, %v6523
    %v6712 = vpack.c.b16 %v6528, %v6526
    %v6713 = vpack.c.b16 %v6529, %v6527
    %v6714 = vpack.c.b16 %v6532, %v6530
    %v6715 = vpack.c.b16 %v6533, %v6531
    %v6716 = vpack.c.b16 %v6536, %v6534
    %v6717 = vpack.c.b16 %v6537, %v6535
    %v6718 = vpack.c.b16 %v6540, %v6538
    %v6719 = vpack.c.b16 %v6541, %v6539
    %v6720 = vpack.c.b16 %v6544, %v6542
    %v6721 = vpack.c.b16 %v6545, %v6543
    %v6722 = vpack.c.b16 %v6548, %v6546
    %v6723 = vpack.c.b16 %v6549, %v6547
    %v6724 = vpack.c.b16 %v6552, %v6550
    %v6725 = vpack.c.b16 %v6553, %v6551
    %v6726 = vpack.c.b16 %v6556, %v6554
    %v6727 = vpack.c.b16 %v6557, %v6555
    %v6728 = vpack.c.b16 %v6560, %v6558
    %v6729 = vpack.c.b16 %v6561, %v6559
    %v6730 = vpack.c.b16 %v6564, %v6562
    %v6731 = vpack.c.b16 %v6565, %v6563
    %v6732 = vpack.c.b16 %v6568, %v6566
    %v6733 = vpack.c.b16 %v6569, %v6567
    %v6734 = vpack.c.b16 %v6572, %v6570
    %v6735 = vpack.c.b16 %v6573, %v6571
    %v6736 = vpack.c.b16 %v6576, %v6574
    %v6737 = vpack.c.b16 %v6577, %v6575
    %v6738 = vpack.c.b16 %v6580, %v6578
    %v6739 = vpack.c.b16 %v6581, %v6579
    %v6740 = vpack.c.b16 %v6584, %v6582
    %v6741 = vpack.c.b16 %v6585, %v6583
    %v6742 = vpack.c.b16 %v6588, %v6586
    %v6743 = vpack.c.b16 %v6589, %v6587
    %v6744 = vpack.c.b16 %v6592, %v6590
    %v6745 = vpack.c.b16 %v6593, %v6591
    %v6746 = vpack.c.b16 %v6596, %v6594
    %v6747 = vpack.c.b16 %v6597, %v6595
    %v6748 = vpack.c.b16 %v6600, %v6598
    %v6749 = vpack.c.b16 %v6601, %v6599
    %v6750 = vpack.c.b16 %v6604, %v6602
    %v6751 = vpack.c.b16 %v6605, %v6603
    %v6752 = vpack.c.b16 %v6608, %v6606
    %v6753 = vpack.c.b16 %v6609, %v6607
    %v6754 = vpack.c.b16 %v6612, %v6610
    %v6755 = vpack.c.b16 %v6613, %v6611
    %v6756 = vpack.c.b16 %v6616, %v6614
    %v6757 = vpack.c.b16 %v6617, %v6615
    %v6758 = vpack.c.b16 %v6620, %v6618
    %v6759 = vpack.c.b16 %v6621, %v6619
    %v6760 = vpack.c.b16 %v6624, %v6622
    %v6761 = vpack.c.b16 %v6625, %v6623
    %v6762 = vpack.c.b16 %v6628, %v6626
    %v6763 = vpack.c.b16 %v6629, %v6627
    %v6764 = vpack.c.b16 %v6632, %v6630
    %v6765 = vpack.c.b16 %v6633, %v6631
    %v6766 = vpack.c.b16 %v6636, %v6634
    %v6767 = vpack.c.b16 %v6637, %v6635
    %v6768 = vpack.c.b16 %v6640, %v6638
    %v6769 = vpack.c.b16 %v6641, %v6639
    %6898 = vmatpush.bf16.msra.mxu0 %v6656
    %6899 = vmatpush.bf16.msra.mxu0 %v6654
    %6900 = vmatpush.bf16.msra.mxu0 %v6652
    %6901 = vmatpush.bf16.msra.mxu0 %v6650
    %6902 = vmatpush.bf16.msra.mxu0 %v6648
    %6903 = vmatpush.bf16.msra.mxu0 %v6646
    %6904 = vmatpush.bf16.msra.mxu0 %v6644
    %6905 = vmatpush.bf16.msra.mxu0 %v6642
    %6906 = vmatmul.bf16.gmra.mxu0 %v6060
    %v6907 = vpop.f32.mrf.mxu0
    %v6908 = vadd.f32 %v6254, %v6907
    %v6909 = vpop.f32.mrf.mxu0
    %v6910 = vadd.f32 %v6254, %v6909
    %6911 = vmatmul.bf16.gmra.mxu0 %v6068
    %v6912 = vpop.f32.mrf.mxu0
    %v6913 = vadd.f32 %v6254, %v6912
    %v6914 = vpop.f32.mrf.mxu0
    %v6915 = vadd.f32 %v6254, %v6914
    %6916 = vmatmul.bf16.gmra.mxu0 %v6076
    %v6917 = vpop.f32.mrf.mxu0
    %v6918 = vadd.f32 %v6254, %v6917
    %v6919 = vpop.f32.mrf.mxu0
    %v6920 = vadd.f32 %v6254, %v6919
    %6921 = vmatmul.bf16.gmra.mxu0 %v6084
    %v6922 = vpop.f32.mrf.mxu0
    %v6923 = vadd.f32 %v6254, %v6922
    %v6924 = vpop.f32.mrf.mxu0
    %v6925 = vadd.f32 %v6254, %v6924
    %6926 = vmatmul.bf16.gmra.mxu0 %v6092
    %v6927 = vpop.f32.mrf.mxu0
    %v6928 = vadd.f32 %v6254, %v6927
    %v6929 = vpop.f32.mrf.mxu0
    %v6930 = vadd.f32 %v6254, %v6929
    %6931 = vmatmul.bf16.gmra.mxu0 %v6100
    %v6932 = vpop.f32.mrf.mxu0
    %v6933 = vadd.f32 %v6254, %v6932
    %v6934 = vpop.f32.mrf.mxu0
    %v6935 = vadd.f32 %v6254, %v6934
    %6936 = vmatmul.bf16.gmra.mxu0 %v6108
    %v6937 = vpop.f32.mrf.mxu0
    %v6938 = vadd.f32 %v6254, %v6937
    %v6939 = vpop.f32.mrf.mxu0
    %v6940 = vadd.f32 %v6254, %v6939
    %6941 = vmatmul.bf16.gmra.mxu0 %v6116
    %v6942 = vpop.f32.mrf.mxu0
    %v6943 = vadd.f32 %v6254, %v6942
    %v6944 = vpop.f32.mrf.mxu0
    %v6945 = vadd.f32 %v6254, %v6944
    %6946 = vdwg.mxu0
    %6947 = vmatpush.bf16.msra.mxu0 %v6672
    %6948 = vmatpush.bf16.msra.mxu0 %v6670
    %6949 = vmatpush.bf16.msra.mxu0 %v6668
    %6950 = vmatpush.bf16.msra.mxu0 %v6666
    %6951 = vmatpush.bf16.msra.mxu0 %v6664
    %6952 = vmatpush.bf16.msra.mxu0 %v6662
    %6953 = vmatpush.bf16.msra.mxu0 %v6660
    %6954 = vmatpush.bf16.msra.mxu0 %v6658
    %6955 = vmatmul.bf16.gmra.mxu0 %v6061
    %v6956 = vpop.f32.mrf.mxu0
    %v6957 = vadd.f32 %v6908, %v6956
    %v6958 = vpop.f32.mrf.mxu0
    %v6959 = vadd.f32 %v6910, %v6958
    %6960 = vmatmul.bf16.gmra.mxu0 %v6069
    %v6961 = vpop.f32.mrf.mxu0
    %v6962 = vadd.f32 %v6913, %v6961
    %v6963 = vpop.f32.mrf.mxu0
    %v6964 = vadd.f32 %v6915, %v6963
    %6965 = vmatmul.bf16.gmra.mxu0 %v6077
    %v6966 = vpop.f32.mrf.mxu0
    %v6967 = vadd.f32 %v6918, %v6966
    %v6968 = vpop.f32.mrf.mxu0
    %v6969 = vadd.f32 %v6920, %v6968
    %6970 = vmatmul.bf16.gmra.mxu0 %v6085
    %v6971 = vpop.f32.mrf.mxu0
    %v6972 = vadd.f32 %v6923, %v6971
    %v6973 = vpop.f32.mrf.mxu0
    %v6974 = vadd.f32 %v6925, %v6973
    %6975 = vmatmul.bf16.gmra.mxu0 %v6093
    %v6976 = vpop.f32.mrf.mxu0
    %v6977 = vadd.f32 %v6928, %v6976
    %v6978 = vpop.f32.mrf.mxu0
    %v6979 = vadd.f32 %v6930, %v6978
    %6980 = vmatmul.bf16.gmra.mxu0 %v6101
    %v6981 = vpop.f32.mrf.mxu0
    %v6982 = vadd.f32 %v6933, %v6981
    %v6983 = vpop.f32.mrf.mxu0
    %v6984 = vadd.f32 %v6935, %v6983
    %6985 = vmatmul.bf16.gmra.mxu0 %v6109
    %v6986 = vpop.f32.mrf.mxu0
    %v6987 = vadd.f32 %v6938, %v6986
    %v6988 = vpop.f32.mrf.mxu0
    %v6989 = vadd.f32 %v6940, %v6988
    %6990 = vmatmul.bf16.gmra.mxu0 %v6117
    %v6991 = vpop.f32.mrf.mxu0
    %v6992 = vadd.f32 %v6943, %v6991
    %v6993 = vpop.f32.mrf.mxu0
    %v6994 = vadd.f32 %v6945, %v6993
    %6995 = vdwg.mxu0
    %6996 = vmatpush.bf16.msra.mxu0 %v6688
    %6997 = vmatpush.bf16.msra.mxu0 %v6686
    %6998 = vmatpush.bf16.msra.mxu0 %v6684
    %6999 = vmatpush.bf16.msra.mxu0 %v6682
    %7000 = vmatpush.bf16.msra.mxu0 %v6680
    %7001 = vmatpush.bf16.msra.mxu0 %v6678
    %7002 = vmatpush.bf16.msra.mxu0 %v6676
    %7003 = vmatpush.bf16.msra.mxu0 %v6674
    %7004 = vmatmul.bf16.gmra.mxu0 %v6062
    %v7005 = vpop.f32.mrf.mxu0
    %v7006 = vadd.f32 %v6957, %v7005
    %v7007 = vpop.f32.mrf.mxu0
    %v7008 = vadd.f32 %v6959, %v7007
    %7009 = vmatmul.bf16.gmra.mxu0 %v6070
    %v7010 = vpop.f32.mrf.mxu0
    %v7011 = vadd.f32 %v6962, %v7010
    %v7012 = vpop.f32.mrf.mxu0
    %v7013 = vadd.f32 %v6964, %v7012
    %7014 = vmatmul.bf16.gmra.mxu0 %v6078
    %v7015 = vpop.f32.mrf.mxu0
    %v7016 = vadd.f32 %v6967, %v7015
    %v7017 = vpop.f32.mrf.mxu0
    %v7018 = vadd.f32 %v6969, %v7017
    %7019 = vmatmul.bf16.gmra.mxu0 %v6086
    %v7020 = vpop.f32.mrf.mxu0
    %v7021 = vadd.f32 %v6972, %v7020
    %v7022 = vpop.f32.mrf.mxu0
    %v7023 = vadd.f32 %v6974, %v7022
    %7024 = vmatmul.bf16.gmra.mxu0 %v6094
    %v7025 = vpop.f32.mrf.mxu0
    %v7026 = vadd.f32 %v6977, %v7025
    %v7027 = vpop.f32.mrf.mxu0
    %v7028 = vadd.f32 %v6979, %v7027
    %7029 = vmatmul.bf16.gmra.mxu0 %v6102
    %v7030 = vpop.f32.mrf.mxu0
    %v7031 = vadd.f32 %v6982, %v7030
    %v7032 = vpop.f32.mrf.mxu0
    %v7033 = vadd.f32 %v6984, %v7032
    %7034 = vmatmul.bf16.gmra.mxu0 %v6110
    %v7035 = vpop.f32.mrf.mxu0
    %v7036 = vadd.f32 %v6987, %v7035
    %v7037 = vpop.f32.mrf.mxu0
    %v7038 = vadd.f32 %v6989, %v7037
    %7039 = vmatmul.bf16.gmra.mxu0 %v6118
    %v7040 = vpop.f32.mrf.mxu0
    %v7041 = vadd.f32 %v6992, %v7040
    %v7042 = vpop.f32.mrf.mxu0
    %v7043 = vadd.f32 %v6994, %v7042
    %7044 = vdwg.mxu0
    %7045 = vmatpush.bf16.msra.mxu0 %v6704
    %7046 = vmatpush.bf16.msra.mxu0 %v6702
    %7047 = vmatpush.bf16.msra.mxu0 %v6700
    %7048 = vmatpush.bf16.msra.mxu0 %v6698
    %7049 = vmatpush.bf16.msra.mxu0 %v6696
    %7050 = vmatpush.bf16.msra.mxu0 %v6694
    %7051 = vmatpush.bf16.msra.mxu0 %v6692
    %7052 = vmatpush.bf16.msra.mxu0 %v6690
    %7053 = vmatmul.bf16.gmra.mxu0 %v6063
    %v7054 = vpop.f32.mrf.mxu0
    %v7055 = vadd.f32 %v7006, %v7054
    %v7056 = vpop.f32.mrf.mxu0
    %v7057 = vadd.f32 %v7008, %v7056
    %7058 = vmatmul.bf16.gmra.mxu0 %v6071
    %v7059 = vpop.f32.mrf.mxu0
    %v7060 = vadd.f32 %v7011, %v7059
    %v7061 = vpop.f32.mrf.mxu0
    %v7062 = vadd.f32 %v7013, %v7061
    %7063 = vmatmul.bf16.gmra.mxu0 %v6079
    %v7064 = vpop.f32.mrf.mxu0
    %v7065 = vadd.f32 %v7016, %v7064
    %v7066 = vpop.f32.mrf.mxu0
    %v7067 = vadd.f32 %v7018, %v7066
    %7068 = vmatmul.bf16.gmra.mxu0 %v6087
    %v7069 = vpop.f32.mrf.mxu0
    %v7070 = vadd.f32 %v7021, %v7069
    %v7071 = vpop.f32.mrf.mxu0
    %v7072 = vadd.f32 %v7023, %v7071
    %7073 = vmatmul.bf16.gmra.mxu0 %v6095
    %v7074 = vpop.f32.mrf.mxu0
    %v7075 = vadd.f32 %v7026, %v7074
    %v7076 = vpop.f32.mrf.mxu0
    %v7077 = vadd.f32 %v7028, %v7076
    %7078 = vmatmul.bf16.gmra.mxu0 %v6103
    %v7079 = vpop.f32.mrf.mxu0
    %v7080 = vadd.f32 %v7031, %v7079
    %v7081 = vpop.f32.mrf.mxu0
    %v7082 = vadd.f32 %v7033, %v7081
    %7083 = vmatmul.bf16.gmra.mxu0 %v6111
    %v7084 = vpop.f32.mrf.mxu0
    %v7085 = vadd.f32 %v7036, %v7084
    %v7086 = vpop.f32.mrf.mxu0
    %v7087 = vadd.f32 %v7038, %v7086
    %7088 = vmatmul.bf16.gmra.mxu0 %v6119
    %v7089 = vpop.f32.mrf.mxu0
    %v7090 = vadd.f32 %v7041, %v7089
    %v7091 = vpop.f32.mrf.mxu0
    %v7092 = vadd.f32 %v7043, %v7091
    %7093 = vdwg.mxu0
    %7094 = vmatpush.bf16.msra.mxu0 %v6720
    %7095 = vmatpush.bf16.msra.mxu0 %v6718
    %7096 = vmatpush.bf16.msra.mxu0 %v6716
    %7097 = vmatpush.bf16.msra.mxu0 %v6714
    %7098 = vmatpush.bf16.msra.mxu0 %v6712
    %7099 = vmatpush.bf16.msra.mxu0 %v6710
    %7100 = vmatpush.bf16.msra.mxu0 %v6708
    %7101 = vmatpush.bf16.msra.mxu0 %v6706
    %7102 = vmatmul.bf16.gmra.mxu0 %v6064
    %v7103 = vpop.f32.mrf.mxu0
    %v7104 = vadd.f32 %v7055, %v7103
    %v7105 = vpop.f32.mrf.mxu0
    %v7106 = vadd.f32 %v7057, %v7105
    %7107 = vmatmul.bf16.gmra.mxu0 %v6072
    %v7108 = vpop.f32.mrf.mxu0
    %v7109 = vadd.f32 %v7060, %v7108
    %v7110 = vpop.f32.mrf.mxu0
    %v7111 = vadd.f32 %v7062, %v7110
    %7112 = vmatmul.bf16.gmra.mxu0 %v6080
    %v7113 = vpop.f32.mrf.mxu0
    %v7114 = vadd.f32 %v7065, %v7113
    %v7115 = vpop.f32.mrf.mxu0
    %v7116 = vadd.f32 %v7067, %v7115
    %7117 = vmatmul.bf16.gmra.mxu0 %v6088
    %v7118 = vpop.f32.mrf.mxu0
    %v7119 = vadd.f32 %v7070, %v7118
    %v7120 = vpop.f32.mrf.mxu0
    %v7121 = vadd.f32 %v7072, %v7120
    %7122 = vmatmul.bf16.gmra.mxu0 %v6096
    %v7123 = vpop.f32.mrf.mxu0
    %v7124 = vadd.f32 %v7075, %v7123
    %v7125 = vpop.f32.mrf.mxu0
    %v7126 = vadd.f32 %v7077, %v7125
    %7127 = vmatmul.bf16.gmra.mxu0 %v6104
    %v7128 = vpop.f32.mrf.mxu0
    %v7129 = vadd.f32 %v7080, %v7128
    %v7130 = vpop.f32.mrf.mxu0
    %v7131 = vadd.f32 %v7082, %v7130
    %7132 = vmatmul.bf16.gmra.mxu0 %v6112
    %v7133 = vpop.f32.mrf.mxu0
    %v7134 = vadd.f32 %v7085, %v7133
    %v7135 = vpop.f32.mrf.mxu0
    %v7136 = vadd.f32 %v7087, %v7135
    %7137 = vmatmul.bf16.gmra.mxu0 %v6120
    %v7138 = vpop.f32.mrf.mxu0
    %v7139 = vadd.f32 %v7090, %v7138
    %v7140 = vpop.f32.mrf.mxu0
    %v7141 = vadd.f32 %v7092, %v7140
    %7142 = vdwg.mxu0
    %7143 = vmatpush.bf16.msra.mxu0 %v6736
    %7144 = vmatpush.bf16.msra.mxu0 %v6734
    %7145 = vmatpush.bf16.msra.mxu0 %v6732
    %7146 = vmatpush.bf16.msra.mxu0 %v6730
    %7147 = vmatpush.bf16.msra.mxu0 %v6728
    %7148 = vmatpush.bf16.msra.mxu0 %v6726
    %7149 = vmatpush.bf16.msra.mxu0 %v6724
    %7150 = vmatpush.bf16.msra.mxu0 %v6722
    %7151 = vmatmul.bf16.gmra.mxu0 %v6065
    %v7152 = vpop.f32.mrf.mxu0
    %v7153 = vadd.f32 %v7104, %v7152
    %v7154 = vpop.f32.mrf.mxu0
    %v7155 = vadd.f32 %v7106, %v7154
    %7156 = vmatmul.bf16.gmra.mxu0 %v6073
    %v7157 = vpop.f32.mrf.mxu0
    %v7158 = vadd.f32 %v7109, %v7157
    %v7159 = vpop.f32.mrf.mxu0
    %v7160 = vadd.f32 %v7111, %v7159
    %7161 = vmatmul.bf16.gmra.mxu0 %v6081
    %v7162 = vpop.f32.mrf.mxu0
    %v7163 = vadd.f32 %v7114, %v7162
    %v7164 = vpop.f32.mrf.mxu0
    %v7165 = vadd.f32 %v7116, %v7164
    %7166 = vmatmul.bf16.gmra.mxu0 %v6089
    %v7167 = vpop.f32.mrf.mxu0
    %v7168 = vadd.f32 %v7119, %v7167
    %v7169 = vpop.f32.mrf.mxu0
    %v7170 = vadd.f32 %v7121, %v7169
    %7171 = vmatmul.bf16.gmra.mxu0 %v6097
    %v7172 = vpop.f32.mrf.mxu0
    %v7173 = vadd.f32 %v7124, %v7172
    %v7174 = vpop.f32.mrf.mxu0
    %v7175 = vadd.f32 %v7126, %v7174
    %7176 = vmatmul.bf16.gmra.mxu0 %v6105
    %v7177 = vpop.f32.mrf.mxu0
    %v7178 = vadd.f32 %v7129, %v7177
    %v7179 = vpop.f32.mrf.mxu0
    %v7180 = vadd.f32 %v7131, %v7179
    %7181 = vmatmul.bf16.gmra.mxu0 %v6113
    %v7182 = vpop.f32.mrf.mxu0
    %v7183 = vadd.f32 %v7134, %v7182
    %v7184 = vpop.f32.mrf.mxu0
    %v7185 = vadd.f32 %v7136, %v7184
    %7186 = vmatmul.bf16.gmra.mxu0 %v6121
    %v7187 = vpop.f32.mrf.mxu0
    %v7188 = vadd.f32 %v7139, %v7187
    %v7189 = vpop.f32.mrf.mxu0
    %v7190 = vadd.f32 %v7141, %v7189
    %7191 = vdwg.mxu0
    %7192 = vmatpush.bf16.msra.mxu0 %v6752
    %7193 = vmatpush.bf16.msra.mxu0 %v6750
    %7194 = vmatpush.bf16.msra.mxu0 %v6748
    %7195 = vmatpush.bf16.msra.mxu0 %v6746
    %7196 = vmatpush.bf16.msra.mxu0 %v6744
    %7197 = vmatpush.bf16.msra.mxu0 %v6742
    %7198 = vmatpush.bf16.msra.mxu0 %v6740
    %7199 = vmatpush.bf16.msra.mxu0 %v6738
    %7200 = vmatmul.bf16.gmra.mxu0 %v6066
    %v7201 = vpop.f32.mrf.mxu0
    %v7202 = vadd.f32 %v7153, %v7201
    %v7203 = vpop.f32.mrf.mxu0
    %v7204 = vadd.f32 %v7155, %v7203
    %7205 = vmatmul.bf16.gmra.mxu0 %v6074
    %v7206 = vpop.f32.mrf.mxu0
    %v7207 = vadd.f32 %v7158, %v7206
    %v7208 = vpop.f32.mrf.mxu0
    %v7209 = vadd.f32 %v7160, %v7208
    %7210 = vmatmul.bf16.gmra.mxu0 %v6082
    %v7211 = vpop.f32.mrf.mxu0
    %v7212 = vadd.f32 %v7163, %v7211
    %v7213 = vpop.f32.mrf.mxu0
    %v7214 = vadd.f32 %v7165, %v7213
    %7215 = vmatmul.bf16.gmra.mxu0 %v6090
    %v7216 = vpop.f32.mrf.mxu0
    %v7217 = vadd.f32 %v7168, %v7216
    %v7218 = vpop.f32.mrf.mxu0
    %v7219 = vadd.f32 %v7170, %v7218
    %7220 = vmatmul.bf16.gmra.mxu0 %v6098
    %v7221 = vpop.f32.mrf.mxu0
    %v7222 = vadd.f32 %v7173, %v7221
    %v7223 = vpop.f32.mrf.mxu0
    %v7224 = vadd.f32 %v7175, %v7223
    %7225 = vmatmul.bf16.gmra.mxu0 %v6106
    %v7226 = vpop.f32.mrf.mxu0
    %v7227 = vadd.f32 %v7178, %v7226
    %v7228 = vpop.f32.mrf.mxu0
    %v7229 = vadd.f32 %v7180, %v7228
    %7230 = vmatmul.bf16.gmra.mxu0 %v6114
    %v7231 = vpop.f32.mrf.mxu0
    %v7232 = vadd.f32 %v7183, %v7231
    %v7233 = vpop.f32.mrf.mxu0
    %v7234 = vadd.f32 %v7185, %v7233
    %7235 = vmatmul.bf16.gmra.mxu0 %v6122
    %v7236 = vpop.f32.mrf.mxu0
    %v7237 = vadd.f32 %v7188, %v7236
    %v7238 = vpop.f32.mrf.mxu0
    %v7239 = vadd.f32 %v7190, %v7238
    %7240 = vdwg.mxu0
    %7241 = vmatpush.bf16.msra.mxu0 %v6768
    %7242 = vmatpush.bf16.msra.mxu0 %v6766
    %7243 = vmatpush.bf16.msra.mxu0 %v6764
    %7244 = vmatpush.bf16.msra.mxu0 %v6762
    %7245 = vmatpush.bf16.msra.mxu0 %v6760
    %7246 = vmatpush.bf16.msra.mxu0 %v6758
    %7247 = vmatpush.bf16.msra.mxu0 %v6756
    %7248 = vmatpush.bf16.msra.mxu0 %v6754
    %7249 = vmatmul.bf16.gmra.mxu0 %v6067
    %v7250 = vpop.f32.mrf.mxu0
    %v7251 = vadd.f32 %v7202, %v7250
    %v7252 = vpop.f32.mrf.mxu0
    %v7253 = vadd.f32 %v7204, %v7252
    %7254 = vmatmul.bf16.gmra.mxu0 %v6075
    %v7255 = vpop.f32.mrf.mxu0
    %v7256 = vadd.f32 %v7207, %v7255
    %v7257 = vpop.f32.mrf.mxu0
    %v7258 = vadd.f32 %v7209, %v7257
    %7259 = vmatmul.bf16.gmra.mxu0 %v6083
    %v7260 = vpop.f32.mrf.mxu0
    %v7261 = vadd.f32 %v7212, %v7260
    %v7262 = vpop.f32.mrf.mxu0
    %v7263 = vadd.f32 %v7214, %v7262
    %7264 = vmatmul.bf16.gmra.mxu0 %v6091
    %v7265 = vpop.f32.mrf.mxu0
    %v7266 = vadd.f32 %v7217, %v7265
    %v7267 = vpop.f32.mrf.mxu0
    %v7268 = vadd.f32 %v7219, %v7267
    %7269 = vmatmul.bf16.gmra.mxu0 %v6099
    %v7270 = vpop.f32.mrf.mxu0
    %v7271 = vadd.f32 %v7222, %v7270
    %v7272 = vpop.f32.mrf.mxu0
    %v7273 = vadd.f32 %v7224, %v7272
    %7274 = vmatmul.bf16.gmra.mxu0 %v6107
    %v7275 = vpop.f32.mrf.mxu0
    %v7276 = vadd.f32 %v7227, %v7275
    %v7277 = vpop.f32.mrf.mxu0
    %v7278 = vadd.f32 %v7229, %v7277
    %7279 = vmatmul.bf16.gmra.mxu0 %v6115
    %v7280 = vpop.f32.mrf.mxu0
    %v7281 = vadd.f32 %v7232, %v7280
    %v7282 = vpop.f32.mrf.mxu0
    %v7283 = vadd.f32 %v7234, %v7282
    %7284 = vmatmul.bf16.gmra.mxu0 %v6123
    %v7285 = vpop.f32.mrf.mxu0
    %v7286 = vadd.f32 %v7237, %v7285
    %v7287 = vpop.f32.mrf.mxu0
    %v7288 = vadd.f32 %v7239, %v7287
    %7289 = vdwg.mxu0
    %7290 = vmatpush.bf16.msra.mxu0 %v6657
    %7291 = vmatpush.bf16.msra.mxu0 %v6655
    %7292 = vmatpush.bf16.msra.mxu0 %v6653
    %7293 = vmatpush.bf16.msra.mxu0 %v6651
    %7294 = vmatpush.bf16.msra.mxu0 %v6649
    %7295 = vmatpush.bf16.msra.mxu0 %v6647
    %7296 = vmatpush.bf16.msra.mxu0 %v6645
    %7297 = vmatpush.bf16.msra.mxu0 %v6643
    %7298 = vmatmul.bf16.gmra.mxu0 %v6060
    %v7299 = vpop.f32.mrf.mxu0
    %v7300 = vadd.f32 %v6255, %v7299
    %v7301 = vpop.f32.mrf.mxu0
    %v7302 = vadd.f32 %v6255, %v7301
    %7303 = vmatmul.bf16.gmra.mxu0 %v6068
    %v7304 = vpop.f32.mrf.mxu0
    %v7305 = vadd.f32 %v6255, %v7304
    %v7306 = vpop.f32.mrf.mxu0
    %v7307 = vadd.f32 %v6255, %v7306
    %7308 = vmatmul.bf16.gmra.mxu0 %v6076
    %v7309 = vpop.f32.mrf.mxu0
    %v7310 = vadd.f32 %v6255, %v7309
    %v7311 = vpop.f32.mrf.mxu0
    %v7312 = vadd.f32 %v6255, %v7311
    %7313 = vmatmul.bf16.gmra.mxu0 %v6084
    %v7314 = vpop.f32.mrf.mxu0
    %v7315 = vadd.f32 %v6255, %v7314
    %v7316 = vpop.f32.mrf.mxu0
    %v7317 = vadd.f32 %v6255, %v7316
    %7318 = vmatmul.bf16.gmra.mxu0 %v6092
    %v7319 = vpop.f32.mrf.mxu0
    %v7320 = vadd.f32 %v6255, %v7319
    %v7321 = vpop.f32.mrf.mxu0
    %v7322 = vadd.f32 %v6255, %v7321
    %7323 = vmatmul.bf16.gmra.mxu0 %v6100
    %v7324 = vpop.f32.mrf.mxu0
    %v7325 = vadd.f32 %v6255, %v7324
    %v7326 = vpop.f32.mrf.mxu0
    %v7327 = vadd.f32 %v6255, %v7326
    %7328 = vmatmul.bf16.gmra.mxu0 %v6108
    %v7329 = vpop.f32.mrf.mxu0
    %v7330 = vadd.f32 %v6255, %v7329
    %v7331 = vpop.f32.mrf.mxu0
    %v7332 = vadd.f32 %v6255, %v7331
    %7333 = vmatmul.bf16.gmra.mxu0 %v6116
    %v7334 = vpop.f32.mrf.mxu0
    %v7335 = vadd.f32 %v6255, %v7334
    %v7336 = vpop.f32.mrf.mxu0
    %v7337 = vadd.f32 %v6255, %v7336
    %7338 = vdwg.mxu0
    %7339 = vmatpush.bf16.msra.mxu0 %v6673
    %7340 = vmatpush.bf16.msra.mxu0 %v6671
    %7341 = vmatpush.bf16.msra.mxu0 %v6669
    %7342 = vmatpush.bf16.msra.mxu0 %v6667
    %7343 = vmatpush.bf16.msra.mxu0 %v6665
    %7344 = vmatpush.bf16.msra.mxu0 %v6663
    %7345 = vmatpush.bf16.msra.mxu0 %v6661
    %7346 = vmatpush.bf16.msra.mxu0 %v6659
    %7347 = vmatmul.bf16.gmra.mxu0 %v6061
    %v7348 = vpop.f32.mrf.mxu0
    %v7349 = vadd.f32 %v7300, %v7348
    %v7350 = vpop.f32.mrf.mxu0
    %v7351 = vadd.f32 %v7302, %v7350
    %7352 = vmatmul.bf16.gmra.mxu0 %v6069
    %v7353 = vpop.f32.mrf.mxu0
    %v7354 = vadd.f32 %v7305, %v7353
    %v7355 = vpop.f32.mrf.mxu0
    %v7356 = vadd.f32 %v7307, %v7355
    %7357 = vmatmul.bf16.gmra.mxu0 %v6077
    %v7358 = vpop.f32.mrf.mxu0
    %v7359 = vadd.f32 %v7310, %v7358
    %v7360 = vpop.f32.mrf.mxu0
    %v7361 = vadd.f32 %v7312, %v7360
    %7362 = vmatmul.bf16.gmra.mxu0 %v6085
    %v7363 = vpop.f32.mrf.mxu0
    %v7364 = vadd.f32 %v7315, %v7363
    %v7365 = vpop.f32.mrf.mxu0
    %v7366 = vadd.f32 %v7317, %v7365
    %7367 = vmatmul.bf16.gmra.mxu0 %v6093
    %v7368 = vpop.f32.mrf.mxu0
    %v7369 = vadd.f32 %v7320, %v7368
    %v7370 = vpop.f32.mrf.mxu0
    %v7371 = vadd.f32 %v7322, %v7370
    %7372 = vmatmul.bf16.gmra.mxu0 %v6101
    %v7373 = vpop.f32.mrf.mxu0
    %v7374 = vadd.f32 %v7325, %v7373
    %v7375 = vpop.f32.mrf.mxu0
    %v7376 = vadd.f32 %v7327, %v7375
    %7377 = vmatmul.bf16.gmra.mxu0 %v6109
    %v7378 = vpop.f32.mrf.mxu0
    %v7379 = vadd.f32 %v7330, %v7378
    %v7380 = vpop.f32.mrf.mxu0
    %v7381 = vadd.f32 %v7332, %v7380
    %7382 = vmatmul.bf16.gmra.mxu0 %v6117
    %v7383 = vpop.f32.mrf.mxu0
    %v7384 = vadd.f32 %v7335, %v7383
    %v7385 = vpop.f32.mrf.mxu0
    %v7386 = vadd.f32 %v7337, %v7385
    %7387 = vdwg.mxu0
    %7388 = vmatpush.bf16.msra.mxu0 %v6689
    %7389 = vmatpush.bf16.msra.mxu0 %v6687
    %7390 = vmatpush.bf16.msra.mxu0 %v6685
    %7391 = vmatpush.bf16.msra.mxu0 %v6683
    %7392 = vmatpush.bf16.msra.mxu0 %v6681
    %7393 = vmatpush.bf16.msra.mxu0 %v6679
    %7394 = vmatpush.bf16.msra.mxu0 %v6677
    %7395 = vmatpush.bf16.msra.mxu0 %v6675
    %7396 = vmatmul.bf16.gmra.mxu0 %v6062
    %v7397 = vpop.f32.mrf.mxu0
    %v7398 = vadd.f32 %v7349, %v7397
    %v7399 = vpop.f32.mrf.mxu0
    %v7400 = vadd.f32 %v7351, %v7399
    %7401 = vmatmul.bf16.gmra.mxu0 %v6070
    %v7402 = vpop.f32.mrf.mxu0
    %v7403 = vadd.f32 %v7354, %v7402
    %v7404 = vpop.f32.mrf.mxu0
    %v7405 = vadd.f32 %v7356, %v7404
    %7406 = vmatmul.bf16.gmra.mxu0 %v6078
    %v7407 = vpop.f32.mrf.mxu0
    %v7408 = vadd.f32 %v7359, %v7407
    %v7409 = vpop.f32.mrf.mxu0
    %v7410 = vadd.f32 %v7361, %v7409
    %7411 = vmatmul.bf16.gmra.mxu0 %v6086
    %v7412 = vpop.f32.mrf.mxu0
    %v7413 = vadd.f32 %v7364, %v7412
    %v7414 = vpop.f32.mrf.mxu0
    %v7415 = vadd.f32 %v7366, %v7414
    %7416 = vmatmul.bf16.gmra.mxu0 %v6094
    %v7417 = vpop.f32.mrf.mxu0
    %v7418 = vadd.f32 %v7369, %v7417
    %v7419 = vpop.f32.mrf.mxu0
    %v7420 = vadd.f32 %v7371, %v7419
    %7421 = vmatmul.bf16.gmra.mxu0 %v6102
    %v7422 = vpop.f32.mrf.mxu0
    %v7423 = vadd.f32 %v7374, %v7422
    %v7424 = vpop.f32.mrf.mxu0
    %v7425 = vadd.f32 %v7376, %v7424
    %7426 = vmatmul.bf16.gmra.mxu0 %v6110
    %v7427 = vpop.f32.mrf.mxu0
    %v7428 = vadd.f32 %v7379, %v7427
    %v7429 = vpop.f32.mrf.mxu0
    %v7430 = vadd.f32 %v7381, %v7429
    %7431 = vmatmul.bf16.gmra.mxu0 %v6118
    %v7432 = vpop.f32.mrf.mxu0
    %v7433 = vadd.f32 %v7384, %v7432
    %v7434 = vpop.f32.mrf.mxu0
    %v7435 = vadd.f32 %v7386, %v7434
    %7436 = vdwg.mxu0
    %7437 = vmatpush.bf16.msra.mxu0 %v6705
    %7438 = vmatpush.bf16.msra.mxu0 %v6703
    %7439 = vmatpush.bf16.msra.mxu0 %v6701
    %7440 = vmatpush.bf16.msra.mxu0 %v6699
    %7441 = vmatpush.bf16.msra.mxu0 %v6697
    %7442 = vmatpush.bf16.msra.mxu0 %v6695
    %7443 = vmatpush.bf16.msra.mxu0 %v6693
    %7444 = vmatpush.bf16.msra.mxu0 %v6691
    %7445 = vmatmul.bf16.gmra.mxu0 %v6063
    %v7446 = vpop.f32.mrf.mxu0
    %v7447 = vadd.f32 %v7398, %v7446
    %v7448 = vpop.f32.mrf.mxu0
    %v7449 = vadd.f32 %v7400, %v7448
    %7450 = vmatmul.bf16.gmra.mxu0 %v6071
    %v7451 = vpop.f32.mrf.mxu0
    %v7452 = vadd.f32 %v7403, %v7451
    %v7453 = vpop.f32.mrf.mxu0
    %v7454 = vadd.f32 %v7405, %v7453
    %7455 = vmatmul.bf16.gmra.mxu0 %v6079
    %v7456 = vpop.f32.mrf.mxu0
    %v7457 = vadd.f32 %v7408, %v7456
    %v7458 = vpop.f32.mrf.mxu0
    %v7459 = vadd.f32 %v7410, %v7458
    %7460 = vmatmul.bf16.gmra.mxu0 %v6087
    %v7461 = vpop.f32.mrf.mxu0
    %v7462 = vadd.f32 %v7413, %v7461
    %v7463 = vpop.f32.mrf.mxu0
    %v7464 = vadd.f32 %v7415, %v7463
    %7465 = vmatmul.bf16.gmra.mxu0 %v6095
    %v7466 = vpop.f32.mrf.mxu0
    %v7467 = vadd.f32 %v7418, %v7466
    %v7468 = vpop.f32.mrf.mxu0
    %v7469 = vadd.f32 %v7420, %v7468
    %7470 = vmatmul.bf16.gmra.mxu0 %v6103
    %v7471 = vpop.f32.mrf.mxu0
    %v7472 = vadd.f32 %v7423, %v7471
    %v7473 = vpop.f32.mrf.mxu0
    %v7474 = vadd.f32 %v7425, %v7473
    %7475 = vmatmul.bf16.gmra.mxu0 %v6111
    %v7476 = vpop.f32.mrf.mxu0
    %v7477 = vadd.f32 %v7428, %v7476
    %v7478 = vpop.f32.mrf.mxu0
    %v7479 = vadd.f32 %v7430, %v7478
    %7480 = vmatmul.bf16.gmra.mxu0 %v6119
    %v7481 = vpop.f32.mrf.mxu0
    %v7482 = vadd.f32 %v7433, %v7481
    %v7483 = vpop.f32.mrf.mxu0
    %v7484 = vadd.f32 %v7435, %v7483
    %7485 = vdwg.mxu0
    %7486 = vmatpush.bf16.msra.mxu0 %v6721
    %7487 = vmatpush.bf16.msra.mxu0 %v6719
    %7488 = vmatpush.bf16.msra.mxu0 %v6717
    %7489 = vmatpush.bf16.msra.mxu0 %v6715
    %7490 = vmatpush.bf16.msra.mxu0 %v6713
    %7491 = vmatpush.bf16.msra.mxu0 %v6711
    %7492 = vmatpush.bf16.msra.mxu0 %v6709
    %7493 = vmatpush.bf16.msra.mxu0 %v6707
    %7494 = vmatmul.bf16.gmra.mxu0 %v6064
    %v7495 = vpop.f32.mrf.mxu0
    %v7496 = vadd.f32 %v7447, %v7495
    %v7497 = vpop.f32.mrf.mxu0
    %v7498 = vadd.f32 %v7449, %v7497
    %7499 = vmatmul.bf16.gmra.mxu0 %v6072
    %v7500 = vpop.f32.mrf.mxu0
    %v7501 = vadd.f32 %v7452, %v7500
    %v7502 = vpop.f32.mrf.mxu0
    %v7503 = vadd.f32 %v7454, %v7502
    %7504 = vmatmul.bf16.gmra.mxu0 %v6080
    %v7505 = vpop.f32.mrf.mxu0
    %v7506 = vadd.f32 %v7457, %v7505
    %v7507 = vpop.f32.mrf.mxu0
    %v7508 = vadd.f32 %v7459, %v7507
    %7509 = vmatmul.bf16.gmra.mxu0 %v6088
    %v7510 = vpop.f32.mrf.mxu0
    %v7511 = vadd.f32 %v7462, %v7510
    %v7512 = vpop.f32.mrf.mxu0
    %v7513 = vadd.f32 %v7464, %v7512
    %7514 = vmatmul.bf16.gmra.mxu0 %v6096
    %v7515 = vpop.f32.mrf.mxu0
    %v7516 = vadd.f32 %v7467, %v7515
    %v7517 = vpop.f32.mrf.mxu0
    %v7518 = vadd.f32 %v7469, %v7517
    %7519 = vmatmul.bf16.gmra.mxu0 %v6104
    %v7520 = vpop.f32.mrf.mxu0
    %v7521 = vadd.f32 %v7472, %v7520
    %v7522 = vpop.f32.mrf.mxu0
    %v7523 = vadd.f32 %v7474, %v7522
    %7524 = vmatmul.bf16.gmra.mxu0 %v6112
    %v7525 = vpop.f32.mrf.mxu0
    %v7526 = vadd.f32 %v7477, %v7525
    %v7527 = vpop.f32.mrf.mxu0
    %v7528 = vadd.f32 %v7479, %v7527
    %7529 = vmatmul.bf16.gmra.mxu0 %v6120
    %v7530 = vpop.f32.mrf.mxu0
    %v7531 = vadd.f32 %v7482, %v7530
    %v7532 = vpop.f32.mrf.mxu0
    %v7533 = vadd.f32 %v7484, %v7532
    %7534 = vdwg.mxu0
    %7535 = vmatpush.bf16.msra.mxu0 %v6737
    %7536 = vmatpush.bf16.msra.mxu0 %v6735
    %7537 = vmatpush.bf16.msra.mxu0 %v6733
    %7538 = vmatpush.bf16.msra.mxu0 %v6731
    %7539 = vmatpush.bf16.msra.mxu0 %v6729
    %7540 = vmatpush.bf16.msra.mxu0 %v6727
    %7541 = vmatpush.bf16.msra.mxu0 %v6725
    %7542 = vmatpush.bf16.msra.mxu0 %v6723
    %7543 = vmatmul.bf16.gmra.mxu0 %v6065
    %v7544 = vpop.f32.mrf.mxu0
    %v7545 = vadd.f32 %v7496, %v7544
    %v7546 = vpop.f32.mrf.mxu0
    %v7547 = vadd.f32 %v7498, %v7546
    %7548 = vmatmul.bf16.gmra.mxu0 %v6073
    %v7549 = vpop.f32.mrf.mxu0
    %v7550 = vadd.f32 %v7501, %v7549
    %v7551 = vpop.f32.mrf.mxu0
    %v7552 = vadd.f32 %v7503, %v7551
    %7553 = vmatmul.bf16.gmra.mxu0 %v6081
    %v7554 = vpop.f32.mrf.mxu0
    %v7555 = vadd.f32 %v7506, %v7554
    %v7556 = vpop.f32.mrf.mxu0
    %v7557 = vadd.f32 %v7508, %v7556
    %7558 = vmatmul.bf16.gmra.mxu0 %v6089
    %v7559 = vpop.f32.mrf.mxu0
    %v7560 = vadd.f32 %v7511, %v7559
    %v7561 = vpop.f32.mrf.mxu0
    %v7562 = vadd.f32 %v7513, %v7561
    %7563 = vmatmul.bf16.gmra.mxu0 %v6097
    %v7564 = vpop.f32.mrf.mxu0
    %v7565 = vadd.f32 %v7516, %v7564
    %v7566 = vpop.f32.mrf.mxu0
    %v7567 = vadd.f32 %v7518, %v7566
    %7568 = vmatmul.bf16.gmra.mxu0 %v6105
    %v7569 = vpop.f32.mrf.mxu0
    %v7570 = vadd.f32 %v7521, %v7569
    %v7571 = vpop.f32.mrf.mxu0
    %v7572 = vadd.f32 %v7523, %v7571
    %7573 = vmatmul.bf16.gmra.mxu0 %v6113
    %v7574 = vpop.f32.mrf.mxu0
    %v7575 = vadd.f32 %v7526, %v7574
    %v7576 = vpop.f32.mrf.mxu0
    %v7577 = vadd.f32 %v7528, %v7576
    %7578 = vmatmul.bf16.gmra.mxu0 %v6121
    %v7579 = vpop.f32.mrf.mxu0
    %v7580 = vadd.f32 %v7531, %v7579
    %v7581 = vpop.f32.mrf.mxu0
    %v7582 = vadd.f32 %v7533, %v7581
    %7583 = vdwg.mxu0
    %7584 = vmatpush.bf16.msra.mxu0 %v6753
    %7585 = vmatpush.bf16.msra.mxu0 %v6751
    %7586 = vmatpush.bf16.msra.mxu0 %v6749
    %7587 = vmatpush.bf16.msra.mxu0 %v6747
    %7588 = vmatpush.bf16.msra.mxu0 %v6745
    %7589 = vmatpush.bf16.msra.mxu0 %v6743
    %7590 = vmatpush.bf16.msra.mxu0 %v6741
    %7591 = vmatpush.bf16.msra.mxu0 %v6739
    %7592 = vmatmul.bf16.gmra.mxu0 %v6066
    %v7593 = vpop.f32.mrf.mxu0
    %v7594 = vadd.f32 %v7545, %v7593
    %v7595 = vpop.f32.mrf.mxu0
    %v7596 = vadd.f32 %v7547, %v7595
    %7597 = vmatmul.bf16.gmra.mxu0 %v6074
    %v7598 = vpop.f32.mrf.mxu0
    %v7599 = vadd.f32 %v7550, %v7598
    %v7600 = vpop.f32.mrf.mxu0
    %v7601 = vadd.f32 %v7552, %v7600
    %7602 = vmatmul.bf16.gmra.mxu0 %v6082
    %v7603 = vpop.f32.mrf.mxu0
    %v7604 = vadd.f32 %v7555, %v7603
    %v7605 = vpop.f32.mrf.mxu0
    %v7606 = vadd.f32 %v7557, %v7605
    %7607 = vmatmul.bf16.gmra.mxu0 %v6090
    %v7608 = vpop.f32.mrf.mxu0
    %v7609 = vadd.f32 %v7560, %v7608
    %v7610 = vpop.f32.mrf.mxu0
    %v7611 = vadd.f32 %v7562, %v7610
    %7612 = vmatmul.bf16.gmra.mxu0 %v6098
    %v7613 = vpop.f32.mrf.mxu0
    %v7614 = vadd.f32 %v7565, %v7613
    %v7615 = vpop.f32.mrf.mxu0
    %v7616 = vadd.f32 %v7567, %v7615
    %7617 = vmatmul.bf16.gmra.mxu0 %v6106
    %v7618 = vpop.f32.mrf.mxu0
    %v7619 = vadd.f32 %v7570, %v7618
    %v7620 = vpop.f32.mrf.mxu0
    %v7621 = vadd.f32 %v7572, %v7620
    %7622 = vmatmul.bf16.gmra.mxu0 %v6114
    %v7623 = vpop.f32.mrf.mxu0
    %v7624 = vadd.f32 %v7575, %v7623
    %v7625 = vpop.f32.mrf.mxu0
    %v7626 = vadd.f32 %v7577, %v7625
    %7627 = vmatmul.bf16.gmra.mxu0 %v6122
    %v7628 = vpop.f32.mrf.mxu0
    %v7629 = vadd.f32 %v7580, %v7628
    %v7630 = vpop.f32.mrf.mxu0
    %v7631 = vadd.f32 %v7582, %v7630
    %7632 = vdwg.mxu0
    %7633 = vmatpush.bf16.msra.mxu0 %v6769
    %7634 = vmatpush.bf16.msra.mxu0 %v6767
    %7635 = vmatpush.bf16.msra.mxu0 %v6765
    %7636 = vmatpush.bf16.msra.mxu0 %v6763
    %7637 = vmatpush.bf16.msra.mxu0 %v6761
    %7638 = vmatpush.bf16.msra.mxu0 %v6759
    %7639 = vmatpush.bf16.msra.mxu0 %v6757
    %7640 = vmatpush.bf16.msra.mxu0 %v6755
    %7641 = vmatmul.bf16.gmra.mxu0 %v6067
    %v7642 = vpop.f32.mrf.mxu0
    %v7643 = vadd.f32 %v7594, %v7642
    %v7644 = vpop.f32.mrf.mxu0
    %v7645 = vadd.f32 %v7596, %v7644
    %7646 = vmatmul.bf16.gmra.mxu0 %v6075
    %v7647 = vpop.f32.mrf.mxu0
    %v7648 = vadd.f32 %v7599, %v7647
    %v7649 = vpop.f32.mrf.mxu0
    %v7650 = vadd.f32 %v7601, %v7649
    %7651 = vmatmul.bf16.gmra.mxu0 %v6083
    %v7652 = vpop.f32.mrf.mxu0
    %v7653 = vadd.f32 %v7604, %v7652
    %v7654 = vpop.f32.mrf.mxu0
    %v7655 = vadd.f32 %v7606, %v7654
    %7656 = vmatmul.bf16.gmra.mxu0 %v6091
    %v7657 = vpop.f32.mrf.mxu0
    %v7658 = vadd.f32 %v7609, %v7657
    %v7659 = vpop.f32.mrf.mxu0
    %v7660 = vadd.f32 %v7611, %v7659
    %7661 = vmatmul.bf16.gmra.mxu0 %v6099
    %v7662 = vpop.f32.mrf.mxu0
    %v7663 = vadd.f32 %v7614, %v7662
    %v7664 = vpop.f32.mrf.mxu0
    %v7665 = vadd.f32 %v7616, %v7664
    %7666 = vmatmul.bf16.gmra.mxu0 %v6107
    %v7667 = vpop.f32.mrf.mxu0
    %v7668 = vadd.f32 %v7619, %v7667
    %v7669 = vpop.f32.mrf.mxu0
    %v7670 = vadd.f32 %v7621, %v7669
    %7671 = vmatmul.bf16.gmra.mxu0 %v6115
    %v7672 = vpop.f32.mrf.mxu0
    %v7673 = vadd.f32 %v7624, %v7672
    %v7674 = vpop.f32.mrf.mxu0
    %v7675 = vadd.f32 %v7626, %v7674
    %7676 = vmatmul.bf16.gmra.mxu0 %v6123
    %v7677 = vpop.f32.mrf.mxu0
    %v7678 = vadd.f32 %v7629, %v7677
    %v7679 = vpop.f32.mrf.mxu0
    %v7680 = vadd.f32 %v7631, %v7679
    %7681 = vdwg.mxu0
    %v7682 = vmax.f32 %v7251, 0.0
    %v7683 = vmax.f32 %v7643, 0.0
    %v7684 = vmax.f32 %v7253, 0.0
    %v7685 = vmax.f32 %v7645, 0.0
    %v7686 = vmax.f32 %v7256, 0.0
    %v7687 = vmax.f32 %v7648, 0.0
    %v7688 = vmax.f32 %v7258, 0.0
    %v7689 = vmax.f32 %v7650, 0.0
    %v7690 = vmax.f32 %v7261, 0.0
    %v7691 = vmax.f32 %v7653, 0.0
    %v7692 = vmax.f32 %v7263, 0.0
    %v7693 = vmax.f32 %v7655, 0.0
    %v7694 = vmax.f32 %v7266, 0.0
    %v7695 = vmax.f32 %v7658, 0.0
    %v7696 = vmax.f32 %v7268, 0.0
    %v7697 = vmax.f32 %v7660, 0.0
    %v7698 = vmax.f32 %v7271, 0.0
    %v7699 = vmax.f32 %v7663, 0.0
    %v7700 = vmax.f32 %v7273, 0.0
    %v7701 = vmax.f32 %v7665, 0.0
    %v7702 = vmax.f32 %v7276, 0.0
    %v7703 = vmax.f32 %v7668, 0.0
    %v7704 = vmax.f32 %v7278, 0.0
    %v7705 = vmax.f32 %v7670, 0.0
    %v7706 = vmax.f32 %v7281, 0.0
    %v7707 = vmax.f32 %v7673, 0.0
    %v7708 = vmax.f32 %v7283, 0.0
    %v7709 = vmax.f32 %v7675, 0.0
    %v7710 = vmax.f32 %v7286, 0.0
    %v7711 = vmax.f32 %v7678, 0.0
    %v7712 = vmax.f32 %v7288, 0.0
    %v7713 = vmax.f32 %v7680, 0.0
    %v7714 = vpack.c.bf16 %v7684, %v7682
    %v7715 = vpack.c.bf16 %v7685, %v7683
    %v7716 = vpack.c.bf16 %v7688, %v7686
    %v7717 = vpack.c.bf16 %v7689, %v7687
    %v7718 = vpack.c.bf16 %v7692, %v7690
    %v7719 = vpack.c.bf16 %v7693, %v7691
    %v7720 = vpack.c.bf16 %v7696, %v7694
    %v7721 = vpack.c.bf16 %v7697, %v7695
    %v7722 = vpack.c.bf16 %v7700, %v7698
    %v7723 = vpack.c.bf16 %v7701, %v7699
    %v7724 = vpack.c.bf16 %v7704, %v7702
    %v7725 = vpack.c.bf16 %v7705, %v7703
    %v7726 = vpack.c.bf16 %v7708, %v7706
    %v7727 = vpack.c.bf16 %v7709, %v7707
    %v7728 = vpack.c.bf16 %v7712, %v7710
    %v7729 = vpack.c.bf16 %v7713, %v7711
    %v7730 = vld [vmem:[#allocation11] sm:$0xf]
    %v7731 = vld [vmem:[#allocation11 + $0x4] sm:$0xf]
    %v7732 = vld [vmem:[#allocation11 + $0x8] sm:$0xf]
    %v7733 = vld [vmem:[#allocation11 + $0xc] sm:$0xf]
    %v7734 = vld [vmem:[#allocation11 + $0x10] sm:$0xf]
    %v7735 = vld [vmem:[#allocation11 + $0x14] sm:$0xf]
    %v7736 = vld [vmem:[#allocation11 + $0x18] sm:$0xf]
    %v7737 = vld [vmem:[#allocation11 + $0x1c] sm:$0xf]
    %v7738 = vld [vmem:[#allocation11 + $0x20] sm:$0xf]
    %v7739 = vld [vmem:[#allocation11 + $0x24] sm:$0xf]
    %v7740 = vld [vmem:[#allocation11 + $0x28] sm:$0xf]
    %v7741 = vld [vmem:[#allocation11 + $0x2c] sm:$0xf]
    %v7742 = vld [vmem:[#allocation11 + $0x30] sm:$0xf]
    %v7743 = vld [vmem:[#allocation11 + $0x34] sm:$0xf]
    %v7744 = vld [vmem:[#allocation11 + $0x38] sm:$0xf]
    %v7745 = vld [vmem:[#allocation11 + $0x3c] sm:$0xf]
    %v7746 = vld [vmem:[#allocation11 + $0x40] sm:$0xf]
    %v7747 = vld [vmem:[#allocation11 + $0x44] sm:$0xf]
    %v7748 = vld [vmem:[#allocation11 + $0x48] sm:$0xf]
    %v7749 = vld [vmem:[#allocation11 + $0x4c] sm:$0xf]
    %v7750 = vld [vmem:[#allocation11 + $0x50] sm:$0xf]
    %v7751 = vld [vmem:[#allocation11 + $0x54] sm:$0xf]
    %v7752 = vld [vmem:[#allocation11 + $0x58] sm:$0xf]
    %v7753 = vld [vmem:[#allocation11 + $0x5c] sm:$0xf]
    %v7754 = vld [vmem:[#allocation11 + $0x60] sm:$0xf]
    %v7755 = vld [vmem:[#allocation11 + $0x64] sm:$0xf]
    %v7756 = vld [vmem:[#allocation11 + $0x68] sm:$0xf]
    %v7757 = vld [vmem:[#allocation11 + $0x6c] sm:$0xf]
    %v7758 = vld [vmem:[#allocation11 + $0x70] sm:$0xf]
    %v7759 = vld [vmem:[#allocation11 + $0x74] sm:$0xf]
    %v7760 = vld [vmem:[#allocation11 + $0x78] sm:$0xf]
    %v7761 = vld [vmem:[#allocation11 + $0x7c] sm:$0xf]
    %v7762 = vld [vmem:[#allocation13] sm:$0x1]
    %v7764 = vperm.slane %v7762, 0
    %v7798 = vunpack.c.l.b16 %v7730
    %v7799 = vunpack.c.l.b16 %v7731
    %v7800 = vunpack.c.l.b16 %v7732
    %v7801 = vunpack.c.l.b16 %v7733
    %v7802 = vunpack.c.l.b16 %v7734
    %v7803 = vunpack.c.l.b16 %v7735
    %v7804 = vunpack.c.l.b16 %v7736
    %v7805 = vunpack.c.l.b16 %v7737
    %v7806 = vunpack.c.l.b16 %v7738
    %v7807 = vunpack.c.l.b16 %v7739
    %v7808 = vunpack.c.l.b16 %v7740
    %v7809 = vunpack.c.l.b16 %v7741
    %v7810 = vunpack.c.l.b16 %v7742
    %v7811 = vunpack.c.l.b16 %v7743
    %v7812 = vunpack.c.l.b16 %v7744
    %v7813 = vunpack.c.l.b16 %v7745
    %v7814 = vunpack.c.l.b16 %v7746
    %v7815 = vunpack.c.l.b16 %v7747
    %v7816 = vunpack.c.l.b16 %v7748
    %v7817 = vunpack.c.l.b16 %v7749
    %v7818 = vunpack.c.l.b16 %v7750
    %v7819 = vunpack.c.l.b16 %v7751
    %v7820 = vunpack.c.l.b16 %v7752
    %v7821 = vunpack.c.l.b16 %v7753
    %v7822 = vunpack.c.l.b16 %v7754
    %v7823 = vunpack.c.l.b16 %v7755
    %v7824 = vunpack.c.l.b16 %v7756
    %v7825 = vunpack.c.l.b16 %v7757
    %v7826 = vunpack.c.l.b16 %v7758
    %v7827 = vunpack.c.l.b16 %v7759
    %v7828 = vunpack.c.l.b16 %v7760
    %v7829 = vunpack.c.l.b16 %v7761
    %v7830 = vpack.c.b16 %v7799, %v7798
    %v7831 = vpack.c.b16 %v7801, %v7800
    %v7832 = vpack.c.b16 %v7803, %v7802
    %v7833 = vpack.c.b16 %v7805, %v7804
    %v7834 = vpack.c.b16 %v7807, %v7806
    %v7835 = vpack.c.b16 %v7809, %v7808
    %v7836 = vpack.c.b16 %v7811, %v7810
    %v7837 = vpack.c.b16 %v7813, %v7812
    %v7838 = vpack.c.b16 %v7815, %v7814
    %v7839 = vpack.c.b16 %v7817, %v7816
    %v7840 = vpack.c.b16 %v7819, %v7818
    %v7841 = vpack.c.b16 %v7821, %v7820
    %v7842 = vpack.c.b16 %v7823, %v7822
    %v7843 = vpack.c.b16 %v7825, %v7824
    %v7844 = vpack.c.b16 %v7827, %v7826
    %v7845 = vpack.c.b16 %v7829, %v7828
    %7862 = vmatpush.bf16.msra.mxu0 %v7837
    %7863 = vmatpush.bf16.msra.mxu0 %v7836
    %7864 = vmatpush.bf16.msra.mxu0 %v7835
    %7865 = vmatpush.bf16.msra.mxu0 %v7834
    %7866 = vmatpush.bf16.msra.mxu0 %v7833
    %7867 = vmatpush.bf16.msra.mxu0 %v7832
    %7868 = vmatpush.bf16.msra.mxu0 %v7831
    %7869 = vmatpush.bf16.msra.mxu0 %v7830
    %7870 = vmatmul.bf16.gmra.mxu0 %v7714
    %v7871 = vpop.f32.mrf.mxu0
    %v7872 = vadd.f32 %v7764, %v7871
    %v7873 = vpop.f32.mrf.mxu0
    %v7874 = vadd.f32 %v7764, %v7873
    %7875 = vmatmul.bf16.gmra.mxu0 %v7716
    %v7876 = vpop.f32.mrf.mxu0
    %v7877 = vadd.f32 %v7764, %v7876
    %v7878 = vpop.f32.mrf.mxu0
    %v7879 = vadd.f32 %v7764, %v7878
    %7880 = vmatmul.bf16.gmra.mxu0 %v7718
    %v7881 = vpop.f32.mrf.mxu0
    %v7882 = vadd.f32 %v7764, %v7881
    %v7883 = vpop.f32.mrf.mxu0
    %v7884 = vadd.f32 %v7764, %v7883
    %7885 = vmatmul.bf16.gmra.mxu0 %v7720
    %v7886 = vpop.f32.mrf.mxu0
    %v7887 = vadd.f32 %v7764, %v7886
    %v7888 = vpop.f32.mrf.mxu0
    %v7889 = vadd.f32 %v7764, %v7888
    %7890 = vmatmul.bf16.gmra.mxu0 %v7722
    %v7891 = vpop.f32.mrf.mxu0
    %v7892 = vadd.f32 %v7764, %v7891
    %v7893 = vpop.f32.mrf.mxu0
    %v7894 = vadd.f32 %v7764, %v7893
    %7895 = vmatmul.bf16.gmra.mxu0 %v7724
    %v7896 = vpop.f32.mrf.mxu0
    %v7897 = vadd.f32 %v7764, %v7896
    %v7898 = vpop.f32.mrf.mxu0
    %v7899 = vadd.f32 %v7764, %v7898
    %7900 = vmatmul.bf16.gmra.mxu0 %v7726
    %v7901 = vpop.f32.mrf.mxu0
    %v7902 = vadd.f32 %v7764, %v7901
    %v7903 = vpop.f32.mrf.mxu0
    %v7904 = vadd.f32 %v7764, %v7903
    %7905 = vmatmul.bf16.gmra.mxu0 %v7728
    %v7906 = vpop.f32.mrf.mxu0
    %v7907 = vadd.f32 %v7764, %v7906
    %v7908 = vpop.f32.mrf.mxu0
    %v7909 = vadd.f32 %v7764, %v7908
    %7910 = vdwg.mxu0
    %7911 = vmatpush.bf16.msra.mxu0 %v7845
    %7912 = vmatpush.bf16.msra.mxu0 %v7844
    %7913 = vmatpush.bf16.msra.mxu0 %v7843
    %7914 = vmatpush.bf16.msra.mxu0 %v7842
    %7915 = vmatpush.bf16.msra.mxu0 %v7841
    %7916 = vmatpush.bf16.msra.mxu0 %v7840
    %7917 = vmatpush.bf16.msra.mxu0 %v7839
    %7918 = vmatpush.bf16.msra.mxu0 %v7838
    %7919 = vmatmul.bf16.gmra.mxu0 %v7715
    %v7920 = vpop.f32.mrf.mxu0
    %v7921 = vadd.f32 %v7872, %v7920
    %v7922 = vpop.f32.mrf.mxu0
    %v7923 = vadd.f32 %v7874, %v7922
    %7924 = vmatmul.bf16.gmra.mxu0 %v7717
    %v7925 = vpop.f32.mrf.mxu0
    %v7926 = vadd.f32 %v7877, %v7925
    %v7927 = vpop.f32.mrf.mxu0
    %v7928 = vadd.f32 %v7879, %v7927
    %7929 = vmatmul.bf16.gmra.mxu0 %v7719
    %v7930 = vpop.f32.mrf.mxu0
    %v7931 = vadd.f32 %v7882, %v7930
    %v7932 = vpop.f32.mrf.mxu0
    %v7933 = vadd.f32 %v7884, %v7932
    %7934 = vmatmul.bf16.gmra.mxu0 %v7721
    %v7935 = vpop.f32.mrf.mxu0
    %v7936 = vadd.f32 %v7887, %v7935
    %v7937 = vpop.f32.mrf.mxu0
    %v7938 = vadd.f32 %v7889, %v7937
    %7939 = vmatmul.bf16.gmra.mxu0 %v7723
    %v7940 = vpop.f32.mrf.mxu0
    %v7941 = vadd.f32 %v7892, %v7940
    %v7942 = vpop.f32.mrf.mxu0
    %v7943 = vadd.f32 %v7894, %v7942
    %7944 = vmatmul.bf16.gmra.mxu0 %v7725
    %v7945 = vpop.f32.mrf.mxu0
    %v7946 = vadd.f32 %v7897, %v7945
    %v7947 = vpop.f32.mrf.mxu0
    %v7948 = vadd.f32 %v7899, %v7947
    %7949 = vmatmul.bf16.gmra.mxu0 %v7727
    %v7950 = vpop.f32.mrf.mxu0
    %v7951 = vadd.f32 %v7902, %v7950
    %v7952 = vpop.f32.mrf.mxu0
    %v7953 = vadd.f32 %v7904, %v7952
    %7954 = vmatmul.bf16.gmra.mxu0 %v7729
    %v7955 = vpop.f32.mrf.mxu0
    %v7956 = vadd.f32 %v7907, %v7955
    %v7957 = vpop.f32.mrf.mxu0
    %v7958 = vadd.f32 %v7909, %v7957
    %7959 = vdwg.mxu0
    %v7960 = vmax.f32 %v7921, 0.0
    %v7961 = vmax.f32 %v7923, 0.0
    %v7962 = vmax.f32 %v7926, 0.0
    %v7963 = vmax.f32 %v7928, 0.0
    %v7964 = vmax.f32 %v7931, 0.0
    %v7965 = vmax.f32 %v7933, 0.0
    %v7966 = vmax.f32 %v7936, 0.0
    %v7967 = vmax.f32 %v7938, 0.0
    %v7968 = vmax.f32 %v7941, 0.0
    %v7969 = vmax.f32 %v7943, 0.0
    %v7970 = vmax.f32 %v7946, 0.0
    %v7971 = vmax.f32 %v7948, 0.0
    %v7972 = vmax.f32 %v7951, 0.0
    %v7973 = vmax.f32 %v7953, 0.0
    %v7974 = vmax.f32 %v7956, 0.0
    %v7975 = vmax.f32 %v7958, 0.0
    %7976 = vst [vmem:[#allocation14] sm:$0xff] %v7960
    %7977 = vst [vmem:[#allocation14 + $0x8] sm:$0xff] %v7961
    %7978 = vst [vmem:[#allocation14 + $0x10] sm:$0xff] %v7962
    %7979 = vst [vmem:[#allocation14 + $0x18] sm:$0xff] %v7963
    %7980 = vst [vmem:[#allocation14 + $0x20] sm:$0xff] %v7964
    %7981 = vst [vmem:[#allocation14 + $0x28] sm:$0xff] %v7965
    %7982 = vst [vmem:[#allocation14 + $0x30] sm:$0xff] %v7966
    %7983 = vst [vmem:[#allocation14 + $0x38] sm:$0xff] %v7967
    %7984 = vst [vmem:[#allocation14 + $0x40] sm:$0xff] %v7968
    %7985 = vst [vmem:[#allocation14 + $0x48] sm:$0xff] %v7969
    %7986 = vst [vmem:[#allocation14 + $0x50] sm:$0xff] %v7970
    %7987 = vst [vmem:[#allocation14 + $0x58] sm:$0xff] %v7971
    %7988 = vst [vmem:[#allocation14 + $0x60] sm:$0xff] %v7972
    %7989 = vst [vmem:[#allocation14 + $0x68] sm:$0xff] %v7973
    %7990 = vst [vmem:[#allocation14 + $0x70] sm:$0xff] %v7974
    %7991 = vst [vmem:[#allocation14 + $0x78] sm:$0xff] %v7975
    // Predicated region
    $region58: #{tpu_custom_call.1} parent=1 // pred_check
      _
    $region59: #{tpu_custom_call.1} parent=1 // pred_check_branch
      %7993 = sbr.rel (0) target = $region61
    $region60: #{tpu_custom_call.1} parent=1 // pred_region
      %7995 = vsyncadd [#allocation4], 0
      %s7996 = sshll.u32 [#allocation14], 4
      %s7997 = int_to_ptr.vmem [resolvable:$true] %s7996
      %s7998 = sshll.u32 %s7, 4
      %s7999 = int_to_ptr.hbm [resolvable:$true] %s7998
      %8004 = dma.vmem_to_hbm [thread:$0]  %s7997, 2048, %s7999, [#allocation4], 128, 128, 8
    $region61: #{tpu_custom_call.1} parent=1 // pred_fallthru
      _
    // Predicated region
    $region62: #{tpu_custom_call.1} parent=1 // pred_check
      _
    $region63: #{tpu_custom_call.1} parent=1 // pred_check_branch
      %8006 = sbr.rel (0) target = $region65
    $region64: #{tpu_custom_call.1} parent=1 // pred_region
      %8008 = dma.done [#allocation4], 2048
    $region65: #{tpu_custom_call.1} parent=1 // pred_fallthru
      _
    %8009 = vsyncpa [#allocation3], 1
    %8010 = vsyncpa [#allocation6], 1
    %8011 = vsyncpa [#allocation9], 1
    %8012 = vsyncpa [#allocation12], 1
    %8013 = vsyncpa [#allocation4], 1

</llo_original>
